<compile_context>
chip_gen: v5e
topology: v5e:2x2
jax: 0.10.0
libtpu: 0.0.40
codegen_flags: <defaults>
</compile_context>

<pallas_src>
import functools

import jax
import jax.numpy as jnp
from jax.experimental import pallas as pl
from jax.experimental.pallas import tpu as pltpu


_BN_EPS = 1e-5
_LEAKY = 0.2

_ACTS = {
    "none": lambda x: x,
    "leaky": lambda x: jnp.where(x > 0, x, _LEAKY * x),   # LeakyReLU(0.2)
    "relu": lambda x: jnp.maximum(x, 0.0),
    "sigmoid": jax.nn.sigmoid,
}


def _vmem():
    return pl.BlockSpec(memory_space=pltpu.MemorySpace.VMEM)


# ----------------------------- Pallas kernels -------------------------------

def _conv_bn_act_kernel(p_ref, w_ref, g_ref, b_ref, o_ref, *, act):
    """act(BatchNorm(patches @ w)) with training-mode (batch) statistics.

    The conv bias is intentionally omitted: these layers are followed by
    training-mode BatchNorm whose batch-mean subtraction cancels it exactly.
    """
    y = jnp.dot(p_ref[...], w_ref[...], preferred_element_type=jnp.float32)
    mean = jnp.mean(y, axis=0, keepdims=True)
    var = jnp.mean(jnp.square(y - mean), axis=0, keepdims=True)
    y = (y - mean) * jax.lax.rsqrt(var + _BN_EPS) * g_ref[...] + b_ref[...]
    o_ref[...] = _ACTS[act](y)


def _conv_bias_act_kernel(p_ref, w_ref, b_ref, o_ref, *, act):
    y = jnp.dot(p_ref[...], w_ref[...], preferred_element_type=jnp.float32)
    o_ref[...] = _ACTS[act](y + b_ref[...])


def _bottleneck_kernel(p2_ref, w2_ref, g2_ref, be2_ref,
                       wfc12_ref, bfc12_ref, eps_ref,
                       wfc3_ref, bfc3_ref,
                       wd1_ref, g3_ref, be3_ref,
                       mlv_ref, d1_ref, *, batch, z_dim):
    """Fused: conv2 + BN2 + LeakyReLU -> fc1|fc2 (one matmul) ->
    reparametrize -> fc3 -> deconv1 (1x1 input => pure matmul) -> BN3 + ReLU.
    Everything stays VMEM-resident inside one pallas_call."""
    B = batch

    # --- conv2 (k4, s2) + BN2 + LeakyReLU.  Patch rows are ordered
    #     (spatial position p, batch b): each position is a contiguous block.
    y = jnp.dot(p2_ref[...], w2_ref[...], preferred_element_type=jnp.float32)
    mean = jnp.mean(y, axis=0, keepdims=True)
    var = jnp.mean(jnp.square(y - mean), axis=0, keepdims=True)
    a2 = (y - mean) * jax.lax.rsqrt(var + _BN_EPS) * g2_ref[...] + be2_ref[...]
    a2 = jnp.where(a2 > 0, a2, _LEAKY * a2)              # (n_pos*B, 128)

    # --- fc1 | fc2 fused as one matmul.  wfc12 rows were permuted at prep
    #     time to the position-major order of a2, so the torch Flatten
    #     ((C,H,W) ordering) never has to be materialized in memory.
    n_pos = p2_ref.shape[0] // B                          # = 4
    acc = None
    for p in range(n_pos):
        c = jnp.dot(a2[p * B:(p + 1) * B, :].astype(jnp.bfloat16),
                    wfc12_ref[p * 128:(p + 1) * 128, :],
                    preferred_element_type=jnp.float32)
        acc = c if acc is None else acc + c
    ml = acc + bfc12_ref[...]                             # (B,128) = [mu|logvar|0]
    mlv_ref[...] = ml                                     # lane-dense output

    mu = ml[:, :z_dim]
    logvar = ml[:, z_dim:2 * z_dim]
    z = mu + jnp.exp(0.5 * logvar) * eps_ref[...]         # reparametrize

    # --- fc3
    d = jnp.dot(z.astype(jnp.bfloat16), wfc3_ref[...],
                preferred_element_type=jnp.float32) + bfc3_ref[...]   # (B, 512)

    # --- deconv1 on a 1x1 spatial input is a pure matmul:
    #     out[b, i, j, cout] = d[b, :] @ W[:, cout, i, j]; columns of t are
    #     ordered ((i,j), cout).  Bias dropped (BN3 follows).
    t = jnp.dot(d.astype(jnp.bfloat16), wd1_ref[...],
                preferred_element_type=jnp.float32)       # (B, 16*128)

    # --- BN3 + ReLU: per-channel batch stats over (b, 16 spatial positions),
    #     computed from the 16 lane-aligned 128-wide column blocks.
    n_sp = wd1_ref.shape[1] // 128                        # = 16
    blocks = [t[:, 128 * p:128 * (p + 1)] for p in range(n_sp)]
    ssum = blocks[0]
    ssq = blocks[0] * blocks[0]
    for blk in blocks[1:]:
        ssum = ssum + blk
        ssq = ssq + blk * blk
    cnt = float(n_sp) * B
    mean3 = jnp.sum(ssum, axis=0, keepdims=True) / cnt
    ex2 = jnp.sum(ssq, axis=0, keepdims=True) / cnt
    var3 = ex2 - mean3 * mean3                            # biased batch var
    scale = jax.lax.rsqrt(var3 + _BN_EPS) * g3_ref[...]
    shift = be3_ref[...] - mean3 * scale
    for p in range(n_sp):
        d1_ref[:, 128 * p:128 * (p + 1)] = jnp.maximum(
            blocks[p] * scale + shift, 0.0)


# ------------------------- pallas_call wrappers ------------------------------

def _conv_bn_act(patches, w, gamma, beta, act):
    M, N = patches.shape[0], w.shape[1]
    return pl.pallas_call(
        functools.partial(_conv_bn_act_kernel, act=act),
        out_shape=jax.ShapeDtypeStruct((M, N), jnp.float32),
        in_specs=[_vmem()] * 4,
        out_specs=_vmem(),
    )(patches, w, gamma, beta)


def _conv_bias_act(patches, w, bias, act):
    M, N = patches.shape[0], w.shape[1]
    return pl.pallas_call(
        functools.partial(_conv_bias_act_kernel, act=act),
        out_shape=jax.ShapeDtypeStruct((M, N), jnp.float32),
        in_specs=[_vmem()] * 3,
        out_specs=_vmem(),
    )(patches, w, bias)


def _bottleneck(p2, pp, eps_noise, batch, z_dim):
    return pl.pallas_call(
        functools.partial(_bottleneck_kernel, batch=batch, z_dim=z_dim),
        out_shape=(jax.ShapeDtypeStruct((batch, 128), jnp.float32),
                   jax.ShapeDtypeStruct((batch, 2048), jnp.float32)),
        in_specs=[_vmem()] * 12,
        out_specs=(_vmem(), _vmem()),
    )(p2, pp["w2"], pp["bn2_g"], pp["bn2_b"],
      pp["wfc12"], pp["bfc12"], eps_noise,
      pp["wfc3"], pp["bfc3"],
      pp["wd1"], pp["bn3_g"], pp["bn3_b"])


# ------------------------------ conv glue ------------------------------------
# TODO(synk): im2col / dilation patch construction stays in plain JAX glue
# (the strided gathers have no clean whole-block Pallas expression here); the
# patch matrices are bf16 and small (<=1 MiB), so this is cheap at these sizes.

def _im2col(x, kh, kw, stride):
    """x: (B,H,W,C) NHWC -> (B, OH, OW, kh*kw*C); column order (kh, kw, C)."""
    B, H, W, C = x.shape
    OH = (H - kh) // stride + 1
    OW = (W - kw) // stride + 1
    cols = []
    for i in range(kh):
        for j in range(kw):
            cols.append(x[:, i:i + stride * OH:stride, j:j + stride * OW:stride, :])
    return jnp.concatenate(cols, axis=-1), (B, OH, OW)


def _dilate_and_pad(x, stride, pad):
    B, H, W, C = x.shape
    if stride > 1:
        y = jnp.zeros((B, (H - 1) * stride + 1, (W - 1) * stride + 1, C), x.dtype)
        y = y.at[:, ::stride, ::stride, :].set(x)
    else:
        y = x
    if pad > 0:
        y = jnp.pad(y, ((0, 0), (pad, pad), (pad, pad), (0, 0)))
    return y


# ------------------------------ parameters -----------------------------------

def init_params(key, nc=3, z_dim=32, h_dim=512):
    """Synthetic parameters with the torch module's shapes.  fc weights are
    stored transposed to (in, out).  The biases of BN-followed conv layers
    (c1,c2,d1,d2) exist for parity but are unused (training-mode BN cancels
    them)."""
    ks = jax.random.split(key, 16)
    n = lambda k, shape: 0.05 * jax.random.normal(k, shape, jnp.float32)
    return {
        "c1_w": n(ks[0], (64, nc, 4, 4)),   "c1_b": n(ks[1], (64,)),
        "bn1_g": jnp.ones((64,), jnp.float32), "bn1_b": jnp.zeros((64,), jnp.float32),
        "c2_w": n(ks[2], (128, 64, 4, 4)),  "c2_b": n(ks[3], (128,)),
        "bn2_g": jnp.ones((128,), jnp.float32), "bn2_b": jnp.zeros((128,), jnp.float32),
        "fc1_w": n(ks[4], (h_dim, z_dim)), "fc1_b": n(ks[5], (z_dim,)),
        "fc2_w": n(ks[6], (h_dim, z_dim)), "fc2_b": n(ks[7], (z_dim,)),
        "fc3_w": n(ks[8], (z_dim, h_dim)), "fc3_b": n(ks[9], (h_dim,)),
        "d1_w": n(ks[10], (h_dim, 128, 4, 4)), "d1_b": n(ks[11], (128,)),
        "bn3_g": jnp.ones((128,), jnp.float32), "bn3_b": jnp.zeros((128,), jnp.float32),
        "d2_w": n(ks[12], (128, 64, 4, 4)),    "d2_b": n(ks[13], (64,)),
        "bn4_g": jnp.ones((64,), jnp.float32), "bn4_b": jnp.zeros((64,), jnp.float32),
        "d3_w": n(ks[14], (64, nc, 4, 4)),     "d3_b": n(ks[15], (nc,)),
    }


def _pad_lanes(a, n_to):
    """Zero-pad the last dim up to n_to (lane-dense kernel operands/outputs)."""
    n = a.shape[-1]
    if n == n_to:
        return a
    return jnp.pad(a, [(0, 0)] * (a.ndim - 1) + [(0, n_to - n)])


def prepare_params(p, nc=3, z_dim=32, h_dim=512):
    """One-time packing: transposes, spatial flips, (K,N) reshapes, fc1|fc2
    concatenation, lane padding to 128, bf16 cast of MXU weights."""
    bf = jnp.bfloat16
    f32 = jnp.float32

    def row(v, n_to=None):            # (N,) -> (1,N) f32, optionally lane-padded
        v = v.astype(f32).reshape(1, -1)
        return _pad_lanes(v, n_to) if n_to else v

    # fc1|fc2: permute rows from torch-Flatten order (c*4 + p) to the kernel's
    # position-major order (p*128 + c); then concat along N and pad lanes.
    def perm_fc(w):                    # w: (h_dim, z_dim), rows indexed c*4+p
        return w.reshape(128, 4, z_dim).transpose(1, 0, 2).reshape(h_dim, z_dim)

    wfc12 = jnp.concatenate([perm_fc(p["fc1_w"]), perm_fc(p["fc2_w"])], axis=1)
    bfc12 = jnp.concatenate([p["fc1_b"], p["fc2_b"]])

    return {
        # encoder stage 1: conv1 weight -> (kh*kw*cin, 64) padded to 128 lanes
        "w1": _pad_lanes(jnp.transpose(p["c1_w"], (2, 3, 1, 0))
                         .reshape(16 * nc, 64), 128).astype(bf),
        "bn1_g": row(p["bn1_g"], 128), "bn1_b": row(p["bn1_b"], 128),
        # bottleneck kernel operands
        "w2": jnp.transpose(p["c2_w"], (2, 3, 1, 0)).reshape(1024, 128).astype(bf),
        "bn2_g": row(p["bn2_g"]), "bn2_b": row(p["bn2_b"]),
        "wfc12": _pad_lanes(wfc12, 128).astype(bf),
        "bfc12": row(bfc12, 128),
        "wfc3": p["fc3_w"].astype(bf), "bfc3": row(p["fc3_b"]),
        "wd1": jnp.transpose(p["d1_w"], (0, 2, 3, 1)).reshape(h_dim, 16 * 128).astype(bf),
        "bn3_g": row(p["bn3_g"]), "bn3_b": row(p["bn3_b"]),
        # decoder stage 2: deconv2 = flipped kernel -> (kh*kw*cin, 64) pad 128
        "wd2": _pad_lanes(jnp.transpose(p["d2_w"][:, :, ::-1, ::-1], (2, 3, 0, 1))
                          .reshape(2048, 64), 128).astype(bf),
        "bn4_g": row(p["bn4_g"], 128), "bn4_b": row(p["bn4_b"], 128),
        # decoder stage 3: deconv3 (+ real bias; sigmoid follows, no BN)
        "wd3": _pad_lanes(jnp.transpose(p["d3_w"][:, :, ::-1, ::-1], (2, 3, 0, 1))
                          .reshape(1024, nc), 128).astype(bf),
        "bd3": row(p["d3_b"], 128),
    }


# -------------------------------- forward ------------------------------------

@functools.partial(jax.jit, static_argnames=("nc", "z_dim"))
def vae_forward(pp, x_nchw, noise_key, nc=3, z_dim=32):
    B = x_nchw.shape[0]
    x = jnp.transpose(x_nchw, (0, 2, 3, 1)).astype(jnp.float32)      # NCHW->NHWC

    # -- stage E1: conv1(k4,s2,no bias) + BN1 + LeakyReLU   (pallas_call #1)
    p1, (_, OH1, OW1) = _im2col(x, 4, 4, 2)                          # (B,7,7,48)
    p1 = p1.reshape(B * OH1 * OW1, 16 * nc).astype(jnp.bfloat16)
    a1 = _conv_bn_act(p1, pp["w1"], pp["bn1_g"], pp["bn1_b"], "leaky")
    a1 = a1[:, :64].reshape(B, OH1, OW1, 64)

    # -- stage E2 patches, position-major row order (oh, ow, b)
    p2, (_, OH2, OW2) = _im2col(a1, 4, 4, 2)                         # (B,2,2,1024)
    p2 = jnp.transpose(p2, (1, 2, 0, 3)).reshape(OH2 * OW2 * B, 1024)
    p2 = p2.astype(jnp.bfloat16)

    # -- fused bottleneck: conv2+BN2+LeakyReLU -> fc1|fc2 -> reparametrize ->
    #    fc3 -> deconv1 -> BN3+ReLU                         (pallas_call #2)
    # TODO(synk): PyTorch promotes the noise (and z) to float64; TPUs have no
    # fast f64 path, so everything stays float32 here.
    eps_noise = jax.random.normal(noise_key, (B, z_dim), dtype=jnp.float32)
    mlv, d1 = _bottleneck(p2, pp, eps_noise, B, z_dim)
    mu, logvar = mlv[:, :z_dim], mlv[:, z_dim:2 * z_dim]
    d1 = d1.reshape(B, 4, 4, 128)                       # NHWC, already BN3+ReLU

    # -- stage D2: deconv2(k4,s2,p1,no bias) + BN4 + ReLU   (pallas_call #3)
    q2, _ = _im2col(_dilate_and_pad(d1, 2, 2), 4, 4, 1)              # (B,8,8,2048)
    q2 = q2.reshape(B * 64, 2048).astype(jnp.bfloat16)
    a4 = _conv_bn_act(q2, pp["wd2"], pp["bn4_g"], pp["bn4_b"], "relu")
    a4 = a4[:, :64].reshape(B, 8, 8, 64)

    # -- stage D3: deconv3(k4,s2,p1) + bias + Sigmoid       (pallas_call #4)
    q3, _ = _im2col(_dilate_and_pad(a4, 2, 2), 4, 4, 1)              # (B,16,16,1024)
    q3 = q3.reshape(B * 256, 1024).astype(jnp.bfloat16)
    out = _conv_bias_act(q3, pp["wd3"], pp["bd3"], "sigmoid")        # (B*256,128)
    recon = out[:, :nc].reshape(B, 16, 16, nc)
    recon = jnp.transpose(recon, (0, 3, 1, 2))                       # NHWC->NCHW
    return recon, mu, logvar


if __name__ == "__main__":
    key = jax.random.PRNGKey(0)
    pkey, xkey, nkey = jax.random.split(key, 3)

    raw = init_params(pkey)
    pp = prepare_params(raw)
    # input 16x16 so the encoder flatten yields h_dim = 128*2*2 = 512
    x = jax.random.normal(xkey, (2, 3, 16, 16), dtype=jnp.float32)

    recon, mu, logvar = vae_forward(pp, x, nkey)
    jax.block_until_ready((recon, mu, logvar))

    assert recon.shape == (2, 3, 16, 16)
    assert mu.shape == (2, 32) and logvar.shape == (2, 32)
    assert bool(jnp.all(jnp.isfinite(recon)))
    assert bool(jnp.all(recon >= 0)) and bool(jnp.all(recon <= 1))
    assert bool(jnp.all(jnp.isfinite(mu))) and bool(jnp.all(jnp.isfinite(logvar)))
    print("KERNEL_OK")
</pallas_src>

<mosaic_0001>
module attributes {stable_mosaic.version = 11 : i64} {
  func.func @_conv_bn_act_kernel(%arg0: memref<98x48xbf16, #tpu.memory_space<vmem>>, %arg1: memref<48x128xbf16, #tpu.memory_space<vmem>>, %arg2: memref<1x128xf32, #tpu.memory_space<vmem>>, %arg3: memref<1x128xf32, #tpu.memory_space<vmem>>, %arg4: memref<98x128xf32, #tpu.memory_space<vmem>>) attributes {dimension_semantics = [], scalar_prefetch = 0 : i64, scratch_operands = 0 : i64, tpu.core_type = #tpu.core_type<tc>} {
    %c0 = arith.constant 0 : index
    %c0_0 = arith.constant 0 : index
    %0 = vector.load %arg0[%c0, %c0_0] : memref<98x48xbf16, #tpu.memory_space<vmem>>, vector<98x48xbf16>
    %c0_1 = arith.constant 0 : index
    %c0_2 = arith.constant 0 : index
    %1 = vector.load %arg1[%c0_1, %c0_2] : memref<48x128xbf16, #tpu.memory_space<vmem>>, vector<48x128xbf16>
    %cst = arith.constant dense<0.000000e+00> : vector<98x128xf32>
    %2 = tpu.matmul %0, %1, %cst {dimension_numbers = #tpu.dot_dimension_numbers<[1], [0], [0], [1], [0, 0, 1, 1], [], []>} : vector<98x48xbf16>, vector<48x128xbf16>, vector<98x128xf32> -> vector<98x128xf32>
    %cst_3 = arith.constant dense<0.000000e+00> : vector<128xf32>
    %3 = vector.multi_reduction <add>, %2, %cst_3 [0] : vector<98x128xf32> to vector<128xf32>
    %4 = vector.shape_cast %3 : vector<128xf32> to vector<1x128xf32>
    %cst_4 = arith.constant 9.800000e+01 : f32
    %5 = vector.broadcast %cst_4 : f32 to vector<1x128xf32>
    %6 = arith.divf %4, %5 : vector<1x128xf32>
    %7 = vector.broadcast %6 : vector<1x128xf32> to vector<98x128xf32>
    %8 = arith.subf %2, %7 : vector<98x128xf32>
    %9 = arith.mulf %8, %8 : vector<98x128xf32>
    %cst_5 = arith.constant dense<0.000000e+00> : vector<128xf32>
    %10 = vector.multi_reduction <add>, %9, %cst_5 [0] : vector<98x128xf32> to vector<128xf32>
    %11 = vector.shape_cast %10 : vector<128xf32> to vector<1x128xf32>
    %cst_6 = arith.constant 9.800000e+01 : f32
    %12 = vector.broadcast %cst_6 : f32 to vector<1x128xf32>
    %13 = arith.divf %11, %12 : vector<1x128xf32>
    %14 = vector.broadcast %6 : vector<1x128xf32> to vector<98x128xf32>
    %15 = arith.subf %2, %14 : vector<98x128xf32>
    %cst_7 = arith.constant 9.99999974E-6 : f32
    %16 = vector.broadcast %cst_7 : f32 to vector<1x128xf32>
    %17 = arith.addf %13, %16 : vector<1x128xf32>
    %18 = math.rsqrt %17 : vector<1x128xf32>
    %19 = vector.broadcast %18 : vector<1x128xf32> to vector<98x128xf32>
    %20 = arith.mulf %15, %19 : vector<98x128xf32>
    %c0_8 = arith.constant 0 : index
    %c0_9 = arith.constant 0 : index
    %21 = vector.load %arg2[%c0_8, %c0_9] : memref<1x128xf32, #tpu.memory_space<vmem>>, vector<1x128xf32>
    %22 = vector.broadcast %21 : vector<1x128xf32> to vector<98x128xf32>
    %23 = arith.mulf %20, %22 : vector<98x128xf32>
    %c0_10 = arith.constant 0 : index
    %c0_11 = arith.constant 0 : index
    %24 = vector.load %arg3[%c0_10, %c0_11] : memref<1x128xf32, #tpu.memory_space<vmem>>, vector<1x128xf32>
    %25 = vector.broadcast %24 : vector<1x128xf32> to vector<98x128xf32>
    %26 = arith.addf %23, %25 : vector<98x128xf32>
    %cst_12 = arith.constant 0.000000e+00 : f32
    %27 = vector.broadcast %cst_12 : f32 to vector<98x128xf32>
    %28 = arith.cmpf ogt, %26, %27 : vector<98x128xf32>
    %cst_13 = arith.constant 2.000000e-01 : f32
    %29 = vector.broadcast %cst_13 : f32 to vector<98x128xf32>
    %30 = arith.mulf %29, %26 : vector<98x128xf32>
    %31 = arith.select %28, %26, %30 : vector<98x128xi1>, vector<98x128xf32>
    %c0_14 = arith.constant 0 : index
    %c0_15 = arith.constant 0 : index
    %32 = vector.load %arg4[%c0_14, %c0_15] : memref<98x128xf32, #tpu.memory_space<vmem>>, vector<98x128xf32>
    tpu.vector_store %arg4[%c0_14, %c0_15], %31 {strides = array<i32>} : memref<98x128xf32, #tpu.memory_space<vmem>>, vector<98x128xf32>,
    return
  }
}

module attributes {stable_mosaic.version = 11 : i64} {
  func.func @_bottleneck_kernel(%arg0: memref<8x1024xbf16, #tpu.memory_space<vmem>>, %arg1: memref<1024x128xbf16, #tpu.memory_space<vmem>>, %arg2: memref<1x128xf32, #tpu.memory_space<vmem>>, %arg3: memref<1x128xf32, #tpu.memory_space<vmem>>, %arg4: memref<512x128xbf16, #tpu.memory_space<vmem>>, %arg5: memref<1x128xf32, #tpu.memory_space<vmem>>, %arg6: memref<2x32xf32, #tpu.memory_space<vmem>>, %arg7: memref<32x512xbf16, #tpu.memory_space<vmem>>, %arg8: memref<1x512xf32, #tpu.memory_space<vmem>>, %arg9: memref<512x2048xbf16, #tpu.memory_space<vmem>>, %arg10: memref<1x128xf32, #tpu.memory_space<vmem>>, %arg11: memref<1x128xf32, #tpu.memory_space<vmem>>, %arg12: memref<2x128xf32, #tpu.memory_space<vmem>>, %arg13: memref<2x2048xf32, #tpu.memory_space<vmem>>) attributes {dimension_semantics = [], scalar_prefetch = 0 : i64, scratch_operands = 0 : i64, tpu.core_type = #tpu.core_type<tc>} {
    %c0 = arith.constant 0 : index
    %c0_0 = arith.constant 0 : index
    %0 = vector.load %arg0[%c0, %c0_0] : memref<8x1024xbf16, #tpu.memory_space<vmem>>, vector<8x1024xbf16>
    %c0_1 = arith.constant 0 : index
    %c0_2 = arith.constant 0 : index
    %1 = vector.load %arg1[%c0_1, %c0_2] : memref<1024x128xbf16, #tpu.memory_space<vmem>>, vector<1024x128xbf16>
    %cst = arith.constant dense<0.000000e+00> : vector<8x128xf32>
    %2 = tpu.matmul %0, %1, %cst {dimension_numbers = #tpu.dot_dimension_numbers<[1], [0], [0], [1], [0, 0, 1, 1], [], []>} : vector<8x1024xbf16>, vector<1024x128xbf16>, vector<8x128xf32> -> vector<8x128xf32>
    %cst_3 = arith.constant dense<0.000000e+00> : vector<128xf32>
    %3 = vector.multi_reduction <add>, %2, %cst_3 [0] : vector<8x128xf32> to vector<128xf32>
    %4 = vector.shape_cast %3 : vector<128xf32> to vector<1x128xf32>
    %cst_4 = arith.constant 8.000000e+00 : f32
    %5 = vector.broadcast %cst_4 : f32 to vector<1x128xf32>
    %6 = arith.divf %4, %5 : vector<1x128xf32>
    %7 = vector.broadcast %6 : vector<1x128xf32> to vector<8x128xf32>
    %8 = arith.subf %2, %7 : vector<8x128xf32>
    %9 = arith.mulf %8, %8 : vector<8x128xf32>
    %cst_5 = arith.constant dense<0.000000e+00> : vector<128xf32>
    %10 = vector.multi_reduction <add>, %9, %cst_5 [0] : vector<8x128xf32> to vector<128xf32>
    %11 = vector.shape_cast %10 : vector<128xf32> to vector<1x128xf32>
    %cst_6 = arith.constant 8.000000e+00 : f32
    %12 = vector.broadcast %cst_6 : f32 to vector<1x128xf32>
    %13 = arith.divf %11, %12 : vector<1x128xf32>
    %14 = vector.broadcast %6 : vector<1x128xf32> to vector<8x128xf32>
    %15 = arith.subf %2, %14 : vector<8x128xf32>
    %cst_7 = arith.constant 9.99999974E-6 : f32
    %16 = vector.broadcast %cst_7 : f32 to vector<1x128xf32>
    %17 = arith.addf %13, %16 : vector<1x128xf32>
    %18 = math.rsqrt %17 : vector<1x128xf32>
    %19 = vector.broadcast %18 : vector<1x128xf32> to vector<8x128xf32>
    %20 = arith.mulf %15, %19 : vector<8x128xf32>
    %c0_8 = arith.constant 0 : index
    %c0_9 = arith.constant 0 : index
    %21 = vector.load %arg2[%c0_8, %c0_9] : memref<1x128xf32, #tpu.memory_space<vmem>>, vector<1x128xf32>
    %22 = vector.broadcast %21 : vector<1x128xf32> to vector<8x128xf32>
    %23 = arith.mulf %20, %22 : vector<8x128xf32>
    %c0_10 = arith.constant 0 : index
    %c0_11 = arith.constant 0 : index
    %24 = vector.load %arg3[%c0_10, %c0_11] : memref<1x128xf32, #tpu.memory_space<vmem>>, vector<1x128xf32>
    %25 = vector.broadcast %24 : vector<1x128xf32> to vector<8x128xf32>
    %26 = arith.addf %23, %25 : vector<8x128xf32>
    %cst_12 = arith.constant 0.000000e+00 : f32
    %27 = vector.broadcast %cst_12 : f32 to vector<8x128xf32>
    %28 = arith.cmpf ogt, %26, %27 : vector<8x128xf32>
    %cst_13 = arith.constant 2.000000e-01 : f32
    %29 = vector.broadcast %cst_13 : f32 to vector<8x128xf32>
    %30 = arith.mulf %29, %26 : vector<8x128xf32>
    %31 = arith.select %28, %26, %30 : vector<8x128xi1>, vector<8x128xf32>
    %32 = vector.extract_strided_slice %31 {offsets = [0, 0], sizes = [2, 128], strides = [1, 1]} : vector<8x128xf32> to vector<2x128xf32>
    %33 = arith.truncf %32 : vector<2x128xf32> to vector<2x128xbf16>
    %c0_14 = arith.constant 0 : index
    %c0_15 = arith.constant 0 : index
    %34 = vector.load %arg4[%c0_14, %c0_15] : memref<512x128xbf16, #tpu.memory_space<vmem>>, vector<128x128xbf16>
    %cst_16 = arith.constant dense<0.000000e+00> : vector<2x128xf32>
    %35 = tpu.matmul %33, %34, %cst_16 {dimension_numbers = #tpu.dot_dimension_numbers<[1], [0], [0], [1], [0, 0, 1, 1], [], []>} : vector<2x128xbf16>, vector<128x128xbf16>, vector<2x128xf32> -> vector<2x128xf32>
    %36 = vector.extract_strided_slice %31 {offsets = [2, 0], sizes = [2, 128], strides = [1, 1]} : vector<8x128xf32> to vector<2x128xf32>
    %37 = arith.truncf %36 : vector<2x128xf32> to vector<2x128xbf16>
    %c128 = arith.constant 128 : index
    %c0_17 = arith.constant 0 : index
    %38 = vector.load %arg4[%c128, %c0_17] : memref<512x128xbf16, #tpu.memory_space<vmem>>, vector<128x128xbf16>
    %cst_18 = arith.constant dense<0.000000e+00> : vector<2x128xf32>
    %39 = tpu.matmul %37, %38, %cst_18 {dimension_numbers = #tpu.dot_dimension_numbers<[1], [0], [0], [1], [0, 0, 1, 1], [], []>} : vector<2x128xbf16>, vector<128x128xbf16>, vector<2x128xf32> -> vector<2x128xf32>
    %40 = arith.addf %35, %39 : vector<2x128xf32>
    %41 = vector.extract_strided_slice %31 {offsets = [4, 0], sizes = [2, 128], strides = [1, 1]} : vector<8x128xf32> to vector<2x128xf32>
    %42 = arith.truncf %41 : vector<2x128xf32> to vector<2x128xbf16>
    %c256 = arith.constant 256 : index
    %c0_19 = arith.constant 0 : index
    %43 = vector.load %arg4[%c256, %c0_19] : memref<512x128xbf16, #tpu.memory_space<vmem>>, vector<128x128xbf16>
    %cst_20 = arith.constant dense<0.000000e+00> : vector<2x128xf32>
    %44 = tpu.matmul %42, %43, %cst_20 {dimension_numbers = #tpu.dot_dimension_numbers<[1], [0], [0], [1], [0, 0, 1, 1], [], []>} : vector<2x128xbf16>, vector<128x128xbf16>, vector<2x128xf32> -> vector<2x128xf32>
    %45 = arith.addf %40, %44 : vector<2x128xf32>
    %46 = vector.extract_strided_slice %31 {offsets = [6, 0], sizes = [2, 128], strides = [1, 1]} : vector<8x128xf32> to vector<2x128xf32>
    %47 = arith.truncf %46 : vector<2x128xf32> to vector<2x128xbf16>
    %c384 = arith.constant 384 : index
    %c0_21 = arith.constant 0 : index
    %48 = vector.load %arg4[%c384, %c0_21] : memref<512x128xbf16, #tpu.memory_space<vmem>>, vector<128x128xbf16>
    %cst_22 = arith.constant dense<0.000000e+00> : vector<2x128xf32>
    %49 = tpu.matmul %47, %48, %cst_22 {dimension_numbers = #tpu.dot_dimension_numbers<[1], [0], [0], [1], [0, 0, 1, 1], [], []>} : vector<2x128xbf16>, vector<128x128xbf16>, vector<2x128xf32> -> vector<2x128xf32>
    %50 = arith.addf %45, %49 : vector<2x128xf32>
    %c0_23 = arith.constant 0 : index
    %c0_24 = arith.constant 0 : index
    %51 = vector.load %arg5[%c0_23, %c0_24] : memref<1x128xf32, #tpu.memory_space<vmem>>, vector<1x128xf32>
    %52 = vector.broadcast %51 : vector<1x128xf32> to vector<2x128xf32>
    %53 = arith.addf %50, %52 : vector<2x128xf32>
    %c0_25 = arith.constant 0 : index
    %c0_26 = arith.constant 0 : index
    %54 = vector.load %arg12[%c0_25, %c0_26] : memref<2x128xf32, #tpu.memory_space<vmem>>, vector<2x128xf32>
    tpu.vector_store %arg12[%c0_25, %c0_26], %53 {strides = array<i32>} : memref<2x128xf32, #tpu.memory_space<vmem>>, vector<2x128xf32>,
    %55 = vector.extract_strided_slice %53 {offsets = [0, 0], sizes = [2, 32], strides = [1, 1]} : vector<2x128xf32> to vector<2x32xf32>
    %56 = vector.extract_strided_slice %53 {offsets = [0, 32], sizes = [2, 32], strides = [1, 1]} : vector<2x128xf32> to vector<2x32xf32>
    %cst_27 = arith.constant 5.000000e-01 : f32
    %57 = vector.broadcast %cst_27 : f32 to vector<2x32xf32>
    %58 = arith.mulf %57, %56 : vector<2x32xf32>
    %59 = math.exp %58 : vector<2x32xf32>
    %c0_28 = arith.constant 0 : index
    %c0_29 = arith.constant 0 : index
    %60 = vector.load %arg6[%c0_28, %c0_29] : memref<2x32xf32, #tpu.memory_space<vmem>>, vector<2x32xf32>
    %61 = arith.mulf %59, %60 : vector<2x32xf32>
    %62 = arith.addf %55, %61 : vector<2x32xf32>
    %63 = arith.truncf %62 : vector<2x32xf32> to vector<2x32xbf16>
    %c0_30 = arith.constant 0 : index
    %c0_31 = arith.constant 0 : index
    %64 = vector.load %arg7[%c0_30, %c0_31] : memref<32x512xbf16, #tpu.memory_space<vmem>>, vector<32x512xbf16>
    %cst_32 = arith.constant dense<0.000000e+00> : vector<2x512xf32>
    %65 = tpu.matmul %63, %64, %cst_32 {dimension_numbers = #tpu.dot_dimension_numbers<[1], [0], [0], [1], [0, 0, 1, 1], [], []>} : vector<2x32xbf16>, vector<32x512xbf16>, vector<2x512xf32> -> vector<2x512xf32>
    %c0_33 = arith.constant 0 : index
    %c0_34 = arith.constant 0 : index
    %66 = vector.load %arg8[%c0_33, %c0_34] : memref<1x512xf32, #tpu.memory_space<vmem>>, vector<1x512xf32>
    %67 = vector.broadcast %66 : vector<1x512xf32> to vector<2x512xf32>
    %68 = arith.addf %65, %67 : vector<2x512xf32>
    %69 = arith.truncf %68 : vector<2x512xf32> to vector<2x512xbf16>
    %c0_35 = arith.constant 0 : index
    %c0_36 = arith.constant 0 : index
    %70 = vector.load %arg9[%c0_35, %c0_36] : memref<512x2048xbf16, #tpu.memory_space<vmem>>, vector<512x2048xbf16>
    %cst_37 = arith.constant dense<0.000000e+00> : vector<2x2048xf32>
    %71 = tpu.matmul %69, %70, %cst_37 {dimension_numbers = #tpu.dot_dimension_numbers<[1], [0], [0], [1], [0, 0, 1, 1], [], []>} : vector<2x512xbf16>, vector<512x2048xbf16>, vector<2x2048xf32> -> vector<2x2048xf32>
    %72 = vector.extract_strided_slice %71 {offsets = [0, 0], sizes = [2, 128], strides = [1, 1]} : vector<2x2048xf32> to vector<2x128xf32>
    %73 = vector.extract_strided_slice %71 {offsets = [0, 128], sizes = [2, 128], strides = [1, 1]} : vector<2x2048xf32> to vector<2x128xf32>
    %74 = vector.extract_strided_slice %71 {offsets = [0, 256], sizes = [2, 128], strides = [1, 1]} : vector<2x2048xf32> to vector<2x128xf32>
    %75 = vector.extract_strided_slice %71 {offsets = [0, 384], sizes = [2, 128], strides = [1, 1]} : vector<2x2048xf32> to vector<2x128xf32>
    %76 = vector.extract_strided_slice %71 {offsets = [0, 512], sizes = [2, 128], strides = [1, 1]} : vector<2x2048xf32> to vector<2x128xf32>
    %77 = vector.extract_strided_slice %71 {offsets = [0, 640], sizes = [2, 128], strides = [1, 1]} : vector<2x2048xf32> to vector<2x128xf32>
    %78 = vector.extract_strided_slice %71 {offsets = [0, 768], sizes = [2, 128], strides = [1, 1]} : vector<2x2048xf32> to vector<2x128xf32>
    %79 = vector.extract_strided_slice %71 {offsets = [0, 896], sizes = [2, 128], strides = [1, 1]} : vector<2x2048xf32> to vector<2x128xf32>
    %80 = vector.extract_strided_slice %71 {offsets = [0, 1024], sizes = [2, 128], strides = [1, 1]} : vector<2x2048xf32> to vector<2x128xf32>
    %81 = vector.extract_strided_slice %71 {offsets = [0, 1152], sizes = [2, 128], strides = [1, 1]} : vector<2x2048xf32> to vector<2x128xf32>
    %82 = vector.extract_strided_slice %71 {offsets = [0, 1280], sizes = [2, 128], strides = [1, 1]} : vector<2x2048xf32> to vector<2x128xf32>
    %83 = vector.extract_strided_slice %71 {offsets = [0, 1408], sizes = [2, 128], strides = [1, 1]} : vector<2x2048xf32> to vector<2x128xf32>
    %84 = vector.extract_strided_slice %71 {offsets = [0, 1536], sizes = [2, 128], strides = [1, 1]} : vector<2x2048xf32> to vector<2x128xf32>
    %85 = vector.extract_strided_slice %71 {offsets = [0, 1664], sizes = [2, 128], strides = [1, 1]} : vector<2x2048xf32> to vector<2x128xf32>
    %86 = vector.extract_strided_slice %71 {offsets = [0, 1792], sizes = [2, 128], strides = [1, 1]} : vector<2x2048xf32> to vector<2x128xf32>
    %87 = vector.extract_strided_slice %71 {offsets = [0, 1920], sizes = [2, 128], strides = [1, 1]} : vector<2x2048xf32> to vector<2x128xf32>
    %88 = arith.mulf %72, %72 : vector<2x128xf32>
    %89 = arith.addf %72, %73 : vector<2x128xf32>
    %90 = arith.mulf %73, %73 : vector<2x128xf32>
    %91 = arith.addf %88, %90 : vector<2x128xf32>
    %92 = arith.addf %89, %74 : vector<2x128xf32>
    %93 = arith.mulf %74, %74 : vector<2x128xf32>
    %94 = arith.addf %91, %93 : vector<2x128xf32>
    %95 = arith.addf %92, %75 : vector<2x128xf32>
    %96 = arith.mulf %75, %75 : vector<2x128xf32>
    %97 = arith.addf %94, %96 : vector<2x128xf32>
    %98 = arith.addf %95, %76 : vector<2x128xf32>
    %99 = arith.mulf %76, %76 : vector<2x128xf32>
    %100 = arith.addf %97, %99 : vector<2x128xf32>
    %101 = arith.addf %98, %77 : vector<2x128xf32>
    %102 = arith.mulf %77, %77 : vector<2x128xf32>
    %103 = arith.addf %100, %102 : vector<2x128xf32>
    %104 = arith.addf %101, %78 : vector<2x128xf32>
    %105 = arith.mulf %78, %78 : vector<2x128xf32>
    %106 = arith.addf %103, %105 : vector<2x128xf32>
    %107 = arith.addf %104, %79 : vector<2x128xf32>
    %108 = arith.mulf %79, %79 : vector<2x128xf32>
    %109 = arith.addf %106, %108 : vector<2x128xf32>
    %110 = arith.addf %107, %80 : vector<2x128xf32>
    %111 = arith.mulf %80, %80 : vector<2x128xf32>
    %112 = arith.addf %109, %111 : vector<2x128xf32>
    %113 = arith.addf %110, %81 : vector<2x128xf32>
    %114 = arith.mulf %81, %81 : vector<2x128xf32>
    %115 = arith.addf %112, %114 : vector<2x128xf32>
    %116 = arith.addf %113, %82 : vector<2x128xf32>
    %117 = arith.mulf %82, %82 : vector<2x128xf32>
    %118 = arith.addf %115, %117 : vector<2x128xf32>
    %119 = arith.addf %116, %83 : vector<2x128xf32>
    %120 = arith.mulf %83, %83 : vector<2x128xf32>
    %121 = arith.addf %118, %120 : vector<2x128xf32>
    %122 = arith.addf %119, %84 : vector<2x128xf32>
    %123 = arith.mulf %84, %84 : vector<2x128xf32>
    %124 = arith.addf %121, %123 : vector<2x128xf32>
    %125 = arith.addf %122, %85 : vector<2x128xf32>
    %126 = arith.mulf %85, %85 : vector<2x128xf32>
    %127 = arith.addf %124, %126 : vector<2x128xf32>
    %128 = arith.addf %125, %86 : vector<2x128xf32>
    %129 = arith.mulf %86, %86 : vector<2x128xf32>
    %130 = arith.addf %127, %129 : vector<2x128xf32>
    %131 = arith.addf %128, %87 : vector<2x128xf32>
    %132 = arith.mulf %87, %87 : vector<2x128xf32>
    %133 = arith.addf %130, %132 : vector<2x128xf32>
    %cst_38 = arith.constant dense<0.000000e+00> : vector<128xf32>
    %134 = vector.multi_reduction <add>, %131, %cst_38 [0] : vector<2x128xf32> to vector<128xf32>
    %135 = vector.shape_cast %134 : vector<128xf32> to vector<1x128xf32>
    %cst_39 = arith.constant 3.200000e+01 : f32
    %136 = vector.broadcast %cst_39 : f32 to vector<1x128xf32>
    %137 = arith.divf %135, %136 : vector<1x128xf32>
    %cst_40 = arith.constant dense<0.000000e+00> : vector<128xf32>
    %138 = vector.multi_reduction <add>, %133, %cst_40 [0] : vector<2x128xf32> to vector<128xf32>
    %139 = vector.shape_cast %138 : vector<128xf32> to vector<1x128xf32>
    %cst_41 = arith.constant 3.200000e+01 : f32
    %140 = vector.broadcast %cst_41 : f32 to vector<1x128xf32>
    %141 = arith.divf %139, %140 : vector<1x128xf32>
    %142 = arith.mulf %137, %137 : vector<1x128xf32>
    %143 = arith.subf %141, %142 : vector<1x128xf32>
    %cst_42 = arith.constant 9.99999974E-6 : f32
    %144 = vector.broadcast %cst_42 : f32 to vector<1x128xf32>
    %145 = arith.addf %143, %144 : vector<1x128xf32>
    %146 = math.rsqrt %145 : vector<1x128xf32>
    %c0_43 = arith.constant 0 : index
    %c0_44 = arith.constant 0 : index
    %147 = vector.load %arg10[%c0_43, %c0_44] : memref<1x128xf32, #tpu.memory_space<vmem>>, vector<1x128xf32>
    %148 = arith.mulf %146, %147 : vector<1x128xf32>
    %c0_45 = arith.constant 0 : index
    %c0_46 = arith.constant 0 : index
    %149 = vector.load %arg11[%c0_45, %c0_46] : memref<1x128xf32, #tpu.memory_space<vmem>>, vector<1x128xf32>
    %150 = arith.mulf %137, %148 : vector<1x128xf32>
    %151 = arith.subf %149, %150 : vector<1x128xf32>
    %152 = vector.broadcast %148 : vector<1x128xf32> to vector<2x128xf32>
    %153 = arith.mulf %72, %152 : vector<2x128xf32>
    %154 = vector.broadcast %151 : vector<1x128xf32> to vector<2x128xf32>
    %155 = arith.addf %153, %154 : vector<2x128xf32>
    %cst_47 = arith.constant 0.000000e+00 : f32
    %156 = vector.broadcast %cst_47 : f32 to vector<2x128xf32>
    %157 = arith.maximumf %155, %156 : vector<2x128xf32>
    %c0_48 = arith.constant 0 : index
    %c0_49 = arith.constant 0 : index
    %158 = vector.load %arg13[%c0_48, %c0_49] : memref<2x2048xf32, #tpu.memory_space<vmem>>, vector<2x128xf32>
    tpu.vector_store %arg13[%c0_48, %c0_49], %157 {strides = array<i32>} : memref<2x2048xf32, #tpu.memory_space<vmem>>, vector<2x128xf32>,
    %159 = vector.broadcast %148 : vector<1x128xf32> to vector<2x128xf32>
    %160 = arith.mulf %73, %159 : vector<2x128xf32>
    %161 = vector.broadcast %151 : vector<1x128xf32> to vector<2x128xf32>
    %162 = arith.addf %160, %161 : vector<2x128xf32>
    %cst_50 = arith.constant 0.000000e+00 : f32
    %163 = vector.broadcast %cst_50 : f32 to vector<2x128xf32>
    %164 = arith.maximumf %162, %163 : vector<2x128xf32>
    %c0_51 = arith.constant 0 : index
    %c128_52 = arith.constant 128 : index
    %165 = vector.load %arg13[%c0_51, %c128_52] : memref<2x2048xf32, #tpu.memory_space<vmem>>, vector<2x128xf32>
    tpu.vector_store %arg13[%c0_51, %c128_52], %164 {strides = array<i32>} : memref<2x2048xf32, #tpu.memory_space<vmem>>, vector<2x128xf32>,
    %166 = vector.broadcast %148 : vector<1x128xf32> to vector<2x128xf32>
    %167 = arith.mulf %74, %166 : vector<2x128xf32>
    %168 = vector.broadcast %151 : vector<1x128xf32> to vector<2x128xf32>
    %169 = arith.addf %167, %168 : vector<2x128xf32>
    %cst_53 = arith.constant 0.000000e+00 : f32
    %170 = vector.broadcast %cst_53 : f32 to vector<2x128xf32>
    %171 = arith.maximumf %169, %170 : vector<2x128xf32>
    %c0_54 = arith.constant 0 : index
    %c256_55 = arith.constant 256 : index
    %172 = vector.load %arg13[%c0_54, %c256_55] : memref<2x2048xf32, #tpu.memory_space<vmem>>, vector<2x128xf32>
    tpu.vector_store %arg13[%c0_54, %c256_55], %171 {strides = array<i32>} : memref<2x2048xf32, #tpu.memory_space<vmem>>, vector<2x128xf32>,
    %173 = vector.broadcast %148 : vector<1x128xf32> to vector<2x128xf32>
    %174 = arith.mulf %75, %173 : vector<2x128xf32>
    %175 = vector.broadcast %151 : vector<1x128xf32> to vector<2x128xf32>
    %176 = arith.addf %174, %175 : vector<2x128xf32>
    %cst_56 = arith.constant 0.000000e+00 : f32
    %177 = vector.broadcast %cst_56 : f32 to vector<2x128xf32>
    %178 = arith.maximumf %176, %177 : vector<2x128xf32>
    %c0_57 = arith.constant 0 : index
    %c384_58 = arith.constant 384 : index
    %179 = vector.load %arg13[%c0_57, %c384_58] : memref<2x2048xf32, #tpu.memory_space<vmem>>, vector<2x128xf32>
    tpu.vector_store %arg13[%c0_57, %c384_58], %178 {strides = array<i32>} : memref<2x2048xf32, #tpu.memory_space<vmem>>, vector<2x128xf32>,
    %180 = vector.broadcast %148 : vector<1x128xf32> to vector<2x128xf32>
    %181 = arith.mulf %76, %180 : vector<2x128xf32>
    %182 = vector.broadcast %151 : vector<1x128xf32> to vector<2x128xf32>
    %183 = arith.addf %181, %182 : vector<2x128xf32>
    %cst_59 = arith.constant 0.000000e+00 : f32
    %184 = vector.broadcast %cst_59 : f32 to vector<2x128xf32>
    %185 = arith.maximumf %183, %184 : vector<2x128xf32>
    %c0_60 = arith.constant 0 : index
    %c512 = arith.constant 512 : index
    %186 = vector.load %arg13[%c0_60, %c512] : memref<2x2048xf32, #tpu.memory_space<vmem>>, vector<2x128xf32>
    tpu.vector_store %arg13[%c0_60, %c512], %185 {strides = array<i32>} : memref<2x2048xf32, #tpu.memory_space<vmem>>, vector<2x128xf32>,
    %187 = vector.broadcast %148 : vector<1x128xf32> to vector<2x128xf32>
    %188 = arith.mulf %77, %187 : vector<2x128xf32>
    %189 = vector.broadcast %151 : vector<1x128xf32> to vector<2x128xf32>
    %190 = arith.addf %188, %189 : vector<2x128xf32>
    %cst_61 = arith.constant 0.000000e+00 : f32
    %191 = vector.broadcast %cst_61 : f32 to vector<2x128xf32>
    %192 = arith.maximumf %190, %191 : vector<2x128xf32>
    %c0_62 = arith.constant 0 : index
    %c640 = arith.constant 640 : index
    %193 = vector.load %arg13[%c0_62, %c640] : memref<2x2048xf32, #tpu.memory_space<vmem>>, vector<2x128xf32>
    tpu.vector_store %arg13[%c0_62, %c640], %192 {strides = array<i32>} : memref<2x2048xf32, #tpu.memory_space<vmem>>, vector<2x128xf32>,
    %194 = vector.broadcast %148 : vector<1x128xf32> to vector<2x128xf32>
    %195 = arith.mulf %78, %194 : vector<2x128xf32>
    %196 = vector.broadcast %151 : vector<1x128xf32> to vector<2x128xf32>
    %197 = arith.addf %195, %196 : vector<2x128xf32>
    %cst_63 = arith.constant 0.000000e+00 : f32
    %198 = vector.broadcast %cst_63 : f32 to vector<2x128xf32>
    %199 = arith.maximumf %197, %198 : vector<2x128xf32>
    %c0_64 = arith.constant 0 : index
    %c768 = arith.constant 768 : index
    %200 = vector.load %arg13[%c0_64, %c768] : memref<2x2048xf32, #tpu.memory_space<vmem>>, vector<2x128xf32>
    tpu.vector_store %arg13[%c0_64, %c768], %199 {strides = array<i32>} : memref<2x2048xf32, #tpu.memory_space<vmem>>, vector<2x128xf32>,
    %201 = vector.broadcast %148 : vector<1x128xf32> to vector<2x128xf32>
    %202 = arith.mulf %79, %201 : vector<2x128xf32>
    %203 = vector.broadcast %151 : vector<1x128xf32> to vector<2x128xf32>
    %204 = arith.addf %202, %203 : vector<2x128xf32>
    %cst_65 = arith.constant 0.000000e+00 : f32
    %205 = vector.broadcast %cst_65 : f32 to vector<2x128xf32>
    %206 = arith.maximumf %204, %205 : vector<2x128xf32>
    %c0_66 = arith.constant 0 : index
    %c896 = arith.constant 896 : index
    %207 = vector.load %arg13[%c0_66, %c896] : memref<2x2048xf32, #tpu.memory_space<vmem>>, vector<2x128xf32>
    tpu.vector_store %arg13[%c0_66, %c896], %206 {strides = array<i32>} : memref<2x2048xf32, #tpu.memory_space<vmem>>, vector<2x128xf32>,
    %208 = vector.broadcast %148 : vector<1x128xf32> to vector<2x128xf32>
    %209 = arith.mulf %80, %208 : vector<2x128xf32>
    %210 = vector.broadcast %151 : vector<1x128xf32> to vector<2x128xf32>
    %211 = arith.addf %209, %210 : vector<2x128xf32>
    %cst_67 = arith.constant 0.000000e+00 : f32
    %212 = vector.broadcast %cst_67 : f32 to vector<2x128xf32>
    %213 = arith.maximumf %211, %212 : vector<2x128xf32>
    %c0_68 = arith.constant 0 : index
    %c1024 = arith.constant 1024 : index
    %214 = vector.load %arg13[%c0_68, %c1024] : memref<2x2048xf32, #tpu.memory_space<vmem>>, vector<2x128xf32>
    tpu.vector_store %arg13[%c0_68, %c1024], %213 {strides = array<i32>} : memref<2x2048xf32, #tpu.memory_space<vmem>>, vector<2x128xf32>,
    %215 = vector.broadcast %148 : vector<1x128xf32> to vector<2x128xf32>
    %216 = arith.mulf %81, %215 : vector<2x128xf32>
    %217 = vector.broadcast %151 : vector<1x128xf32> to vector<2x128xf32>
    %218 = arith.addf %216, %217 : vector<2x128xf32>
    %cst_69 = arith.constant 0.000000e+00 : f32
    %219 = vector.broadcast %cst_69 : f32 to vector<2x128xf32>
    %220 = arith.maximumf %218, %219 : vector<2x128xf32>
    %c0_70 = arith.constant 0 : index
    %c1152 = arith.constant 1152 : index
    %221 = vector.load %arg13[%c0_70, %c1152] : memref<2x2048xf32, #tpu.memory_space<vmem>>, vector<2x128xf32>
    tpu.vector_store %arg13[%c0_70, %c1152], %220 {strides = array<i32>} : memref<2x2048xf32, #tpu.memory_space<vmem>>, vector<2x128xf32>,
    %222 = vector.broadcast %148 : vector<1x128xf32> to vector<2x128xf32>
    %223 = arith.mulf %82, %222 : vector<2x128xf32>
    %224 = vector.broadcast %151 : vector<1x128xf32> to vector<2x128xf32>
    %225 = arith.addf %223, %224 : vector<2x128xf32>
    %cst_71 = arith.constant 0.000000e+00 : f32
    %226 = vector.broadcast %cst_71 : f32 to vector<2x128xf32>
    %227 = arith.maximumf %225, %226 : vector<2x128xf32>
    %c0_72 = arith.constant 0 : index
    %c1280 = arith.constant 1280 : index
    %228 = vector.load %arg13[%c0_72, %c1280] : memref<2x2048xf32, #tpu.memory_space<vmem>>, vector<2x128xf32>
    tpu.vector_store %arg13[%c0_72, %c1280], %227 {strides = array<i32>} : memref<2x2048xf32, #tpu.memory_space<vmem>>, vector<2x128xf32>,
    %229 = vector.broadcast %148 : vector<1x128xf32> to vector<2x128xf32>
    %230 = arith.mulf %83, %229 : vector<2x128xf32>
    %231 = vector.broadcast %151 : vector<1x128xf32> to vector<2x128xf32>
    %232 = arith.addf %230, %231 : vector<2x128xf32>
    %cst_73 = arith.constant 0.000000e+00 : f32
    %233 = vector.broadcast %cst_73 : f32 to vector<2x128xf32>
    %234 = arith.maximumf %232, %233 : vector<2x128xf32>
    %c0_74 = arith.constant 0 : index
    %c1408 = arith.constant 1408 : index
    %235 = vector.load %arg13[%c0_74, %c1408] : memref<2x2048xf32, #tpu.memory_space<vmem>>, vector<2x128xf32>
    tpu.vector_store %arg13[%c0_74, %c1408], %234 {strides = array<i32>} : memref<2x2048xf32, #tpu.memory_space<vmem>>, vector<2x128xf32>,
    %236 = vector.broadcast %148 : vector<1x128xf32> to vector<2x128xf32>
    %237 = arith.mulf %84, %236 : vector<2x128xf32>
    %238 = vector.broadcast %151 : vector<1x128xf32> to vector<2x128xf32>
    %239 = arith.addf %237, %238 : vector<2x128xf32>
    %cst_75 = arith.constant 0.000000e+00 : f32
    %240 = vector.broadcast %cst_75 : f32 to vector<2x128xf32>
    %241 = arith.maximumf %239, %240 : vector<2x128xf32>
    %c0_76 = arith.constant 0 : index
    %c1536 = arith.constant 1536 : index
    %242 = vector.load %arg13[%c0_76, %c1536] : memref<2x2048xf32, #tpu.memory_space<vmem>>, vector<2x128xf32>
    tpu.vector_store %arg13[%c0_76, %c1536], %241 {strides = array<i32>} : memref<2x2048xf32, #tpu.memory_space<vmem>>, vector<2x128xf32>,
    %243 = vector.broadcast %148 : vector<1x128xf32> to vector<2x128xf32>
    %244 = arith.mulf %85, %243 : vector<2x128xf32>
    %245 = vector.broadcast %151 : vector<1x128xf32> to vector<2x128xf32>
    %246 = arith.addf %244, %245 : vector<2x128xf32>
    %cst_77 = arith.constant 0.000000e+00 : f32
    %247 = vector.broadcast %cst_77 : f32 to vector<2x128xf32>
    %248 = arith.maximumf %246, %247 : vector<2x128xf32>
    %c0_78 = arith.constant 0 : index
    %c1664 = arith.constant 1664 : index
    %249 = vector.load %arg13[%c0_78, %c1664] : memref<2x2048xf32, #tpu.memory_space<vmem>>, vector<2x128xf32>
    tpu.vector_store %arg13[%c0_78, %c1664], %248 {strides = array<i32>} : memref<2x2048xf32, #tpu.memory_space<vmem>>, vector<2x128xf32>,
    %250 = vector.broadcast %148 : vector<1x128xf32> to vector<2x128xf32>
    %251 = arith.mulf %86, %250 : vector<2x128xf32>
    %252 = vector.broadcast %151 : vector<1x128xf32> to vector<2x128xf32>
    %253 = arith.addf %251, %252 : vector<2x128xf32>
    %cst_79 = arith.constant 0.000000e+00 : f32
    %254 = vector.broadcast %cst_79 : f32 to vector<2x128xf32>
    %255 = arith.maximumf %253, %254 : vector<2x128xf32>
    %c0_80 = arith.constant 0 : index
    %c1792 = arith.constant 1792 : index
    %256 = vector.load %arg13[%c0_80, %c1792] : memref<2x2048xf32, #tpu.memory_space<vmem>>, vector<2x128xf32>
    tpu.vector_store %arg13[%c0_80, %c1792], %255 {strides = array<i32>} : memref<2x2048xf32, #tpu.memory_space<vmem>>, vector<2x128xf32>,
    %257 = vector.broadcast %148 : vector<1x128xf32> to vector<2x128xf32>
    %258 = arith.mulf %87, %257 : vector<2x128xf32>
    %259 = vector.broadcast %151 : vector<1x128xf32> to vector<2x128xf32>
    %260 = arith.addf %258, %259 : vector<2x128xf32>
    %cst_81 = arith.constant 0.000000e+00 : f32
    %261 = vector.broadcast %cst_81 : f32 to vector<2x128xf32>
    %262 = arith.maximumf %260, %261 : vector<2x128xf32>
    %c0_82 = arith.constant 0 : index
    %c1920 = arith.constant 1920 : index
    %263 = vector.load %arg13[%c0_82, %c1920] : memref<2x2048xf32, #tpu.memory_space<vmem>>, vector<2x128xf32>
    tpu.vector_store %arg13[%c0_82, %c1920], %262 {strides = array<i32>} : memref<2x2048xf32, #tpu.memory_space<vmem>>, vector<2x128xf32>,
    return
  }
}

module attributes {stable_mosaic.version = 11 : i64} {
  func.func @_conv_bn_act_kernel(%arg0: memref<128x2048xbf16, #tpu.memory_space<vmem>>, %arg1: memref<2048x128xbf16, #tpu.memory_space<vmem>>, %arg2: memref<1x128xf32, #tpu.memory_space<vmem>>, %arg3: memref<1x128xf32, #tpu.memory_space<vmem>>, %arg4: memref<128x128xf32, #tpu.memory_space<vmem>>) attributes {dimension_semantics = [], scalar_prefetch = 0 : i64, scratch_operands = 0 : i64, tpu.core_type = #tpu.core_type<tc>} {
    %c0 = arith.constant 0 : index
    %c0_0 = arith.constant 0 : index
    %0 = vector.load %arg0[%c0, %c0_0] : memref<128x2048xbf16, #tpu.memory_space<vmem>>, vector<128x2048xbf16>
    %c0_1 = arith.constant 0 : index
    %c0_2 = arith.constant 0 : index
    %1 = vector.load %arg1[%c0_1, %c0_2] : memref<2048x128xbf16, #tpu.memory_space<vmem>>, vector<2048x128xbf16>
    %cst = arith.constant dense<0.000000e+00> : vector<128x128xf32>
    %2 = tpu.matmul %0, %1, %cst {dimension_numbers = #tpu.dot_dimension_numbers<[1], [0], [0], [1], [0, 0, 1, 1], [], []>} : vector<128x2048xbf16>, vector<2048x128xbf16>, vector<128x128xf32> -> vector<128x128xf32>
    %cst_3 = arith.constant dense<0.000000e+00> : vector<128xf32>
    %3 = vector.multi_reduction <add>, %2, %cst_3 [0] : vector<128x128xf32> to vector<128xf32>
    %4 = vector.shape_cast %3 : vector<128xf32> to vector<1x128xf32>
    %cst_4 = arith.constant 1.280000e+02 : f32
    %5 = vector.broadcast %cst_4 : f32 to vector<1x128xf32>
    %6 = arith.divf %4, %5 : vector<1x128xf32>
    %7 = vector.broadcast %6 : vector<1x128xf32> to vector<128x128xf32>
    %8 = arith.subf %2, %7 : vector<128x128xf32>
    %9 = arith.mulf %8, %8 : vector<128x128xf32>
    %cst_5 = arith.constant dense<0.000000e+00> : vector<128xf32>
    %10 = vector.multi_reduction <add>, %9, %cst_5 [0] : vector<128x128xf32> to vector<128xf32>
    %11 = vector.shape_cast %10 : vector<128xf32> to vector<1x128xf32>
    %cst_6 = arith.constant 1.280000e+02 : f32
    %12 = vector.broadcast %cst_6 : f32 to vector<1x128xf32>
    %13 = arith.divf %11, %12 : vector<1x128xf32>
    %14 = vector.broadcast %6 : vector<1x128xf32> to vector<128x128xf32>
    %15 = arith.subf %2, %14 : vector<128x128xf32>
    %cst_7 = arith.constant 9.99999974E-6 : f32
    %16 = vector.broadcast %cst_7 : f32 to vector<1x128xf32>
    %17 = arith.addf %13, %16 : vector<1x128xf32>
    %18 = math.rsqrt %17 : vector<1x128xf32>
    %19 = vector.broadcast %18 : vector<1x128xf32> to vector<128x128xf32>
    %20 = arith.mulf %15, %19 : vector<128x128xf32>
    %c0_8 = arith.constant 0 : index
    %c0_9 = arith.constant 0 : index
    %21 = vector.load %arg2[%c0_8, %c0_9] : memref<1x128xf32, #tpu.memory_space<vmem>>, vector<1x128xf32>
    %22 = vector.broadcast %21 : vector<1x128xf32> to vector<128x128xf32>
    %23 = arith.mulf %20, %22 : vector<128x128xf32>
    %c0_10 = arith.constant 0 : index
    %c0_11 = arith.constant 0 : index
    %24 = vector.load %arg3[%c0_10, %c0_11] : memref<1x128xf32, #tpu.memory_space<vmem>>, vector<1x128xf32>
    %25 = vector.broadcast %24 : vector<1x128xf32> to vector<128x128xf32>
    %26 = arith.addf %23, %25 : vector<128x128xf32>
    %cst_12 = arith.constant 0.000000e+00 : f32
    %27 = vector.broadcast %cst_12 : f32 to vector<128x128xf32>
    %28 = arith.maximumf %26, %27 : vector<128x128xf32>
    %c0_13 = arith.constant 0 : index
    %c0_14 = arith.constant 0 : index
    %29 = vector.load %arg4[%c0_13, %c0_14] : memref<128x128xf32, #tpu.memory_space<vmem>>, vector<128x128xf32>
    tpu.vector_store %arg4[%c0_13, %c0_14], %28 {strides = array<i32>} : memref<128x128xf32, #tpu.memory_space<vmem>>, vector<128x128xf32>,
    return
  }
}

module attributes {stable_mosaic.version = 11 : i64} {
  func.func @_conv_bias_act_kernel(%arg0: memref<512x1024xbf16, #tpu.memory_space<vmem>>, %arg1: memref<1024x128xbf16, #tpu.memory_space<vmem>>, %arg2: memref<1x128xf32, #tpu.memory_space<vmem>>, %arg3: memref<512x128xf32, #tpu.memory_space<vmem>>) attributes {dimension_semantics = [], scalar_prefetch = 0 : i64, scratch_operands = 0 : i64, tpu.core_type = #tpu.core_type<tc>} {
    %c0 = arith.constant 0 : index
    %c0_0 = arith.constant 0 : index
    %0 = vector.load %arg0[%c0, %c0_0] : memref<512x1024xbf16, #tpu.memory_space<vmem>>, vector<512x1024xbf16>
    %c0_1 = arith.constant 0 : index
    %c0_2 = arith.constant 0 : index
    %1 = vector.load %arg1[%c0_1, %c0_2] : memref<1024x128xbf16, #tpu.memory_space<vmem>>, vector<1024x128xbf16>
    %cst = arith.constant dense<0.000000e+00> : vector<512x128xf32>
    %2 = tpu.matmul %0, %1, %cst {dimension_numbers = #tpu.dot_dimension_numbers<[1], [0], [0], [1], [0, 0, 1, 1], [], []>} : vector<512x1024xbf16>, vector<1024x128xbf16>, vector<512x128xf32> -> vector<512x128xf32>
    %c0_3 = arith.constant 0 : index
    %c0_4 = arith.constant 0 : index
    %3 = vector.load %arg2[%c0_3, %c0_4] : memref<1x128xf32, #tpu.memory_space<vmem>>, vector<1x128xf32>
    %4 = vector.broadcast %3 : vector<1x128xf32> to vector<512x128xf32>
    %5 = arith.addf %2, %4 : vector<512x128xf32>
    %6 = arith.negf %5 : vector<512x128xf32>
    %7 = math.exp %6 : vector<512x128xf32>
    %cst_5 = arith.constant 1.000000e+00 : f32
    %8 = vector.broadcast %cst_5 : f32 to vector<512x128xf32>
    %9 = arith.addf %8, %7 : vector<512x128xf32>
    %10 = arith.divf %8, %9 : vector<512x128xf32>
    %c0_6 = arith.constant 0 : index
    %c0_7 = arith.constant 0 : index
    %11 = vector.load %arg3[%c0_6, %c0_7] : memref<512x128xf32, #tpu.memory_space<vmem>>, vector<512x128xf32>
    tpu.vector_store %arg3[%c0_6, %c0_7], %10 {strides = array<i32>} : memref<512x128xf32, #tpu.memory_space<vmem>>, vector<512x128xf32>,
    return
  }
}

</mosaic_0001>

<llo_original>
// kernel: vae_forward.4
$region0: #{vae_forward.4}
  #allocation0 [shape = 'u32[]', space=smem, size = 0x4, offset = 0x4, fixed_abs, tag = 'smem constant byte address 0x4 - core index']
  #allocation1 [shape = 'u32[72,128]{1,0:T(1,128)}', space=vmem, size = 0x9000, scoped, tag = 'internal scratch']
  %s0 = inlined_call_operand.vmem [shape: bf16[98,48], index: 0, kind: input, shape index: {}]
  %s1 = inlined_call_operand.hbm [shape: bf16[48,128], index: 1, kind: input, shape index: {}]
  %s2 = inlined_call_operand.hbm [shape: f32[1,128], index: 2, kind: input, shape index: {}]
  %s3 = inlined_call_operand.hbm [shape: f32[1,128], index: 3, kind: input, shape index: {}]
  %s4 = inlined_call_operand.vmem [shape: f32[98,128], index: 4, kind: output, shape index: {}]
  %s5 = sld [smem:[#allocation0]]
  $region38: #{vae_forward.4} parent=0
    _
  %s7 = ssub.s32 1, %s5
  %s8 = scalar_select 0, %s7, %s5
  $region1: #{vae_forward.4} parent=0
    #allocation2 [shape = 'u8[12288]{0}', space=vmem, size = 0x3000, scoped, tag = 'input window, operand 1, single buffered']
    #allocation3 [shape = 's32[1]{0}', space=sflag, size = 0x4, scoped, tag = 'scoped memory for vae_forward.4']
    #allocation4 [shape = 'u8[512]{0}', space=vmem, size = 0x400, scoped, tag = 'input window, operand 2, single buffered']
    #allocation5 [shape = 's32[1]{0}', space=sflag, size = 0x4, scoped, tag = 'scoped memory for vae_forward.4']
    #allocation6 [shape = 'u8[512]{0}', space=vmem, size = 0x400, scoped, tag = 'input window, operand 3, single buffered']
    %9 = vsyncpa [#allocation3], 0
    %10 = vsyncpa [#allocation5], 0
    // Predicated region
    $region2: #{vae_forward.4} parent=1 // pred_check
      _
    $region3: #{vae_forward.4} parent=1 // pred_check_branch
      %12 = sbr.rel (0) target = $region5
    $region4: #{vae_forward.4} parent=1 // pred_region
      _
    $region5: #{vae_forward.4} parent=1 // pred_fallthru
      _
    // Predicated region
    $region6: #{vae_forward.4} parent=1 // pred_check
      _
    $region7: #{vae_forward.4} parent=1 // pred_check_branch
      %14 = sbr.rel (0) target = $region9
    $region8: #{vae_forward.4} parent=1 // pred_region
      %16 = vsyncadd [#allocation3], 0
      %s17 = sshll.u32 %s1, 4
      %s18 = int_to_ptr.hbm [resolvable:$true] %s17
      %s19 = sshll.u32 [#allocation2], 4
      %s20 = int_to_ptr.vmem [resolvable:$true] %s19
      %25 = dma.hbm_to_vmem [thread:$0]  %s18, 384, %s20, [#allocation3], 64, 64, 4
    $region9: #{vae_forward.4} parent=1 // pred_fallthru
      _
    // Predicated region
    $region10: #{vae_forward.4} parent=1 // pred_check
      _
    $region11: #{vae_forward.4} parent=1 // pred_check_branch
      %27 = sbr.rel (0) target = $region13
    $region12: #{vae_forward.4} parent=1 // pred_region
      %29 = vsyncadd [#allocation5], 0
      %s31 = sshll.u32 %s2, 4
      %s32 = int_to_ptr.hbm [resolvable:$true] %s31
      %s33 = sshll.u32 [#allocation4], 4
      %s34 = int_to_ptr.vmem [resolvable:$true] %s33
      %36 = dma.hbm_to_vmem [thread:$0]  %s32, 16, %s34, [#allocation5]
    $region13: #{vae_forward.4} parent=1 // pred_fallthru
      _
    // Predicated region
    $region14: #{vae_forward.4} parent=1 // pred_check
      _
    $region15: #{vae_forward.4} parent=1 // pred_check_branch
      %38 = sbr.rel (0) target = $region17
    $region16: #{vae_forward.4} parent=1 // pred_region
      %40 = vsyncadd [#allocation5], 0
      %s42 = sshll.u32 %s3, 4
      %s43 = int_to_ptr.hbm [resolvable:$true] %s42
      %s44 = sshll.u32 [#allocation6], 4
      %s45 = int_to_ptr.vmem [resolvable:$true] %s44
      %47 = dma.hbm_to_vmem [thread:$0]  %s43, 16, %s45, [#allocation5]
    $region17: #{vae_forward.4} parent=1 // pred_fallthru
      _
    // Predicated region
    $region18: #{vae_forward.4} parent=1 // pred_check
      _
    $region19: #{vae_forward.4} parent=1 // pred_check_branch
      %49 = sbr.rel (0) target = $region21
    $region20: #{vae_forward.4} parent=1 // pred_region
      %51 = dma.done [#allocation3], 384
    $region21: #{vae_forward.4} parent=1 // pred_fallthru
      _
    // Predicated region
    $region22: #{vae_forward.4} parent=1 // pred_check
      _
    $region23: #{vae_forward.4} parent=1 // pred_check_branch
      %53 = sbr.rel (0) target = $region25
    $region24: #{vae_forward.4} parent=1 // pred_region
      %55 = dma.done [#allocation5], 16
    $region25: #{vae_forward.4} parent=1 // pred_fallthru
      _
    // Predicated region
    $region26: #{vae_forward.4} parent=1 // pred_check
      _
    $region27: #{vae_forward.4} parent=1 // pred_check_branch
      %57 = sbr.rel (0) target = $region29
    $region28: #{vae_forward.4} parent=1 // pred_region
      %59 = dma.done [#allocation5], 16
    $region29: #{vae_forward.4} parent=1 // pred_fallthru
      _
    %v61 = vld [vmem:[%s0] sm:$0xf]
    %v62 = vld [vmem:[%s0 + $0x4] sm:$0xf]
    %v63 = vld [vmem:[%s0 + $0x8] sm:$0xf]
    %v64 = vld [vmem:[%s0 + $0xc] sm:$0xf]
    %v65 = vld [vmem:[%s0 + $0x10] sm:$0xf]
    %v66 = vld [vmem:[%s0 + $0x14] sm:$0xf]
    %v67 = vld [vmem:[%s0 + $0x18] sm:$0xf]
    %v68 = vld [vmem:[%s0 + $0x1c] sm:$0xf]
    %v69 = vld [vmem:[%s0 + $0x20] sm:$0xf]
    %v70 = vld [vmem:[%s0 + $0x24] sm:$0xf]
    %v71 = vld [vmem:[%s0 + $0x28] sm:$0xf]
    %v72 = vld [vmem:[%s0 + $0x2c] sm:$0xf]
    %v73 = vld [vmem:[%s0 + $0x30] sm:$0x1]
    %v74 = vld [vmem:[#allocation2] sm:$0xf]
    %v75 = vld [vmem:[#allocation2 + $0x4] sm:$0xf]
    %v76 = vld [vmem:[#allocation2 + $0x8] sm:$0xf]
    %v77 = vld [vmem:[#allocation2 + $0xc] sm:$0xf]
    %v78 = vld [vmem:[#allocation2 + $0x10] sm:$0xf]
    %v79 = vld [vmem:[#allocation2 + $0x14] sm:$0xf]
    %v93 = vunpack.c.l.b16 %v61
    %v94 = vunpack.c.l.b16 %v62
    %v95 = vunpack.c.l.b16 %v63
    %v96 = vunpack.c.l.b16 %v64
    %v97 = vunpack.c.l.b16 %v65
    %v98 = vunpack.c.l.b16 %v66
    %v99 = vunpack.c.l.b16 %v67
    %v100 = vunpack.c.l.b16 %v68
    %v101 = vunpack.c.l.b16 %v69
    %v102 = vunpack.c.l.b16 %v70
    %v103 = vunpack.c.l.b16 %v71
    %v104 = vunpack.c.l.b16 %v72
    %v105 = vunpack.c.l.b16 %v73
    %v106 = vpack.c.b16 %v94, %v93
    %v107 = vpack.c.b16 %v96, %v95
    %v108 = vpack.c.b16 %v98, %v97
    %v109 = vpack.c.b16 %v100, %v99
    %v110 = vpack.c.b16 %v102, %v101
    %v111 = vpack.c.b16 %v104, %v103
    %v112 = vpack.c.b16 %v105, %v105
    %v119 = vunpack.c.l.b16 %v74
    %v120 = vunpack.c.l.b16 %v75
    %v121 = vunpack.c.l.b16 %v76
    %v122 = vunpack.c.l.b16 %v77
    %v123 = vunpack.c.l.b16 %v78
    %v124 = vunpack.c.l.b16 %v79
    %v125 = vpack.c.b16 %v120, %v119
    %v126 = vpack.c.b16 %v122, %v121
    %v127 = vpack.c.b16 %v124, %v123
    %vm131 = vcmask 392192
    %v133 = vsel %vm131, %v106, 0
    %v136 = vsel %vm131, %v107, 0
    %v139 = vsel %vm131, %v108, 0
    %v142 = vsel %vm131, %v109, 0
    %v145 = vsel %vm131, %v110, 0
    %v148 = vsel %vm131, %v111, 0
    %v151 = vsel %vm131, %v112, 0
    %153 = vmatpush.bf16.msra.mxu0 0
    %154 = vmatpush.bf16.msra.mxu0 0
    %155 = vmatpush.bf16.msra.mxu0 0
    %156 = vmatpush.bf16.msra.mxu0 0
    %157 = vmatpush.bf16.msra.mxu0 0
    %158 = vmatpush.bf16.msra.mxu0 %v127
    %159 = vmatpush.bf16.msra.mxu0 %v126
    %160 = vmatpush.bf16.msra.mxu0 %v125
    %161 = vmatmul.bf16.gmra.mxu0 %v133
    %v162 = vpop.f32.mrf.mxu0
    %v163 = vadd.f32 0.0, %v162
    %v164 = vpop.f32.mrf.mxu0
    %v165 = vadd.f32 0.0, %v164
    %166 = vmatmul.bf16.gmra.mxu0 %v136
    %v167 = vpop.f32.mrf.mxu0
    %v168 = vadd.f32 0.0, %v167
    %v169 = vpop.f32.mrf.mxu0
    %v170 = vadd.f32 0.0, %v169
    %171 = vmatmul.bf16.gmra.mxu0 %v139
    %v172 = vpop.f32.mrf.mxu0
    %v173 = vadd.f32 0.0, %v172
    %v174 = vpop.f32.mrf.mxu0
    %v175 = vadd.f32 0.0, %v174
    %176 = vmatmul.bf16.gmra.mxu0 %v142
    %v177 = vpop.f32.mrf.mxu0
    %v178 = vadd.f32 0.0, %v177
    %v179 = vpop.f32.mrf.mxu0
    %v180 = vadd.f32 0.0, %v179
    %181 = vmatmul.bf16.gmra.mxu0 %v145
    %v182 = vpop.f32.mrf.mxu0
    %v183 = vadd.f32 0.0, %v182
    %v184 = vpop.f32.mrf.mxu0
    %v185 = vadd.f32 0.0, %v184
    %186 = vmatmul.bf16.gmra.mxu0 %v148
    %v187 = vpop.f32.mrf.mxu0
    %v188 = vadd.f32 0.0, %v187
    %v189 = vpop.f32.mrf.mxu0
    %v190 = vadd.f32 0.0, %v189
    %191 = vmatmul.bf16.gmra.mxu0 %v151
    %v192 = vpop.f32.mrf.mxu0
    %v193 = vadd.f32 0.0, %v192
    %v194 = vpop.f32.mrf.mxu0
    %195 = vdwg.mxu0
    %v196 = vadd.f32 %v163, %v165
    %v197 = vadd.f32 %v196, %v168
    %v198 = vadd.f32 %v197, %v170
    %v199 = vadd.f32 %v198, %v173
    %v200 = vadd.f32 %v199, %v175
    %v201 = vadd.f32 %v200, %v178
    %v202 = vadd.f32 %v201, %v180
    %v203 = vadd.f32 %v202, %v183
    %v204 = vadd.f32 %v203, %v185
    %v205 = vadd.f32 %v204, %v188
    %v206 = vadd.f32 %v205, %v190
    %vm207 = vcmask 1041408
    %v208 = vsel %vm207, %v193, 0.0
    %v209 = vadd.f32 %v206, %v208
    %v210 = vrot.slane %v209, 4
    %v211 = vadd.f32 %v209, %v210
    %v212 = vrot.slane %v211, 2
    %v213 = vadd.f32 %v211, %v212
    %v214 = vrot.slane %v213, 1
    %v215 = vadd.f32 %v213, %v214
    %v216 = vrcp.pop 98.0
    %v217 = vmul.f32 98.0, %v216
    %v218 = vsub.f32 1.0, %v217
    %v219 = vmul.f32 %v216, %v218
    %v220 = vadd.f32 %v216, %v219
    %vm221 = vweird.f32 %v216
    %v222 = vsel %vm221, %v216, %v220
    %v223 = vmul.f32 %v215, %v222
    %v224 = vsub.f32 %v163, %v223
    %v225 = vsub.f32 %v165, %v223
    %v226 = vsub.f32 %v168, %v223
    %v227 = vsub.f32 %v170, %v223
    %v228 = vsub.f32 %v173, %v223
    %v229 = vsub.f32 %v175, %v223
    %v230 = vsub.f32 %v178, %v223
    %v231 = vsub.f32 %v180, %v223
    %v232 = vsub.f32 %v183, %v223
    %v233 = vsub.f32 %v185, %v223
    %v234 = vsub.f32 %v188, %v223
    %v235 = vsub.f32 %v190, %v223
    %v236 = vsub.f32 %v193, %v223
    %v237 = vmul.f32 %v224, %v224
    %v238 = vmul.f32 %v225, %v225
    %v239 = vmul.f32 %v226, %v226
    %v240 = vmul.f32 %v227, %v227
    %v241 = vmul.f32 %v228, %v228
    %v242 = vmul.f32 %v229, %v229
    %v243 = vmul.f32 %v230, %v230
    %v244 = vmul.f32 %v231, %v231
    %v245 = vmul.f32 %v232, %v232
    %v246 = vmul.f32 %v233, %v233
    %v247 = vmul.f32 %v234, %v234
    %v248 = vmul.f32 %v235, %v235
    %v249 = vmul.f32 %v236, %v236
    %v250 = vadd.f32 %v237, %v238
    %v251 = vadd.f32 %v250, %v239
    %v252 = vadd.f32 %v251, %v240
    %v253 = vadd.f32 %v252, %v241
    %v254 = vadd.f32 %v253, %v242
    %v255 = vadd.f32 %v254, %v243
    %v256 = vadd.f32 %v255, %v244
    %v257 = vadd.f32 %v256, %v245
    %v258 = vadd.f32 %v257, %v246
    %v259 = vadd.f32 %v258, %v247
    %v260 = vadd.f32 %v259, %v248
    %v261 = vsel %vm207, %v249, 0.0
    %v262 = vadd.f32 %v260, %v261
    %v263 = vrot.slane %v262, 4
    %v264 = vadd.f32 %v262, %v263
    %v265 = vrot.slane %v264, 2
    %v266 = vadd.f32 %v264, %v265
    %v267 = vrot.slane %v266, 1
    %v268 = vadd.f32 %v266, %v267
    %v269 = vmul.f32 %v268, %v222
    %v270 = vadd.f32 %v269, 1e-05
    %v271 = vrsqrt.pop %v270
    %v272 = vmul.f32 %v271, %v270
    %v273 = vmul.f32 %v272, %v271
    %v274 = vmul.f32 0.5, %v273
    %v275 = vsub.f32 1.5, %v274
    %v276 = vmul.f32 %v271, %v275
    %vm277 = vweird.f32 %v270
    %vm278 = vweird.f32 %v271
    %vm279 = vmor %vm277, %vm278
    %v280 = vsel %vm279, %v271, %v276
    %v281 = vmul.f32 %v224, %v280
    %v282 = vmul.f32 %v225, %v280
    %v283 = vmul.f32 %v226, %v280
    %v284 = vmul.f32 %v227, %v280
    %v285 = vmul.f32 %v228, %v280
    %v286 = vmul.f32 %v229, %v280
    %v287 = vmul.f32 %v230, %v280
    %v288 = vmul.f32 %v231, %v280
    %v289 = vmul.f32 %v232, %v280
    %v290 = vmul.f32 %v233, %v280
    %v291 = vmul.f32 %v234, %v280
    %v292 = vmul.f32 %v235, %v280
    %v293 = vmul.f32 %v236, %v280
    %v294 = vld [vmem:[#allocation4] sm:$0x1]
    %v296 = vperm.slane %v294, 0
    %v298 = vmul.f32 %v281, %v296
    %v299 = vmul.f32 %v282, %v296
    %v300 = vmul.f32 %v283, %v296
    %v301 = vmul.f32 %v284, %v296
    %v302 = vmul.f32 %v285, %v296
    %v303 = vmul.f32 %v286, %v296
    %v304 = vmul.f32 %v287, %v296
    %v305 = vmul.f32 %v288, %v296
    %v306 = vmul.f32 %v289, %v296
    %v307 = vmul.f32 %v290, %v296
    %v308 = vmul.f32 %v291, %v296
    %v309 = vmul.f32 %v292, %v296
    %v310 = vmul.f32 %v293, %v296
    %v311 = vld [vmem:[#allocation6] sm:$0x1]
    %v313 = vperm.slane %v311, 0
    %v315 = vadd.f32 %v298, %v313
    %v316 = vadd.f32 %v299, %v313
    %v317 = vadd.f32 %v300, %v313
    %v318 = vadd.f32 %v301, %v313
    %v319 = vadd.f32 %v302, %v313
    %v320 = vadd.f32 %v303, %v313
    %v321 = vadd.f32 %v304, %v313
    %v322 = vadd.f32 %v305, %v313
    %v323 = vadd.f32 %v306, %v313
    %v324 = vadd.f32 %v307, %v313
    %v325 = vadd.f32 %v308, %v313
    %v326 = vadd.f32 %v309, %v313
    %v327 = vadd.f32 %v310, %v313
    %vm328 = vcmp.gt.f32.partialorder %v315, 0.0
    %vm329 = vcmp.gt.f32.partialorder %v316, 0.0
    %vm330 = vcmp.gt.f32.partialorder %v317, 0.0
    %vm331 = vcmp.gt.f32.partialorder %v318, 0.0
    %vm332 = vcmp.gt.f32.partialorder %v319, 0.0
    %vm333 = vcmp.gt.f32.partialorder %v320, 0.0
    %vm334 = vcmp.gt.f32.partialorder %v321, 0.0
    %vm335 = vcmp.gt.f32.partialorder %v322, 0.0
    %vm336 = vcmp.gt.f32.partialorder %v323, 0.0
    %vm337 = vcmp.gt.f32.partialorder %v324, 0.0
    %vm338 = vcmp.gt.f32.partialorder %v325, 0.0
    %vm339 = vcmp.gt.f32.partialorder %v326, 0.0
    %vm340 = vcmp.gt.f32.partialorder %v327, 0.0
    %v341 = vmul.f32 %v315, 0.2
    %v342 = vmul.f32 %v316, 0.2
    %v343 = vmul.f32 %v317, 0.2
    %v344 = vmul.f32 %v318, 0.2
    %v345 = vmul.f32 %v319, 0.2
    %v346 = vmul.f32 %v320, 0.2
    %v347 = vmul.f32 %v321, 0.2
    %v348 = vmul.f32 %v322, 0.2
    %v349 = vmul.f32 %v323, 0.2
    %v350 = vmul.f32 %v324, 0.2
    %v351 = vmul.f32 %v325, 0.2
    %v352 = vmul.f32 %v326, 0.2
    %v353 = vmul.f32 %v327, 0.2
    %v354 = vsel %vm328, %v315, %v341
    %v355 = vsel %vm329, %v316, %v342
    %v356 = vsel %vm330, %v317, %v343
    %v357 = vsel %vm331, %v318, %v344
    %v358 = vsel %vm332, %v319, %v345
    %v359 = vsel %vm333, %v320, %v346
    %v360 = vsel %vm334, %v321, %v347
    %v361 = vsel %vm335, %v322, %v348
    %v362 = vsel %vm336, %v323, %v349
    %v363 = vsel %vm337, %v324, %v350
    %v364 = vsel %vm338, %v325, %v351
    %v365 = vsel %vm339, %v326, %v352
    %v366 = vsel %vm340, %v327, %v353
    %367 = vst [vmem:[%s4] sm:$0xff] %v354
    %368 = vst [vmem:[%s4 + $0x8] sm:$0xff] %v355
    %369 = vst [vmem:[%s4 + $0x10] sm:$0xff] %v356
    %370 = vst [vmem:[%s4 + $0x18] sm:$0xff] %v357
    %371 = vst [vmem:[%s4 + $0x20] sm:$0xff] %v358
    %372 = vst [vmem:[%s4 + $0x28] sm:$0xff] %v359
    %373 = vst [vmem:[%s4 + $0x30] sm:$0xff] %v360
    %374 = vst [vmem:[%s4 + $0x38] sm:$0xff] %v361
    %375 = vst [vmem:[%s4 + $0x40] sm:$0xff] %v362
    %376 = vst [vmem:[%s4 + $0x48] sm:$0xff] %v363
    %377 = vst [vmem:[%s4 + $0x50] sm:$0xff] %v364
    %378 = vst [vmem:[%s4 + $0x58] sm:$0xff] %v365
    %379 = vst [vmem:[%s4 + $0x60] sm:$0x3] %v366
    // Predicated region
    $region30: #{vae_forward.4} parent=1 // pred_check
      _
    $region31: #{vae_forward.4} parent=1 // pred_check_branch
      %381 = sbr.rel (0) target = $region33
    $region32: #{vae_forward.4} parent=1 // pred_region
      _
    $region33: #{vae_forward.4} parent=1 // pred_fallthru
      _
    // Predicated region
    $region34: #{vae_forward.4} parent=1 // pred_check
      _
    $region35: #{vae_forward.4} parent=1 // pred_check_branch
      %383 = sbr.rel (0) target = $region37
    $region36: #{vae_forward.4} parent=1 // pred_region
      _
    $region37: #{vae_forward.4} parent=1 // pred_fallthru
      _
    %384 = vsyncpa [#allocation3], 1
    %385 = vsyncpa [#allocation5], 1

// kernel: vae_forward.5
$region0: #{vae_forward.5}
  #allocation0 [shape = 'u32[]', space=smem, size = 0x4, offset = 0x4, fixed_abs, tag = 'smem constant byte address 0x4 - core index']
  #allocation1 [shape = 'u32[72,128]{1,0:T(1,128)}', space=vmem, size = 0x9000, scoped, tag = 'internal scratch']
  %s0 = inlined_call_operand.vmem [shape: bf16[8,1024], index: 0, kind: input, shape index: {}]
  %s1 = inlined_call_operand.hbm [shape: bf16[1024,128], index: 1, kind: input, shape index: {}]
  %s2 = inlined_call_operand.hbm [shape: f32[1,128], index: 2, kind: input, shape index: {}]
  %s3 = inlined_call_operand.hbm [shape: f32[1,128], index: 3, kind: input, shape index: {}]
  %s4 = inlined_call_operand.hbm [shape: bf16[512,128], index: 4, kind: input, shape index: {}]
  %s5 = inlined_call_operand.hbm [shape: f32[1,128], index: 5, kind: input, shape index: {}]
  %s6 = inlined_call_operand.vmem [shape: f32[2,32], index: 6, kind: input, shape index: {}]
  %s7 = inlined_call_operand.hbm [shape: bf16[32,512], index: 7, kind: input, shape index: {}]
  %s8 = inlined_call_operand.hbm [shape: f32[1,512], index: 8, kind: input, shape index: {}]
  %s9 = inlined_call_operand.hbm [shape: bf16[512,2048], index: 9, kind: input, shape index: {}]
  %s10 = inlined_call_operand.hbm [shape: f32[1,128], index: 10, kind: input, shape index: {}]
  %s11 = inlined_call_operand.hbm [shape: f32[1,128], index: 11, kind: input, shape index: {}]
  %s12 = inlined_call_operand.vmem [shape: f32[2,128], index: 12, kind: output, shape index: {0}]
  %s13 = inlined_call_operand.vmem [shape: f32[2,2048], index: 13, kind: output, shape index: {1}]
  %14 = xla_tuple %s12, %s13
  %s15 = sld [smem:[#allocation0]]
  $region106: #{vae_forward.5} parent=0
    _
  %s17 = ssub.s32 1, %s15
  %s18 = scalar_select 0, %s17, %s15
  $region1: #{vae_forward.5} parent=0
    #allocation2 [shape = 'u8[262144]{0}', space=vmem, size = 0x40000, scoped, tag = 'input window, operand 1, single buffered']
    #allocation3 [shape = 's32[1]{0}', space=sflag, size = 0x4, scoped, tag = 'scoped memory for vae_forward.5']
    #allocation4 [shape = 'u8[512]{0}', space=vmem, size = 0x400, scoped, tag = 'input window, operand 2, single buffered']
    #allocation5 [shape = 's32[1]{0}', space=sflag, size = 0x4, scoped, tag = 'scoped memory for vae_forward.5']
    #allocation6 [shape = 'u8[512]{0}', space=vmem, size = 0x400, scoped, tag = 'input window, operand 3, single buffered']
    #allocation7 [shape = 'u8[131072]{0}', space=vmem, size = 0x20000, scoped, tag = 'input window, operand 4, single buffered']
    #allocation8 [shape = 's32[1]{0}', space=sflag, size = 0x4, scoped, tag = 'scoped memory for vae_forward.5']
    #allocation9 [shape = 'u8[512]{0}', space=vmem, size = 0x400, scoped, tag = 'input window, operand 5, single buffered']
    #allocation10 [shape = 'u8[32768]{0}', space=vmem, size = 0x8000, scoped, tag = 'input window, operand 7, single buffered']
    #allocation11 [shape = 's32[1]{0}', space=sflag, size = 0x4, scoped, tag = 'scoped memory for vae_forward.5']
    #allocation12 [shape = 'u8[2048]{0}', space=vmem, size = 0x800, scoped, tag = 'input window, operand 8, single buffered']
    #allocation13 [shape = 'u8[2097152]{0}', space=vmem, size = 0x200000, scoped, tag = 'input window, operand 9, single buffered']
    #allocation14 [shape = 's32[1]{0}', space=sflag, size = 0x4, scoped, tag = 'scoped memory for vae_forward.5']
    #allocation15 [shape = 'u8[512]{0}', space=vmem, size = 0x400, scoped, tag = 'input window, operand 10, single buffered']
    #allocation16 [shape = 'u8[512]{0}', space=vmem, size = 0x400, scoped, tag = 'input window, operand 11, single buffered']
    #allocation17 [shape = 's32[1]{0}', space=sflag, size = 0x4, scoped, tag = 'scoped memory for vae_forward.5']
    %19 = vsyncpa [#allocation3], 0
    %20 = vsyncpa [#allocation5], 0
    %21 = vsyncpa [#allocation8], 0
    %22 = vsyncpa [#allocation11], 0
    %23 = vsyncpa [#allocation14], 0
    %24 = vsyncpa [#allocation17], 0
    // Predicated region
    $region2: #{vae_forward.5} parent=1 // pred_check
      _
    $region3: #{vae_forward.5} parent=1 // pred_check_branch
      %26 = sbr.rel (0) target = $region5
    $region4: #{vae_forward.5} parent=1 // pred_region
      _
    $region5: #{vae_forward.5} parent=1 // pred_fallthru
      _
    // Predicated region
    $region6: #{vae_forward.5} parent=1 // pred_check
      _
    $region7: #{vae_forward.5} parent=1 // pred_check_branch
      %28 = sbr.rel (0) target = $region9
    $region8: #{vae_forward.5} parent=1 // pred_region
      %30 = vsyncadd [#allocation3], 0
      %s31 = sshll.u32 %s1, 4
      %s32 = int_to_ptr.hbm [resolvable:$true] %s31
      %s33 = sshll.u32 [#allocation2], 4
      %s34 = int_to_ptr.vmem [resolvable:$true] %s33
      %39 = dma.hbm_to_vmem [thread:$0]  %s32, 8192, %s34, [#allocation3], 64, 64, 4
    $region9: #{vae_forward.5} parent=1 // pred_fallthru
      _
    // Predicated region
    $region10: #{vae_forward.5} parent=1 // pred_check
      _
    $region11: #{vae_forward.5} parent=1 // pred_check_branch
      %41 = sbr.rel (0) target = $region13
    $region12: #{vae_forward.5} parent=1 // pred_region
      %43 = vsyncadd [#allocation5], 0
      %s45 = sshll.u32 %s2, 4
      %s46 = int_to_ptr.hbm [resolvable:$true] %s45
      %s47 = sshll.u32 [#allocation4], 4
      %s48 = int_to_ptr.vmem [resolvable:$true] %s47
      %50 = dma.hbm_to_vmem [thread:$0]  %s46, 16, %s48, [#allocation5]
    $region13: #{vae_forward.5} parent=1 // pred_fallthru
      _
    // Predicated region
    $region14: #{vae_forward.5} parent=1 // pred_check
      _
    $region15: #{vae_forward.5} parent=1 // pred_check_branch
      %52 = sbr.rel (0) target = $region17
    $region16: #{vae_forward.5} parent=1 // pred_region
      %54 = vsyncadd [#allocation5], 0
      %s56 = sshll.u32 %s3, 4
      %s57 = int_to_ptr.hbm [resolvable:$true] %s56
      %s58 = sshll.u32 [#allocation6], 4
      %s59 = int_to_ptr.vmem [resolvable:$true] %s58
      %61 = dma.hbm_to_vmem [thread:$0]  %s57, 16, %s59, [#allocation5]
    $region17: #{vae_forward.5} parent=1 // pred_fallthru
      _
    // Predicated region
    $region18: #{vae_forward.5} parent=1 // pred_check
      _
    $region19: #{vae_forward.5} parent=1 // pred_check_branch
      %63 = sbr.rel (0) target = $region21
    $region20: #{vae_forward.5} parent=1 // pred_region
      %65 = vsyncadd [#allocation8], 0
      %s66 = sshll.u32 %s4, 4
      %s67 = int_to_ptr.hbm [resolvable:$true] %s66
      %s68 = sshll.u32 [#allocation7], 4
      %s69 = int_to_ptr.vmem [resolvable:$true] %s68
      %74 = dma.hbm_to_vmem [thread:$0]  %s67, 4096, %s69, [#allocation8], 64, 64, 4
    $region21: #{vae_forward.5} parent=1 // pred_fallthru
      _
    // Predicated region
    $region22: #{vae_forward.5} parent=1 // pred_check
      _
    $region23: #{vae_forward.5} parent=1 // pred_check_branch
      %76 = sbr.rel (0) target = $region25
    $region24: #{vae_forward.5} parent=1 // pred_region
      %78 = vsyncadd [#allocation8], 0
      %s80 = sshll.u32 %s5, 4
      %s81 = int_to_ptr.hbm [resolvable:$true] %s80
      %s82 = sshll.u32 [#allocation9], 4
      %s83 = int_to_ptr.vmem [resolvable:$true] %s82
      %85 = dma.hbm_to_vmem [thread:$0]  %s81, 16, %s83, [#allocation8]
    $region25: #{vae_forward.5} parent=1 // pred_fallthru
      _
    // Predicated region
    $region26: #{vae_forward.5} parent=1 // pred_check
      _
    $region27: #{vae_forward.5} parent=1 // pred_check_branch
      %87 = sbr.rel (0) target = $region29
    $region28: #{vae_forward.5} parent=1 // pred_region
      _
    $region29: #{vae_forward.5} parent=1 // pred_fallthru
      _
    // Predicated region
    $region30: #{vae_forward.5} parent=1 // pred_check
      _
    $region31: #{vae_forward.5} parent=1 // pred_check_branch
      %89 = sbr.rel (0) target = $region33
    $region32: #{vae_forward.5} parent=1 // pred_region
      %91 = vsyncadd [#allocation11], 0
      %s92 = sshll.u32 %s7, 4
      %s93 = int_to_ptr.hbm [resolvable:$true] %s92
      %s94 = sshll.u32 [#allocation10], 4
      %s95 = int_to_ptr.vmem [resolvable:$true] %s94
      %100 = dma.hbm_to_vmem [thread:$0]  %s93, 1024, %s95, [#allocation11], 256, 256, 16
    $region33: #{vae_forward.5} parent=1 // pred_fallthru
      _
    // Predicated region
    $region34: #{vae_forward.5} parent=1 // pred_check
      _
    $region35: #{vae_forward.5} parent=1 // pred_check_branch
      %102 = sbr.rel (0) target = $region37
    $region36: #{vae_forward.5} parent=1 // pred_region
      %104 = vsyncadd [#allocation11], 0
      %s106 = sshll.u32 %s8, 4
      %s107 = int_to_ptr.hbm [resolvable:$true] %s106
      %s108 = sshll.u32 [#allocation12], 4
      %s109 = int_to_ptr.vmem [resolvable:$true] %s108
      %111 = dma.hbm_to_vmem [thread:$0]  %s107, 64, %s109, [#allocation11]
    $region37: #{vae_forward.5} parent=1 // pred_fallthru
      _
    // Predicated region
    $region38: #{vae_forward.5} parent=1 // pred_check
      _
    $region39: #{vae_forward.5} parent=1 // pred_check_branch
      %113 = sbr.rel (0) target = $region41
    $region40: #{vae_forward.5} parent=1 // pred_region
      %115 = vsyncadd [#allocation14], 0
      %s116 = sshll.u32 %s9, 4
      %s117 = int_to_ptr.hbm [resolvable:$true] %s116
      %s118 = sshll.u32 [#allocation13], 4
      %s119 = int_to_ptr.vmem [resolvable:$true] %s118
      %124 = dma.hbm_to_vmem [thread:$0]  %s117, 65536, %s119, [#allocation14], 1024, 1024, 64
    $region41: #{vae_forward.5} parent=1 // pred_fallthru
      _
    // Predicated region
    $region42: #{vae_forward.5} parent=1 // pred_check
      _
    $region43: #{vae_forward.5} parent=1 // pred_check_branch
      %126 = sbr.rel (0) target = $region45
    $region44: #{vae_forward.5} parent=1 // pred_region
      %128 = vsyncadd [#allocation14], 0
      %s130 = sshll.u32 %s10, 4
      %s131 = int_to_ptr.hbm [resolvable:$true] %s130
      %s132 = sshll.u32 [#allocation15], 4
      %s133 = int_to_ptr.vmem [resolvable:$true] %s132
      %135 = dma.hbm_to_vmem [thread:$0]  %s131, 16, %s133, [#allocation14]
    $region45: #{vae_forward.5} parent=1 // pred_fallthru
      _
    // Predicated region
    $region46: #{vae_forward.5} parent=1 // pred_check
      _
    $region47: #{vae_forward.5} parent=1 // pred_check_branch
      %137 = sbr.rel (0) target = $region49
    $region48: #{vae_forward.5} parent=1 // pred_region
      %139 = vsyncadd [#allocation17], 0
      %s141 = sshll.u32 %s11, 4
      %s142 = int_to_ptr.hbm [resolvable:$true] %s141
      %s143 = sshll.u32 [#allocation16], 4
      %s144 = int_to_ptr.vmem [resolvable:$true] %s143
      %146 = dma.hbm_to_vmem [thread:$0]  %s142, 16, %s144, [#allocation17]
    $region49: #{vae_forward.5} parent=1 // pred_fallthru
      _
    // Predicated region
    $region50: #{vae_forward.5} parent=1 // pred_check
      _
    $region51: #{vae_forward.5} parent=1 // pred_check_branch
      %148 = sbr.rel (0) target = $region53
    $region52: #{vae_forward.5} parent=1 // pred_region
      %150 = dma.done [#allocation3], 8192
    $region53: #{vae_forward.5} parent=1 // pred_fallthru
      _
    // Predicated region
    $region54: #{vae_forward.5} parent=1 // pred_check
      _
    $region55: #{vae_forward.5} parent=1 // pred_check_branch
      %152 = sbr.rel (0) target = $region57
    $region56: #{vae_forward.5} parent=1 // pred_region
      %154 = dma.done [#allocation5], 16
    $region57: #{vae_forward.5} parent=1 // pred_fallthru
      _
    // Predicated region
    $region58: #{vae_forward.5} parent=1 // pred_check
      _
    $region59: #{vae_forward.5} parent=1 // pred_check_branch
      %156 = sbr.rel (0) target = $region61
    $region60: #{vae_forward.5} parent=1 // pred_region
      %158 = dma.done [#allocation5], 16
    $region61: #{vae_forward.5} parent=1 // pred_fallthru
      _
    // Predicated region
    $region62: #{vae_forward.5} parent=1 // pred_check
      _
    $region63: #{vae_forward.5} parent=1 // pred_check_branch
      %160 = sbr.rel (0) target = $region65
    $region64: #{vae_forward.5} parent=1 // pred_region
      %162 = dma.done [#allocation8], 4096
    $region65: #{vae_forward.5} parent=1 // pred_fallthru
      _
    // Predicated region
    $region66: #{vae_forward.5} parent=1 // pred_check
      _
    $region67: #{vae_forward.5} parent=1 // pred_check_branch
      %164 = sbr.rel (0) target = $region69
    $region68: #{vae_forward.5} parent=1 // pred_region
      %166 = dma.done [#allocation8], 16
    $region69: #{vae_forward.5} parent=1 // pred_fallthru
      _
    // Predicated region
    $region70: #{vae_forward.5} parent=1 // pred_check
      _
    $region71: #{vae_forward.5} parent=1 // pred_check_branch
      %168 = sbr.rel (0) target = $region73
    $region72: #{vae_forward.5} parent=1 // pred_region
      %170 = dma.done [#allocation11], 1024
    $region73: #{vae_forward.5} parent=1 // pred_fallthru
      _
    // Predicated region
    $region74: #{vae_forward.5} parent=1 // pred_check
      _
    $region75: #{vae_forward.5} parent=1 // pred_check_branch
      %172 = sbr.rel (0) target = $region77
    $region76: #{vae_forward.5} parent=1 // pred_region
      %174 = dma.done [#allocation11], 64
    $region77: #{vae_forward.5} parent=1 // pred_fallthru
      _
    // Predicated region
    $region78: #{vae_forward.5} parent=1 // pred_check
      _
    $region79: #{vae_forward.5} parent=1 // pred_check_branch
      %176 = sbr.rel (0) target = $region81
    $region80: #{vae_forward.5} parent=1 // pred_region
      %178 = dma.done [#allocation14], 65536
    $region81: #{vae_forward.5} parent=1 // pred_fallthru
      _
    // Predicated region
    $region82: #{vae_forward.5} parent=1 // pred_check
      _
    $region83: #{vae_forward.5} parent=1 // pred_check_branch
      %180 = sbr.rel (0) target = $region85
    $region84: #{vae_forward.5} parent=1 // pred_region
      %182 = dma.done [#allocation14], 16
    $region85: #{vae_forward.5} parent=1 // pred_fallthru
      _
    // Predicated region
    $region86: #{vae_forward.5} parent=1 // pred_check
      _
    $region87: #{vae_forward.5} parent=1 // pred_check_branch
      %184 = sbr.rel (0) target = $region89
    $region88: #{vae_forward.5} parent=1 // pred_region
      %186 = dma.done [#allocation17], 16
    $region89: #{vae_forward.5} parent=1 // pred_fallthru
      _
    %v188 = vld [vmem:[%s0] sm:$0xff]
    %v189 = vld [vmem:[%s0 + $0x8] sm:$0xff]
    %v190 = vld [vmem:[%s0 + $0x10] sm:$0xff]
    %v191 = vld [vmem:[%s0 + $0x18] sm:$0xff]
    %v192 = vld [vmem:[#allocation2] sm:$0xf]
    %v193 = vld [vmem:[#allocation2 + $0x4] sm:$0xf]
    %v194 = vld [vmem:[#allocation2 + $0x8] sm:$0xf]
    %v195 = vld [vmem:[#allocation2 + $0xc] sm:$0xf]
    %v196 = vld [vmem:[#allocation2 + $0x10] sm:$0xf]
    %v197 = vld [vmem:[#allocation2 + $0x14] sm:$0xf]
    %v198 = vld [vmem:[#allocation2 + $0x18] sm:$0xf]
    %v199 = vld [vmem:[#allocation2 + $0x1c] sm:$0xf]
    %v200 = vld [vmem:[#allocation2 + $0x20] sm:$0xf]
    %v201 = vld [vmem:[#allocation2 + $0x24] sm:$0xf]
    %v202 = vld [vmem:[#allocation2 + $0x28] sm:$0xf]
    %v203 = vld [vmem:[#allocation2 + $0x2c] sm:$0xf]
    %v204 = vld [vmem:[#allocation2 + $0x30] sm:$0xf]
    %v205 = vld [vmem:[#allocation2 + $0x34] sm:$0xf]
    %v206 = vld [vmem:[#allocation2 + $0x38] sm:$0xf]
    %v207 = vld [vmem:[#allocation2 + $0x3c] sm:$0xf]
    %v208 = vld [vmem:[#allocation2 + $0x40] sm:$0xf]
    %v209 = vld [vmem:[#allocation2 + $0x44] sm:$0xf]
    %v210 = vld [vmem:[#allocation2 + $0x48] sm:$0xf]
    %v211 = vld [vmem:[#allocation2 + $0x4c] sm:$0xf]
    %v212 = vld [vmem:[#allocation2 + $0x50] sm:$0xf]
    %v213 = vld [vmem:[#allocation2 + $0x54] sm:$0xf]
    %v214 = vld [vmem:[#allocation2 + $0x58] sm:$0xf]
    %v215 = vld [vmem:[#allocation2 + $0x5c] sm:$0xf]
    %v216 = vld [vmem:[#allocation2 + $0x60] sm:$0xf]
    %v217 = vld [vmem:[#allocation2 + $0x64] sm:$0xf]
    %v218 = vld [vmem:[#allocation2 + $0x68] sm:$0xf]
    %v219 = vld [vmem:[#allocation2 + $0x6c] sm:$0xf]
    %v220 = vld [vmem:[#allocation2 + $0x70] sm:$0xf]
    %v221 = vld [vmem:[#allocation2 + $0x74] sm:$0xf]
    %v222 = vld [vmem:[#allocation2 + $0x78] sm:$0xf]
    %v223 = vld [vmem:[#allocation2 + $0x7c] sm:$0xf]
    %v224 = vld [vmem:[#allocation2 + $0x80] sm:$0xf]
    %v225 = vld [vmem:[#allocation2 + $0x84] sm:$0xf]
    %v226 = vld [vmem:[#allocation2 + $0x88] sm:$0xf]
    %v227 = vld [vmem:[#allocation2 + $0x8c] sm:$0xf]
    %v228 = vld [vmem:[#allocation2 + $0x90] sm:$0xf]
    %v229 = vld [vmem:[#allocation2 + $0x94] sm:$0xf]
    %v230 = vld [vmem:[#allocation2 + $0x98] sm:$0xf]
    %v231 = vld [vmem:[#allocation2 + $0x9c] sm:$0xf]
    %v232 = vld [vmem:[#allocation2 + $0xa0] sm:$0xf]
    %v233 = vld [vmem:[#allocation2 + $0xa4] sm:$0xf]
    %v234 = vld [vmem:[#allocation2 + $0xa8] sm:$0xf]
    %v235 = vld [vmem:[#allocation2 + $0xac] sm:$0xf]
    %v236 = vld [vmem:[#allocation2 + $0xb0] sm:$0xf]
    %v237 = vld [vmem:[#allocation2 + $0xb4] sm:$0xf]
    %v238 = vld [vmem:[#allocation2 + $0xb8] sm:$0xf]
    %v239 = vld [vmem:[#allocation2 + $0xbc] sm:$0xf]
    %v240 = vld [vmem:[#allocation2 + $0xc0] sm:$0xf]
    %v241 = vld [vmem:[#allocation2 + $0xc4] sm:$0xf]
    %v242 = vld [vmem:[#allocation2 + $0xc8] sm:$0xf]
    %v243 = vld [vmem:[#allocation2 + $0xcc] sm:$0xf]
    %v244 = vld [vmem:[#allocation2 + $0xd0] sm:$0xf]
    %v245 = vld [vmem:[#allocation2 + $0xd4] sm:$0xf]
    %v246 = vld [vmem:[#allocation2 + $0xd8] sm:$0xf]
    %v247 = vld [vmem:[#allocation2 + $0xdc] sm:$0xf]
    %v248 = vld [vmem:[#allocation2 + $0xe0] sm:$0xf]
    %v249 = vld [vmem:[#allocation2 + $0xe4] sm:$0xf]
    %v250 = vld [vmem:[#allocation2 + $0xe8] sm:$0xf]
    %v251 = vld [vmem:[#allocation2 + $0xec] sm:$0xf]
    %v252 = vld [vmem:[#allocation2 + $0xf0] sm:$0xf]
    %v253 = vld [vmem:[#allocation2 + $0xf4] sm:$0xf]
    %v254 = vld [vmem:[#allocation2 + $0xf8] sm:$0xf]
    %v255 = vld [vmem:[#allocation2 + $0xfc] sm:$0xf]
    %v256 = vld [vmem:[#allocation2 + $0x100] sm:$0xf]
    %v257 = vld [vmem:[#allocation2 + $0x104] sm:$0xf]
    %v258 = vld [vmem:[#allocation2 + $0x108] sm:$0xf]
    %v259 = vld [vmem:[#allocation2 + $0x10c] sm:$0xf]
    %v260 = vld [vmem:[#allocation2 + $0x110] sm:$0xf]
    %v261 = vld [vmem:[#allocation2 + $0x114] sm:$0xf]
    %v262 = vld [vmem:[#allocation2 + $0x118] sm:$0xf]
    %v263 = vld [vmem:[#allocation2 + $0x11c] sm:$0xf]
    %v264 = vld [vmem:[#allocation2 + $0x120] sm:$0xf]
    %v265 = vld [vmem:[#allocation2 + $0x124] sm:$0xf]
    %v266 = vld [vmem:[#allocation2 + $0x128] sm:$0xf]
    %v267 = vld [vmem:[#allocation2 + $0x12c] sm:$0xf]
    %v268 = vld [vmem:[#allocation2 + $0x130] sm:$0xf]
    %v269 = vld [vmem:[#allocation2 + $0x134] sm:$0xf]
    %v270 = vld [vmem:[#allocation2 + $0x138] sm:$0xf]
    %v271 = vld [vmem:[#allocation2 + $0x13c] sm:$0xf]
    %v272 = vld [vmem:[#allocation2 + $0x140] sm:$0xf]
    %v273 = vld [vmem:[#allocation2 + $0x144] sm:$0xf]
    %v274 = vld [vmem:[#allocation2 + $0x148] sm:$0xf]
    %v275 = vld [vmem:[#allocation2 + $0x14c] sm:$0xf]
    %v276 = vld [vmem:[#allocation2 + $0x150] sm:$0xf]
    %v277 = vld [vmem:[#allocation2 + $0x154] sm:$0xf]
    %v278 = vld [vmem:[#allocation2 + $0x158] sm:$0xf]
    %v279 = vld [vmem:[#allocation2 + $0x15c] sm:$0xf]
    %v280 = vld [vmem:[#allocation2 + $0x160] sm:$0xf]
    %v281 = vld [vmem:[#allocation2 + $0x164] sm:$0xf]
    %v282 = vld [vmem:[#allocation2 + $0x168] sm:$0xf]
    %v283 = vld [vmem:[#allocation2 + $0x16c] sm:$0xf]
    %v284 = vld [vmem:[#allocation2 + $0x170] sm:$0xf]
    %v285 = vld [vmem:[#allocation2 + $0x174] sm:$0xf]
    %v286 = vld [vmem:[#allocation2 + $0x178] sm:$0xf]
    %v287 = vld [vmem:[#allocation2 + $0x17c] sm:$0xf]
    %v288 = vld [vmem:[#allocation2 + $0x180] sm:$0xf]
    %v289 = vld [vmem:[#allocation2 + $0x184] sm:$0xf]
    %v290 = vld [vmem:[#allocation2 + $0x188] sm:$0xf]
    %v291 = vld [vmem:[#allocation2 + $0x18c] sm:$0xf]
    %v292 = vld [vmem:[#allocation2 + $0x190] sm:$0xf]
    %v293 = vld [vmem:[#allocation2 + $0x194] sm:$0xf]
    %v294 = vld [vmem:[#allocation2 + $0x198] sm:$0xf]
    %v295 = vld [vmem:[#allocation2 + $0x19c] sm:$0xf]
    %v296 = vld [vmem:[#allocation2 + $0x1a0] sm:$0xf]
    %v297 = vld [vmem:[#allocation2 + $0x1a4] sm:$0xf]
    %v298 = vld [vmem:[#allocation2 + $0x1a8] sm:$0xf]
    %v299 = vld [vmem:[#allocation2 + $0x1ac] sm:$0xf]
    %v300 = vld [vmem:[#allocation2 + $0x1b0] sm:$0xf]
    %v301 = vld [vmem:[#allocation2 + $0x1b4] sm:$0xf]
    %v302 = vld [vmem:[#allocation2 + $0x1b8] sm:$0xf]
    %v303 = vld [vmem:[#allocation2 + $0x1bc] sm:$0xf]
    %v304 = vld [vmem:[#allocation2 + $0x1c0] sm:$0xf]
    %v305 = vld [vmem:[#allocation2 + $0x1c4] sm:$0xf]
    %v306 = vld [vmem:[#allocation2 + $0x1c8] sm:$0xf]
    %v307 = vld [vmem:[#allocation2 + $0x1cc] sm:$0xf]
    %v308 = vld [vmem:[#allocation2 + $0x1d0] sm:$0xf]
    %v309 = vld [vmem:[#allocation2 + $0x1d4] sm:$0xf]
    %v310 = vld [vmem:[#allocation2 + $0x1d8] sm:$0xf]
    %v311 = vld [vmem:[#allocation2 + $0x1dc] sm:$0xf]
    %v312 = vld [vmem:[#allocation2 + $0x1e0] sm:$0xf]
    %v313 = vld [vmem:[#allocation2 + $0x1e4] sm:$0xf]
    %v314 = vld [vmem:[#allocation2 + $0x1e8] sm:$0xf]
    %v315 = vld [vmem:[#allocation2 + $0x1ec] sm:$0xf]
    %v316 = vld [vmem:[#allocation2 + $0x1f0] sm:$0xf]
    %v317 = vld [vmem:[#allocation2 + $0x1f4] sm:$0xf]
    %v318 = vld [vmem:[#allocation2 + $0x1f8] sm:$0xf]
    %v319 = vld [vmem:[#allocation2 + $0x1fc] sm:$0xf]
    %v324 = vunpack.c.l.b16 %v188
    %v325 = vunpack.c.h.b16 %v188
    %v326 = vunpack.c.l.b16 %v189
    %v327 = vunpack.c.h.b16 %v189
    %v328 = vunpack.c.l.b16 %v190
    %v329 = vunpack.c.h.b16 %v190
    %v330 = vunpack.c.l.b16 %v191
    %v331 = vunpack.c.h.b16 %v191
    %v332 = vpack.c.b16 %v324, %v324
    %v333 = vpack.c.b16 %v325, %v325
    %v334 = vpack.c.b16 %v326, %v326
    %v335 = vpack.c.b16 %v327, %v327
    %v336 = vpack.c.b16 %v328, %v328
    %v337 = vpack.c.b16 %v329, %v329
    %v338 = vpack.c.b16 %v330, %v330
    %v339 = vpack.c.b16 %v331, %v331
    %v476 = vunpack.c.l.b16 %v192
    %v477 = vunpack.c.l.b16 %v193
    %v478 = vunpack.c.l.b16 %v194
    %v479 = vunpack.c.l.b16 %v195
    %v480 = vunpack.c.l.b16 %v196
    %v481 = vunpack.c.l.b16 %v197
    %v482 = vunpack.c.l.b16 %v198
    %v483 = vunpack.c.l.b16 %v199
    %v484 = vunpack.c.l.b16 %v200
    %v485 = vunpack.c.l.b16 %v201
    %v486 = vunpack.c.l.b16 %v202
    %v487 = vunpack.c.l.b16 %v203
    %v488 = vunpack.c.l.b16 %v204
    %v489 = vunpack.c.l.b16 %v205
    %v490 = vunpack.c.l.b16 %v206
    %v491 = vunpack.c.l.b16 %v207
    %v492 = vunpack.c.l.b16 %v208
    %v493 = vunpack.c.l.b16 %v209
    %v494 = vunpack.c.l.b16 %v210
    %v495 = vunpack.c.l.b16 %v211
    %v496 = vunpack.c.l.b16 %v212
    %v497 = vunpack.c.l.b16 %v213
    %v498 = vunpack.c.l.b16 %v214
    %v499 = vunpack.c.l.b16 %v215
    %v500 = vunpack.c.l.b16 %v216
    %v501 = vunpack.c.l.b16 %v217
    %v502 = vunpack.c.l.b16 %v218
    %v503 = vunpack.c.l.b16 %v219
    %v504 = vunpack.c.l.b16 %v220
    %v505 = vunpack.c.l.b16 %v221
    %v506 = vunpack.c.l.b16 %v222
    %v507 = vunpack.c.l.b16 %v223
    %v508 = vunpack.c.l.b16 %v224
    %v509 = vunpack.c.l.b16 %v225
    %v510 = vunpack.c.l.b16 %v226
    %v511 = vunpack.c.l.b16 %v227
    %v512 = vunpack.c.l.b16 %v228
    %v513 = vunpack.c.l.b16 %v229
    %v514 = vunpack.c.l.b16 %v230
    %v515 = vunpack.c.l.b16 %v231
    %v516 = vunpack.c.l.b16 %v232
    %v517 = vunpack.c.l.b16 %v233
    %v518 = vunpack.c.l.b16 %v234
    %v519 = vunpack.c.l.b16 %v235
    %v520 = vunpack.c.l.b16 %v236
    %v521 = vunpack.c.l.b16 %v237
    %v522 = vunpack.c.l.b16 %v238
    %v523 = vunpack.c.l.b16 %v239
    %v524 = vunpack.c.l.b16 %v240
    %v525 = vunpack.c.l.b16 %v241
    %v526 = vunpack.c.l.b16 %v242
    %v527 = vunpack.c.l.b16 %v243
    %v528 = vunpack.c.l.b16 %v244
    %v529 = vunpack.c.l.b16 %v245
    %v530 = vunpack.c.l.b16 %v246
    %v531 = vunpack.c.l.b16 %v247
    %v532 = vunpack.c.l.b16 %v248
    %v533 = vunpack.c.l.b16 %v249
    %v534 = vunpack.c.l.b16 %v250
    %v535 = vunpack.c.l.b16 %v251
    %v536 = vunpack.c.l.b16 %v252
    %v537 = vunpack.c.l.b16 %v253
    %v538 = vunpack.c.l.b16 %v254
    %v539 = vunpack.c.l.b16 %v255
    %v540 = vunpack.c.l.b16 %v256
    %v541 = vunpack.c.l.b16 %v257
    %v542 = vunpack.c.l.b16 %v258
    %v543 = vunpack.c.l.b16 %v259
    %v544 = vunpack.c.l.b16 %v260
    %v545 = vunpack.c.l.b16 %v261
    %v546 = vunpack.c.l.b16 %v262
    %v547 = vunpack.c.l.b16 %v263
    %v548 = vunpack.c.l.b16 %v264
    %v549 = vunpack.c.l.b16 %v265
    %v550 = vunpack.c.l.b16 %v266
    %v551 = vunpack.c.l.b16 %v267
    %v552 = vunpack.c.l.b16 %v268
    %v553 = vunpack.c.l.b16 %v269
    %v554 = vunpack.c.l.b16 %v270
    %v555 = vunpack.c.l.b16 %v271
    %v556 = vunpack.c.l.b16 %v272
    %v557 = vunpack.c.l.b16 %v273
    %v558 = vunpack.c.l.b16 %v274
    %v559 = vunpack.c.l.b16 %v275
    %v560 = vunpack.c.l.b16 %v276
    %v561 = vunpack.c.l.b16 %v277
    %v562 = vunpack.c.l.b16 %v278
    %v563 = vunpack.c.l.b16 %v279
    %v564 = vunpack.c.l.b16 %v280
    %v565 = vunpack.c.l.b16 %v281
    %v566 = vunpack.c.l.b16 %v282
    %v567 = vunpack.c.l.b16 %v283
    %v568 = vunpack.c.l.b16 %v284
    %v569 = vunpack.c.l.b16 %v285
    %v570 = vunpack.c.l.b16 %v286
    %v571 = vunpack.c.l.b16 %v287
    %v572 = vunpack.c.l.b16 %v288
    %v573 = vunpack.c.l.b16 %v289
    %v574 = vunpack.c.l.b16 %v290
    %v575 = vunpack.c.l.b16 %v291
    %v576 = vunpack.c.l.b16 %v292
    %v577 = vunpack.c.l.b16 %v293
    %v578 = vunpack.c.l.b16 %v294
    %v579 = vunpack.c.l.b16 %v295
    %v580 = vunpack.c.l.b16 %v296
    %v581 = vunpack.c.l.b16 %v297
    %v582 = vunpack.c.l.b16 %v298
    %v583 = vunpack.c.l.b16 %v299
    %v584 = vunpack.c.l.b16 %v300
    %v585 = vunpack.c.l.b16 %v301
    %v586 = vunpack.c.l.b16 %v302
    %v587 = vunpack.c.l.b16 %v303
    %v588 = vunpack.c.l.b16 %v304
    %v589 = vunpack.c.l.b16 %v305
    %v590 = vunpack.c.l.b16 %v306
    %v591 = vunpack.c.l.b16 %v307
    %v592 = vunpack.c.l.b16 %v308
    %v593 = vunpack.c.l.b16 %v309
    %v594 = vunpack.c.l.b16 %v310
    %v595 = vunpack.c.l.b16 %v311
    %v596 = vunpack.c.l.b16 %v312
    %v597 = vunpack.c.l.b16 %v313
    %v598 = vunpack.c.l.b16 %v314
    %v599 = vunpack.c.l.b16 %v315
    %v600 = vunpack.c.l.b16 %v316
    %v601 = vunpack.c.l.b16 %v317
    %v602 = vunpack.c.l.b16 %v318
    %v603 = vunpack.c.l.b16 %v319
    %v604 = vpack.c.b16 %v477, %v476
    %v605 = vpack.c.b16 %v479, %v478
    %v606 = vpack.c.b16 %v481, %v480
    %v607 = vpack.c.b16 %v483, %v482
    %v608 = vpack.c.b16 %v485, %v484
    %v609 = vpack.c.b16 %v487, %v486
    %v610 = vpack.c.b16 %v489, %v488
    %v611 = vpack.c.b16 %v491, %v490
    %v612 = vpack.c.b16 %v493, %v492
    %v613 = vpack.c.b16 %v495, %v494
    %v614 = vpack.c.b16 %v497, %v496
    %v615 = vpack.c.b16 %v499, %v498
    %v616 = vpack.c.b16 %v501, %v500
    %v617 = vpack.c.b16 %v503, %v502
    %v618 = vpack.c.b16 %v505, %v504
    %v619 = vpack.c.b16 %v507, %v506
    %v620 = vpack.c.b16 %v509, %v508
    %v621 = vpack.c.b16 %v511, %v510
    %v622 = vpack.c.b16 %v513, %v512
    %v623 = vpack.c.b16 %v515, %v514
    %v624 = vpack.c.b16 %v517, %v516
    %v625 = vpack.c.b16 %v519, %v518
    %v626 = vpack.c.b16 %v521, %v520
    %v627 = vpack.c.b16 %v523, %v522
    %v628 = vpack.c.b16 %v525, %v524
    %v629 = vpack.c.b16 %v527, %v526
    %v630 = vpack.c.b16 %v529, %v528
    %v631 = vpack.c.b16 %v531, %v530
    %v632 = vpack.c.b16 %v533, %v532
    %v633 = vpack.c.b16 %v535, %v534
    %v634 = vpack.c.b16 %v537, %v536
    %v635 = vpack.c.b16 %v539, %v538
    %v636 = vpack.c.b16 %v541, %v540
    %v637 = vpack.c.b16 %v543, %v542
    %v638 = vpack.c.b16 %v545, %v544
    %v639 = vpack.c.b16 %v547, %v546
    %v640 = vpack.c.b16 %v549, %v548
    %v641 = vpack.c.b16 %v551, %v550
    %v642 = vpack.c.b16 %v553, %v552
    %v643 = vpack.c.b16 %v555, %v554
    %v644 = vpack.c.b16 %v557, %v556
    %v645 = vpack.c.b16 %v559, %v558
    %v646 = vpack.c.b16 %v561, %v560
    %v647 = vpack.c.b16 %v563, %v562
    %v648 = vpack.c.b16 %v565, %v564
    %v649 = vpack.c.b16 %v567, %v566
    %v650 = vpack.c.b16 %v569, %v568
    %v651 = vpack.c.b16 %v571, %v570
    %v652 = vpack.c.b16 %v573, %v572
    %v653 = vpack.c.b16 %v575, %v574
    %v654 = vpack.c.b16 %v577, %v576
    %v655 = vpack.c.b16 %v579, %v578
    %v656 = vpack.c.b16 %v581, %v580
    %v657 = vpack.c.b16 %v583, %v582
    %v658 = vpack.c.b16 %v585, %v584
    %v659 = vpack.c.b16 %v587, %v586
    %v660 = vpack.c.b16 %v589, %v588
    %v661 = vpack.c.b16 %v591, %v590
    %v662 = vpack.c.b16 %v593, %v592
    %v663 = vpack.c.b16 %v595, %v594
    %v664 = vpack.c.b16 %v597, %v596
    %v665 = vpack.c.b16 %v599, %v598
    %v666 = vpack.c.b16 %v601, %v600
    %v667 = vpack.c.b16 %v603, %v602
    %732 = vmatpush.bf16.msra.mxu0 %v611
    %733 = vmatpush.bf16.msra.mxu0 %v610
    %734 = vmatpush.bf16.msra.mxu0 %v609
    %735 = vmatpush.bf16.msra.mxu0 %v608
    %736 = vmatpush.bf16.msra.mxu0 %v607
    %737 = vmatpush.bf16.msra.mxu0 %v606
    %738 = vmatpush.bf16.msra.mxu0 %v605
    %739 = vmatpush.bf16.msra.mxu0 %v604
    %740 = vmatmul.bf16.gmra.mxu0 %v332
    %v741 = vpop.f32.mrf.mxu0
    %v742 = vadd.f32 0.0, %v741
    %v743 = vpop.f32.mrf.mxu0
    %744 = vdwg.mxu0
    %745 = vmatpush.bf16.msra.mxu0 %v619
    %746 = vmatpush.bf16.msra.mxu0 %v618
    %747 = vmatpush.bf16.msra.mxu0 %v617
    %748 = vmatpush.bf16.msra.mxu0 %v616
    %749 = vmatpush.bf16.msra.mxu0 %v615
    %750 = vmatpush.bf16.msra.mxu0 %v614
    %751 = vmatpush.bf16.msra.mxu0 %v613
    %752 = vmatpush.bf16.msra.mxu0 %v612
    %753 = vmatmul.bf16.gmra.mxu0 %v333
    %v754 = vpop.f32.mrf.mxu0
    %v755 = vadd.f32 %v742, %v754
    %v756 = vpop.f32.mrf.mxu0
    %757 = vdwg.mxu0
    %758 = vmatpush.bf16.msra.mxu0 %v627
    %759 = vmatpush.bf16.msra.mxu0 %v626
    %760 = vmatpush.bf16.msra.mxu0 %v625
    %761 = vmatpush.bf16.msra.mxu0 %v624
    %762 = vmatpush.bf16.msra.mxu0 %v623
    %763 = vmatpush.bf16.msra.mxu0 %v622
    %764 = vmatpush.bf16.msra.mxu0 %v621
    %765 = vmatpush.bf16.msra.mxu0 %v620
    %766 = vmatmul.bf16.gmra.mxu0 %v334
    %v767 = vpop.f32.mrf.mxu0
    %v768 = vadd.f32 %v755, %v767
    %v769 = vpop.f32.mrf.mxu0
    %770 = vdwg.mxu0
    %771 = vmatpush.bf16.msra.mxu0 %v635
    %772 = vmatpush.bf16.msra.mxu0 %v634
    %773 = vmatpush.bf16.msra.mxu0 %v633
    %774 = vmatpush.bf16.msra.mxu0 %v632
    %775 = vmatpush.bf16.msra.mxu0 %v631
    %776 = vmatpush.bf16.msra.mxu0 %v630
    %777 = vmatpush.bf16.msra.mxu0 %v629
    %778 = vmatpush.bf16.msra.mxu0 %v628
    %779 = vmatmul.bf16.gmra.mxu0 %v335
    %v780 = vpop.f32.mrf.mxu0
    %v781 = vadd.f32 %v768, %v780
    %v782 = vpop.f32.mrf.mxu0
    %783 = vdwg.mxu0
    %784 = vmatpush.bf16.msra.mxu0 %v643
    %785 = vmatpush.bf16.msra.mxu0 %v642
    %786 = vmatpush.bf16.msra.mxu0 %v641
    %787 = vmatpush.bf16.msra.mxu0 %v640
    %788 = vmatpush.bf16.msra.mxu0 %v639
    %789 = vmatpush.bf16.msra.mxu0 %v638
    %790 = vmatpush.bf16.msra.mxu0 %v637
    %791 = vmatpush.bf16.msra.mxu0 %v636
    %792 = vmatmul.bf16.gmra.mxu0 %v336
    %v793 = vpop.f32.mrf.mxu0
    %v794 = vadd.f32 %v781, %v793
    %v795 = vpop.f32.mrf.mxu0
    %796 = vdwg.mxu0
    %797 = vmatpush.bf16.msra.mxu0 %v651
    %798 = vmatpush.bf16.msra.mxu0 %v650
    %799 = vmatpush.bf16.msra.mxu0 %v649
    %800 = vmatpush.bf16.msra.mxu0 %v648
    %801 = vmatpush.bf16.msra.mxu0 %v647
    %802 = vmatpush.bf16.msra.mxu0 %v646
    %803 = vmatpush.bf16.msra.mxu0 %v645
    %804 = vmatpush.bf16.msra.mxu0 %v644
    %805 = vmatmul.bf16.gmra.mxu0 %v337
    %v806 = vpop.f32.mrf.mxu0
    %v807 = vadd.f32 %v794, %v806
    %v808 = vpop.f32.mrf.mxu0
    %809 = vdwg.mxu0
    %810 = vmatpush.bf16.msra.mxu0 %v659
    %811 = vmatpush.bf16.msra.mxu0 %v658
    %812 = vmatpush.bf16.msra.mxu0 %v657
    %813 = vmatpush.bf16.msra.mxu0 %v656
    %814 = vmatpush.bf16.msra.mxu0 %v655
    %815 = vmatpush.bf16.msra.mxu0 %v654
    %816 = vmatpush.bf16.msra.mxu0 %v653
    %817 = vmatpush.bf16.msra.mxu0 %v652
    %818 = vmatmul.bf16.gmra.mxu0 %v338
    %v819 = vpop.f32.mrf.mxu0
    %v820 = vadd.f32 %v807, %v819
    %v821 = vpop.f32.mrf.mxu0
    %822 = vdwg.mxu0
    %823 = vmatpush.bf16.msra.mxu0 %v667
    %824 = vmatpush.bf16.msra.mxu0 %v666
    %825 = vmatpush.bf16.msra.mxu0 %v665
    %826 = vmatpush.bf16.msra.mxu0 %v664
    %827 = vmatpush.bf16.msra.mxu0 %v663
    %828 = vmatpush.bf16.msra.mxu0 %v662
    %829 = vmatpush.bf16.msra.mxu0 %v661
    %830 = vmatpush.bf16.msra.mxu0 %v660
    %831 = vmatmul.bf16.gmra.mxu0 %v339
    %v832 = vpop.f32.mrf.mxu0
    %v833 = vadd.f32 %v820, %v832
    %v834 = vpop.f32.mrf.mxu0
    %835 = vdwg.mxu0
    %v836 = vrot.slane %v833, 4
    %v837 = vadd.f32 %v833, %v836
    %v838 = vrot.slane %v837, 2
    %v839 = vadd.f32 %v837, %v838
    %v840 = vrot.slane %v839, 1
    %v841 = vadd.f32 %v839, %v840
    %v842 = vrcp.pop 8.0
    %v843 = vmul.f32 8.0, %v842
    %v844 = vsub.f32 1.0, %v843
    %v845 = vmul.f32 %v842, %v844
    %v846 = vadd.f32 %v842, %v845
    %vm847 = vweird.f32 %v842
    %v848 = vsel %vm847, %v842, %v846
    %v849 = vmul.f32 %v841, %v848
    %v850 = vsub.f32 %v833, %v849
    %v851 = vmul.f32 %v850, %v850
    %v852 = vrot.slane %v851, 4
    %v853 = vadd.f32 %v851, %v852
    %v854 = vrot.slane %v853, 2
    %v855 = vadd.f32 %v853, %v854
    %v856 = vrot.slane %v855, 1
    %v857 = vadd.f32 %v855, %v856
    %v858 = vmul.f32 %v857, %v848
    %v859 = vadd.f32 %v858, 1e-05
    %v860 = vrsqrt.pop %v859
    %v861 = vmul.f32 %v860, %v859
    %v862 = vmul.f32 %v861, %v860
    %v863 = vmul.f32 0.5, %v862
    %v864 = vsub.f32 1.5, %v863
    %v865 = vmul.f32 %v860, %v864
    %vm866 = vweird.f32 %v859
    %vm867 = vweird.f32 %v860
    %vm868 = vmor %vm866, %vm867
    %v869 = vsel %vm868, %v860, %v865
    %v870 = vmul.f32 %v850, %v869
    %v871 = vld [vmem:[#allocation4] sm:$0x1]
    %v873 = vperm.slane %v871, 0
    %v875 = vmul.f32 %v870, %v873
    %v876 = vld [vmem:[#allocation6] sm:$0x1]
    %v878 = vperm.slane %v876, 0
    %v880 = vadd.f32 %v875, %v878
    %vm881 = vcmp.gt.f32.partialorder %v880, 0.0
    %v882 = vmul.f32 %v880, 0.2
    %v883 = vsel %vm881, %v880, %v882
    %v884 = vpack.c.bf16 %v883, %v883
    %v885 = vld [vmem:[#allocation7] sm:$0xf]
    %v886 = vld [vmem:[#allocation7 + $0x4] sm:$0xf]
    %v887 = vld [vmem:[#allocation7 + $0x8] sm:$0xf]
    %v888 = vld [vmem:[#allocation7 + $0xc] sm:$0xf]
    %v889 = vld [vmem:[#allocation7 + $0x10] sm:$0xf]
    %v890 = vld [vmem:[#allocation7 + $0x14] sm:$0xf]
    %v891 = vld [vmem:[#allocation7 + $0x18] sm:$0xf]
    %v892 = vld [vmem:[#allocation7 + $0x1c] sm:$0xf]
    %v893 = vld [vmem:[#allocation7 + $0x20] sm:$0xf]
    %v894 = vld [vmem:[#allocation7 + $0x24] sm:$0xf]
    %v895 = vld [vmem:[#allocation7 + $0x28] sm:$0xf]
    %v896 = vld [vmem:[#allocation7 + $0x2c] sm:$0xf]
    %v897 = vld [vmem:[#allocation7 + $0x30] sm:$0xf]
    %v898 = vld [vmem:[#allocation7 + $0x34] sm:$0xf]
    %v899 = vld [vmem:[#allocation7 + $0x38] sm:$0xf]
    %v900 = vld [vmem:[#allocation7 + $0x3c] sm:$0xf]
    %v901 = vld [vmem:[#allocation7 + $0x40] sm:$0xf]
    %v902 = vld [vmem:[#allocation7 + $0x44] sm:$0xf]
    %v903 = vld [vmem:[#allocation7 + $0x48] sm:$0xf]
    %v904 = vld [vmem:[#allocation7 + $0x4c] sm:$0xf]
    %v905 = vld [vmem:[#allocation7 + $0x50] sm:$0xf]
    %v906 = vld [vmem:[#allocation7 + $0x54] sm:$0xf]
    %v907 = vld [vmem:[#allocation7 + $0x58] sm:$0xf]
    %v908 = vld [vmem:[#allocation7 + $0x5c] sm:$0xf]
    %v909 = vld [vmem:[#allocation7 + $0x60] sm:$0xf]
    %v910 = vld [vmem:[#allocation7 + $0x64] sm:$0xf]
    %v911 = vld [vmem:[#allocation7 + $0x68] sm:$0xf]
    %v912 = vld [vmem:[#allocation7 + $0x6c] sm:$0xf]
    %v913 = vld [vmem:[#allocation7 + $0x70] sm:$0xf]
    %v914 = vld [vmem:[#allocation7 + $0x74] sm:$0xf]
    %v915 = vld [vmem:[#allocation7 + $0x78] sm:$0xf]
    %v916 = vld [vmem:[#allocation7 + $0x7c] sm:$0xf]
    %v918 = vrot.slane %v884, 1
    %v936 = vunpack.c.l.b16 %v901
    %v937 = vunpack.c.l.b16 %v902
    %v938 = vunpack.c.l.b16 %v903
    %v939 = vunpack.c.l.b16 %v904
    %v940 = vunpack.c.l.b16 %v905
    %v941 = vunpack.c.l.b16 %v906
    %v942 = vunpack.c.l.b16 %v907
    %v943 = vunpack.c.l.b16 %v908
    %v944 = vunpack.c.l.b16 %v909
    %v945 = vunpack.c.l.b16 %v910
    %v946 = vunpack.c.l.b16 %v911
    %v947 = vunpack.c.l.b16 %v912
    %v948 = vunpack.c.l.b16 %v913
    %v949 = vunpack.c.l.b16 %v914
    %v950 = vunpack.c.l.b16 %v915
    %v951 = vunpack.c.l.b16 %v916
    %v952 = vpack.c.b16 %v937, %v936
    %v953 = vpack.c.b16 %v939, %v938
    %v954 = vpack.c.b16 %v941, %v940
    %v955 = vpack.c.b16 %v943, %v942
    %v956 = vpack.c.b16 %v945, %v944
    %v957 = vpack.c.b16 %v947, %v946
    %v958 = vpack.c.b16 %v949, %v948
    %v959 = vpack.c.b16 %v951, %v950
    %968 = vmatpush.bf16.msra.mxu0 %v959
    %969 = vmatpush.bf16.msra.mxu0 %v958
    %970 = vmatpush.bf16.msra.mxu0 %v957
    %971 = vmatpush.bf16.msra.mxu0 %v956
    %972 = vmatpush.bf16.msra.mxu0 %v955
    %973 = vmatpush.bf16.msra.mxu0 %v954
    %974 = vmatpush.bf16.msra.mxu0 %v953
    %975 = vmatpush.bf16.msra.mxu0 %v952
    %976 = vmatmul.bf16.gmra.mxu0 %v918
    %v977 = vpop.f32.mrf.mxu0
    %v978 = vadd.f32 0.0, %v977
    %v979 = vpop.f32.mrf.mxu0
    %980 = vdwg.mxu0
    %v997 = vunpack.c.l.b16 %v885
    %v998 = vunpack.c.l.b16 %v886
    %v999 = vunpack.c.l.b16 %v887
    %v1000 = vunpack.c.l.b16 %v888
    %v1001 = vunpack.c.l.b16 %v889
    %v1002 = vunpack.c.l.b16 %v890
    %v1003 = vunpack.c.l.b16 %v891
    %v1004 = vunpack.c.l.b16 %v892
    %v1005 = vunpack.c.l.b16 %v893
    %v1006 = vunpack.c.l.b16 %v894
    %v1007 = vunpack.c.l.b16 %v895
    %v1008 = vunpack.c.l.b16 %v896
    %v1009 = vunpack.c.l.b16 %v897
    %v1010 = vunpack.c.l.b16 %v898
    %v1011 = vunpack.c.l.b16 %v899
    %v1012 = vunpack.c.l.b16 %v900
    %v1013 = vpack.c.b16 %v998, %v997
    %v1014 = vpack.c.b16 %v1000, %v999
    %v1015 = vpack.c.b16 %v1002, %v1001
    %v1016 = vpack.c.b16 %v1004, %v1003
    %v1017 = vpack.c.b16 %v1006, %v1005
    %v1018 = vpack.c.b16 %v1008, %v1007
    %v1019 = vpack.c.b16 %v1010, %v1009
    %v1020 = vpack.c.b16 %v1012, %v1011
    %1029 = vmatpush.bf16.msra.mxu0 %v1020
    %1030 = vmatpush.bf16.msra.mxu0 %v1019
    %1031 = vmatpush.bf16.msra.mxu0 %v1018
    %1032 = vmatpush.bf16.msra.mxu0 %v1017
    %1033 = vmatpush.bf16.msra.mxu0 %v1016
    %1034 = vmatpush.bf16.msra.mxu0 %v1015
    %1035 = vmatpush.bf16.msra.mxu0 %v1014
    %1036 = vmatpush.bf16.msra.mxu0 %v1013
    %1037 = vmatmul.bf16.gmra.mxu0 %v884
    %v1038 = vpop.f32.mrf.mxu0
    %v1039 = vadd.f32 %v978, %v1038
    %v1040 = vpop.f32.mrf.mxu0
    %1041 = vdwg.mxu0
    %v1042 = vld [vmem:[#allocation7 + $0x80] sm:$0xf]
    %v1043 = vld [vmem:[#allocation7 + $0x84] sm:$0xf]
    %v1044 = vld [vmem:[#allocation7 + $0x88] sm:$0xf]
    %v1045 = vld [vmem:[#allocation7 + $0x8c] sm:$0xf]
    %v1046 = vld [vmem:[#allocation7 + $0x90] sm:$0xf]
    %v1047 = vld [vmem:[#allocation7 + $0x94] sm:$0xf]
    %v1048 = vld [vmem:[#allocation7 + $0x98] sm:$0xf]
    %v1049 = vld [vmem:[#allocation7 + $0x9c] sm:$0xf]
    %v1050 = vld [vmem:[#allocation7 + $0xa0] sm:$0xf]
    %v1051 = vld [vmem:[#allocation7 + $0xa4] sm:$0xf]
    %v1052 = vld [vmem:[#allocation7 + $0xa8] sm:$0xf]
    %v1053 = vld [vmem:[#allocation7 + $0xac] sm:$0xf]
    %v1054 = vld [vmem:[#allocation7 + $0xb0] sm:$0xf]
    %v1055 = vld [vmem:[#allocation7 + $0xb4] sm:$0xf]
    %v1056 = vld [vmem:[#allocation7 + $0xb8] sm:$0xf]
    %v1057 = vld [vmem:[#allocation7 + $0xbc] sm:$0xf]
    %v1058 = vrot.slane %v884, 2
    %v1076 = vunpack.c.l.b16 %v1042
    %v1077 = vunpack.c.l.b16 %v1043
    %v1078 = vunpack.c.l.b16 %v1044
    %v1079 = vunpack.c.l.b16 %v1045
    %v1080 = vunpack.c.l.b16 %v1046
    %v1081 = vunpack.c.l.b16 %v1047
    %v1082 = vunpack.c.l.b16 %v1048
    %v1083 = vunpack.c.l.b16 %v1049
    %v1084 = vunpack.c.l.b16 %v1050
    %v1085 = vunpack.c.l.b16 %v1051
    %v1086 = vunpack.c.l.b16 %v1052
    %v1087 = vunpack.c.l.b16 %v1053
    %v1088 = vunpack.c.l.b16 %v1054
    %v1089 = vunpack.c.l.b16 %v1055
    %v1090 = vunpack.c.l.b16 %v1056
    %v1091 = vunpack.c.l.b16 %v1057
    %v1092 = vpack.c.b16 %v1077, %v1076
    %v1093 = vpack.c.b16 %v1079, %v1078
    %v1094 = vpack.c.b16 %v1081, %v1080
    %v1095 = vpack.c.b16 %v1083, %v1082
    %v1096 = vpack.c.b16 %v1085, %v1084
    %v1097 = vpack.c.b16 %v1087, %v1086
    %v1098 = vpack.c.b16 %v1089, %v1088
    %v1099 = vpack.c.b16 %v1091, %v1090
    %1108 = vmatpush.bf16.msra.mxu0 %v1099
    %1109 = vmatpush.bf16.msra.mxu0 %v1098
    %1110 = vmatpush.bf16.msra.mxu0 %v1097
    %1111 = vmatpush.bf16.msra.mxu0 %v1096
    %1112 = vmatpush.bf16.msra.mxu0 %v1095
    %1113 = vmatpush.bf16.msra.mxu0 %v1094
    %1114 = vmatpush.bf16.msra.mxu0 %v1093
    %1115 = vmatpush.bf16.msra.mxu0 %v1092
    %1116 = vmatmul.bf16.gmra.mxu0 %v1058
    %v1117 = vpop.f32.mrf.mxu0
    %v1118 = vadd.f32 0.0, %v1117
    %v1119 = vpop.f32.mrf.mxu0
    %1120 = vdwg.mxu0
    %v1121 = vadd.f32 %v1039, %v1118
    %v1122 = vld [vmem:[#allocation7 + $0xc0] sm:$0xf]
    %v1123 = vld [vmem:[#allocation7 + $0xc4] sm:$0xf]
    %v1124 = vld [vmem:[#allocation7 + $0xc8] sm:$0xf]
    %v1125 = vld [vmem:[#allocation7 + $0xcc] sm:$0xf]
    %v1126 = vld [vmem:[#allocation7 + $0xd0] sm:$0xf]
    %v1127 = vld [vmem:[#allocation7 + $0xd4] sm:$0xf]
    %v1128 = vld [vmem:[#allocation7 + $0xd8] sm:$0xf]
    %v1129 = vld [vmem:[#allocation7 + $0xdc] sm:$0xf]
    %v1130 = vld [vmem:[#allocation7 + $0xe0] sm:$0xf]
    %v1131 = vld [vmem:[#allocation7 + $0xe4] sm:$0xf]
    %v1132 = vld [vmem:[#allocation7 + $0xe8] sm:$0xf]
    %v1133 = vld [vmem:[#allocation7 + $0xec] sm:$0xf]
    %v1134 = vld [vmem:[#allocation7 + $0xf0] sm:$0xf]
    %v1135 = vld [vmem:[#allocation7 + $0xf4] sm:$0xf]
    %v1136 = vld [vmem:[#allocation7 + $0xf8] sm:$0xf]
    %v1137 = vld [vmem:[#allocation7 + $0xfc] sm:$0xf]
    %v1138 = vrot.slane %v884, 3
    %v1156 = vunpack.c.l.b16 %v1122
    %v1157 = vunpack.c.l.b16 %v1123
    %v1158 = vunpack.c.l.b16 %v1124
    %v1159 = vunpack.c.l.b16 %v1125
    %v1160 = vunpack.c.l.b16 %v1126
    %v1161 = vunpack.c.l.b16 %v1127
    %v1162 = vunpack.c.l.b16 %v1128
    %v1163 = vunpack.c.l.b16 %v1129
    %v1164 = vunpack.c.l.b16 %v1130
    %v1165 = vunpack.c.l.b16 %v1131
    %v1166 = vunpack.c.l.b16 %v1132
    %v1167 = vunpack.c.l.b16 %v1133
    %v1168 = vunpack.c.l.b16 %v1134
    %v1169 = vunpack.c.l.b16 %v1135
    %v1170 = vunpack.c.l.b16 %v1136
    %v1171 = vunpack.c.l.b16 %v1137
    %v1172 = vpack.c.b16 %v1157, %v1156
    %v1173 = vpack.c.b16 %v1159, %v1158
    %v1174 = vpack.c.b16 %v1161, %v1160
    %v1175 = vpack.c.b16 %v1163, %v1162
    %v1176 = vpack.c.b16 %v1165, %v1164
    %v1177 = vpack.c.b16 %v1167, %v1166
    %v1178 = vpack.c.b16 %v1169, %v1168
    %v1179 = vpack.c.b16 %v1171, %v1170
    %1188 = vmatpush.bf16.msra.mxu0 %v1179
    %1189 = vmatpush.bf16.msra.mxu0 %v1178
    %1190 = vmatpush.bf16.msra.mxu0 %v1177
    %1191 = vmatpush.bf16.msra.mxu0 %v1176
    %1192 = vmatpush.bf16.msra.mxu0 %v1175
    %1193 = vmatpush.bf16.msra.mxu0 %v1174
    %1194 = vmatpush.bf16.msra.mxu0 %v1173
    %1195 = vmatpush.bf16.msra.mxu0 %v1172
    %1196 = vmatmul.bf16.gmra.mxu0 %v1138
    %v1197 = vpop.f32.mrf.mxu0
    %v1198 = vadd.f32 0.0, %v1197
    %v1199 = vpop.f32.mrf.mxu0
    %1200 = vdwg.mxu0
    %v1201 = vadd.f32 %v1121, %v1198
    %v1202 = vld [vmem:[#allocation9] sm:$0x1]
    %v1204 = vperm.slane %v1202, 0
    %v1206 = vadd.f32 %v1201, %v1204
    %1207 = vst [vmem:[%s12] sm:$0x3] %v1206
    %v1208 = vmul.f32 %v1206, 0.5
    %v1209 = vmul.f32 %v1208, 1.442695
    %v1210 = vpow.pop %v1209
    %v1211 = vld [vmem:[%s6] sm:$0x3]
    %1213 = vrot.lane.b32.xlu0 %v1211, 32
    %v1214 = vpop.permute.xlu0 %1213
    %v1216 = vmul.f32 %v1210, %v1214
    %1218 = vrot.lane.b32.xlu0 %v1216, 96
    %v1219 = vpop.permute.xlu0 %1218
    %v1221 = vadd.f32 %v1206, %v1219
    %v1222 = vpack.c.bf16 %v1221, %v1221
    %v1223 = vld [vmem:[#allocation10] sm:$0xff]
    %v1224 = vld [vmem:[#allocation10 + $0x8] sm:$0xff]
    %v1225 = vld [vmem:[#allocation10 + $0x10] sm:$0xff]
    %v1226 = vld [vmem:[#allocation10 + $0x18] sm:$0xff]
    %v1227 = vld [vmem:[#allocation10 + $0x20] sm:$0xff]
    %v1228 = vld [vmem:[#allocation10 + $0x28] sm:$0xff]
    %v1229 = vld [vmem:[#allocation10 + $0x30] sm:$0xff]
    %v1230 = vld [vmem:[#allocation10 + $0x38] sm:$0xff]
    %v1231 = vld [vmem:[#allocation12] sm:$0xf]
    %v1233 = vperm.slane %v1231, 0
    %v1234 = vperm.slane %v1231, 1
    %v1235 = vperm.slane %v1231, 2
    %v1236 = vperm.slane %v1231, 3
    %v1249 = vunpack.c.l.b16 %v1223
    %v1250 = vunpack.c.h.b16 %v1223
    %v1251 = vunpack.c.l.b16 %v1224
    %v1252 = vunpack.c.h.b16 %v1224
    %v1253 = vunpack.c.l.b16 %v1225
    %v1254 = vunpack.c.h.b16 %v1225
    %v1255 = vunpack.c.l.b16 %v1226
    %v1256 = vunpack.c.h.b16 %v1226
    %v1257 = vunpack.c.l.b16 %v1227
    %v1258 = vunpack.c.h.b16 %v1227
    %v1259 = vunpack.c.l.b16 %v1228
    %v1260 = vunpack.c.h.b16 %v1228
    %v1261 = vunpack.c.l.b16 %v1229
    %v1262 = vunpack.c.h.b16 %v1229
    %v1263 = vunpack.c.l.b16 %v1230
    %v1264 = vunpack.c.h.b16 %v1230
    %v1265 = vpack.c.b16 %v1253, %v1249
    %v1266 = vpack.c.b16 %v1254, %v1250
    %v1267 = vpack.c.b16 %v1255, %v1251
    %v1268 = vpack.c.b16 %v1256, %v1252
    %v1269 = vpack.c.b16 %v1261, %v1257
    %v1270 = vpack.c.b16 %v1262, %v1258
    %v1271 = vpack.c.b16 %v1263, %v1259
    %v1272 = vpack.c.b16 %v1264, %v1260
    %vm1281 = vcmask 261120
    %v1283 = vsel %vm1281, %v1222, 0
    %1285 = vmatpush.bf16.msra.mxu0 0
    %1286 = vmatpush.bf16.msra.mxu0 0
    %1287 = vmatpush.bf16.msra.mxu0 0
    %1288 = vmatpush.bf16.msra.mxu0 0
    %1289 = vmatpush.bf16.msra.mxu0 0
    %1290 = vmatpush.bf16.msra.mxu0 0
    %1291 = vmatpush.bf16.msra.mxu0 %v1269
    %1292 = vmatpush.bf16.msra.mxu0 %v1265
    %1293 = vmatmul.bf16.gmra.mxu0 %v1283
    %v1294 = vpop.f32.mrf.mxu0
    %v1295 = vadd.f32 %v1233, %v1294
    %v1296 = vpop.f32.mrf.mxu0
    %1297 = vdwg.mxu0
    %1298 = vmatpush.bf16.msra.mxu0 0
    %1299 = vmatpush.bf16.msra.mxu0 0
    %1300 = vmatpush.bf16.msra.mxu0 0
    %1301 = vmatpush.bf16.msra.mxu0 0
    %1302 = vmatpush.bf16.msra.mxu0 0
    %1303 = vmatpush.bf16.msra.mxu0 0
    %1304 = vmatpush.bf16.msra.mxu0 %v1270
    %1305 = vmatpush.bf16.msra.mxu0 %v1266
    %1306 = vmatmul.bf16.gmra.mxu0 %v1283
    %v1307 = vpop.f32.mrf.mxu0
    %v1308 = vadd.f32 %v1234, %v1307
    %v1309 = vpop.f32.mrf.mxu0
    %1310 = vdwg.mxu0
    %1311 = vmatpush.bf16.msra.mxu0 0
    %1312 = vmatpush.bf16.msra.mxu0 0
    %1313 = vmatpush.bf16.msra.mxu0 0
    %1314 = vmatpush.bf16.msra.mxu0 0
    %1315 = vmatpush.bf16.msra.mxu0 0
    %1316 = vmatpush.bf16.msra.mxu0 0
    %1317 = vmatpush.bf16.msra.mxu0 %v1271
    %1318 = vmatpush.bf16.msra.mxu0 %v1267
    %1319 = vmatmul.bf16.gmra.mxu0 %v1283
    %v1320 = vpop.f32.mrf.mxu0
    %v1321 = vadd.f32 %v1235, %v1320
    %v1322 = vpop.f32.mrf.mxu0
    %1323 = vdwg.mxu0
    %1324 = vmatpush.bf16.msra.mxu0 0
    %1325 = vmatpush.bf16.msra.mxu0 0
    %1326 = vmatpush.bf16.msra.mxu0 0
    %1327 = vmatpush.bf16.msra.mxu0 0
    %1328 = vmatpush.bf16.msra.mxu0 0
    %1329 = vmatpush.bf16.msra.mxu0 0
    %1330 = vmatpush.bf16.msra.mxu0 %v1272
    %1331 = vmatpush.bf16.msra.mxu0 %v1268
    %1332 = vmatmul.bf16.gmra.mxu0 %v1283
    %v1333 = vpop.f32.mrf.mxu0
    %v1334 = vadd.f32 %v1236, %v1333
    %v1335 = vpop.f32.mrf.mxu0
    %1336 = vdwg.mxu0
    %v1337 = vpack.c.bf16 %v1295, %v1295
    %v1338 = vpack.c.bf16 %v1308, %v1308
    %v1339 = vpack.c.bf16 %v1321, %v1321
    %v1340 = vpack.c.bf16 %v1334, %v1334
    %v1341 = vld [vmem:[#allocation13] sm:$0xff]
    %v1342 = vld [vmem:[#allocation13 + $0x8] sm:$0xff]
    %v1343 = vld [vmem:[#allocation13 + $0x10] sm:$0xff]
    %v1344 = vld [vmem:[#allocation13 + $0x18] sm:$0xff]
    %v1345 = vld [vmem:[#allocation13 + $0x20] sm:$0xff]
    %v1346 = vld [vmem:[#allocation13 + $0x28] sm:$0xff]
    %v1347 = vld [vmem:[#allocation13 + $0x30] sm:$0xff]
    %v1348 = vld [vmem:[#allocation13 + $0x38] sm:$0xff]
    %v1349 = vld [vmem:[#allocation13 + $0x40] sm:$0xff]
    %v1350 = vld [vmem:[#allocation13 + $0x48] sm:$0xff]
    %v1351 = vld [vmem:[#allocation13 + $0x50] sm:$0xff]
    %v1352 = vld [vmem:[#allocation13 + $0x58] sm:$0xff]
    %v1353 = vld [vmem:[#allocation13 + $0x60] sm:$0xff]
    %v1354 = vld [vmem:[#allocation13 + $0x68] sm:$0xff]
    %v1355 = vld [vmem:[#allocation13 + $0x70] sm:$0xff]
    %v1356 = vld [vmem:[#allocation13 + $0x78] sm:$0xff]
    %v1357 = vld [vmem:[#allocation13 + $0x80] sm:$0xff]
    %v1358 = vld [vmem:[#allocation13 + $0x88] sm:$0xff]
    %v1359 = vld [vmem:[#allocation13 + $0x90] sm:$0xff]
    %v1360 = vld [vmem:[#allocation13 + $0x98] sm:$0xff]
    %v1361 = vld [vmem:[#allocation13 + $0xa0] sm:$0xff]
    %v1362 = vld [vmem:[#allocation13 + $0xa8] sm:$0xff]
    %v1363 = vld [vmem:[#allocation13 + $0xb0] sm:$0xff]
    %v1364 = vld [vmem:[#allocation13 + $0xb8] sm:$0xff]
    %v1365 = vld [vmem:[#allocation13 + $0xc0] sm:$0xff]
    %v1366 = vld [vmem:[#allocation13 + $0xc8] sm:$0xff]
    %v1367 = vld [vmem:[#allocation13 + $0xd0] sm:$0xff]
    %v1368 = vld [vmem:[#allocation13 + $0xd8] sm:$0xff]
    %v1369 = vld [vmem:[#allocation13 + $0xe0] sm:$0xff]
    %v1370 = vld [vmem:[#allocation13 + $0xe8] sm:$0xff]
    %v1371 = vld [vmem:[#allocation13 + $0xf0] sm:$0xff]
    %v1372 = vld [vmem:[#allocation13 + $0xf8] sm:$0xff]
    %v1373 = vld [vmem:[#allocation13 + $0x100] sm:$0xff]
    %v1374 = vld [vmem:[#allocation13 + $0x108] sm:$0xff]
    %v1375 = vld [vmem:[#allocation13 + $0x110] sm:$0xff]
    %v1376 = vld [vmem:[#allocation13 + $0x118] sm:$0xff]
    %v1377 = vld [vmem:[#allocation13 + $0x120] sm:$0xff]
    %v1378 = vld [vmem:[#allocation13 + $0x128] sm:$0xff]
    %v1379 = vld [vmem:[#allocation13 + $0x130] sm:$0xff]
    %v1380 = vld [vmem:[#allocation13 + $0x138] sm:$0xff]
    %v1381 = vld [vmem:[#allocation13 + $0x140] sm:$0xff]
    %v1382 = vld [vmem:[#allocation13 + $0x148] sm:$0xff]
    %v1383 = vld [vmem:[#allocation13 + $0x150] sm:$0xff]
    %v1384 = vld [vmem:[#allocation13 + $0x158] sm:$0xff]
    %v1385 = vld [vmem:[#allocation13 + $0x160] sm:$0xff]
    %v1386 = vld [vmem:[#allocation13 + $0x168] sm:$0xff]
    %v1387 = vld [vmem:[#allocation13 + $0x170] sm:$0xff]
    %v1388 = vld [vmem:[#allocation13 + $0x178] sm:$0xff]
    %v1389 = vld [vmem:[#allocation13 + $0x180] sm:$0xff]
    %v1390 = vld [vmem:[#allocation13 + $0x188] sm:$0xff]
    %v1391 = vld [vmem:[#allocation13 + $0x190] sm:$0xff]
    %v1392 = vld [vmem:[#allocation13 + $0x198] sm:$0xff]
    %v1393 = vld [vmem:[#allocation13 + $0x1a0] sm:$0xff]
    %v1394 = vld [vmem:[#allocation13 + $0x1a8] sm:$0xff]
    %v1395 = vld [vmem:[#allocation13 + $0x1b0] sm:$0xff]
    %v1396 = vld [vmem:[#allocation13 + $0x1b8] sm:$0xff]
    %v1397 = vld [vmem:[#allocation13 + $0x1c0] sm:$0xff]
    %v1398 = vld [vmem:[#allocation13 + $0x1c8] sm:$0xff]
    %v1399 = vld [vmem:[#allocation13 + $0x1d0] sm:$0xff]
    %v1400 = vld [vmem:[#allocation13 + $0x1d8] sm:$0xff]
    %v1401 = vld [vmem:[#allocation13 + $0x1e0] sm:$0xff]
    %v1402 = vld [vmem:[#allocation13 + $0x1e8] sm:$0xff]
    %v1403 = vld [vmem:[#allocation13 + $0x1f0] sm:$0xff]
    %v1404 = vld [vmem:[#allocation13 + $0x1f8] sm:$0xff]
    %v1405 = vld [vmem:[#allocation13 + $0x200] sm:$0xff]
    %v1406 = vld [vmem:[#allocation13 + $0x208] sm:$0xff]
    %v1407 = vld [vmem:[#allocation13 + $0x210] sm:$0xff]
    %v1408 = vld [vmem:[#allocation13 + $0x218] sm:$0xff]
    %v1409 = vld [vmem:[#allocation13 + $0x220] sm:$0xff]
    %v1410 = vld [vmem:[#allocation13 + $0x228] sm:$0xff]
    %v1411 = vld [vmem:[#allocation13 + $0x230] sm:$0xff]
    %v1412 = vld [vmem:[#allocation13 + $0x238] sm:$0xff]
    %v1413 = vld [vmem:[#allocation13 + $0x240] sm:$0xff]
    %v1414 = vld [vmem:[#allocation13 + $0x248] sm:$0xff]
    %v1415 = vld [vmem:[#allocation13 + $0x250] sm:$0xff]
    %v1416 = vld [vmem:[#allocation13 + $0x258] sm:$0xff]
    %v1417 = vld [vmem:[#allocation13 + $0x260] sm:$0xff]
    %v1418 = vld [vmem:[#allocation13 + $0x268] sm:$0xff]
    %v1419 = vld [vmem:[#allocation13 + $0x270] sm:$0xff]
    %v1420 = vld [vmem:[#allocation13 + $0x278] sm:$0xff]
    %v1421 = vld [vmem:[#allocation13 + $0x280] sm:$0xff]
    %v1422 = vld [vmem:[#allocation13 + $0x288] sm:$0xff]
    %v1423 = vld [vmem:[#allocation13 + $0x290] sm:$0xff]
    %v1424 = vld [vmem:[#allocation13 + $0x298] sm:$0xff]
    %v1425 = vld [vmem:[#allocation13 + $0x2a0] sm:$0xff]
    %v1426 = vld [vmem:[#allocation13 + $0x2a8] sm:$0xff]
    %v1427 = vld [vmem:[#allocation13 + $0x2b0] sm:$0xff]
    %v1428 = vld [vmem:[#allocation13 + $0x2b8] sm:$0xff]
    %v1429 = vld [vmem:[#allocation13 + $0x2c0] sm:$0xff]
    %v1430 = vld [vmem:[#allocation13 + $0x2c8] sm:$0xff]
    %v1431 = vld [vmem:[#allocation13 + $0x2d0] sm:$0xff]
    %v1432 = vld [vmem:[#allocation13 + $0x2d8] sm:$0xff]
    %v1433 = vld [vmem:[#allocation13 + $0x2e0] sm:$0xff]
    %v1434 = vld [vmem:[#allocation13 + $0x2e8] sm:$0xff]
    %v1435 = vld [vmem:[#allocation13 + $0x2f0] sm:$0xff]
    %v1436 = vld [vmem:[#allocation13 + $0x2f8] sm:$0xff]
    %v1437 = vld [vmem:[#allocation13 + $0x300] sm:$0xff]
    %v1438 = vld [vmem:[#allocation13 + $0x308] sm:$0xff]
    %v1439 = vld [vmem:[#allocation13 + $0x310] sm:$0xff]
    %v1440 = vld [vmem:[#allocation13 + $0x318] sm:$0xff]
    %v1441 = vld [vmem:[#allocation13 + $0x320] sm:$0xff]
    %v1442 = vld [vmem:[#allocation13 + $0x328] sm:$0xff]
    %v1443 = vld [vmem:[#allocation13 + $0x330] sm:$0xff]
    %v1444 = vld [vmem:[#allocation13 + $0x338] sm:$0xff]
    %v1445 = vld [vmem:[#allocation13 + $0x340] sm:$0xff]
    %v1446 = vld [vmem:[#allocation13 + $0x348] sm:$0xff]
    %v1447 = vld [vmem:[#allocation13 + $0x350] sm:$0xff]
    %v1448 = vld [vmem:[#allocation13 + $0x358] sm:$0xff]
    %v1449 = vld [vmem:[#allocation13 + $0x360] sm:$0xff]
    %v1450 = vld [vmem:[#allocation13 + $0x368] sm:$0xff]
    %v1451 = vld [vmem:[#allocation13 + $0x370] sm:$0xff]
    %v1452 = vld [vmem:[#allocation13 + $0x378] sm:$0xff]
    %v1453 = vld [vmem:[#allocation13 + $0x380] sm:$0xff]
    %v1454 = vld [vmem:[#allocation13 + $0x388] sm:$0xff]
    %v1455 = vld [vmem:[#allocation13 + $0x390] sm:$0xff]
    %v1456 = vld [vmem:[#allocation13 + $0x398] sm:$0xff]
    %v1457 = vld [vmem:[#allocation13 + $0x3a0] sm:$0xff]
    %v1458 = vld [vmem:[#allocation13 + $0x3a8] sm:$0xff]
    %v1459 = vld [vmem:[#allocation13 + $0x3b0] sm:$0xff]
    %v1460 = vld [vmem:[#allocation13 + $0x3b8] sm:$0xff]
    %v1461 = vld [vmem:[#allocation13 + $0x3c0] sm:$0xff]
    %v1462 = vld [vmem:[#allocation13 + $0x3c8] sm:$0xff]
    %v1463 = vld [vmem:[#allocation13 + $0x3d0] sm:$0xff]
    %v1464 = vld [vmem:[#allocation13 + $0x3d8] sm:$0xff]
    %v1465 = vld [vmem:[#allocation13 + $0x3e0] sm:$0xff]
    %v1466 = vld [vmem:[#allocation13 + $0x3e8] sm:$0xff]
    %v1467 = vld [vmem:[#allocation13 + $0x3f0] sm:$0xff]
    %v1468 = vld [vmem:[#allocation13 + $0x3f8] sm:$0xff]
    %v1469 = vld [vmem:[#allocation13 + $0x400] sm:$0xff]
    %v1470 = vld [vmem:[#allocation13 + $0x408] sm:$0xff]
    %v1471 = vld [vmem:[#allocation13 + $0x410] sm:$0xff]
    %v1472 = vld [vmem:[#allocation13 + $0x418] sm:$0xff]
    %v1473 = vld [vmem:[#allocation13 + $0x420] sm:$0xff]
    %v1474 = vld [vmem:[#allocation13 + $0x428] sm:$0xff]
    %v1475 = vld [vmem:[#allocation13 + $0x430] sm:$0xff]
    %v1476 = vld [vmem:[#allocation13 + $0x438] sm:$0xff]
    %v1477 = vld [vmem:[#allocation13 + $0x440] sm:$0xff]
    %v1478 = vld [vmem:[#allocation13 + $0x448] sm:$0xff]
    %v1479 = vld [vmem:[#allocation13 + $0x450] sm:$0xff]
    %v1480 = vld [vmem:[#allocation13 + $0x458] sm:$0xff]
    %v1481 = vld [vmem:[#allocation13 + $0x460] sm:$0xff]
    %v1482 = vld [vmem:[#allocation13 + $0x468] sm:$0xff]
    %v1483 = vld [vmem:[#allocation13 + $0x470] sm:$0xff]
    %v1484 = vld [vmem:[#allocation13 + $0x478] sm:$0xff]
    %v1485 = vld [vmem:[#allocation13 + $0x480] sm:$0xff]
    %v1486 = vld [vmem:[#allocation13 + $0x488] sm:$0xff]
    %v1487 = vld [vmem:[#allocation13 + $0x490] sm:$0xff]
    %v1488 = vld [vmem:[#allocation13 + $0x498] sm:$0xff]
    %v1489 = vld [vmem:[#allocation13 + $0x4a0] sm:$0xff]
    %v1490 = vld [vmem:[#allocation13 + $0x4a8] sm:$0xff]
    %v1491 = vld [vmem:[#allocation13 + $0x4b0] sm:$0xff]
    %v1492 = vld [vmem:[#allocation13 + $0x4b8] sm:$0xff]
    %v1493 = vld [vmem:[#allocation13 + $0x4c0] sm:$0xff]
    %v1494 = vld [vmem:[#allocation13 + $0x4c8] sm:$0xff]
    %v1495 = vld [vmem:[#allocation13 + $0x4d0] sm:$0xff]
    %v1496 = vld [vmem:[#allocation13 + $0x4d8] sm:$0xff]
    %v1497 = vld [vmem:[#allocation13 + $0x4e0] sm:$0xff]
    %v1498 = vld [vmem:[#allocation13 + $0x4e8] sm:$0xff]
    %v1499 = vld [vmem:[#allocation13 + $0x4f0] sm:$0xff]
    %v1500 = vld [vmem:[#allocation13 + $0x4f8] sm:$0xff]
    %v1501 = vld [vmem:[#allocation13 + $0x500] sm:$0xff]
    %v1502 = vld [vmem:[#allocation13 + $0x508] sm:$0xff]
    %v1503 = vld [vmem:[#allocation13 + $0x510] sm:$0xff]
    %v1504 = vld [vmem:[#allocation13 + $0x518] sm:$0xff]
    %v1505 = vld [vmem:[#allocation13 + $0x520] sm:$0xff]
    %v1506 = vld [vmem:[#allocation13 + $0x528] sm:$0xff]
    %v1507 = vld [vmem:[#allocation13 + $0x530] sm:$0xff]
    %v1508 = vld [vmem:[#allocation13 + $0x538] sm:$0xff]
    %v1509 = vld [vmem:[#allocation13 + $0x540] sm:$0xff]
    %v1510 = vld [vmem:[#allocation13 + $0x548] sm:$0xff]
    %v1511 = vld [vmem:[#allocation13 + $0x550] sm:$0xff]
    %v1512 = vld [vmem:[#allocation13 + $0x558] sm:$0xff]
    %v1513 = vld [vmem:[#allocation13 + $0x560] sm:$0xff]
    %v1514 = vld [vmem:[#allocation13 + $0x568] sm:$0xff]
    %v1515 = vld [vmem:[#allocation13 + $0x570] sm:$0xff]
    %v1516 = vld [vmem:[#allocation13 + $0x578] sm:$0xff]
    %v1517 = vld [vmem:[#allocation13 + $0x580] sm:$0xff]
    %v1518 = vld [vmem:[#allocation13 + $0x588] sm:$0xff]
    %v1519 = vld [vmem:[#allocation13 + $0x590] sm:$0xff]
    %v1520 = vld [vmem:[#allocation13 + $0x598] sm:$0xff]
    %v1521 = vld [vmem:[#allocation13 + $0x5a0] sm:$0xff]
    %v1522 = vld [vmem:[#allocation13 + $0x5a8] sm:$0xff]
    %v1523 = vld [vmem:[#allocation13 + $0x5b0] sm:$0xff]
    %v1524 = vld [vmem:[#allocation13 + $0x5b8] sm:$0xff]
    %v1525 = vld [vmem:[#allocation13 + $0x5c0] sm:$0xff]
    %v1526 = vld [vmem:[#allocation13 + $0x5c8] sm:$0xff]
    %v1527 = vld [vmem:[#allocation13 + $0x5d0] sm:$0xff]
    %v1528 = vld [vmem:[#allocation13 + $0x5d8] sm:$0xff]
    %v1529 = vld [vmem:[#allocation13 + $0x5e0] sm:$0xff]
    %v1530 = vld [vmem:[#allocation13 + $0x5e8] sm:$0xff]
    %v1531 = vld [vmem:[#allocation13 + $0x5f0] sm:$0xff]
    %v1532 = vld [vmem:[#allocation13 + $0x5f8] sm:$0xff]
    %v1533 = vld [vmem:[#allocation13 + $0x600] sm:$0xff]
    %v1534 = vld [vmem:[#allocation13 + $0x608] sm:$0xff]
    %v1535 = vld [vmem:[#allocation13 + $0x610] sm:$0xff]
    %v1536 = vld [vmem:[#allocation13 + $0x618] sm:$0xff]
    %v1537 = vld [vmem:[#allocation13 + $0x620] sm:$0xff]
    %v1538 = vld [vmem:[#allocation13 + $0x628] sm:$0xff]
    %v1539 = vld [vmem:[#allocation13 + $0x630] sm:$0xff]
    %v1540 = vld [vmem:[#allocation13 + $0x638] sm:$0xff]
    %v1541 = vld [vmem:[#allocation13 + $0x640] sm:$0xff]
    %v1542 = vld [vmem:[#allocation13 + $0x648] sm:$0xff]
    %v1543 = vld [vmem:[#allocation13 + $0x650] sm:$0xff]
    %v1544 = vld [vmem:[#allocation13 + $0x658] sm:$0xff]
    %v1545 = vld [vmem:[#allocation13 + $0x660] sm:$0xff]
    %v1546 = vld [vmem:[#allocation13 + $0x668] sm:$0xff]
    %v1547 = vld [vmem:[#allocation13 + $0x670] sm:$0xff]
    %v1548 = vld [vmem:[#allocation13 + $0x678] sm:$0xff]
    %v1549 = vld [vmem:[#allocation13 + $0x680] sm:$0xff]
    %v1550 = vld [vmem:[#allocation13 + $0x688] sm:$0xff]
    %v1551 = vld [vmem:[#allocation13 + $0x690] sm:$0xff]
    %v1552 = vld [vmem:[#allocation13 + $0x698] sm:$0xff]
    %v1553 = vld [vmem:[#allocation13 + $0x6a0] sm:$0xff]
    %v1554 = vld [vmem:[#allocation13 + $0x6a8] sm:$0xff]
    %v1555 = vld [vmem:[#allocation13 + $0x6b0] sm:$0xff]
    %v1556 = vld [vmem:[#allocation13 + $0x6b8] sm:$0xff]
    %v1557 = vld [vmem:[#allocation13 + $0x6c0] sm:$0xff]
    %v1558 = vld [vmem:[#allocation13 + $0x6c8] sm:$0xff]
    %v1559 = vld [vmem:[#allocation13 + $0x6d0] sm:$0xff]
    %v1560 = vld [vmem:[#allocation13 + $0x6d8] sm:$0xff]
    %v1561 = vld [vmem:[#allocation13 + $0x6e0] sm:$0xff]
    %v1562 = vld [vmem:[#allocation13 + $0x6e8] sm:$0xff]
    %v1563 = vld [vmem:[#allocation13 + $0x6f0] sm:$0xff]
    %v1564 = vld [vmem:[#allocation13 + $0x6f8] sm:$0xff]
    %v1565 = vld [vmem:[#allocation13 + $0x700] sm:$0xff]
    %v1566 = vld [vmem:[#allocation13 + $0x708] sm:$0xff]
    %v1567 = vld [vmem:[#allocation13 + $0x710] sm:$0xff]
    %v1568 = vld [vmem:[#allocation13 + $0x718] sm:$0xff]
    %v1569 = vld [vmem:[#allocation13 + $0x720] sm:$0xff]
    %v1570 = vld [vmem:[#allocation13 + $0x728] sm:$0xff]
    %v1571 = vld [vmem:[#allocation13 + $0x730] sm:$0xff]
    %v1572 = vld [vmem:[#allocation13 + $0x738] sm:$0xff]
    %v1573 = vld [vmem:[#allocation13 + $0x740] sm:$0xff]
    %v1574 = vld [vmem:[#allocation13 + $0x748] sm:$0xff]
    %v1575 = vld [vmem:[#allocation13 + $0x750] sm:$0xff]
    %v1576 = vld [vmem:[#allocation13 + $0x758] sm:$0xff]
    %v1577 = vld [vmem:[#allocation13 + $0x760] sm:$0xff]
    %v1578 = vld [vmem:[#allocation13 + $0x768] sm:$0xff]
    %v1579 = vld [vmem:[#allocation13 + $0x770] sm:$0xff]
    %v1580 = vld [vmem:[#allocation13 + $0x778] sm:$0xff]
    %v1581 = vld [vmem:[#allocation13 + $0x780] sm:$0xff]
    %v1582 = vld [vmem:[#allocation13 + $0x788] sm:$0xff]
    %v1583 = vld [vmem:[#allocation13 + $0x790] sm:$0xff]
    %v1584 = vld [vmem:[#allocation13 + $0x798] sm:$0xff]
    %v1585 = vld [vmem:[#allocation13 + $0x7a0] sm:$0xff]
    %v1586 = vld [vmem:[#allocation13 + $0x7a8] sm:$0xff]
    %v1587 = vld [vmem:[#allocation13 + $0x7b0] sm:$0xff]
    %v1588 = vld [vmem:[#allocation13 + $0x7b8] sm:$0xff]
    %v1589 = vld [vmem:[#allocation13 + $0x7c0] sm:$0xff]
    %v1590 = vld [vmem:[#allocation13 + $0x7c8] sm:$0xff]
    %v1591 = vld [vmem:[#allocation13 + $0x7d0] sm:$0xff]
    %v1592 = vld [vmem:[#allocation13 + $0x7d8] sm:$0xff]
    %v1593 = vld [vmem:[#allocation13 + $0x7e0] sm:$0xff]
    %v1594 = vld [vmem:[#allocation13 + $0x7e8] sm:$0xff]
    %v1595 = vld [vmem:[#allocation13 + $0x7f0] sm:$0xff]
    %v1596 = vld [vmem:[#allocation13 + $0x7f8] sm:$0xff]
    %v1597 = vld [vmem:[#allocation13 + $0x800] sm:$0xff]
    %v1598 = vld [vmem:[#allocation13 + $0x808] sm:$0xff]
    %v1599 = vld [vmem:[#allocation13 + $0x810] sm:$0xff]
    %v1600 = vld [vmem:[#allocation13 + $0x818] sm:$0xff]
    %v1601 = vld [vmem:[#allocation13 + $0x820] sm:$0xff]
    %v1602 = vld [vmem:[#allocation13 + $0x828] sm:$0xff]
    %v1603 = vld [vmem:[#allocation13 + $0x830] sm:$0xff]
    %v1604 = vld [vmem:[#allocation13 + $0x838] sm:$0xff]
    %v1605 = vld [vmem:[#allocation13 + $0x840] sm:$0xff]
    %v1606 = vld [vmem:[#allocation13 + $0x848] sm:$0xff]
    %v1607 = vld [vmem:[#allocation13 + $0x850] sm:$0xff]
    %v1608 = vld [vmem:[#allocation13 + $0x858] sm:$0xff]
    %v1609 = vld [vmem:[#allocation13 + $0x860] sm:$0xff]
    %v1610 = vld [vmem:[#allocation13 + $0x868] sm:$0xff]
    %v1611 = vld [vmem:[#allocation13 + $0x870] sm:$0xff]
    %v1612 = vld [vmem:[#allocation13 + $0x878] sm:$0xff]
    %v1613 = vld [vmem:[#allocation13 + $0x880] sm:$0xff]
    %v1614 = vld [vmem:[#allocation13 + $0x888] sm:$0xff]
    %v1615 = vld [vmem:[#allocation13 + $0x890] sm:$0xff]
    %v1616 = vld [vmem:[#allocation13 + $0x898] sm:$0xff]
    %v1617 = vld [vmem:[#allocation13 + $0x8a0] sm:$0xff]
    %v1618 = vld [vmem:[#allocation13 + $0x8a8] sm:$0xff]
    %v1619 = vld [vmem:[#allocation13 + $0x8b0] sm:$0xff]
    %v1620 = vld [vmem:[#allocation13 + $0x8b8] sm:$0xff]
    %v1621 = vld [vmem:[#allocation13 + $0x8c0] sm:$0xff]
    %v1622 = vld [vmem:[#allocation13 + $0x8c8] sm:$0xff]
    %v1623 = vld [vmem:[#allocation13 + $0x8d0] sm:$0xff]
    %v1624 = vld [vmem:[#allocation13 + $0x8d8] sm:$0xff]
    %v1625 = vld [vmem:[#allocation13 + $0x8e0] sm:$0xff]
    %v1626 = vld [vmem:[#allocation13 + $0x8e8] sm:$0xff]
    %v1627 = vld [vmem:[#allocation13 + $0x8f0] sm:$0xff]
    %v1628 = vld [vmem:[#allocation13 + $0x8f8] sm:$0xff]
    %v1629 = vld [vmem:[#allocation13 + $0x900] sm:$0xff]
    %v1630 = vld [vmem:[#allocation13 + $0x908] sm:$0xff]
    %v1631 = vld [vmem:[#allocation13 + $0x910] sm:$0xff]
    %v1632 = vld [vmem:[#allocation13 + $0x918] sm:$0xff]
    %v1633 = vld [vmem:[#allocation13 + $0x920] sm:$0xff]
    %v1634 = vld [vmem:[#allocation13 + $0x928] sm:$0xff]
    %v1635 = vld [vmem:[#allocation13 + $0x930] sm:$0xff]
    %v1636 = vld [vmem:[#allocation13 + $0x938] sm:$0xff]
    %v1637 = vld [vmem:[#allocation13 + $0x940] sm:$0xff]
    %v1638 = vld [vmem:[#allocation13 + $0x948] sm:$0xff]
    %v1639 = vld [vmem:[#allocation13 + $0x950] sm:$0xff]
    %v1640 = vld [vmem:[#allocation13 + $0x958] sm:$0xff]
    %v1641 = vld [vmem:[#allocation13 + $0x960] sm:$0xff]
    %v1642 = vld [vmem:[#allocation13 + $0x968] sm:$0xff]
    %v1643 = vld [vmem:[#allocation13 + $0x970] sm:$0xff]
    %v1644 = vld [vmem:[#allocation13 + $0x978] sm:$0xff]
    %v1645 = vld [vmem:[#allocation13 + $0x980] sm:$0xff]
    %v1646 = vld [vmem:[#allocation13 + $0x988] sm:$0xff]
    %v1647 = vld [vmem:[#allocation13 + $0x990] sm:$0xff]
    %v1648 = vld [vmem:[#allocation13 + $0x998] sm:$0xff]
    %v1649 = vld [vmem:[#allocation13 + $0x9a0] sm:$0xff]
    %v1650 = vld [vmem:[#allocation13 + $0x9a8] sm:$0xff]
    %v1651 = vld [vmem:[#allocation13 + $0x9b0] sm:$0xff]
    %v1652 = vld [vmem:[#allocation13 + $0x9b8] sm:$0xff]
    %v1653 = vld [vmem:[#allocation13 + $0x9c0] sm:$0xff]
    %v1654 = vld [vmem:[#allocation13 + $0x9c8] sm:$0xff]
    %v1655 = vld [vmem:[#allocation13 + $0x9d0] sm:$0xff]
    %v1656 = vld [vmem:[#allocation13 + $0x9d8] sm:$0xff]
    %v1657 = vld [vmem:[#allocation13 + $0x9e0] sm:$0xff]
    %v1658 = vld [vmem:[#allocation13 + $0x9e8] sm:$0xff]
    %v1659 = vld [vmem:[#allocation13 + $0x9f0] sm:$0xff]
    %v1660 = vld [vmem:[#allocation13 + $0x9f8] sm:$0xff]
    %v1661 = vld [vmem:[#allocation13 + $0xa00] sm:$0xff]
    %v1662 = vld [vmem:[#allocation13 + $0xa08] sm:$0xff]
    %v1663 = vld [vmem:[#allocation13 + $0xa10] sm:$0xff]
    %v1664 = vld [vmem:[#allocation13 + $0xa18] sm:$0xff]
    %v1665 = vld [vmem:[#allocation13 + $0xa20] sm:$0xff]
    %v1666 = vld [vmem:[#allocation13 + $0xa28] sm:$0xff]
    %v1667 = vld [vmem:[#allocation13 + $0xa30] sm:$0xff]
    %v1668 = vld [vmem:[#allocation13 + $0xa38] sm:$0xff]
    %v1669 = vld [vmem:[#allocation13 + $0xa40] sm:$0xff]
    %v1670 = vld [vmem:[#allocation13 + $0xa48] sm:$0xff]
    %v1671 = vld [vmem:[#allocation13 + $0xa50] sm:$0xff]
    %v1672 = vld [vmem:[#allocation13 + $0xa58] sm:$0xff]
    %v1673 = vld [vmem:[#allocation13 + $0xa60] sm:$0xff]
    %v1674 = vld [vmem:[#allocation13 + $0xa68] sm:$0xff]
    %v1675 = vld [vmem:[#allocation13 + $0xa70] sm:$0xff]
    %v1676 = vld [vmem:[#allocation13 + $0xa78] sm:$0xff]
    %v1677 = vld [vmem:[#allocation13 + $0xa80] sm:$0xff]
    %v1678 = vld [vmem:[#allocation13 + $0xa88] sm:$0xff]
    %v1679 = vld [vmem:[#allocation13 + $0xa90] sm:$0xff]
    %v1680 = vld [vmem:[#allocation13 + $0xa98] sm:$0xff]
    %v1681 = vld [vmem:[#allocation13 + $0xaa0] sm:$0xff]
    %v1682 = vld [vmem:[#allocation13 + $0xaa8] sm:$0xff]
    %v1683 = vld [vmem:[#allocation13 + $0xab0] sm:$0xff]
    %v1684 = vld [vmem:[#allocation13 + $0xab8] sm:$0xff]
    %v1685 = vld [vmem:[#allocation13 + $0xac0] sm:$0xff]
    %v1686 = vld [vmem:[#allocation13 + $0xac8] sm:$0xff]
    %v1687 = vld [vmem:[#allocation13 + $0xad0] sm:$0xff]
    %v1688 = vld [vmem:[#allocation13 + $0xad8] sm:$0xff]
    %v1689 = vld [vmem:[#allocation13 + $0xae0] sm:$0xff]
    %v1690 = vld [vmem:[#allocation13 + $0xae8] sm:$0xff]
    %v1691 = vld [vmem:[#allocation13 + $0xaf0] sm:$0xff]
    %v1692 = vld [vmem:[#allocation13 + $0xaf8] sm:$0xff]
    %v1693 = vld [vmem:[#allocation13 + $0xb00] sm:$0xff]
    %v1694 = vld [vmem:[#allocation13 + $0xb08] sm:$0xff]
    %v1695 = vld [vmem:[#allocation13 + $0xb10] sm:$0xff]
    %v1696 = vld [vmem:[#allocation13 + $0xb18] sm:$0xff]
    %v1697 = vld [vmem:[#allocation13 + $0xb20] sm:$0xff]
    %v1698 = vld [vmem:[#allocation13 + $0xb28] sm:$0xff]
    %v1699 = vld [vmem:[#allocation13 + $0xb30] sm:$0xff]
    %v1700 = vld [vmem:[#allocation13 + $0xb38] sm:$0xff]
    %v1701 = vld [vmem:[#allocation13 + $0xb40] sm:$0xff]
    %v1702 = vld [vmem:[#allocation13 + $0xb48] sm:$0xff]
    %v1703 = vld [vmem:[#allocation13 + $0xb50] sm:$0xff]
    %v1704 = vld [vmem:[#allocation13 + $0xb58] sm:$0xff]
    %v1705 = vld [vmem:[#allocation13 + $0xb60] sm:$0xff]
    %v1706 = vld [vmem:[#allocation13 + $0xb68] sm:$0xff]
    %v1707 = vld [vmem:[#allocation13 + $0xb70] sm:$0xff]
    %v1708 = vld [vmem:[#allocation13 + $0xb78] sm:$0xff]
    %v1709 = vld [vmem:[#allocation13 + $0xb80] sm:$0xff]
    %v1710 = vld [vmem:[#allocation13 + $0xb88] sm:$0xff]
    %v1711 = vld [vmem:[#allocation13 + $0xb90] sm:$0xff]
    %v1712 = vld [vmem:[#allocation13 + $0xb98] sm:$0xff]
    %v1713 = vld [vmem:[#allocation13 + $0xba0] sm:$0xff]
    %v1714 = vld [vmem:[#allocation13 + $0xba8] sm:$0xff]
    %v1715 = vld [vmem:[#allocation13 + $0xbb0] sm:$0xff]
    %v1716 = vld [vmem:[#allocation13 + $0xbb8] sm:$0xff]
    %v1717 = vld [vmem:[#allocation13 + $0xbc0] sm:$0xff]
    %v1718 = vld [vmem:[#allocation13 + $0xbc8] sm:$0xff]
    %v1719 = vld [vmem:[#allocation13 + $0xbd0] sm:$0xff]
    %v1720 = vld [vmem:[#allocation13 + $0xbd8] sm:$0xff]
    %v1721 = vld [vmem:[#allocation13 + $0xbe0] sm:$0xff]
    %v1722 = vld [vmem:[#allocation13 + $0xbe8] sm:$0xff]
    %v1723 = vld [vmem:[#allocation13 + $0xbf0] sm:$0xff]
    %v1724 = vld [vmem:[#allocation13 + $0xbf8] sm:$0xff]
    %v1725 = vld [vmem:[#allocation13 + $0xc00] sm:$0xff]
    %v1726 = vld [vmem:[#allocation13 + $0xc08] sm:$0xff]
    %v1727 = vld [vmem:[#allocation13 + $0xc10] sm:$0xff]
    %v1728 = vld [vmem:[#allocation13 + $0xc18] sm:$0xff]
    %v1729 = vld [vmem:[#allocation13 + $0xc20] sm:$0xff]
    %v1730 = vld [vmem:[#allocation13 + $0xc28] sm:$0xff]
    %v1731 = vld [vmem:[#allocation13 + $0xc30] sm:$0xff]
    %v1732 = vld [vmem:[#allocation13 + $0xc38] sm:$0xff]
    %v1733 = vld [vmem:[#allocation13 + $0xc40] sm:$0xff]
    %v1734 = vld [vmem:[#allocation13 + $0xc48] sm:$0xff]
    %v1735 = vld [vmem:[#allocation13 + $0xc50] sm:$0xff]
    %v1736 = vld [vmem:[#allocation13 + $0xc58] sm:$0xff]
    %v1737 = vld [vmem:[#allocation13 + $0xc60] sm:$0xff]
    %v1738 = vld [vmem:[#allocation13 + $0xc68] sm:$0xff]
    %v1739 = vld [vmem:[#allocation13 + $0xc70] sm:$0xff]
    %v1740 = vld [vmem:[#allocation13 + $0xc78] sm:$0xff]
    %v1741 = vld [vmem:[#allocation13 + $0xc80] sm:$0xff]
    %v1742 = vld [vmem:[#allocation13 + $0xc88] sm:$0xff]
    %v1743 = vld [vmem:[#allocation13 + $0xc90] sm:$0xff]
    %v1744 = vld [vmem:[#allocation13 + $0xc98] sm:$0xff]
    %v1745 = vld [vmem:[#allocation13 + $0xca0] sm:$0xff]
    %v1746 = vld [vmem:[#allocation13 + $0xca8] sm:$0xff]
    %v1747 = vld [vmem:[#allocation13 + $0xcb0] sm:$0xff]
    %v1748 = vld [vmem:[#allocation13 + $0xcb8] sm:$0xff]
    %v1749 = vld [vmem:[#allocation13 + $0xcc0] sm:$0xff]
    %v1750 = vld [vmem:[#allocation13 + $0xcc8] sm:$0xff]
    %v1751 = vld [vmem:[#allocation13 + $0xcd0] sm:$0xff]
    %v1752 = vld [vmem:[#allocation13 + $0xcd8] sm:$0xff]
    %v1753 = vld [vmem:[#allocation13 + $0xce0] sm:$0xff]
    %v1754 = vld [vmem:[#allocation13 + $0xce8] sm:$0xff]
    %v1755 = vld [vmem:[#allocation13 + $0xcf0] sm:$0xff]
    %v1756 = vld [vmem:[#allocation13 + $0xcf8] sm:$0xff]
    %v1757 = vld [vmem:[#allocation13 + $0xd00] sm:$0xff]
    %v1758 = vld [vmem:[#allocation13 + $0xd08] sm:$0xff]
    %v1759 = vld [vmem:[#allocation13 + $0xd10] sm:$0xff]
    %v1760 = vld [vmem:[#allocation13 + $0xd18] sm:$0xff]
    %v1761 = vld [vmem:[#allocation13 + $0xd20] sm:$0xff]
    %v1762 = vld [vmem:[#allocation13 + $0xd28] sm:$0xff]
    %v1763 = vld [vmem:[#allocation13 + $0xd30] sm:$0xff]
    %v1764 = vld [vmem:[#allocation13 + $0xd38] sm:$0xff]
    %v1765 = vld [vmem:[#allocation13 + $0xd40] sm:$0xff]
    %v1766 = vld [vmem:[#allocation13 + $0xd48] sm:$0xff]
    %v1767 = vld [vmem:[#allocation13 + $0xd50] sm:$0xff]
    %v1768 = vld [vmem:[#allocation13 + $0xd58] sm:$0xff]
    %v1769 = vld [vmem:[#allocation13 + $0xd60] sm:$0xff]
    %v1770 = vld [vmem:[#allocation13 + $0xd68] sm:$0xff]
    %v1771 = vld [vmem:[#allocation13 + $0xd70] sm:$0xff]
    %v1772 = vld [vmem:[#allocation13 + $0xd78] sm:$0xff]
    %v1773 = vld [vmem:[#allocation13 + $0xd80] sm:$0xff]
    %v1774 = vld [vmem:[#allocation13 + $0xd88] sm:$0xff]
    %v1775 = vld [vmem:[#allocation13 + $0xd90] sm:$0xff]
    %v1776 = vld [vmem:[#allocation13 + $0xd98] sm:$0xff]
    %v1777 = vld [vmem:[#allocation13 + $0xda0] sm:$0xff]
    %v1778 = vld [vmem:[#allocation13 + $0xda8] sm:$0xff]
    %v1779 = vld [vmem:[#allocation13 + $0xdb0] sm:$0xff]
    %v1780 = vld [vmem:[#allocation13 + $0xdb8] sm:$0xff]
    %v1781 = vld [vmem:[#allocation13 + $0xdc0] sm:$0xff]
    %v1782 = vld [vmem:[#allocation13 + $0xdc8] sm:$0xff]
    %v1783 = vld [vmem:[#allocation13 + $0xdd0] sm:$0xff]
    %v1784 = vld [vmem:[#allocation13 + $0xdd8] sm:$0xff]
    %v1785 = vld [vmem:[#allocation13 + $0xde0] sm:$0xff]
    %v1786 = vld [vmem:[#allocation13 + $0xde8] sm:$0xff]
    %v1787 = vld [vmem:[#allocation13 + $0xdf0] sm:$0xff]
    %v1788 = vld [vmem:[#allocation13 + $0xdf8] sm:$0xff]
    %v1789 = vld [vmem:[#allocation13 + $0xe00] sm:$0xff]
    %v1790 = vld [vmem:[#allocation13 + $0xe08] sm:$0xff]
    %v1791 = vld [vmem:[#allocation13 + $0xe10] sm:$0xff]
    %v1792 = vld [vmem:[#allocation13 + $0xe18] sm:$0xff]
    %v1793 = vld [vmem:[#allocation13 + $0xe20] sm:$0xff]
    %v1794 = vld [vmem:[#allocation13 + $0xe28] sm:$0xff]
    %v1795 = vld [vmem:[#allocation13 + $0xe30] sm:$0xff]
    %v1796 = vld [vmem:[#allocation13 + $0xe38] sm:$0xff]
    %v1797 = vld [vmem:[#allocation13 + $0xe40] sm:$0xff]
    %v1798 = vld [vmem:[#allocation13 + $0xe48] sm:$0xff]
    %v1799 = vld [vmem:[#allocation13 + $0xe50] sm:$0xff]
    %v1800 = vld [vmem:[#allocation13 + $0xe58] sm:$0xff]
    %v1801 = vld [vmem:[#allocation13 + $0xe60] sm:$0xff]
    %v1802 = vld [vmem:[#allocation13 + $0xe68] sm:$0xff]
    %v1803 = vld [vmem:[#allocation13 + $0xe70] sm:$0xff]
    %v1804 = vld [vmem:[#allocation13 + $0xe78] sm:$0xff]
    %v1805 = vld [vmem:[#allocation13 + $0xe80] sm:$0xff]
    %v1806 = vld [vmem:[#allocation13 + $0xe88] sm:$0xff]
    %v1807 = vld [vmem:[#allocation13 + $0xe90] sm:$0xff]
    %v1808 = vld [vmem:[#allocation13 + $0xe98] sm:$0xff]
    %v1809 = vld [vmem:[#allocation13 + $0xea0] sm:$0xff]
    %v1810 = vld [vmem:[#allocation13 + $0xea8] sm:$0xff]
    %v1811 = vld [vmem:[#allocation13 + $0xeb0] sm:$0xff]
    %v1812 = vld [vmem:[#allocation13 + $0xeb8] sm:$0xff]
    %v1813 = vld [vmem:[#allocation13 + $0xec0] sm:$0xff]
    %v1814 = vld [vmem:[#allocation13 + $0xec8] sm:$0xff]
    %v1815 = vld [vmem:[#allocation13 + $0xed0] sm:$0xff]
    %v1816 = vld [vmem:[#allocation13 + $0xed8] sm:$0xff]
    %v1817 = vld [vmem:[#allocation13 + $0xee0] sm:$0xff]
    %v1818 = vld [vmem:[#allocation13 + $0xee8] sm:$0xff]
    %v1819 = vld [vmem:[#allocation13 + $0xef0] sm:$0xff]
    %v1820 = vld [vmem:[#allocation13 + $0xef8] sm:$0xff]
    %v1821 = vld [vmem:[#allocation13 + $0xf00] sm:$0xff]
    %v1822 = vld [vmem:[#allocation13 + $0xf08] sm:$0xff]
    %v1823 = vld [vmem:[#allocation13 + $0xf10] sm:$0xff]
    %v1824 = vld [vmem:[#allocation13 + $0xf18] sm:$0xff]
    %v1825 = vld [vmem:[#allocation13 + $0xf20] sm:$0xff]
    %v1826 = vld [vmem:[#allocation13 + $0xf28] sm:$0xff]
    %v1827 = vld [vmem:[#allocation13 + $0xf30] sm:$0xff]
    %v1828 = vld [vmem:[#allocation13 + $0xf38] sm:$0xff]
    %v1829 = vld [vmem:[#allocation13 + $0xf40] sm:$0xff]
    %v1830 = vld [vmem:[#allocation13 + $0xf48] sm:$0xff]
    %v1831 = vld [vmem:[#allocation13 + $0xf50] sm:$0xff]
    %v1832 = vld [vmem:[#allocation13 + $0xf58] sm:$0xff]
    %v1833 = vld [vmem:[#allocation13 + $0xf60] sm:$0xff]
    %v1834 = vld [vmem:[#allocation13 + $0xf68] sm:$0xff]
    %v1835 = vld [vmem:[#allocation13 + $0xf70] sm:$0xff]
    %v1836 = vld [vmem:[#allocation13 + $0xf78] sm:$0xff]
    %v1837 = vld [vmem:[#allocation13 + $0xf80] sm:$0xff]
    %v1838 = vld [vmem:[#allocation13 + $0xf88] sm:$0xff]
    %v1839 = vld [vmem:[#allocation13 + $0xf90] sm:$0xff]
    %v1840 = vld [vmem:[#allocation13 + $0xf98] sm:$0xff]
    %v1841 = vld [vmem:[#allocation13 + $0xfa0] sm:$0xff]
    %v1842 = vld [vmem:[#allocation13 + $0xfa8] sm:$0xff]
    %v1843 = vld [vmem:[#allocation13 + $0xfb0] sm:$0xff]
    %v1844 = vld [vmem:[#allocation13 + $0xfb8] sm:$0xff]
    %v1845 = vld [vmem:[#allocation13 + $0xfc0] sm:$0xff]
    %v1846 = vld [vmem:[#allocation13 + $0xfc8] sm:$0xff]
    %v1847 = vld [vmem:[#allocation13 + $0xfd0] sm:$0xff]
    %v1848 = vld [vmem:[#allocation13 + $0xfd8] sm:$0xff]
    %v1849 = vld [vmem:[#allocation13 + $0xfe0] sm:$0xff]
    %v1850 = vld [vmem:[#allocation13 + $0xfe8] sm:$0xff]
    %v1851 = vld [vmem:[#allocation13 + $0xff0] sm:$0xff]
    %v1852 = vld [vmem:[#allocation13 + $0xff8] sm:$0xff]
    %v2365 = vunpack.c.l.b16 %v1341
    %v2366 = vunpack.c.h.b16 %v1341
    %v2367 = vunpack.c.l.b16 %v1342
    %v2368 = vunpack.c.h.b16 %v1342
    %v2369 = vunpack.c.l.b16 %v1343
    %v2370 = vunpack.c.h.b16 %v1343
    %v2371 = vunpack.c.l.b16 %v1344
    %v2372 = vunpack.c.h.b16 %v1344
    %v2373 = vunpack.c.l.b16 %v1345
    %v2374 = vunpack.c.h.b16 %v1345
    %v2375 = vunpack.c.l.b16 %v1346
    %v2376 = vunpack.c.h.b16 %v1346
    %v2377 = vunpack.c.l.b16 %v1347
    %v2378 = vunpack.c.h.b16 %v1347
    %v2379 = vunpack.c.l.b16 %v1348
    %v2380 = vunpack.c.h.b16 %v1348
    %v2381 = vunpack.c.l.b16 %v1349
    %v2382 = vunpack.c.h.b16 %v1349
    %v2383 = vunpack.c.l.b16 %v1350
    %v2384 = vunpack.c.h.b16 %v1350
    %v2385 = vunpack.c.l.b16 %v1351
    %v2386 = vunpack.c.h.b16 %v1351
    %v2387 = vunpack.c.l.b16 %v1352
    %v2388 = vunpack.c.h.b16 %v1352
    %v2389 = vunpack.c.l.b16 %v1353
    %v2390 = vunpack.c.h.b16 %v1353
    %v2391 = vunpack.c.l.b16 %v1354
    %v2392 = vunpack.c.h.b16 %v1354
    %v2393 = vunpack.c.l.b16 %v1355
    %v2394 = vunpack.c.h.b16 %v1355
    %v2395 = vunpack.c.l.b16 %v1356
    %v2396 = vunpack.c.h.b16 %v1356
    %v2397 = vunpack.c.l.b16 %v1357
    %v2398 = vunpack.c.h.b16 %v1357
    %v2399 = vunpack.c.l.b16 %v1358
    %v2400 = vunpack.c.h.b16 %v1358
    %v2401 = vunpack.c.l.b16 %v1359
    %v2402 = vunpack.c.h.b16 %v1359
    %v2403 = vunpack.c.l.b16 %v1360
    %v2404 = vunpack.c.h.b16 %v1360
    %v2405 = vunpack.c.l.b16 %v1361
    %v2406 = vunpack.c.h.b16 %v1361
    %v2407 = vunpack.c.l.b16 %v1362
    %v2408 = vunpack.c.h.b16 %v1362
    %v2409 = vunpack.c.l.b16 %v1363
    %v2410 = vunpack.c.h.b16 %v1363
    %v2411 = vunpack.c.l.b16 %v1364
    %v2412 = vunpack.c.h.b16 %v1364
    %v2413 = vunpack.c.l.b16 %v1365
    %v2414 = vunpack.c.h.b16 %v1365
    %v2415 = vunpack.c.l.b16 %v1366
    %v2416 = vunpack.c.h.b16 %v1366
    %v2417 = vunpack.c.l.b16 %v1367
    %v2418 = vunpack.c.h.b16 %v1367
    %v2419 = vunpack.c.l.b16 %v1368
    %v2420 = vunpack.c.h.b16 %v1368
    %v2421 = vunpack.c.l.b16 %v1369
    %v2422 = vunpack.c.h.b16 %v1369
    %v2423 = vunpack.c.l.b16 %v1370
    %v2424 = vunpack.c.h.b16 %v1370
    %v2425 = vunpack.c.l.b16 %v1371
    %v2426 = vunpack.c.h.b16 %v1371
    %v2427 = vunpack.c.l.b16 %v1372
    %v2428 = vunpack.c.h.b16 %v1372
    %v2429 = vunpack.c.l.b16 %v1373
    %v2430 = vunpack.c.h.b16 %v1373
    %v2431 = vunpack.c.l.b16 %v1374
    %v2432 = vunpack.c.h.b16 %v1374
    %v2433 = vunpack.c.l.b16 %v1375
    %v2434 = vunpack.c.h.b16 %v1375
    %v2435 = vunpack.c.l.b16 %v1376
    %v2436 = vunpack.c.h.b16 %v1376
    %v2437 = vunpack.c.l.b16 %v1377
    %v2438 = vunpack.c.h.b16 %v1377
    %v2439 = vunpack.c.l.b16 %v1378
    %v2440 = vunpack.c.h.b16 %v1378
    %v2441 = vunpack.c.l.b16 %v1379
    %v2442 = vunpack.c.h.b16 %v1379
    %v2443 = vunpack.c.l.b16 %v1380
    %v2444 = vunpack.c.h.b16 %v1380
    %v2445 = vunpack.c.l.b16 %v1381
    %v2446 = vunpack.c.h.b16 %v1381
    %v2447 = vunpack.c.l.b16 %v1382
    %v2448 = vunpack.c.h.b16 %v1382
    %v2449 = vunpack.c.l.b16 %v1383
    %v2450 = vunpack.c.h.b16 %v1383
    %v2451 = vunpack.c.l.b16 %v1384
    %v2452 = vunpack.c.h.b16 %v1384
    %v2453 = vunpack.c.l.b16 %v1385
    %v2454 = vunpack.c.h.b16 %v1385
    %v2455 = vunpack.c.l.b16 %v1386
    %v2456 = vunpack.c.h.b16 %v1386
    %v2457 = vunpack.c.l.b16 %v1387
    %v2458 = vunpack.c.h.b16 %v1387
    %v2459 = vunpack.c.l.b16 %v1388
    %v2460 = vunpack.c.h.b16 %v1388
    %v2461 = vunpack.c.l.b16 %v1389
    %v2462 = vunpack.c.h.b16 %v1389
    %v2463 = vunpack.c.l.b16 %v1390
    %v2464 = vunpack.c.h.b16 %v1390
    %v2465 = vunpack.c.l.b16 %v1391
    %v2466 = vunpack.c.h.b16 %v1391
    %v2467 = vunpack.c.l.b16 %v1392
    %v2468 = vunpack.c.h.b16 %v1392
    %v2469 = vunpack.c.l.b16 %v1393
    %v2470 = vunpack.c.h.b16 %v1393
    %v2471 = vunpack.c.l.b16 %v1394
    %v2472 = vunpack.c.h.b16 %v1394
    %v2473 = vunpack.c.l.b16 %v1395
    %v2474 = vunpack.c.h.b16 %v1395
    %v2475 = vunpack.c.l.b16 %v1396
    %v2476 = vunpack.c.h.b16 %v1396
    %v2477 = vunpack.c.l.b16 %v1397
    %v2478 = vunpack.c.h.b16 %v1397
    %v2479 = vunpack.c.l.b16 %v1398
    %v2480 = vunpack.c.h.b16 %v1398
    %v2481 = vunpack.c.l.b16 %v1399
    %v2482 = vunpack.c.h.b16 %v1399
    %v2483 = vunpack.c.l.b16 %v1400
    %v2484 = vunpack.c.h.b16 %v1400
    %v2485 = vunpack.c.l.b16 %v1401
    %v2486 = vunpack.c.h.b16 %v1401
    %v2487 = vunpack.c.l.b16 %v1402
    %v2488 = vunpack.c.h.b16 %v1402
    %v2489 = vunpack.c.l.b16 %v1403
    %v2490 = vunpack.c.h.b16 %v1403
    %v2491 = vunpack.c.l.b16 %v1404
    %v2492 = vunpack.c.h.b16 %v1404
    %v2493 = vunpack.c.l.b16 %v1405
    %v2494 = vunpack.c.h.b16 %v1405
    %v2495 = vunpack.c.l.b16 %v1406
    %v2496 = vunpack.c.h.b16 %v1406
    %v2497 = vunpack.c.l.b16 %v1407
    %v2498 = vunpack.c.h.b16 %v1407
    %v2499 = vunpack.c.l.b16 %v1408
    %v2500 = vunpack.c.h.b16 %v1408
    %v2501 = vunpack.c.l.b16 %v1409
    %v2502 = vunpack.c.h.b16 %v1409
    %v2503 = vunpack.c.l.b16 %v1410
    %v2504 = vunpack.c.h.b16 %v1410
    %v2505 = vunpack.c.l.b16 %v1411
    %v2506 = vunpack.c.h.b16 %v1411
    %v2507 = vunpack.c.l.b16 %v1412
    %v2508 = vunpack.c.h.b16 %v1412
    %v2509 = vunpack.c.l.b16 %v1413
    %v2510 = vunpack.c.h.b16 %v1413
    %v2511 = vunpack.c.l.b16 %v1414
    %v2512 = vunpack.c.h.b16 %v1414
    %v2513 = vunpack.c.l.b16 %v1415
    %v2514 = vunpack.c.h.b16 %v1415
    %v2515 = vunpack.c.l.b16 %v1416
    %v2516 = vunpack.c.h.b16 %v1416
    %v2517 = vunpack.c.l.b16 %v1417
    %v2518 = vunpack.c.h.b16 %v1417
    %v2519 = vunpack.c.l.b16 %v1418
    %v2520 = vunpack.c.h.b16 %v1418
    %v2521 = vunpack.c.l.b16 %v1419
    %v2522 = vunpack.c.h.b16 %v1419
    %v2523 = vunpack.c.l.b16 %v1420
    %v2524 = vunpack.c.h.b16 %v1420
    %v2525 = vunpack.c.l.b16 %v1421
    %v2526 = vunpack.c.h.b16 %v1421
    %v2527 = vunpack.c.l.b16 %v1422
    %v2528 = vunpack.c.h.b16 %v1422
    %v2529 = vunpack.c.l.b16 %v1423
    %v2530 = vunpack.c.h.b16 %v1423
    %v2531 = vunpack.c.l.b16 %v1424
    %v2532 = vunpack.c.h.b16 %v1424
    %v2533 = vunpack.c.l.b16 %v1425
    %v2534 = vunpack.c.h.b16 %v1425
    %v2535 = vunpack.c.l.b16 %v1426
    %v2536 = vunpack.c.h.b16 %v1426
    %v2537 = vunpack.c.l.b16 %v1427
    %v2538 = vunpack.c.h.b16 %v1427
    %v2539 = vunpack.c.l.b16 %v1428
    %v2540 = vunpack.c.h.b16 %v1428
    %v2541 = vunpack.c.l.b16 %v1429
    %v2542 = vunpack.c.h.b16 %v1429
    %v2543 = vunpack.c.l.b16 %v1430
    %v2544 = vunpack.c.h.b16 %v1430
    %v2545 = vunpack.c.l.b16 %v1431
    %v2546 = vunpack.c.h.b16 %v1431
    %v2547 = vunpack.c.l.b16 %v1432
    %v2548 = vunpack.c.h.b16 %v1432
    %v2549 = vunpack.c.l.b16 %v1433
    %v2550 = vunpack.c.h.b16 %v1433
    %v2551 = vunpack.c.l.b16 %v1434
    %v2552 = vunpack.c.h.b16 %v1434
    %v2553 = vunpack.c.l.b16 %v1435
    %v2554 = vunpack.c.h.b16 %v1435
    %v2555 = vunpack.c.l.b16 %v1436
    %v2556 = vunpack.c.h.b16 %v1436
    %v2557 = vunpack.c.l.b16 %v1437
    %v2558 = vunpack.c.h.b16 %v1437
    %v2559 = vunpack.c.l.b16 %v1438
    %v2560 = vunpack.c.h.b16 %v1438
    %v2561 = vunpack.c.l.b16 %v1439
    %v2562 = vunpack.c.h.b16 %v1439
    %v2563 = vunpack.c.l.b16 %v1440
    %v2564 = vunpack.c.h.b16 %v1440
    %v2565 = vunpack.c.l.b16 %v1441
    %v2566 = vunpack.c.h.b16 %v1441
    %v2567 = vunpack.c.l.b16 %v1442
    %v2568 = vunpack.c.h.b16 %v1442
    %v2569 = vunpack.c.l.b16 %v1443
    %v2570 = vunpack.c.h.b16 %v1443
    %v2571 = vunpack.c.l.b16 %v1444
    %v2572 = vunpack.c.h.b16 %v1444
    %v2573 = vunpack.c.l.b16 %v1445
    %v2574 = vunpack.c.h.b16 %v1445
    %v2575 = vunpack.c.l.b16 %v1446
    %v2576 = vunpack.c.h.b16 %v1446
    %v2577 = vunpack.c.l.b16 %v1447
    %v2578 = vunpack.c.h.b16 %v1447
    %v2579 = vunpack.c.l.b16 %v1448
    %v2580 = vunpack.c.h.b16 %v1448
    %v2581 = vunpack.c.l.b16 %v1449
    %v2582 = vunpack.c.h.b16 %v1449
    %v2583 = vunpack.c.l.b16 %v1450
    %v2584 = vunpack.c.h.b16 %v1450
    %v2585 = vunpack.c.l.b16 %v1451
    %v2586 = vunpack.c.h.b16 %v1451
    %v2587 = vunpack.c.l.b16 %v1452
    %v2588 = vunpack.c.h.b16 %v1452
    %v2589 = vunpack.c.l.b16 %v1453
    %v2590 = vunpack.c.h.b16 %v1453
    %v2591 = vunpack.c.l.b16 %v1454
    %v2592 = vunpack.c.h.b16 %v1454
    %v2593 = vunpack.c.l.b16 %v1455
    %v2594 = vunpack.c.h.b16 %v1455
    %v2595 = vunpack.c.l.b16 %v1456
    %v2596 = vunpack.c.h.b16 %v1456
    %v2597 = vunpack.c.l.b16 %v1457
    %v2598 = vunpack.c.h.b16 %v1457
    %v2599 = vunpack.c.l.b16 %v1458
    %v2600 = vunpack.c.h.b16 %v1458
    %v2601 = vunpack.c.l.b16 %v1459
    %v2602 = vunpack.c.h.b16 %v1459
    %v2603 = vunpack.c.l.b16 %v1460
    %v2604 = vunpack.c.h.b16 %v1460
    %v2605 = vunpack.c.l.b16 %v1461
    %v2606 = vunpack.c.h.b16 %v1461
    %v2607 = vunpack.c.l.b16 %v1462
    %v2608 = vunpack.c.h.b16 %v1462
    %v2609 = vunpack.c.l.b16 %v1463
    %v2610 = vunpack.c.h.b16 %v1463
    %v2611 = vunpack.c.l.b16 %v1464
    %v2612 = vunpack.c.h.b16 %v1464
    %v2613 = vunpack.c.l.b16 %v1465
    %v2614 = vunpack.c.h.b16 %v1465
    %v2615 = vunpack.c.l.b16 %v1466
    %v2616 = vunpack.c.h.b16 %v1466
    %v2617 = vunpack.c.l.b16 %v1467
    %v2618 = vunpack.c.h.b16 %v1467
    %v2619 = vunpack.c.l.b16 %v1468
    %v2620 = vunpack.c.h.b16 %v1468
    %v2621 = vunpack.c.l.b16 %v1469
    %v2622 = vunpack.c.h.b16 %v1469
    %v2623 = vunpack.c.l.b16 %v1470
    %v2624 = vunpack.c.h.b16 %v1470
    %v2625 = vunpack.c.l.b16 %v1471
    %v2626 = vunpack.c.h.b16 %v1471
    %v2627 = vunpack.c.l.b16 %v1472
    %v2628 = vunpack.c.h.b16 %v1472
    %v2629 = vunpack.c.l.b16 %v1473
    %v2630 = vunpack.c.h.b16 %v1473
    %v2631 = vunpack.c.l.b16 %v1474
    %v2632 = vunpack.c.h.b16 %v1474
    %v2633 = vunpack.c.l.b16 %v1475
    %v2634 = vunpack.c.h.b16 %v1475
    %v2635 = vunpack.c.l.b16 %v1476
    %v2636 = vunpack.c.h.b16 %v1476
    %v2637 = vunpack.c.l.b16 %v1477
    %v2638 = vunpack.c.h.b16 %v1477
    %v2639 = vunpack.c.l.b16 %v1478
    %v2640 = vunpack.c.h.b16 %v1478
    %v2641 = vunpack.c.l.b16 %v1479
    %v2642 = vunpack.c.h.b16 %v1479
    %v2643 = vunpack.c.l.b16 %v1480
    %v2644 = vunpack.c.h.b16 %v1480
    %v2645 = vunpack.c.l.b16 %v1481
    %v2646 = vunpack.c.h.b16 %v1481
    %v2647 = vunpack.c.l.b16 %v1482
    %v2648 = vunpack.c.h.b16 %v1482
    %v2649 = vunpack.c.l.b16 %v1483
    %v2650 = vunpack.c.h.b16 %v1483
    %v2651 = vunpack.c.l.b16 %v1484
    %v2652 = vunpack.c.h.b16 %v1484
    %v2653 = vunpack.c.l.b16 %v1485
    %v2654 = vunpack.c.h.b16 %v1485
    %v2655 = vunpack.c.l.b16 %v1486
    %v2656 = vunpack.c.h.b16 %v1486
    %v2657 = vunpack.c.l.b16 %v1487
    %v2658 = vunpack.c.h.b16 %v1487
    %v2659 = vunpack.c.l.b16 %v1488
    %v2660 = vunpack.c.h.b16 %v1488
    %v2661 = vunpack.c.l.b16 %v1489
    %v2662 = vunpack.c.h.b16 %v1489
    %v2663 = vunpack.c.l.b16 %v1490
    %v2664 = vunpack.c.h.b16 %v1490
    %v2665 = vunpack.c.l.b16 %v1491
    %v2666 = vunpack.c.h.b16 %v1491
    %v2667 = vunpack.c.l.b16 %v1492
    %v2668 = vunpack.c.h.b16 %v1492
    %v2669 = vunpack.c.l.b16 %v1493
    %v2670 = vunpack.c.h.b16 %v1493
    %v2671 = vunpack.c.l.b16 %v1494
    %v2672 = vunpack.c.h.b16 %v1494
    %v2673 = vunpack.c.l.b16 %v1495
    %v2674 = vunpack.c.h.b16 %v1495
    %v2675 = vunpack.c.l.b16 %v1496
    %v2676 = vunpack.c.h.b16 %v1496
    %v2677 = vunpack.c.l.b16 %v1497
    %v2678 = vunpack.c.h.b16 %v1497
    %v2679 = vunpack.c.l.b16 %v1498
    %v2680 = vunpack.c.h.b16 %v1498
    %v2681 = vunpack.c.l.b16 %v1499
    %v2682 = vunpack.c.h.b16 %v1499
    %v2683 = vunpack.c.l.b16 %v1500
    %v2684 = vunpack.c.h.b16 %v1500
    %v2685 = vunpack.c.l.b16 %v1501
    %v2686 = vunpack.c.h.b16 %v1501
    %v2687 = vunpack.c.l.b16 %v1502
    %v2688 = vunpack.c.h.b16 %v1502
    %v2689 = vunpack.c.l.b16 %v1503
    %v2690 = vunpack.c.h.b16 %v1503
    %v2691 = vunpack.c.l.b16 %v1504
    %v2692 = vunpack.c.h.b16 %v1504
    %v2693 = vunpack.c.l.b16 %v1505
    %v2694 = vunpack.c.h.b16 %v1505
    %v2695 = vunpack.c.l.b16 %v1506
    %v2696 = vunpack.c.h.b16 %v1506
    %v2697 = vunpack.c.l.b16 %v1507
    %v2698 = vunpack.c.h.b16 %v1507
    %v2699 = vunpack.c.l.b16 %v1508
    %v2700 = vunpack.c.h.b16 %v1508
    %v2701 = vunpack.c.l.b16 %v1509
    %v2702 = vunpack.c.h.b16 %v1509
    %v2703 = vunpack.c.l.b16 %v1510
    %v2704 = vunpack.c.h.b16 %v1510
    %v2705 = vunpack.c.l.b16 %v1511
    %v2706 = vunpack.c.h.b16 %v1511
    %v2707 = vunpack.c.l.b16 %v1512
    %v2708 = vunpack.c.h.b16 %v1512
    %v2709 = vunpack.c.l.b16 %v1513
    %v2710 = vunpack.c.h.b16 %v1513
    %v2711 = vunpack.c.l.b16 %v1514
    %v2712 = vunpack.c.h.b16 %v1514
    %v2713 = vunpack.c.l.b16 %v1515
    %v2714 = vunpack.c.h.b16 %v1515
    %v2715 = vunpack.c.l.b16 %v1516
    %v2716 = vunpack.c.h.b16 %v1516
    %v2717 = vunpack.c.l.b16 %v1517
    %v2718 = vunpack.c.h.b16 %v1517
    %v2719 = vunpack.c.l.b16 %v1518
    %v2720 = vunpack.c.h.b16 %v1518
    %v2721 = vunpack.c.l.b16 %v1519
    %v2722 = vunpack.c.h.b16 %v1519
    %v2723 = vunpack.c.l.b16 %v1520
    %v2724 = vunpack.c.h.b16 %v1520
    %v2725 = vunpack.c.l.b16 %v1521
    %v2726 = vunpack.c.h.b16 %v1521
    %v2727 = vunpack.c.l.b16 %v1522
    %v2728 = vunpack.c.h.b16 %v1522
    %v2729 = vunpack.c.l.b16 %v1523
    %v2730 = vunpack.c.h.b16 %v1523
    %v2731 = vunpack.c.l.b16 %v1524
    %v2732 = vunpack.c.h.b16 %v1524
    %v2733 = vunpack.c.l.b16 %v1525
    %v2734 = vunpack.c.h.b16 %v1525
    %v2735 = vunpack.c.l.b16 %v1526
    %v2736 = vunpack.c.h.b16 %v1526
    %v2737 = vunpack.c.l.b16 %v1527
    %v2738 = vunpack.c.h.b16 %v1527
    %v2739 = vunpack.c.l.b16 %v1528
    %v2740 = vunpack.c.h.b16 %v1528
    %v2741 = vunpack.c.l.b16 %v1529
    %v2742 = vunpack.c.h.b16 %v1529
    %v2743 = vunpack.c.l.b16 %v1530
    %v2744 = vunpack.c.h.b16 %v1530
    %v2745 = vunpack.c.l.b16 %v1531
    %v2746 = vunpack.c.h.b16 %v1531
    %v2747 = vunpack.c.l.b16 %v1532
    %v2748 = vunpack.c.h.b16 %v1532
    %v2749 = vunpack.c.l.b16 %v1533
    %v2750 = vunpack.c.h.b16 %v1533
    %v2751 = vunpack.c.l.b16 %v1534
    %v2752 = vunpack.c.h.b16 %v1534
    %v2753 = vunpack.c.l.b16 %v1535
    %v2754 = vunpack.c.h.b16 %v1535
    %v2755 = vunpack.c.l.b16 %v1536
    %v2756 = vunpack.c.h.b16 %v1536
    %v2757 = vunpack.c.l.b16 %v1537
    %v2758 = vunpack.c.h.b16 %v1537
    %v2759 = vunpack.c.l.b16 %v1538
    %v2760 = vunpack.c.h.b16 %v1538
    %v2761 = vunpack.c.l.b16 %v1539
    %v2762 = vunpack.c.h.b16 %v1539
    %v2763 = vunpack.c.l.b16 %v1540
    %v2764 = vunpack.c.h.b16 %v1540
    %v2765 = vunpack.c.l.b16 %v1541
    %v2766 = vunpack.c.h.b16 %v1541
    %v2767 = vunpack.c.l.b16 %v1542
    %v2768 = vunpack.c.h.b16 %v1542
    %v2769 = vunpack.c.l.b16 %v1543
    %v2770 = vunpack.c.h.b16 %v1543
    %v2771 = vunpack.c.l.b16 %v1544
    %v2772 = vunpack.c.h.b16 %v1544
    %v2773 = vunpack.c.l.b16 %v1545
    %v2774 = vunpack.c.h.b16 %v1545
    %v2775 = vunpack.c.l.b16 %v1546
    %v2776 = vunpack.c.h.b16 %v1546
    %v2777 = vunpack.c.l.b16 %v1547
    %v2778 = vunpack.c.h.b16 %v1547
    %v2779 = vunpack.c.l.b16 %v1548
    %v2780 = vunpack.c.h.b16 %v1548
    %v2781 = vunpack.c.l.b16 %v1549
    %v2782 = vunpack.c.h.b16 %v1549
    %v2783 = vunpack.c.l.b16 %v1550
    %v2784 = vunpack.c.h.b16 %v1550
    %v2785 = vunpack.c.l.b16 %v1551
    %v2786 = vunpack.c.h.b16 %v1551
    %v2787 = vunpack.c.l.b16 %v1552
    %v2788 = vunpack.c.h.b16 %v1552
    %v2789 = vunpack.c.l.b16 %v1553
    %v2790 = vunpack.c.h.b16 %v1553
    %v2791 = vunpack.c.l.b16 %v1554
    %v2792 = vunpack.c.h.b16 %v1554
    %v2793 = vunpack.c.l.b16 %v1555
    %v2794 = vunpack.c.h.b16 %v1555
    %v2795 = vunpack.c.l.b16 %v1556
    %v2796 = vunpack.c.h.b16 %v1556
    %v2797 = vunpack.c.l.b16 %v1557
    %v2798 = vunpack.c.h.b16 %v1557
    %v2799 = vunpack.c.l.b16 %v1558
    %v2800 = vunpack.c.h.b16 %v1558
    %v2801 = vunpack.c.l.b16 %v1559
    %v2802 = vunpack.c.h.b16 %v1559
    %v2803 = vunpack.c.l.b16 %v1560
    %v2804 = vunpack.c.h.b16 %v1560
    %v2805 = vunpack.c.l.b16 %v1561
    %v2806 = vunpack.c.h.b16 %v1561
    %v2807 = vunpack.c.l.b16 %v1562
    %v2808 = vunpack.c.h.b16 %v1562
    %v2809 = vunpack.c.l.b16 %v1563
    %v2810 = vunpack.c.h.b16 %v1563
    %v2811 = vunpack.c.l.b16 %v1564
    %v2812 = vunpack.c.h.b16 %v1564
    %v2813 = vunpack.c.l.b16 %v1565
    %v2814 = vunpack.c.h.b16 %v1565
    %v2815 = vunpack.c.l.b16 %v1566
    %v2816 = vunpack.c.h.b16 %v1566
    %v2817 = vunpack.c.l.b16 %v1567
    %v2818 = vunpack.c.h.b16 %v1567
    %v2819 = vunpack.c.l.b16 %v1568
    %v2820 = vunpack.c.h.b16 %v1568
    %v2821 = vunpack.c.l.b16 %v1569
    %v2822 = vunpack.c.h.b16 %v1569
    %v2823 = vunpack.c.l.b16 %v1570
    %v2824 = vunpack.c.h.b16 %v1570
    %v2825 = vunpack.c.l.b16 %v1571
    %v2826 = vunpack.c.h.b16 %v1571
    %v2827 = vunpack.c.l.b16 %v1572
    %v2828 = vunpack.c.h.b16 %v1572
    %v2829 = vunpack.c.l.b16 %v1573
    %v2830 = vunpack.c.h.b16 %v1573
    %v2831 = vunpack.c.l.b16 %v1574
    %v2832 = vunpack.c.h.b16 %v1574
    %v2833 = vunpack.c.l.b16 %v1575
    %v2834 = vunpack.c.h.b16 %v1575
    %v2835 = vunpack.c.l.b16 %v1576
    %v2836 = vunpack.c.h.b16 %v1576
    %v2837 = vunpack.c.l.b16 %v1577
    %v2838 = vunpack.c.h.b16 %v1577
    %v2839 = vunpack.c.l.b16 %v1578
    %v2840 = vunpack.c.h.b16 %v1578
    %v2841 = vunpack.c.l.b16 %v1579
    %v2842 = vunpack.c.h.b16 %v1579
    %v2843 = vunpack.c.l.b16 %v1580
    %v2844 = vunpack.c.h.b16 %v1580
    %v2845 = vunpack.c.l.b16 %v1581
    %v2846 = vunpack.c.h.b16 %v1581
    %v2847 = vunpack.c.l.b16 %v1582
    %v2848 = vunpack.c.h.b16 %v1582
    %v2849 = vunpack.c.l.b16 %v1583
    %v2850 = vunpack.c.h.b16 %v1583
    %v2851 = vunpack.c.l.b16 %v1584
    %v2852 = vunpack.c.h.b16 %v1584
    %v2853 = vunpack.c.l.b16 %v1585
    %v2854 = vunpack.c.h.b16 %v1585
    %v2855 = vunpack.c.l.b16 %v1586
    %v2856 = vunpack.c.h.b16 %v1586
    %v2857 = vunpack.c.l.b16 %v1587
    %v2858 = vunpack.c.h.b16 %v1587
    %v2859 = vunpack.c.l.b16 %v1588
    %v2860 = vunpack.c.h.b16 %v1588
    %v2861 = vunpack.c.l.b16 %v1589
    %v2862 = vunpack.c.h.b16 %v1589
    %v2863 = vunpack.c.l.b16 %v1590
    %v2864 = vunpack.c.h.b16 %v1590
    %v2865 = vunpack.c.l.b16 %v1591
    %v2866 = vunpack.c.h.b16 %v1591
    %v2867 = vunpack.c.l.b16 %v1592
    %v2868 = vunpack.c.h.b16 %v1592
    %v2869 = vunpack.c.l.b16 %v1593
    %v2870 = vunpack.c.h.b16 %v1593
    %v2871 = vunpack.c.l.b16 %v1594
    %v2872 = vunpack.c.h.b16 %v1594
    %v2873 = vunpack.c.l.b16 %v1595
    %v2874 = vunpack.c.h.b16 %v1595
    %v2875 = vunpack.c.l.b16 %v1596
    %v2876 = vunpack.c.h.b16 %v1596
    %v2877 = vunpack.c.l.b16 %v1597
    %v2878 = vunpack.c.h.b16 %v1597
    %v2879 = vunpack.c.l.b16 %v1598
    %v2880 = vunpack.c.h.b16 %v1598
    %v2881 = vunpack.c.l.b16 %v1599
    %v2882 = vunpack.c.h.b16 %v1599
    %v2883 = vunpack.c.l.b16 %v1600
    %v2884 = vunpack.c.h.b16 %v1600
    %v2885 = vunpack.c.l.b16 %v1601
    %v2886 = vunpack.c.h.b16 %v1601
    %v2887 = vunpack.c.l.b16 %v1602
    %v2888 = vunpack.c.h.b16 %v1602
    %v2889 = vunpack.c.l.b16 %v1603
    %v2890 = vunpack.c.h.b16 %v1603
    %v2891 = vunpack.c.l.b16 %v1604
    %v2892 = vunpack.c.h.b16 %v1604
    %v2893 = vunpack.c.l.b16 %v1605
    %v2894 = vunpack.c.h.b16 %v1605
    %v2895 = vunpack.c.l.b16 %v1606
    %v2896 = vunpack.c.h.b16 %v1606
    %v2897 = vunpack.c.l.b16 %v1607
    %v2898 = vunpack.c.h.b16 %v1607
    %v2899 = vunpack.c.l.b16 %v1608
    %v2900 = vunpack.c.h.b16 %v1608
    %v2901 = vunpack.c.l.b16 %v1609
    %v2902 = vunpack.c.h.b16 %v1609
    %v2903 = vunpack.c.l.b16 %v1610
    %v2904 = vunpack.c.h.b16 %v1610
    %v2905 = vunpack.c.l.b16 %v1611
    %v2906 = vunpack.c.h.b16 %v1611
    %v2907 = vunpack.c.l.b16 %v1612
    %v2908 = vunpack.c.h.b16 %v1612
    %v2909 = vunpack.c.l.b16 %v1613
    %v2910 = vunpack.c.h.b16 %v1613
    %v2911 = vunpack.c.l.b16 %v1614
    %v2912 = vunpack.c.h.b16 %v1614
    %v2913 = vunpack.c.l.b16 %v1615
    %v2914 = vunpack.c.h.b16 %v1615
    %v2915 = vunpack.c.l.b16 %v1616
    %v2916 = vunpack.c.h.b16 %v1616
    %v2917 = vunpack.c.l.b16 %v1617
    %v2918 = vunpack.c.h.b16 %v1617
    %v2919 = vunpack.c.l.b16 %v1618
    %v2920 = vunpack.c.h.b16 %v1618
    %v2921 = vunpack.c.l.b16 %v1619
    %v2922 = vunpack.c.h.b16 %v1619
    %v2923 = vunpack.c.l.b16 %v1620
    %v2924 = vunpack.c.h.b16 %v1620
    %v2925 = vunpack.c.l.b16 %v1621
    %v2926 = vunpack.c.h.b16 %v1621
    %v2927 = vunpack.c.l.b16 %v1622
    %v2928 = vunpack.c.h.b16 %v1622
    %v2929 = vunpack.c.l.b16 %v1623
    %v2930 = vunpack.c.h.b16 %v1623
    %v2931 = vunpack.c.l.b16 %v1624
    %v2932 = vunpack.c.h.b16 %v1624
    %v2933 = vunpack.c.l.b16 %v1625
    %v2934 = vunpack.c.h.b16 %v1625
    %v2935 = vunpack.c.l.b16 %v1626
    %v2936 = vunpack.c.h.b16 %v1626
    %v2937 = vunpack.c.l.b16 %v1627
    %v2938 = vunpack.c.h.b16 %v1627
    %v2939 = vunpack.c.l.b16 %v1628
    %v2940 = vunpack.c.h.b16 %v1628
    %v2941 = vunpack.c.l.b16 %v1629
    %v2942 = vunpack.c.h.b16 %v1629
    %v2943 = vunpack.c.l.b16 %v1630
    %v2944 = vunpack.c.h.b16 %v1630
    %v2945 = vunpack.c.l.b16 %v1631
    %v2946 = vunpack.c.h.b16 %v1631
    %v2947 = vunpack.c.l.b16 %v1632
    %v2948 = vunpack.c.h.b16 %v1632
    %v2949 = vunpack.c.l.b16 %v1633
    %v2950 = vunpack.c.h.b16 %v1633
    %v2951 = vunpack.c.l.b16 %v1634
    %v2952 = vunpack.c.h.b16 %v1634
    %v2953 = vunpack.c.l.b16 %v1635
    %v2954 = vunpack.c.h.b16 %v1635
    %v2955 = vunpack.c.l.b16 %v1636
    %v2956 = vunpack.c.h.b16 %v1636
    %v2957 = vunpack.c.l.b16 %v1637
    %v2958 = vunpack.c.h.b16 %v1637
    %v2959 = vunpack.c.l.b16 %v1638
    %v2960 = vunpack.c.h.b16 %v1638
    %v2961 = vunpack.c.l.b16 %v1639
    %v2962 = vunpack.c.h.b16 %v1639
    %v2963 = vunpack.c.l.b16 %v1640
    %v2964 = vunpack.c.h.b16 %v1640
    %v2965 = vunpack.c.l.b16 %v1641
    %v2966 = vunpack.c.h.b16 %v1641
    %v2967 = vunpack.c.l.b16 %v1642
    %v2968 = vunpack.c.h.b16 %v1642
    %v2969 = vunpack.c.l.b16 %v1643
    %v2970 = vunpack.c.h.b16 %v1643
    %v2971 = vunpack.c.l.b16 %v1644
    %v2972 = vunpack.c.h.b16 %v1644
    %v2973 = vunpack.c.l.b16 %v1645
    %v2974 = vunpack.c.h.b16 %v1645
    %v2975 = vunpack.c.l.b16 %v1646
    %v2976 = vunpack.c.h.b16 %v1646
    %v2977 = vunpack.c.l.b16 %v1647
    %v2978 = vunpack.c.h.b16 %v1647
    %v2979 = vunpack.c.l.b16 %v1648
    %v2980 = vunpack.c.h.b16 %v1648
    %v2981 = vunpack.c.l.b16 %v1649
    %v2982 = vunpack.c.h.b16 %v1649
    %v2983 = vunpack.c.l.b16 %v1650
    %v2984 = vunpack.c.h.b16 %v1650
    %v2985 = vunpack.c.l.b16 %v1651
    %v2986 = vunpack.c.h.b16 %v1651
    %v2987 = vunpack.c.l.b16 %v1652
    %v2988 = vunpack.c.h.b16 %v1652
    %v2989 = vunpack.c.l.b16 %v1653
    %v2990 = vunpack.c.h.b16 %v1653
    %v2991 = vunpack.c.l.b16 %v1654
    %v2992 = vunpack.c.h.b16 %v1654
    %v2993 = vunpack.c.l.b16 %v1655
    %v2994 = vunpack.c.h.b16 %v1655
    %v2995 = vunpack.c.l.b16 %v1656
    %v2996 = vunpack.c.h.b16 %v1656
    %v2997 = vunpack.c.l.b16 %v1657
    %v2998 = vunpack.c.h.b16 %v1657
    %v2999 = vunpack.c.l.b16 %v1658
    %v3000 = vunpack.c.h.b16 %v1658
    %v3001 = vunpack.c.l.b16 %v1659
    %v3002 = vunpack.c.h.b16 %v1659
    %v3003 = vunpack.c.l.b16 %v1660
    %v3004 = vunpack.c.h.b16 %v1660
    %v3005 = vunpack.c.l.b16 %v1661
    %v3006 = vunpack.c.h.b16 %v1661
    %v3007 = vunpack.c.l.b16 %v1662
    %v3008 = vunpack.c.h.b16 %v1662
    %v3009 = vunpack.c.l.b16 %v1663
    %v3010 = vunpack.c.h.b16 %v1663
    %v3011 = vunpack.c.l.b16 %v1664
    %v3012 = vunpack.c.h.b16 %v1664
    %v3013 = vunpack.c.l.b16 %v1665
    %v3014 = vunpack.c.h.b16 %v1665
    %v3015 = vunpack.c.l.b16 %v1666
    %v3016 = vunpack.c.h.b16 %v1666
    %v3017 = vunpack.c.l.b16 %v1667
    %v3018 = vunpack.c.h.b16 %v1667
    %v3019 = vunpack.c.l.b16 %v1668
    %v3020 = vunpack.c.h.b16 %v1668
    %v3021 = vunpack.c.l.b16 %v1669
    %v3022 = vunpack.c.h.b16 %v1669
    %v3023 = vunpack.c.l.b16 %v1670
    %v3024 = vunpack.c.h.b16 %v1670
    %v3025 = vunpack.c.l.b16 %v1671
    %v3026 = vunpack.c.h.b16 %v1671
    %v3027 = vunpack.c.l.b16 %v1672
    %v3028 = vunpack.c.h.b16 %v1672
    %v3029 = vunpack.c.l.b16 %v1673
    %v3030 = vunpack.c.h.b16 %v1673
    %v3031 = vunpack.c.l.b16 %v1674
    %v3032 = vunpack.c.h.b16 %v1674
    %v3033 = vunpack.c.l.b16 %v1675
    %v3034 = vunpack.c.h.b16 %v1675
    %v3035 = vunpack.c.l.b16 %v1676
    %v3036 = vunpack.c.h.b16 %v1676
    %v3037 = vunpack.c.l.b16 %v1677
    %v3038 = vunpack.c.h.b16 %v1677
    %v3039 = vunpack.c.l.b16 %v1678
    %v3040 = vunpack.c.h.b16 %v1678
    %v3041 = vunpack.c.l.b16 %v1679
    %v3042 = vunpack.c.h.b16 %v1679
    %v3043 = vunpack.c.l.b16 %v1680
    %v3044 = vunpack.c.h.b16 %v1680
    %v3045 = vunpack.c.l.b16 %v1681
    %v3046 = vunpack.c.h.b16 %v1681
    %v3047 = vunpack.c.l.b16 %v1682
    %v3048 = vunpack.c.h.b16 %v1682
    %v3049 = vunpack.c.l.b16 %v1683
    %v3050 = vunpack.c.h.b16 %v1683
    %v3051 = vunpack.c.l.b16 %v1684
    %v3052 = vunpack.c.h.b16 %v1684
    %v3053 = vunpack.c.l.b16 %v1685
    %v3054 = vunpack.c.h.b16 %v1685
    %v3055 = vunpack.c.l.b16 %v1686
    %v3056 = vunpack.c.h.b16 %v1686
    %v3057 = vunpack.c.l.b16 %v1687
    %v3058 = vunpack.c.h.b16 %v1687
    %v3059 = vunpack.c.l.b16 %v1688
    %v3060 = vunpack.c.h.b16 %v1688
    %v3061 = vunpack.c.l.b16 %v1689
    %v3062 = vunpack.c.h.b16 %v1689
    %v3063 = vunpack.c.l.b16 %v1690
    %v3064 = vunpack.c.h.b16 %v1690
    %v3065 = vunpack.c.l.b16 %v1691
    %v3066 = vunpack.c.h.b16 %v1691
    %v3067 = vunpack.c.l.b16 %v1692
    %v3068 = vunpack.c.h.b16 %v1692
    %v3069 = vunpack.c.l.b16 %v1693
    %v3070 = vunpack.c.h.b16 %v1693
    %v3071 = vunpack.c.l.b16 %v1694
    %v3072 = vunpack.c.h.b16 %v1694
    %v3073 = vunpack.c.l.b16 %v1695
    %v3074 = vunpack.c.h.b16 %v1695
    %v3075 = vunpack.c.l.b16 %v1696
    %v3076 = vunpack.c.h.b16 %v1696
    %v3077 = vunpack.c.l.b16 %v1697
    %v3078 = vunpack.c.h.b16 %v1697
    %v3079 = vunpack.c.l.b16 %v1698
    %v3080 = vunpack.c.h.b16 %v1698
    %v3081 = vunpack.c.l.b16 %v1699
    %v3082 = vunpack.c.h.b16 %v1699
    %v3083 = vunpack.c.l.b16 %v1700
    %v3084 = vunpack.c.h.b16 %v1700
    %v3085 = vunpack.c.l.b16 %v1701
    %v3086 = vunpack.c.h.b16 %v1701
    %v3087 = vunpack.c.l.b16 %v1702
    %v3088 = vunpack.c.h.b16 %v1702
    %v3089 = vunpack.c.l.b16 %v1703
    %v3090 = vunpack.c.h.b16 %v1703
    %v3091 = vunpack.c.l.b16 %v1704
    %v3092 = vunpack.c.h.b16 %v1704
    %v3093 = vunpack.c.l.b16 %v1705
    %v3094 = vunpack.c.h.b16 %v1705
    %v3095 = vunpack.c.l.b16 %v1706
    %v3096 = vunpack.c.h.b16 %v1706
    %v3097 = vunpack.c.l.b16 %v1707
    %v3098 = vunpack.c.h.b16 %v1707
    %v3099 = vunpack.c.l.b16 %v1708
    %v3100 = vunpack.c.h.b16 %v1708
    %v3101 = vunpack.c.l.b16 %v1709
    %v3102 = vunpack.c.h.b16 %v1709
    %v3103 = vunpack.c.l.b16 %v1710
    %v3104 = vunpack.c.h.b16 %v1710
    %v3105 = vunpack.c.l.b16 %v1711
    %v3106 = vunpack.c.h.b16 %v1711
    %v3107 = vunpack.c.l.b16 %v1712
    %v3108 = vunpack.c.h.b16 %v1712
    %v3109 = vunpack.c.l.b16 %v1713
    %v3110 = vunpack.c.h.b16 %v1713
    %v3111 = vunpack.c.l.b16 %v1714
    %v3112 = vunpack.c.h.b16 %v1714
    %v3113 = vunpack.c.l.b16 %v1715
    %v3114 = vunpack.c.h.b16 %v1715
    %v3115 = vunpack.c.l.b16 %v1716
    %v3116 = vunpack.c.h.b16 %v1716
    %v3117 = vunpack.c.l.b16 %v1717
    %v3118 = vunpack.c.h.b16 %v1717
    %v3119 = vunpack.c.l.b16 %v1718
    %v3120 = vunpack.c.h.b16 %v1718
    %v3121 = vunpack.c.l.b16 %v1719
    %v3122 = vunpack.c.h.b16 %v1719
    %v3123 = vunpack.c.l.b16 %v1720
    %v3124 = vunpack.c.h.b16 %v1720
    %v3125 = vunpack.c.l.b16 %v1721
    %v3126 = vunpack.c.h.b16 %v1721
    %v3127 = vunpack.c.l.b16 %v1722
    %v3128 = vunpack.c.h.b16 %v1722
    %v3129 = vunpack.c.l.b16 %v1723
    %v3130 = vunpack.c.h.b16 %v1723
    %v3131 = vunpack.c.l.b16 %v1724
    %v3132 = vunpack.c.h.b16 %v1724
    %v3133 = vunpack.c.l.b16 %v1725
    %v3134 = vunpack.c.h.b16 %v1725
    %v3135 = vunpack.c.l.b16 %v1726
    %v3136 = vunpack.c.h.b16 %v1726
    %v3137 = vunpack.c.l.b16 %v1727
    %v3138 = vunpack.c.h.b16 %v1727
    %v3139 = vunpack.c.l.b16 %v1728
    %v3140 = vunpack.c.h.b16 %v1728
    %v3141 = vunpack.c.l.b16 %v1729
    %v3142 = vunpack.c.h.b16 %v1729
    %v3143 = vunpack.c.l.b16 %v1730
    %v3144 = vunpack.c.h.b16 %v1730
    %v3145 = vunpack.c.l.b16 %v1731
    %v3146 = vunpack.c.h.b16 %v1731
    %v3147 = vunpack.c.l.b16 %v1732
    %v3148 = vunpack.c.h.b16 %v1732
    %v3149 = vunpack.c.l.b16 %v1733
    %v3150 = vunpack.c.h.b16 %v1733
    %v3151 = vunpack.c.l.b16 %v1734
    %v3152 = vunpack.c.h.b16 %v1734
    %v3153 = vunpack.c.l.b16 %v1735
    %v3154 = vunpack.c.h.b16 %v1735
    %v3155 = vunpack.c.l.b16 %v1736
    %v3156 = vunpack.c.h.b16 %v1736
    %v3157 = vunpack.c.l.b16 %v1737
    %v3158 = vunpack.c.h.b16 %v1737
    %v3159 = vunpack.c.l.b16 %v1738
    %v3160 = vunpack.c.h.b16 %v1738
    %v3161 = vunpack.c.l.b16 %v1739
    %v3162 = vunpack.c.h.b16 %v1739
    %v3163 = vunpack.c.l.b16 %v1740
    %v3164 = vunpack.c.h.b16 %v1740
    %v3165 = vunpack.c.l.b16 %v1741
    %v3166 = vunpack.c.h.b16 %v1741
    %v3167 = vunpack.c.l.b16 %v1742
    %v3168 = vunpack.c.h.b16 %v1742
    %v3169 = vunpack.c.l.b16 %v1743
    %v3170 = vunpack.c.h.b16 %v1743
    %v3171 = vunpack.c.l.b16 %v1744
    %v3172 = vunpack.c.h.b16 %v1744
    %v3173 = vunpack.c.l.b16 %v1745
    %v3174 = vunpack.c.h.b16 %v1745
    %v3175 = vunpack.c.l.b16 %v1746
    %v3176 = vunpack.c.h.b16 %v1746
    %v3177 = vunpack.c.l.b16 %v1747
    %v3178 = vunpack.c.h.b16 %v1747
    %v3179 = vunpack.c.l.b16 %v1748
    %v3180 = vunpack.c.h.b16 %v1748
    %v3181 = vunpack.c.l.b16 %v1749
    %v3182 = vunpack.c.h.b16 %v1749
    %v3183 = vunpack.c.l.b16 %v1750
    %v3184 = vunpack.c.h.b16 %v1750
    %v3185 = vunpack.c.l.b16 %v1751
    %v3186 = vunpack.c.h.b16 %v1751
    %v3187 = vunpack.c.l.b16 %v1752
    %v3188 = vunpack.c.h.b16 %v1752
    %v3189 = vunpack.c.l.b16 %v1753
    %v3190 = vunpack.c.h.b16 %v1753
    %v3191 = vunpack.c.l.b16 %v1754
    %v3192 = vunpack.c.h.b16 %v1754
    %v3193 = vunpack.c.l.b16 %v1755
    %v3194 = vunpack.c.h.b16 %v1755
    %v3195 = vunpack.c.l.b16 %v1756
    %v3196 = vunpack.c.h.b16 %v1756
    %v3197 = vunpack.c.l.b16 %v1757
    %v3198 = vunpack.c.h.b16 %v1757
    %v3199 = vunpack.c.l.b16 %v1758
    %v3200 = vunpack.c.h.b16 %v1758
    %v3201 = vunpack.c.l.b16 %v1759
    %v3202 = vunpack.c.h.b16 %v1759
    %v3203 = vunpack.c.l.b16 %v1760
    %v3204 = vunpack.c.h.b16 %v1760
    %v3205 = vunpack.c.l.b16 %v1761
    %v3206 = vunpack.c.h.b16 %v1761
    %v3207 = vunpack.c.l.b16 %v1762
    %v3208 = vunpack.c.h.b16 %v1762
    %v3209 = vunpack.c.l.b16 %v1763
    %v3210 = vunpack.c.h.b16 %v1763
    %v3211 = vunpack.c.l.b16 %v1764
    %v3212 = vunpack.c.h.b16 %v1764
    %v3213 = vunpack.c.l.b16 %v1765
    %v3214 = vunpack.c.h.b16 %v1765
    %v3215 = vunpack.c.l.b16 %v1766
    %v3216 = vunpack.c.h.b16 %v1766
    %v3217 = vunpack.c.l.b16 %v1767
    %v3218 = vunpack.c.h.b16 %v1767
    %v3219 = vunpack.c.l.b16 %v1768
    %v3220 = vunpack.c.h.b16 %v1768
    %v3221 = vunpack.c.l.b16 %v1769
    %v3222 = vunpack.c.h.b16 %v1769
    %v3223 = vunpack.c.l.b16 %v1770
    %v3224 = vunpack.c.h.b16 %v1770
    %v3225 = vunpack.c.l.b16 %v1771
    %v3226 = vunpack.c.h.b16 %v1771
    %v3227 = vunpack.c.l.b16 %v1772
    %v3228 = vunpack.c.h.b16 %v1772
    %v3229 = vunpack.c.l.b16 %v1773
    %v3230 = vunpack.c.h.b16 %v1773
    %v3231 = vunpack.c.l.b16 %v1774
    %v3232 = vunpack.c.h.b16 %v1774
    %v3233 = vunpack.c.l.b16 %v1775
    %v3234 = vunpack.c.h.b16 %v1775
    %v3235 = vunpack.c.l.b16 %v1776
    %v3236 = vunpack.c.h.b16 %v1776
    %v3237 = vunpack.c.l.b16 %v1777
    %v3238 = vunpack.c.h.b16 %v1777
    %v3239 = vunpack.c.l.b16 %v1778
    %v3240 = vunpack.c.h.b16 %v1778
    %v3241 = vunpack.c.l.b16 %v1779
    %v3242 = vunpack.c.h.b16 %v1779
    %v3243 = vunpack.c.l.b16 %v1780
    %v3244 = vunpack.c.h.b16 %v1780
    %v3245 = vunpack.c.l.b16 %v1781
    %v3246 = vunpack.c.h.b16 %v1781
    %v3247 = vunpack.c.l.b16 %v1782
    %v3248 = vunpack.c.h.b16 %v1782
    %v3249 = vunpack.c.l.b16 %v1783
    %v3250 = vunpack.c.h.b16 %v1783
    %v3251 = vunpack.c.l.b16 %v1784
    %v3252 = vunpack.c.h.b16 %v1784
    %v3253 = vunpack.c.l.b16 %v1785
    %v3254 = vunpack.c.h.b16 %v1785
    %v3255 = vunpack.c.l.b16 %v1786
    %v3256 = vunpack.c.h.b16 %v1786
    %v3257 = vunpack.c.l.b16 %v1787
    %v3258 = vunpack.c.h.b16 %v1787
    %v3259 = vunpack.c.l.b16 %v1788
    %v3260 = vunpack.c.h.b16 %v1788
    %v3261 = vunpack.c.l.b16 %v1789
    %v3262 = vunpack.c.h.b16 %v1789
    %v3263 = vunpack.c.l.b16 %v1790
    %v3264 = vunpack.c.h.b16 %v1790
    %v3265 = vunpack.c.l.b16 %v1791
    %v3266 = vunpack.c.h.b16 %v1791
    %v3267 = vunpack.c.l.b16 %v1792
    %v3268 = vunpack.c.h.b16 %v1792
    %v3269 = vunpack.c.l.b16 %v1793
    %v3270 = vunpack.c.h.b16 %v1793
    %v3271 = vunpack.c.l.b16 %v1794
    %v3272 = vunpack.c.h.b16 %v1794
    %v3273 = vunpack.c.l.b16 %v1795
    %v3274 = vunpack.c.h.b16 %v1795
    %v3275 = vunpack.c.l.b16 %v1796
    %v3276 = vunpack.c.h.b16 %v1796
    %v3277 = vunpack.c.l.b16 %v1797
    %v3278 = vunpack.c.h.b16 %v1797
    %v3279 = vunpack.c.l.b16 %v1798
    %v3280 = vunpack.c.h.b16 %v1798
    %v3281 = vunpack.c.l.b16 %v1799
    %v3282 = vunpack.c.h.b16 %v1799
    %v3283 = vunpack.c.l.b16 %v1800
    %v3284 = vunpack.c.h.b16 %v1800
    %v3285 = vunpack.c.l.b16 %v1801
    %v3286 = vunpack.c.h.b16 %v1801
    %v3287 = vunpack.c.l.b16 %v1802
    %v3288 = vunpack.c.h.b16 %v1802
    %v3289 = vunpack.c.l.b16 %v1803
    %v3290 = vunpack.c.h.b16 %v1803
    %v3291 = vunpack.c.l.b16 %v1804
    %v3292 = vunpack.c.h.b16 %v1804
    %v3293 = vunpack.c.l.b16 %v1805
    %v3294 = vunpack.c.h.b16 %v1805
    %v3295 = vunpack.c.l.b16 %v1806
    %v3296 = vunpack.c.h.b16 %v1806
    %v3297 = vunpack.c.l.b16 %v1807
    %v3298 = vunpack.c.h.b16 %v1807
    %v3299 = vunpack.c.l.b16 %v1808
    %v3300 = vunpack.c.h.b16 %v1808
    %v3301 = vunpack.c.l.b16 %v1809
    %v3302 = vunpack.c.h.b16 %v1809
    %v3303 = vunpack.c.l.b16 %v1810
    %v3304 = vunpack.c.h.b16 %v1810
    %v3305 = vunpack.c.l.b16 %v1811
    %v3306 = vunpack.c.h.b16 %v1811
    %v3307 = vunpack.c.l.b16 %v1812
    %v3308 = vunpack.c.h.b16 %v1812
    %v3309 = vunpack.c.l.b16 %v1813
    %v3310 = vunpack.c.h.b16 %v1813
    %v3311 = vunpack.c.l.b16 %v1814
    %v3312 = vunpack.c.h.b16 %v1814
    %v3313 = vunpack.c.l.b16 %v1815
    %v3314 = vunpack.c.h.b16 %v1815
    %v3315 = vunpack.c.l.b16 %v1816
    %v3316 = vunpack.c.h.b16 %v1816
    %v3317 = vunpack.c.l.b16 %v1817
    %v3318 = vunpack.c.h.b16 %v1817
    %v3319 = vunpack.c.l.b16 %v1818
    %v3320 = vunpack.c.h.b16 %v1818
    %v3321 = vunpack.c.l.b16 %v1819
    %v3322 = vunpack.c.h.b16 %v1819
    %v3323 = vunpack.c.l.b16 %v1820
    %v3324 = vunpack.c.h.b16 %v1820
    %v3325 = vunpack.c.l.b16 %v1821
    %v3326 = vunpack.c.h.b16 %v1821
    %v3327 = vunpack.c.l.b16 %v1822
    %v3328 = vunpack.c.h.b16 %v1822
    %v3329 = vunpack.c.l.b16 %v1823
    %v3330 = vunpack.c.h.b16 %v1823
    %v3331 = vunpack.c.l.b16 %v1824
    %v3332 = vunpack.c.h.b16 %v1824
    %v3333 = vunpack.c.l.b16 %v1825
    %v3334 = vunpack.c.h.b16 %v1825
    %v3335 = vunpack.c.l.b16 %v1826
    %v3336 = vunpack.c.h.b16 %v1826
    %v3337 = vunpack.c.l.b16 %v1827
    %v3338 = vunpack.c.h.b16 %v1827
    %v3339 = vunpack.c.l.b16 %v1828
    %v3340 = vunpack.c.h.b16 %v1828
    %v3341 = vunpack.c.l.b16 %v1829
    %v3342 = vunpack.c.h.b16 %v1829
    %v3343 = vunpack.c.l.b16 %v1830
    %v3344 = vunpack.c.h.b16 %v1830
    %v3345 = vunpack.c.l.b16 %v1831
    %v3346 = vunpack.c.h.b16 %v1831
    %v3347 = vunpack.c.l.b16 %v1832
    %v3348 = vunpack.c.h.b16 %v1832
    %v3349 = vunpack.c.l.b16 %v1833
    %v3350 = vunpack.c.h.b16 %v1833
    %v3351 = vunpack.c.l.b16 %v1834
    %v3352 = vunpack.c.h.b16 %v1834
    %v3353 = vunpack.c.l.b16 %v1835
    %v3354 = vunpack.c.h.b16 %v1835
    %v3355 = vunpack.c.l.b16 %v1836
    %v3356 = vunpack.c.h.b16 %v1836
    %v3357 = vunpack.c.l.b16 %v1837
    %v3358 = vunpack.c.h.b16 %v1837
    %v3359 = vunpack.c.l.b16 %v1838
    %v3360 = vunpack.c.h.b16 %v1838
    %v3361 = vunpack.c.l.b16 %v1839
    %v3362 = vunpack.c.h.b16 %v1839
    %v3363 = vunpack.c.l.b16 %v1840
    %v3364 = vunpack.c.h.b16 %v1840
    %v3365 = vunpack.c.l.b16 %v1841
    %v3366 = vunpack.c.h.b16 %v1841
    %v3367 = vunpack.c.l.b16 %v1842
    %v3368 = vunpack.c.h.b16 %v1842
    %v3369 = vunpack.c.l.b16 %v1843
    %v3370 = vunpack.c.h.b16 %v1843
    %v3371 = vunpack.c.l.b16 %v1844
    %v3372 = vunpack.c.h.b16 %v1844
    %v3373 = vunpack.c.l.b16 %v1845
    %v3374 = vunpack.c.h.b16 %v1845
    %v3375 = vunpack.c.l.b16 %v1846
    %v3376 = vunpack.c.h.b16 %v1846
    %v3377 = vunpack.c.l.b16 %v1847
    %v3378 = vunpack.c.h.b16 %v1847
    %v3379 = vunpack.c.l.b16 %v1848
    %v3380 = vunpack.c.h.b16 %v1848
    %v3381 = vunpack.c.l.b16 %v1849
    %v3382 = vunpack.c.h.b16 %v1849
    %v3383 = vunpack.c.l.b16 %v1850
    %v3384 = vunpack.c.h.b16 %v1850
    %v3385 = vunpack.c.l.b16 %v1851
    %v3386 = vunpack.c.h.b16 %v1851
    %v3387 = vunpack.c.l.b16 %v1852
    %v3388 = vunpack.c.h.b16 %v1852
    %v3389 = vpack.c.b16 %v2381, %v2365
    %v3390 = vpack.c.b16 %v2382, %v2366
    %v3391 = vpack.c.b16 %v2383, %v2367
    %v3392 = vpack.c.b16 %v2384, %v2368
    %v3393 = vpack.c.b16 %v2385, %v2369
    %v3394 = vpack.c.b16 %v2386, %v2370
    %v3395 = vpack.c.b16 %v2387, %v2371
    %v3396 = vpack.c.b16 %v2388, %v2372
    %v3397 = vpack.c.b16 %v2389, %v2373
    %v3398 = vpack.c.b16 %v2390, %v2374
    %v3399 = vpack.c.b16 %v2391, %v2375
    %v3400 = vpack.c.b16 %v2392, %v2376
    %v3401 = vpack.c.b16 %v2393, %v2377
    %v3402 = vpack.c.b16 %v2394, %v2378
    %v3403 = vpack.c.b16 %v2395, %v2379
    %v3404 = vpack.c.b16 %v2396, %v2380
    %v3405 = vpack.c.b16 %v2413, %v2397
    %v3406 = vpack.c.b16 %v2414, %v2398
    %v3407 = vpack.c.b16 %v2415, %v2399
    %v3408 = vpack.c.b16 %v2416, %v2400
    %v3409 = vpack.c.b16 %v2417, %v2401
    %v3410 = vpack.c.b16 %v2418, %v2402
    %v3411 = vpack.c.b16 %v2419, %v2403
    %v3412 = vpack.c.b16 %v2420, %v2404
    %v3413 = vpack.c.b16 %v2421, %v2405
    %v3414 = vpack.c.b16 %v2422, %v2406
    %v3415 = vpack.c.b16 %v2423, %v2407
    %v3416 = vpack.c.b16 %v2424, %v2408
    %v3417 = vpack.c.b16 %v2425, %v2409
    %v3418 = vpack.c.b16 %v2426, %v2410
    %v3419 = vpack.c.b16 %v2427, %v2411
    %v3420 = vpack.c.b16 %v2428, %v2412
    %v3421 = vpack.c.b16 %v2445, %v2429
    %v3422 = vpack.c.b16 %v2446, %v2430
    %v3423 = vpack.c.b16 %v2447, %v2431
    %v3424 = vpack.c.b16 %v2448, %v2432
    %v3425 = vpack.c.b16 %v2449, %v2433
    %v3426 = vpack.c.b16 %v2450, %v2434
    %v3427 = vpack.c.b16 %v2451, %v2435
    %v3428 = vpack.c.b16 %v2452, %v2436
    %v3429 = vpack.c.b16 %v2453, %v2437
    %v3430 = vpack.c.b16 %v2454, %v2438
    %v3431 = vpack.c.b16 %v2455, %v2439
    %v3432 = vpack.c.b16 %v2456, %v2440
    %v3433 = vpack.c.b16 %v2457, %v2441
    %v3434 = vpack.c.b16 %v2458, %v2442
    %v3435 = vpack.c.b16 %v2459, %v2443
    %v3436 = vpack.c.b16 %v2460, %v2444
    %v3437 = vpack.c.b16 %v2477, %v2461
    %v3438 = vpack.c.b16 %v2478, %v2462
    %v3439 = vpack.c.b16 %v2479, %v2463
    %v3440 = vpack.c.b16 %v2480, %v2464
    %v3441 = vpack.c.b16 %v2481, %v2465
    %v3442 = vpack.c.b16 %v2482, %v2466
    %v3443 = vpack.c.b16 %v2483, %v2467
    %v3444 = vpack.c.b16 %v2484, %v2468
    %v3445 = vpack.c.b16 %v2485, %v2469
    %v3446 = vpack.c.b16 %v2486, %v2470
    %v3447 = vpack.c.b16 %v2487, %v2471
    %v3448 = vpack.c.b16 %v2488, %v2472
    %v3449 = vpack.c.b16 %v2489, %v2473
    %v3450 = vpack.c.b16 %v2490, %v2474
    %v3451 = vpack.c.b16 %v2491, %v2475
    %v3452 = vpack.c.b16 %v2492, %v2476
    %v3453 = vpack.c.b16 %v2509, %v2493
    %v3454 = vpack.c.b16 %v2510, %v2494
    %v3455 = vpack.c.b16 %v2511, %v2495
    %v3456 = vpack.c.b16 %v2512, %v2496
    %v3457 = vpack.c.b16 %v2513, %v2497
    %v3458 = vpack.c.b16 %v2514, %v2498
    %v3459 = vpack.c.b16 %v2515, %v2499
    %v3460 = vpack.c.b16 %v2516, %v2500
    %v3461 = vpack.c.b16 %v2517, %v2501
    %v3462 = vpack.c.b16 %v2518, %v2502
    %v3463 = vpack.c.b16 %v2519, %v2503
    %v3464 = vpack.c.b16 %v2520, %v2504
    %v3465 = vpack.c.b16 %v2521, %v2505
    %v3466 = vpack.c.b16 %v2522, %v2506
    %v3467 = vpack.c.b16 %v2523, %v2507
    %v3468 = vpack.c.b16 %v2524, %v2508
    %v3469 = vpack.c.b16 %v2541, %v2525
    %v3470 = vpack.c.b16 %v2542, %v2526
    %v3471 = vpack.c.b16 %v2543, %v2527
    %v3472 = vpack.c.b16 %v2544, %v2528
    %v3473 = vpack.c.b16 %v2545, %v2529
    %v3474 = vpack.c.b16 %v2546, %v2530
    %v3475 = vpack.c.b16 %v2547, %v2531
    %v3476 = vpack.c.b16 %v2548, %v2532
    %v3477 = vpack.c.b16 %v2549, %v2533
    %v3478 = vpack.c.b16 %v2550, %v2534
    %v3479 = vpack.c.b16 %v2551, %v2535
    %v3480 = vpack.c.b16 %v2552, %v2536
    %v3481 = vpack.c.b16 %v2553, %v2537
    %v3482 = vpack.c.b16 %v2554, %v2538
    %v3483 = vpack.c.b16 %v2555, %v2539
    %v3484 = vpack.c.b16 %v2556, %v2540
    %v3485 = vpack.c.b16 %v2573, %v2557
    %v3486 = vpack.c.b16 %v2574, %v2558
    %v3487 = vpack.c.b16 %v2575, %v2559
    %v3488 = vpack.c.b16 %v2576, %v2560
    %v3489 = vpack.c.b16 %v2577, %v2561
    %v3490 = vpack.c.b16 %v2578, %v2562
    %v3491 = vpack.c.b16 %v2579, %v2563
    %v3492 = vpack.c.b16 %v2580, %v2564
    %v3493 = vpack.c.b16 %v2581, %v2565
    %v3494 = vpack.c.b16 %v2582, %v2566
    %v3495 = vpack.c.b16 %v2583, %v2567
    %v3496 = vpack.c.b16 %v2584, %v2568
    %v3497 = vpack.c.b16 %v2585, %v2569
    %v3498 = vpack.c.b16 %v2586, %v2570
    %v3499 = vpack.c.b16 %v2587, %v2571
    %v3500 = vpack.c.b16 %v2588, %v2572
    %v3501 = vpack.c.b16 %v2605, %v2589
    %v3502 = vpack.c.b16 %v2606, %v2590
    %v3503 = vpack.c.b16 %v2607, %v2591
    %v3504 = vpack.c.b16 %v2608, %v2592
    %v3505 = vpack.c.b16 %v2609, %v2593
    %v3506 = vpack.c.b16 %v2610, %v2594
    %v3507 = vpack.c.b16 %v2611, %v2595
    %v3508 = vpack.c.b16 %v2612, %v2596
    %v3509 = vpack.c.b16 %v2613, %v2597
    %v3510 = vpack.c.b16 %v2614, %v2598
    %v3511 = vpack.c.b16 %v2615, %v2599
    %v3512 = vpack.c.b16 %v2616, %v2600
    %v3513 = vpack.c.b16 %v2617, %v2601
    %v3514 = vpack.c.b16 %v2618, %v2602
    %v3515 = vpack.c.b16 %v2619, %v2603
    %v3516 = vpack.c.b16 %v2620, %v2604
    %v3517 = vpack.c.b16 %v2637, %v2621
    %v3518 = vpack.c.b16 %v2638, %v2622
    %v3519 = vpack.c.b16 %v2639, %v2623
    %v3520 = vpack.c.b16 %v2640, %v2624
    %v3521 = vpack.c.b16 %v2641, %v2625
    %v3522 = vpack.c.b16 %v2642, %v2626
    %v3523 = vpack.c.b16 %v2643, %v2627
    %v3524 = vpack.c.b16 %v2644, %v2628
    %v3525 = vpack.c.b16 %v2645, %v2629
    %v3526 = vpack.c.b16 %v2646, %v2630
    %v3527 = vpack.c.b16 %v2647, %v2631
    %v3528 = vpack.c.b16 %v2648, %v2632
    %v3529 = vpack.c.b16 %v2649, %v2633
    %v3530 = vpack.c.b16 %v2650, %v2634
    %v3531 = vpack.c.b16 %v2651, %v2635
    %v3532 = vpack.c.b16 %v2652, %v2636
    %v3533 = vpack.c.b16 %v2669, %v2653
    %v3534 = vpack.c.b16 %v2670, %v2654
    %v3535 = vpack.c.b16 %v2671, %v2655
    %v3536 = vpack.c.b16 %v2672, %v2656
    %v3537 = vpack.c.b16 %v2673, %v2657
    %v3538 = vpack.c.b16 %v2674, %v2658
    %v3539 = vpack.c.b16 %v2675, %v2659
    %v3540 = vpack.c.b16 %v2676, %v2660
    %v3541 = vpack.c.b16 %v2677, %v2661
    %v3542 = vpack.c.b16 %v2678, %v2662
    %v3543 = vpack.c.b16 %v2679, %v2663
    %v3544 = vpack.c.b16 %v2680, %v2664
    %v3545 = vpack.c.b16 %v2681, %v2665
    %v3546 = vpack.c.b16 %v2682, %v2666
    %v3547 = vpack.c.b16 %v2683, %v2667
    %v3548 = vpack.c.b16 %v2684, %v2668
    %v3549 = vpack.c.b16 %v2701, %v2685
    %v3550 = vpack.c.b16 %v2702, %v2686
    %v3551 = vpack.c.b16 %v2703, %v2687
    %v3552 = vpack.c.b16 %v2704, %v2688
    %v3553 = vpack.c.b16 %v2705, %v2689
    %v3554 = vpack.c.b16 %v2706, %v2690
    %v3555 = vpack.c.b16 %v2707, %v2691
    %v3556 = vpack.c.b16 %v2708, %v2692
    %v3557 = vpack.c.b16 %v2709, %v2693
    %v3558 = vpack.c.b16 %v2710, %v2694
    %v3559 = vpack.c.b16 %v2711, %v2695
    %v3560 = vpack.c.b16 %v2712, %v2696
    %v3561 = vpack.c.b16 %v2713, %v2697
    %v3562 = vpack.c.b16 %v2714, %v2698
    %v3563 = vpack.c.b16 %v2715, %v2699
    %v3564 = vpack.c.b16 %v2716, %v2700
    %v3565 = vpack.c.b16 %v2733, %v2717
    %v3566 = vpack.c.b16 %v2734, %v2718
    %v3567 = vpack.c.b16 %v2735, %v2719
    %v3568 = vpack.c.b16 %v2736, %v2720
    %v3569 = vpack.c.b16 %v2737, %v2721
    %v3570 = vpack.c.b16 %v2738, %v2722
    %v3571 = vpack.c.b16 %v2739, %v2723
    %v3572 = vpack.c.b16 %v2740, %v2724
    %v3573 = vpack.c.b16 %v2741, %v2725
    %v3574 = vpack.c.b16 %v2742, %v2726
    %v3575 = vpack.c.b16 %v2743, %v2727
    %v3576 = vpack.c.b16 %v2744, %v2728
    %v3577 = vpack.c.b16 %v2745, %v2729
    %v3578 = vpack.c.b16 %v2746, %v2730
    %v3579 = vpack.c.b16 %v2747, %v2731
    %v3580 = vpack.c.b16 %v2748, %v2732
    %v3581 = vpack.c.b16 %v2765, %v2749
    %v3582 = vpack.c.b16 %v2766, %v2750
    %v3583 = vpack.c.b16 %v2767, %v2751
    %v3584 = vpack.c.b16 %v2768, %v2752
    %v3585 = vpack.c.b16 %v2769, %v2753
    %v3586 = vpack.c.b16 %v2770, %v2754
    %v3587 = vpack.c.b16 %v2771, %v2755
    %v3588 = vpack.c.b16 %v2772, %v2756
    %v3589 = vpack.c.b16 %v2773, %v2757
    %v3590 = vpack.c.b16 %v2774, %v2758
    %v3591 = vpack.c.b16 %v2775, %v2759
    %v3592 = vpack.c.b16 %v2776, %v2760
    %v3593 = vpack.c.b16 %v2777, %v2761
    %v3594 = vpack.c.b16 %v2778, %v2762
    %v3595 = vpack.c.b16 %v2779, %v2763
    %v3596 = vpack.c.b16 %v2780, %v2764
    %v3597 = vpack.c.b16 %v2797, %v2781
    %v3598 = vpack.c.b16 %v2798, %v2782
    %v3599 = vpack.c.b16 %v2799, %v2783
    %v3600 = vpack.c.b16 %v2800, %v2784
    %v3601 = vpack.c.b16 %v2801, %v2785
    %v3602 = vpack.c.b16 %v2802, %v2786
    %v3603 = vpack.c.b16 %v2803, %v2787
    %v3604 = vpack.c.b16 %v2804, %v2788
    %v3605 = vpack.c.b16 %v2805, %v2789
    %v3606 = vpack.c.b16 %v2806, %v2790
    %v3607 = vpack.c.b16 %v2807, %v2791
    %v3608 = vpack.c.b16 %v2808, %v2792
    %v3609 = vpack.c.b16 %v2809, %v2793
    %v3610 = vpack.c.b16 %v2810, %v2794
    %v3611 = vpack.c.b16 %v2811, %v2795
    %v3612 = vpack.c.b16 %v2812, %v2796
    %v3613 = vpack.c.b16 %v2829, %v2813
    %v3614 = vpack.c.b16 %v2830, %v2814
    %v3615 = vpack.c.b16 %v2831, %v2815
    %v3616 = vpack.c.b16 %v2832, %v2816
    %v3617 = vpack.c.b16 %v2833, %v2817
    %v3618 = vpack.c.b16 %v2834, %v2818
    %v3619 = vpack.c.b16 %v2835, %v2819
    %v3620 = vpack.c.b16 %v2836, %v2820
    %v3621 = vpack.c.b16 %v2837, %v2821
    %v3622 = vpack.c.b16 %v2838, %v2822
    %v3623 = vpack.c.b16 %v2839, %v2823
    %v3624 = vpack.c.b16 %v2840, %v2824
    %v3625 = vpack.c.b16 %v2841, %v2825
    %v3626 = vpack.c.b16 %v2842, %v2826
    %v3627 = vpack.c.b16 %v2843, %v2827
    %v3628 = vpack.c.b16 %v2844, %v2828
    %v3629 = vpack.c.b16 %v2861, %v2845
    %v3630 = vpack.c.b16 %v2862, %v2846
    %v3631 = vpack.c.b16 %v2863, %v2847
    %v3632 = vpack.c.b16 %v2864, %v2848
    %v3633 = vpack.c.b16 %v2865, %v2849
    %v3634 = vpack.c.b16 %v2866, %v2850
    %v3635 = vpack.c.b16 %v2867, %v2851
    %v3636 = vpack.c.b16 %v2868, %v2852
    %v3637 = vpack.c.b16 %v2869, %v2853
    %v3638 = vpack.c.b16 %v2870, %v2854
    %v3639 = vpack.c.b16 %v2871, %v2855
    %v3640 = vpack.c.b16 %v2872, %v2856
    %v3641 = vpack.c.b16 %v2873, %v2857
    %v3642 = vpack.c.b16 %v2874, %v2858
    %v3643 = vpack.c.b16 %v2875, %v2859
    %v3644 = vpack.c.b16 %v2876, %v2860
    %v3645 = vpack.c.b16 %v2893, %v2877
    %v3646 = vpack.c.b16 %v2894, %v2878
    %v3647 = vpack.c.b16 %v2895, %v2879
    %v3648 = vpack.c.b16 %v2896, %v2880
    %v3649 = vpack.c.b16 %v2897, %v2881
    %v3650 = vpack.c.b16 %v2898, %v2882
    %v3651 = vpack.c.b16 %v2899, %v2883
    %v3652 = vpack.c.b16 %v2900, %v2884
    %v3653 = vpack.c.b16 %v2901, %v2885
    %v3654 = vpack.c.b16 %v2902, %v2886
    %v3655 = vpack.c.b16 %v2903, %v2887
    %v3656 = vpack.c.b16 %v2904, %v2888
    %v3657 = vpack.c.b16 %v2905, %v2889
    %v3658 = vpack.c.b16 %v2906, %v2890
    %v3659 = vpack.c.b16 %v2907, %v2891
    %v3660 = vpack.c.b16 %v2908, %v2892
    %v3661 = vpack.c.b16 %v2925, %v2909
    %v3662 = vpack.c.b16 %v2926, %v2910
    %v3663 = vpack.c.b16 %v2927, %v2911
    %v3664 = vpack.c.b16 %v2928, %v2912
    %v3665 = vpack.c.b16 %v2929, %v2913
    %v3666 = vpack.c.b16 %v2930, %v2914
    %v3667 = vpack.c.b16 %v2931, %v2915
    %v3668 = vpack.c.b16 %v2932, %v2916
    %v3669 = vpack.c.b16 %v2933, %v2917
    %v3670 = vpack.c.b16 %v2934, %v2918
    %v3671 = vpack.c.b16 %v2935, %v2919
    %v3672 = vpack.c.b16 %v2936, %v2920
    %v3673 = vpack.c.b16 %v2937, %v2921
    %v3674 = vpack.c.b16 %v2938, %v2922
    %v3675 = vpack.c.b16 %v2939, %v2923
    %v3676 = vpack.c.b16 %v2940, %v2924
    %v3677 = vpack.c.b16 %v2957, %v2941
    %v3678 = vpack.c.b16 %v2958, %v2942
    %v3679 = vpack.c.b16 %v2959, %v2943
    %v3680 = vpack.c.b16 %v2960, %v2944
    %v3681 = vpack.c.b16 %v2961, %v2945
    %v3682 = vpack.c.b16 %v2962, %v2946
    %v3683 = vpack.c.b16 %v2963, %v2947
    %v3684 = vpack.c.b16 %v2964, %v2948
    %v3685 = vpack.c.b16 %v2965, %v2949
    %v3686 = vpack.c.b16 %v2966, %v2950
    %v3687 = vpack.c.b16 %v2967, %v2951
    %v3688 = vpack.c.b16 %v2968, %v2952
    %v3689 = vpack.c.b16 %v2969, %v2953
    %v3690 = vpack.c.b16 %v2970, %v2954
    %v3691 = vpack.c.b16 %v2971, %v2955
    %v3692 = vpack.c.b16 %v2972, %v2956
    %v3693 = vpack.c.b16 %v2989, %v2973
    %v3694 = vpack.c.b16 %v2990, %v2974
    %v3695 = vpack.c.b16 %v2991, %v2975
    %v3696 = vpack.c.b16 %v2992, %v2976
    %v3697 = vpack.c.b16 %v2993, %v2977
    %v3698 = vpack.c.b16 %v2994, %v2978
    %v3699 = vpack.c.b16 %v2995, %v2979
    %v3700 = vpack.c.b16 %v2996, %v2980
    %v3701 = vpack.c.b16 %v2997, %v2981
    %v3702 = vpack.c.b16 %v2998, %v2982
    %v3703 = vpack.c.b16 %v2999, %v2983
    %v3704 = vpack.c.b16 %v3000, %v2984
    %v3705 = vpack.c.b16 %v3001, %v2985
    %v3706 = vpack.c.b16 %v3002, %v2986
    %v3707 = vpack.c.b16 %v3003, %v2987
    %v3708 = vpack.c.b16 %v3004, %v2988
    %v3709 = vpack.c.b16 %v3021, %v3005
    %v3710 = vpack.c.b16 %v3022, %v3006
    %v3711 = vpack.c.b16 %v3023, %v3007
    %v3712 = vpack.c.b16 %v3024, %v3008
    %v3713 = vpack.c.b16 %v3025, %v3009
    %v3714 = vpack.c.b16 %v3026, %v3010
    %v3715 = vpack.c.b16 %v3027, %v3011
    %v3716 = vpack.c.b16 %v3028, %v3012
    %v3717 = vpack.c.b16 %v3029, %v3013
    %v3718 = vpack.c.b16 %v3030, %v3014
    %v3719 = vpack.c.b16 %v3031, %v3015
    %v3720 = vpack.c.b16 %v3032, %v3016
    %v3721 = vpack.c.b16 %v3033, %v3017
    %v3722 = vpack.c.b16 %v3034, %v3018
    %v3723 = vpack.c.b16 %v3035, %v3019
    %v3724 = vpack.c.b16 %v3036, %v3020
    %v3725 = vpack.c.b16 %v3053, %v3037
    %v3726 = vpack.c.b16 %v3054, %v3038
    %v3727 = vpack.c.b16 %v3055, %v3039
    %v3728 = vpack.c.b16 %v3056, %v3040
    %v3729 = vpack.c.b16 %v3057, %v3041
    %v3730 = vpack.c.b16 %v3058, %v3042
    %v3731 = vpack.c.b16 %v3059, %v3043
    %v3732 = vpack.c.b16 %v3060, %v3044
    %v3733 = vpack.c.b16 %v3061, %v3045
    %v3734 = vpack.c.b16 %v3062, %v3046
    %v3735 = vpack.c.b16 %v3063, %v3047
    %v3736 = vpack.c.b16 %v3064, %v3048
    %v3737 = vpack.c.b16 %v3065, %v3049
    %v3738 = vpack.c.b16 %v3066, %v3050
    %v3739 = vpack.c.b16 %v3067, %v3051
    %v3740 = vpack.c.b16 %v3068, %v3052
    %v3741 = vpack.c.b16 %v3085, %v3069
    %v3742 = vpack.c.b16 %v3086, %v3070
    %v3743 = vpack.c.b16 %v3087, %v3071
    %v3744 = vpack.c.b16 %v3088, %v3072
    %v3745 = vpack.c.b16 %v3089, %v3073
    %v3746 = vpack.c.b16 %v3090, %v3074
    %v3747 = vpack.c.b16 %v3091, %v3075
    %v3748 = vpack.c.b16 %v3092, %v3076
    %v3749 = vpack.c.b16 %v3093, %v3077
    %v3750 = vpack.c.b16 %v3094, %v3078
    %v3751 = vpack.c.b16 %v3095, %v3079
    %v3752 = vpack.c.b16 %v3096, %v3080
    %v3753 = vpack.c.b16 %v3097, %v3081
    %v3754 = vpack.c.b16 %v3098, %v3082
    %v3755 = vpack.c.b16 %v3099, %v3083
    %v3756 = vpack.c.b16 %v3100, %v3084
    %v3757 = vpack.c.b16 %v3117, %v3101
    %v3758 = vpack.c.b16 %v3118, %v3102
    %v3759 = vpack.c.b16 %v3119, %v3103
    %v3760 = vpack.c.b16 %v3120, %v3104
    %v3761 = vpack.c.b16 %v3121, %v3105
    %v3762 = vpack.c.b16 %v3122, %v3106
    %v3763 = vpack.c.b16 %v3123, %v3107
    %v3764 = vpack.c.b16 %v3124, %v3108
    %v3765 = vpack.c.b16 %v3125, %v3109
    %v3766 = vpack.c.b16 %v3126, %v3110
    %v3767 = vpack.c.b16 %v3127, %v3111
    %v3768 = vpack.c.b16 %v3128, %v3112
    %v3769 = vpack.c.b16 %v3129, %v3113
    %v3770 = vpack.c.b16 %v3130, %v3114
    %v3771 = vpack.c.b16 %v3131, %v3115
    %v3772 = vpack.c.b16 %v3132, %v3116
    %v3773 = vpack.c.b16 %v3149, %v3133
    %v3774 = vpack.c.b16 %v3150, %v3134
    %v3775 = vpack.c.b16 %v3151, %v3135
    %v3776 = vpack.c.b16 %v3152, %v3136
    %v3777 = vpack.c.b16 %v3153, %v3137
    %v3778 = vpack.c.b16 %v3154, %v3138
    %v3779 = vpack.c.b16 %v3155, %v3139
    %v3780 = vpack.c.b16 %v3156, %v3140
    %v3781 = vpack.c.b16 %v3157, %v3141
    %v3782 = vpack.c.b16 %v3158, %v3142
    %v3783 = vpack.c.b16 %v3159, %v3143
    %v3784 = vpack.c.b16 %v3160, %v3144
    %v3785 = vpack.c.b16 %v3161, %v3145
    %v3786 = vpack.c.b16 %v3162, %v3146
    %v3787 = vpack.c.b16 %v3163, %v3147
    %v3788 = vpack.c.b16 %v3164, %v3148
    %v3789 = vpack.c.b16 %v3181, %v3165
    %v3790 = vpack.c.b16 %v3182, %v3166
    %v3791 = vpack.c.b16 %v3183, %v3167
    %v3792 = vpack.c.b16 %v3184, %v3168
    %v3793 = vpack.c.b16 %v3185, %v3169
    %v3794 = vpack.c.b16 %v3186, %v3170
    %v3795 = vpack.c.b16 %v3187, %v3171
    %v3796 = vpack.c.b16 %v3188, %v3172
    %v3797 = vpack.c.b16 %v3189, %v3173
    %v3798 = vpack.c.b16 %v3190, %v3174
    %v3799 = vpack.c.b16 %v3191, %v3175
    %v3800 = vpack.c.b16 %v3192, %v3176
    %v3801 = vpack.c.b16 %v3193, %v3177
    %v3802 = vpack.c.b16 %v3194, %v3178
    %v3803 = vpack.c.b16 %v3195, %v3179
    %v3804 = vpack.c.b16 %v3196, %v3180
    %v3805 = vpack.c.b16 %v3213, %v3197
    %v3806 = vpack.c.b16 %v3214, %v3198
    %v3807 = vpack.c.b16 %v3215, %v3199
    %v3808 = vpack.c.b16 %v3216, %v3200
    %v3809 = vpack.c.b16 %v3217, %v3201
    %v3810 = vpack.c.b16 %v3218, %v3202
    %v3811 = vpack.c.b16 %v3219, %v3203
    %v3812 = vpack.c.b16 %v3220, %v3204
    %v3813 = vpack.c.b16 %v3221, %v3205
    %v3814 = vpack.c.b16 %v3222, %v3206
    %v3815 = vpack.c.b16 %v3223, %v3207
    %v3816 = vpack.c.b16 %v3224, %v3208
    %v3817 = vpack.c.b16 %v3225, %v3209
    %v3818 = vpack.c.b16 %v3226, %v3210
    %v3819 = vpack.c.b16 %v3227, %v3211
    %v3820 = vpack.c.b16 %v3228, %v3212
    %v3821 = vpack.c.b16 %v3245, %v3229
    %v3822 = vpack.c.b16 %v3246, %v3230
    %v3823 = vpack.c.b16 %v3247, %v3231
    %v3824 = vpack.c.b16 %v3248, %v3232
    %v3825 = vpack.c.b16 %v3249, %v3233
    %v3826 = vpack.c.b16 %v3250, %v3234
    %v3827 = vpack.c.b16 %v3251, %v3235
    %v3828 = vpack.c.b16 %v3252, %v3236
    %v3829 = vpack.c.b16 %v3253, %v3237
    %v3830 = vpack.c.b16 %v3254, %v3238
    %v3831 = vpack.c.b16 %v3255, %v3239
    %v3832 = vpack.c.b16 %v3256, %v3240
    %v3833 = vpack.c.b16 %v3257, %v3241
    %v3834 = vpack.c.b16 %v3258, %v3242
    %v3835 = vpack.c.b16 %v3259, %v3243
    %v3836 = vpack.c.b16 %v3260, %v3244
    %v3837 = vpack.c.b16 %v3277, %v3261
    %v3838 = vpack.c.b16 %v3278, %v3262
    %v3839 = vpack.c.b16 %v3279, %v3263
    %v3840 = vpack.c.b16 %v3280, %v3264
    %v3841 = vpack.c.b16 %v3281, %v3265
    %v3842 = vpack.c.b16 %v3282, %v3266
    %v3843 = vpack.c.b16 %v3283, %v3267
    %v3844 = vpack.c.b16 %v3284, %v3268
    %v3845 = vpack.c.b16 %v3285, %v3269
    %v3846 = vpack.c.b16 %v3286, %v3270
    %v3847 = vpack.c.b16 %v3287, %v3271
    %v3848 = vpack.c.b16 %v3288, %v3272
    %v3849 = vpack.c.b16 %v3289, %v3273
    %v3850 = vpack.c.b16 %v3290, %v3274
    %v3851 = vpack.c.b16 %v3291, %v3275
    %v3852 = vpack.c.b16 %v3292, %v3276
    %v3853 = vpack.c.b16 %v3309, %v3293
    %v3854 = vpack.c.b16 %v3310, %v3294
    %v3855 = vpack.c.b16 %v3311, %v3295
    %v3856 = vpack.c.b16 %v3312, %v3296
    %v3857 = vpack.c.b16 %v3313, %v3297
    %v3858 = vpack.c.b16 %v3314, %v3298
    %v3859 = vpack.c.b16 %v3315, %v3299
    %v3860 = vpack.c.b16 %v3316, %v3300
    %v3861 = vpack.c.b16 %v3317, %v3301
    %v3862 = vpack.c.b16 %v3318, %v3302
    %v3863 = vpack.c.b16 %v3319, %v3303
    %v3864 = vpack.c.b16 %v3320, %v3304
    %v3865 = vpack.c.b16 %v3321, %v3305
    %v3866 = vpack.c.b16 %v3322, %v3306
    %v3867 = vpack.c.b16 %v3323, %v3307
    %v3868 = vpack.c.b16 %v3324, %v3308
    %v3869 = vpack.c.b16 %v3341, %v3325
    %v3870 = vpack.c.b16 %v3342, %v3326
    %v3871 = vpack.c.b16 %v3343, %v3327
    %v3872 = vpack.c.b16 %v3344, %v3328
    %v3873 = vpack.c.b16 %v3345, %v3329
    %v3874 = vpack.c.b16 %v3346, %v3330
    %v3875 = vpack.c.b16 %v3347, %v3331
    %v3876 = vpack.c.b16 %v3348, %v3332
    %v3877 = vpack.c.b16 %v3349, %v3333
    %v3878 = vpack.c.b16 %v3350, %v3334
    %v3879 = vpack.c.b16 %v3351, %v3335
    %v3880 = vpack.c.b16 %v3352, %v3336
    %v3881 = vpack.c.b16 %v3353, %v3337
    %v3882 = vpack.c.b16 %v3354, %v3338
    %v3883 = vpack.c.b16 %v3355, %v3339
    %v3884 = vpack.c.b16 %v3356, %v3340
    %v3885 = vpack.c.b16 %v3373, %v3357
    %v3886 = vpack.c.b16 %v3374, %v3358
    %v3887 = vpack.c.b16 %v3375, %v3359
    %v3888 = vpack.c.b16 %v3376, %v3360
    %v3889 = vpack.c.b16 %v3377, %v3361
    %v3890 = vpack.c.b16 %v3378, %v3362
    %v3891 = vpack.c.b16 %v3379, %v3363
    %v3892 = vpack.c.b16 %v3380, %v3364
    %v3893 = vpack.c.b16 %v3381, %v3365
    %v3894 = vpack.c.b16 %v3382, %v3366
    %v3895 = vpack.c.b16 %v3383, %v3367
    %v3896 = vpack.c.b16 %v3384, %v3368
    %v3897 = vpack.c.b16 %v3385, %v3369
    %v3898 = vpack.c.b16 %v3386, %v3370
    %v3899 = vpack.c.b16 %v3387, %v3371
    %v3900 = vpack.c.b16 %v3388, %v3372
    %4413 = vmatpush.bf16.msra.mxu0 %v3501
    %4414 = vmatpush.bf16.msra.mxu0 %v3485
    %4415 = vmatpush.bf16.msra.mxu0 %v3469
    %4416 = vmatpush.bf16.msra.mxu0 %v3453
    %4417 = vmatpush.bf16.msra.mxu0 %v3437
    %4418 = vmatpush.bf16.msra.mxu0 %v3421
    %4419 = vmatpush.bf16.msra.mxu0 %v3405
    %4420 = vmatpush.bf16.msra.mxu0 %v3389
    %4421 = vmatmul.bf16.gmra.mxu0 %v1337
    %v4422 = vpop.f32.mrf.mxu0
    %v4423 = vadd.f32 0.0, %v4422
    %v4424 = vpop.f32.mrf.mxu0
    %4425 = vdwg.mxu0
    %4426 = vmatpush.bf16.msra.mxu0 %v3629
    %4427 = vmatpush.bf16.msra.mxu0 %v3613
    %4428 = vmatpush.bf16.msra.mxu0 %v3597
    %4429 = vmatpush.bf16.msra.mxu0 %v3581
    %4430 = vmatpush.bf16.msra.mxu0 %v3565
    %4431 = vmatpush.bf16.msra.mxu0 %v3549
    %4432 = vmatpush.bf16.msra.mxu0 %v3533
    %4433 = vmatpush.bf16.msra.mxu0 %v3517
    %4434 = vmatmul.bf16.gmra.mxu0 %v1338
    %v4435 = vpop.f32.mrf.mxu0
    %v4436 = vadd.f32 %v4423, %v4435
    %v4437 = vpop.f32.mrf.mxu0
    %4438 = vdwg.mxu0
    %4439 = vmatpush.bf16.msra.mxu0 %v3757
    %4440 = vmatpush.bf16.msra.mxu0 %v3741
    %4441 = vmatpush.bf16.msra.mxu0 %v3725
    %4442 = vmatpush.bf16.msra.mxu0 %v3709
    %4443 = vmatpush.bf16.msra.mxu0 %v3693
    %4444 = vmatpush.bf16.msra.mxu0 %v3677
    %4445 = vmatpush.bf16.msra.mxu0 %v3661
    %4446 = vmatpush.bf16.msra.mxu0 %v3645
    %4447 = vmatmul.bf16.gmra.mxu0 %v1339
    %v4448 = vpop.f32.mrf.mxu0
    %v4449 = vadd.f32 %v4436, %v4448
    %v4450 = vpop.f32.mrf.mxu0
    %4451 = vdwg.mxu0
    %4452 = vmatpush.bf16.msra.mxu0 %v3885
    %4453 = vmatpush.bf16.msra.mxu0 %v3869
    %4454 = vmatpush.bf16.msra.mxu0 %v3853
    %4455 = vmatpush.bf16.msra.mxu0 %v3837
    %4456 = vmatpush.bf16.msra.mxu0 %v3821
    %4457 = vmatpush.bf16.msra.mxu0 %v3805
    %4458 = vmatpush.bf16.msra.mxu0 %v3789
    %4459 = vmatpush.bf16.msra.mxu0 %v3773
    %4460 = vmatmul.bf16.gmra.mxu0 %v1340
    %v4461 = vpop.f32.mrf.mxu0
    %v4462 = vadd.f32 %v4449, %v4461
    %v4463 = vpop.f32.mrf.mxu0
    %4464 = vdwg.mxu0
    %4465 = vmatpush.bf16.msra.mxu0 %v3502
    %4466 = vmatpush.bf16.msra.mxu0 %v3486
    %4467 = vmatpush.bf16.msra.mxu0 %v3470
    %4468 = vmatpush.bf16.msra.mxu0 %v3454
    %4469 = vmatpush.bf16.msra.mxu0 %v3438
    %4470 = vmatpush.bf16.msra.mxu0 %v3422
    %4471 = vmatpush.bf16.msra.mxu0 %v3406
    %4472 = vmatpush.bf16.msra.mxu0 %v3390
    %4473 = vmatmul.bf16.gmra.mxu0 %v1337
    %v4474 = vpop.f32.mrf.mxu0
    %v4475 = vadd.f32 0.0, %v4474
    %v4476 = vpop.f32.mrf.mxu0
    %4477 = vdwg.mxu0
    %4478 = vmatpush.bf16.msra.mxu0 %v3630
    %4479 = vmatpush.bf16.msra.mxu0 %v3614
    %4480 = vmatpush.bf16.msra.mxu0 %v3598
    %4481 = vmatpush.bf16.msra.mxu0 %v3582
    %4482 = vmatpush.bf16.msra.mxu0 %v3566
    %4483 = vmatpush.bf16.msra.mxu0 %v3550
    %4484 = vmatpush.bf16.msra.mxu0 %v3534
    %4485 = vmatpush.bf16.msra.mxu0 %v3518
    %4486 = vmatmul.bf16.gmra.mxu0 %v1338
    %v4487 = vpop.f32.mrf.mxu0
    %v4488 = vadd.f32 %v4475, %v4487
    %v4489 = vpop.f32.mrf.mxu0
    %4490 = vdwg.mxu0
    %4491 = vmatpush.bf16.msra.mxu0 %v3758
    %4492 = vmatpush.bf16.msra.mxu0 %v3742
    %4493 = vmatpush.bf16.msra.mxu0 %v3726
    %4494 = vmatpush.bf16.msra.mxu0 %v3710
    %4495 = vmatpush.bf16.msra.mxu0 %v3694
    %4496 = vmatpush.bf16.msra.mxu0 %v3678
    %4497 = vmatpush.bf16.msra.mxu0 %v3662
    %4498 = vmatpush.bf16.msra.mxu0 %v3646
    %4499 = vmatmul.bf16.gmra.mxu0 %v1339
    %v4500 = vpop.f32.mrf.mxu0
    %v4501 = vadd.f32 %v4488, %v4500
    %v4502 = vpop.f32.mrf.mxu0
    %4503 = vdwg.mxu0
    %4504 = vmatpush.bf16.msra.mxu0 %v3886
    %4505 = vmatpush.bf16.msra.mxu0 %v3870
    %4506 = vmatpush.bf16.msra.mxu0 %v3854
    %4507 = vmatpush.bf16.msra.mxu0 %v3838
    %4508 = vmatpush.bf16.msra.mxu0 %v3822
    %4509 = vmatpush.bf16.msra.mxu0 %v3806
    %4510 = vmatpush.bf16.msra.mxu0 %v3790
    %4511 = vmatpush.bf16.msra.mxu0 %v3774
    %4512 = vmatmul.bf16.gmra.mxu0 %v1340
    %v4513 = vpop.f32.mrf.mxu0
    %v4514 = vadd.f32 %v4501, %v4513
    %v4515 = vpop.f32.mrf.mxu0
    %4516 = vdwg.mxu0
    %4517 = vmatpush.bf16.msra.mxu0 %v3503
    %4518 = vmatpush.bf16.msra.mxu0 %v3487
    %4519 = vmatpush.bf16.msra.mxu0 %v3471
    %4520 = vmatpush.bf16.msra.mxu0 %v3455
    %4521 = vmatpush.bf16.msra.mxu0 %v3439
    %4522 = vmatpush.bf16.msra.mxu0 %v3423
    %4523 = vmatpush.bf16.msra.mxu0 %v3407
    %4524 = vmatpush.bf16.msra.mxu0 %v3391
    %4525 = vmatmul.bf16.gmra.mxu0 %v1337
    %v4526 = vpop.f32.mrf.mxu0
    %v4527 = vadd.f32 0.0, %v4526
    %v4528 = vpop.f32.mrf.mxu0
    %4529 = vdwg.mxu0
    %4530 = vmatpush.bf16.msra.mxu0 %v3631
    %4531 = vmatpush.bf16.msra.mxu0 %v3615
    %4532 = vmatpush.bf16.msra.mxu0 %v3599
    %4533 = vmatpush.bf16.msra.mxu0 %v3583
    %4534 = vmatpush.bf16.msra.mxu0 %v3567
    %4535 = vmatpush.bf16.msra.mxu0 %v3551
    %4536 = vmatpush.bf16.msra.mxu0 %v3535
    %4537 = vmatpush.bf16.msra.mxu0 %v3519
    %4538 = vmatmul.bf16.gmra.mxu0 %v1338
    %v4539 = vpop.f32.mrf.mxu0
    %v4540 = vadd.f32 %v4527, %v4539
    %v4541 = vpop.f32.mrf.mxu0
    %4542 = vdwg.mxu0
    %4543 = vmatpush.bf16.msra.mxu0 %v3759
    %4544 = vmatpush.bf16.msra.mxu0 %v3743
    %4545 = vmatpush.bf16.msra.mxu0 %v3727
    %4546 = vmatpush.bf16.msra.mxu0 %v3711
    %4547 = vmatpush.bf16.msra.mxu0 %v3695
    %4548 = vmatpush.bf16.msra.mxu0 %v3679
    %4549 = vmatpush.bf16.msra.mxu0 %v3663
    %4550 = vmatpush.bf16.msra.mxu0 %v3647
    %4551 = vmatmul.bf16.gmra.mxu0 %v1339
    %v4552 = vpop.f32.mrf.mxu0
    %v4553 = vadd.f32 %v4540, %v4552
    %v4554 = vpop.f32.mrf.mxu0
    %4555 = vdwg.mxu0
    %4556 = vmatpush.bf16.msra.mxu0 %v3887
    %4557 = vmatpush.bf16.msra.mxu0 %v3871
    %4558 = vmatpush.bf16.msra.mxu0 %v3855
    %4559 = vmatpush.bf16.msra.mxu0 %v3839
    %4560 = vmatpush.bf16.msra.mxu0 %v3823
    %4561 = vmatpush.bf16.msra.mxu0 %v3807
    %4562 = vmatpush.bf16.msra.mxu0 %v3791
    %4563 = vmatpush.bf16.msra.mxu0 %v3775
    %4564 = vmatmul.bf16.gmra.mxu0 %v1340
    %v4565 = vpop.f32.mrf.mxu0
    %v4566 = vadd.f32 %v4553, %v4565
    %v4567 = vpop.f32.mrf.mxu0
    %4568 = vdwg.mxu0
    %4569 = vmatpush.bf16.msra.mxu0 %v3504
    %4570 = vmatpush.bf16.msra.mxu0 %v3488
    %4571 = vmatpush.bf16.msra.mxu0 %v3472
    %4572 = vmatpush.bf16.msra.mxu0 %v3456
    %4573 = vmatpush.bf16.msra.mxu0 %v3440
    %4574 = vmatpush.bf16.msra.mxu0 %v3424
    %4575 = vmatpush.bf16.msra.mxu0 %v3408
    %4576 = vmatpush.bf16.msra.mxu0 %v3392
    %4577 = vmatmul.bf16.gmra.mxu0 %v1337
    %v4578 = vpop.f32.mrf.mxu0
    %v4579 = vadd.f32 0.0, %v4578
    %v4580 = vpop.f32.mrf.mxu0
    %4581 = vdwg.mxu0
    %4582 = vmatpush.bf16.msra.mxu0 %v3632
    %4583 = vmatpush.bf16.msra.mxu0 %v3616
    %4584 = vmatpush.bf16.msra.mxu0 %v3600
    %4585 = vmatpush.bf16.msra.mxu0 %v3584
    %4586 = vmatpush.bf16.msra.mxu0 %v3568
    %4587 = vmatpush.bf16.msra.mxu0 %v3552
    %4588 = vmatpush.bf16.msra.mxu0 %v3536
    %4589 = vmatpush.bf16.msra.mxu0 %v3520
    %4590 = vmatmul.bf16.gmra.mxu0 %v1338
    %v4591 = vpop.f32.mrf.mxu0
    %v4592 = vadd.f32 %v4579, %v4591
    %v4593 = vpop.f32.mrf.mxu0
    %4594 = vdwg.mxu0
    %4595 = vmatpush.bf16.msra.mxu0 %v3760
    %4596 = vmatpush.bf16.msra.mxu0 %v3744
    %4597 = vmatpush.bf16.msra.mxu0 %v3728
    %4598 = vmatpush.bf16.msra.mxu0 %v3712
    %4599 = vmatpush.bf16.msra.mxu0 %v3696
    %4600 = vmatpush.bf16.msra.mxu0 %v3680
    %4601 = vmatpush.bf16.msra.mxu0 %v3664
    %4602 = vmatpush.bf16.msra.mxu0 %v3648
    %4603 = vmatmul.bf16.gmra.mxu0 %v1339
    %v4604 = vpop.f32.mrf.mxu0
    %v4605 = vadd.f32 %v4592, %v4604
    %v4606 = vpop.f32.mrf.mxu0
    %4607 = vdwg.mxu0
    %4608 = vmatpush.bf16.msra.mxu0 %v3888
    %4609 = vmatpush.bf16.msra.mxu0 %v3872
    %4610 = vmatpush.bf16.msra.mxu0 %v3856
    %4611 = vmatpush.bf16.msra.mxu0 %v3840
    %4612 = vmatpush.bf16.msra.mxu0 %v3824
    %4613 = vmatpush.bf16.msra.mxu0 %v3808
    %4614 = vmatpush.bf16.msra.mxu0 %v3792
    %4615 = vmatpush.bf16.msra.mxu0 %v3776
    %4616 = vmatmul.bf16.gmra.mxu0 %v1340
    %v4617 = vpop.f32.mrf.mxu0
    %v4618 = vadd.f32 %v4605, %v4617
    %v4619 = vpop.f32.mrf.mxu0
    %4620 = vdwg.mxu0
    %4621 = vmatpush.bf16.msra.mxu0 %v3505
    %4622 = vmatpush.bf16.msra.mxu0 %v3489
    %4623 = vmatpush.bf16.msra.mxu0 %v3473
    %4624 = vmatpush.bf16.msra.mxu0 %v3457
    %4625 = vmatpush.bf16.msra.mxu0 %v3441
    %4626 = vmatpush.bf16.msra.mxu0 %v3425
    %4627 = vmatpush.bf16.msra.mxu0 %v3409
    %4628 = vmatpush.bf16.msra.mxu0 %v3393
    %4629 = vmatmul.bf16.gmra.mxu0 %v1337
    %v4630 = vpop.f32.mrf.mxu0
    %v4631 = vadd.f32 0.0, %v4630
    %v4632 = vpop.f32.mrf.mxu0
    %4633 = vdwg.mxu0
    %4634 = vmatpush.bf16.msra.mxu0 %v3633
    %4635 = vmatpush.bf16.msra.mxu0 %v3617
    %4636 = vmatpush.bf16.msra.mxu0 %v3601
    %4637 = vmatpush.bf16.msra.mxu0 %v3585
    %4638 = vmatpush.bf16.msra.mxu0 %v3569
    %4639 = vmatpush.bf16.msra.mxu0 %v3553
    %4640 = vmatpush.bf16.msra.mxu0 %v3537
    %4641 = vmatpush.bf16.msra.mxu0 %v3521
    %4642 = vmatmul.bf16.gmra.mxu0 %v1338
    %v4643 = vpop.f32.mrf.mxu0
    %v4644 = vadd.f32 %v4631, %v4643
    %v4645 = vpop.f32.mrf.mxu0
    %4646 = vdwg.mxu0
    %4647 = vmatpush.bf16.msra.mxu0 %v3761
    %4648 = vmatpush.bf16.msra.mxu0 %v3745
    %4649 = vmatpush.bf16.msra.mxu0 %v3729
    %4650 = vmatpush.bf16.msra.mxu0 %v3713
    %4651 = vmatpush.bf16.msra.mxu0 %v3697
    %4652 = vmatpush.bf16.msra.mxu0 %v3681
    %4653 = vmatpush.bf16.msra.mxu0 %v3665
    %4654 = vmatpush.bf16.msra.mxu0 %v3649
    %4655 = vmatmul.bf16.gmra.mxu0 %v1339
    %v4656 = vpop.f32.mrf.mxu0
    %v4657 = vadd.f32 %v4644, %v4656
    %v4658 = vpop.f32.mrf.mxu0
    %4659 = vdwg.mxu0
    %4660 = vmatpush.bf16.msra.mxu0 %v3889
    %4661 = vmatpush.bf16.msra.mxu0 %v3873
    %4662 = vmatpush.bf16.msra.mxu0 %v3857
    %4663 = vmatpush.bf16.msra.mxu0 %v3841
    %4664 = vmatpush.bf16.msra.mxu0 %v3825
    %4665 = vmatpush.bf16.msra.mxu0 %v3809
    %4666 = vmatpush.bf16.msra.mxu0 %v3793
    %4667 = vmatpush.bf16.msra.mxu0 %v3777
    %4668 = vmatmul.bf16.gmra.mxu0 %v1340
    %v4669 = vpop.f32.mrf.mxu0
    %v4670 = vadd.f32 %v4657, %v4669
    %v4671 = vpop.f32.mrf.mxu0
    %4672 = vdwg.mxu0
    %4673 = vmatpush.bf16.msra.mxu0 %v3506
    %4674 = vmatpush.bf16.msra.mxu0 %v3490
    %4675 = vmatpush.bf16.msra.mxu0 %v3474
    %4676 = vmatpush.bf16.msra.mxu0 %v3458
    %4677 = vmatpush.bf16.msra.mxu0 %v3442
    %4678 = vmatpush.bf16.msra.mxu0 %v3426
    %4679 = vmatpush.bf16.msra.mxu0 %v3410
    %4680 = vmatpush.bf16.msra.mxu0 %v3394
    %4681 = vmatmul.bf16.gmra.mxu0 %v1337
    %v4682 = vpop.f32.mrf.mxu0
    %v4683 = vadd.f32 0.0, %v4682
    %v4684 = vpop.f32.mrf.mxu0
    %4685 = vdwg.mxu0
    %4686 = vmatpush.bf16.msra.mxu0 %v3634
    %4687 = vmatpush.bf16.msra.mxu0 %v3618
    %4688 = vmatpush.bf16.msra.mxu0 %v3602
    %4689 = vmatpush.bf16.msra.mxu0 %v3586
    %4690 = vmatpush.bf16.msra.mxu0 %v3570
    %4691 = vmatpush.bf16.msra.mxu0 %v3554
    %4692 = vmatpush.bf16.msra.mxu0 %v3538
    %4693 = vmatpush.bf16.msra.mxu0 %v3522
    %4694 = vmatmul.bf16.gmra.mxu0 %v1338
    %v4695 = vpop.f32.mrf.mxu0
    %v4696 = vadd.f32 %v4683, %v4695
    %v4697 = vpop.f32.mrf.mxu0
    %4698 = vdwg.mxu0
    %4699 = vmatpush.bf16.msra.mxu0 %v3762
    %4700 = vmatpush.bf16.msra.mxu0 %v3746
    %4701 = vmatpush.bf16.msra.mxu0 %v3730
    %4702 = vmatpush.bf16.msra.mxu0 %v3714
    %4703 = vmatpush.bf16.msra.mxu0 %v3698
    %4704 = vmatpush.bf16.msra.mxu0 %v3682
    %4705 = vmatpush.bf16.msra.mxu0 %v3666
    %4706 = vmatpush.bf16.msra.mxu0 %v3650
    %4707 = vmatmul.bf16.gmra.mxu0 %v1339
    %v4708 = vpop.f32.mrf.mxu0
    %v4709 = vadd.f32 %v4696, %v4708
    %v4710 = vpop.f32.mrf.mxu0
    %4711 = vdwg.mxu0
    %4712 = vmatpush.bf16.msra.mxu0 %v3890
    %4713 = vmatpush.bf16.msra.mxu0 %v3874
    %4714 = vmatpush.bf16.msra.mxu0 %v3858
    %4715 = vmatpush.bf16.msra.mxu0 %v3842
    %4716 = vmatpush.bf16.msra.mxu0 %v3826
    %4717 = vmatpush.bf16.msra.mxu0 %v3810
    %4718 = vmatpush.bf16.msra.mxu0 %v3794
    %4719 = vmatpush.bf16.msra.mxu0 %v3778
    %4720 = vmatmul.bf16.gmra.mxu0 %v1340
    %v4721 = vpop.f32.mrf.mxu0
    %v4722 = vadd.f32 %v4709, %v4721
    %v4723 = vpop.f32.mrf.mxu0
    %4724 = vdwg.mxu0
    %4725 = vmatpush.bf16.msra.mxu0 %v3507
    %4726 = vmatpush.bf16.msra.mxu0 %v3491
    %4727 = vmatpush.bf16.msra.mxu0 %v3475
    %4728 = vmatpush.bf16.msra.mxu0 %v3459
    %4729 = vmatpush.bf16.msra.mxu0 %v3443
    %4730 = vmatpush.bf16.msra.mxu0 %v3427
    %4731 = vmatpush.bf16.msra.mxu0 %v3411
    %4732 = vmatpush.bf16.msra.mxu0 %v3395
    %4733 = vmatmul.bf16.gmra.mxu0 %v1337
    %v4734 = vpop.f32.mrf.mxu0
    %v4735 = vadd.f32 0.0, %v4734
    %v4736 = vpop.f32.mrf.mxu0
    %4737 = vdwg.mxu0
    %4738 = vmatpush.bf16.msra.mxu0 %v3635
    %4739 = vmatpush.bf16.msra.mxu0 %v3619
    %4740 = vmatpush.bf16.msra.mxu0 %v3603
    %4741 = vmatpush.bf16.msra.mxu0 %v3587
    %4742 = vmatpush.bf16.msra.mxu0 %v3571
    %4743 = vmatpush.bf16.msra.mxu0 %v3555
    %4744 = vmatpush.bf16.msra.mxu0 %v3539
    %4745 = vmatpush.bf16.msra.mxu0 %v3523
    %4746 = vmatmul.bf16.gmra.mxu0 %v1338
    %v4747 = vpop.f32.mrf.mxu0
    %v4748 = vadd.f32 %v4735, %v4747
    %v4749 = vpop.f32.mrf.mxu0
    %4750 = vdwg.mxu0
    %4751 = vmatpush.bf16.msra.mxu0 %v3763
    %4752 = vmatpush.bf16.msra.mxu0 %v3747
    %4753 = vmatpush.bf16.msra.mxu0 %v3731
    %4754 = vmatpush.bf16.msra.mxu0 %v3715
    %4755 = vmatpush.bf16.msra.mxu0 %v3699
    %4756 = vmatpush.bf16.msra.mxu0 %v3683
    %4757 = vmatpush.bf16.msra.mxu0 %v3667
    %4758 = vmatpush.bf16.msra.mxu0 %v3651
    %4759 = vmatmul.bf16.gmra.mxu0 %v1339
    %v4760 = vpop.f32.mrf.mxu0
    %v4761 = vadd.f32 %v4748, %v4760
    %v4762 = vpop.f32.mrf.mxu0
    %4763 = vdwg.mxu0
    %4764 = vmatpush.bf16.msra.mxu0 %v3891
    %4765 = vmatpush.bf16.msra.mxu0 %v3875
    %4766 = vmatpush.bf16.msra.mxu0 %v3859
    %4767 = vmatpush.bf16.msra.mxu0 %v3843
    %4768 = vmatpush.bf16.msra.mxu0 %v3827
    %4769 = vmatpush.bf16.msra.mxu0 %v3811
    %4770 = vmatpush.bf16.msra.mxu0 %v3795
    %4771 = vmatpush.bf16.msra.mxu0 %v3779
    %4772 = vmatmul.bf16.gmra.mxu0 %v1340
    %v4773 = vpop.f32.mrf.mxu0
    %v4774 = vadd.f32 %v4761, %v4773
    %v4775 = vpop.f32.mrf.mxu0
    %4776 = vdwg.mxu0
    %4777 = vmatpush.bf16.msra.mxu0 %v3508
    %4778 = vmatpush.bf16.msra.mxu0 %v3492
    %4779 = vmatpush.bf16.msra.mxu0 %v3476
    %4780 = vmatpush.bf16.msra.mxu0 %v3460
    %4781 = vmatpush.bf16.msra.mxu0 %v3444
    %4782 = vmatpush.bf16.msra.mxu0 %v3428
    %4783 = vmatpush.bf16.msra.mxu0 %v3412
    %4784 = vmatpush.bf16.msra.mxu0 %v3396
    %4785 = vmatmul.bf16.gmra.mxu0 %v1337
    %v4786 = vpop.f32.mrf.mxu0
    %v4787 = vadd.f32 0.0, %v4786
    %v4788 = vpop.f32.mrf.mxu0
    %4789 = vdwg.mxu0
    %4790 = vmatpush.bf16.msra.mxu0 %v3636
    %4791 = vmatpush.bf16.msra.mxu0 %v3620
    %4792 = vmatpush.bf16.msra.mxu0 %v3604
    %4793 = vmatpush.bf16.msra.mxu0 %v3588
    %4794 = vmatpush.bf16.msra.mxu0 %v3572
    %4795 = vmatpush.bf16.msra.mxu0 %v3556
    %4796 = vmatpush.bf16.msra.mxu0 %v3540
    %4797 = vmatpush.bf16.msra.mxu0 %v3524
    %4798 = vmatmul.bf16.gmra.mxu0 %v1338
    %v4799 = vpop.f32.mrf.mxu0
    %v4800 = vadd.f32 %v4787, %v4799
    %v4801 = vpop.f32.mrf.mxu0
    %4802 = vdwg.mxu0
    %4803 = vmatpush.bf16.msra.mxu0 %v3764
    %4804 = vmatpush.bf16.msra.mxu0 %v3748
    %4805 = vmatpush.bf16.msra.mxu0 %v3732
    %4806 = vmatpush.bf16.msra.mxu0 %v3716
    %4807 = vmatpush.bf16.msra.mxu0 %v3700
    %4808 = vmatpush.bf16.msra.mxu0 %v3684
    %4809 = vmatpush.bf16.msra.mxu0 %v3668
    %4810 = vmatpush.bf16.msra.mxu0 %v3652
    %4811 = vmatmul.bf16.gmra.mxu0 %v1339
    %v4812 = vpop.f32.mrf.mxu0
    %v4813 = vadd.f32 %v4800, %v4812
    %v4814 = vpop.f32.mrf.mxu0
    %4815 = vdwg.mxu0
    %4816 = vmatpush.bf16.msra.mxu0 %v3892
    %4817 = vmatpush.bf16.msra.mxu0 %v3876
    %4818 = vmatpush.bf16.msra.mxu0 %v3860
    %4819 = vmatpush.bf16.msra.mxu0 %v3844
    %4820 = vmatpush.bf16.msra.mxu0 %v3828
    %4821 = vmatpush.bf16.msra.mxu0 %v3812
    %4822 = vmatpush.bf16.msra.mxu0 %v3796
    %4823 = vmatpush.bf16.msra.mxu0 %v3780
    %4824 = vmatmul.bf16.gmra.mxu0 %v1340
    %v4825 = vpop.f32.mrf.mxu0
    %v4826 = vadd.f32 %v4813, %v4825
    %v4827 = vpop.f32.mrf.mxu0
    %4828 = vdwg.mxu0
    %4829 = vmatpush.bf16.msra.mxu0 %v3509
    %4830 = vmatpush.bf16.msra.mxu0 %v3493
    %4831 = vmatpush.bf16.msra.mxu0 %v3477
    %4832 = vmatpush.bf16.msra.mxu0 %v3461
    %4833 = vmatpush.bf16.msra.mxu0 %v3445
    %4834 = vmatpush.bf16.msra.mxu0 %v3429
    %4835 = vmatpush.bf16.msra.mxu0 %v3413
    %4836 = vmatpush.bf16.msra.mxu0 %v3397
    %4837 = vmatmul.bf16.gmra.mxu0 %v1337
    %v4838 = vpop.f32.mrf.mxu0
    %v4839 = vadd.f32 0.0, %v4838
    %v4840 = vpop.f32.mrf.mxu0
    %4841 = vdwg.mxu0
    %4842 = vmatpush.bf16.msra.mxu0 %v3637
    %4843 = vmatpush.bf16.msra.mxu0 %v3621
    %4844 = vmatpush.bf16.msra.mxu0 %v3605
    %4845 = vmatpush.bf16.msra.mxu0 %v3589
    %4846 = vmatpush.bf16.msra.mxu0 %v3573
    %4847 = vmatpush.bf16.msra.mxu0 %v3557
    %4848 = vmatpush.bf16.msra.mxu0 %v3541
    %4849 = vmatpush.bf16.msra.mxu0 %v3525
    %4850 = vmatmul.bf16.gmra.mxu0 %v1338
    %v4851 = vpop.f32.mrf.mxu0
    %v4852 = vadd.f32 %v4839, %v4851
    %v4853 = vpop.f32.mrf.mxu0
    %4854 = vdwg.mxu0
    %4855 = vmatpush.bf16.msra.mxu0 %v3765
    %4856 = vmatpush.bf16.msra.mxu0 %v3749
    %4857 = vmatpush.bf16.msra.mxu0 %v3733
    %4858 = vmatpush.bf16.msra.mxu0 %v3717
    %4859 = vmatpush.bf16.msra.mxu0 %v3701
    %4860 = vmatpush.bf16.msra.mxu0 %v3685
    %4861 = vmatpush.bf16.msra.mxu0 %v3669
    %4862 = vmatpush.bf16.msra.mxu0 %v3653
    %4863 = vmatmul.bf16.gmra.mxu0 %v1339
    %v4864 = vpop.f32.mrf.mxu0
    %v4865 = vadd.f32 %v4852, %v4864
    %v4866 = vpop.f32.mrf.mxu0
    %4867 = vdwg.mxu0
    %4868 = vmatpush.bf16.msra.mxu0 %v3893
    %4869 = vmatpush.bf16.msra.mxu0 %v3877
    %4870 = vmatpush.bf16.msra.mxu0 %v3861
    %4871 = vmatpush.bf16.msra.mxu0 %v3845
    %4872 = vmatpush.bf16.msra.mxu0 %v3829
    %4873 = vmatpush.bf16.msra.mxu0 %v3813
    %4874 = vmatpush.bf16.msra.mxu0 %v3797
    %4875 = vmatpush.bf16.msra.mxu0 %v3781
    %4876 = vmatmul.bf16.gmra.mxu0 %v1340
    %v4877 = vpop.f32.mrf.mxu0
    %v4878 = vadd.f32 %v4865, %v4877
    %v4879 = vpop.f32.mrf.mxu0
    %4880 = vdwg.mxu0
    %4881 = vmatpush.bf16.msra.mxu0 %v3510
    %4882 = vmatpush.bf16.msra.mxu0 %v3494
    %4883 = vmatpush.bf16.msra.mxu0 %v3478
    %4884 = vmatpush.bf16.msra.mxu0 %v3462
    %4885 = vmatpush.bf16.msra.mxu0 %v3446
    %4886 = vmatpush.bf16.msra.mxu0 %v3430
    %4887 = vmatpush.bf16.msra.mxu0 %v3414
    %4888 = vmatpush.bf16.msra.mxu0 %v3398
    %4889 = vmatmul.bf16.gmra.mxu0 %v1337
    %v4890 = vpop.f32.mrf.mxu0
    %v4891 = vadd.f32 0.0, %v4890
    %v4892 = vpop.f32.mrf.mxu0
    %4893 = vdwg.mxu0
    %4894 = vmatpush.bf16.msra.mxu0 %v3638
    %4895 = vmatpush.bf16.msra.mxu0 %v3622
    %4896 = vmatpush.bf16.msra.mxu0 %v3606
    %4897 = vmatpush.bf16.msra.mxu0 %v3590
    %4898 = vmatpush.bf16.msra.mxu0 %v3574
    %4899 = vmatpush.bf16.msra.mxu0 %v3558
    %4900 = vmatpush.bf16.msra.mxu0 %v3542
    %4901 = vmatpush.bf16.msra.mxu0 %v3526
    %4902 = vmatmul.bf16.gmra.mxu0 %v1338
    %v4903 = vpop.f32.mrf.mxu0
    %v4904 = vadd.f32 %v4891, %v4903
    %v4905 = vpop.f32.mrf.mxu0
    %4906 = vdwg.mxu0
    %4907 = vmatpush.bf16.msra.mxu0 %v3766
    %4908 = vmatpush.bf16.msra.mxu0 %v3750
    %4909 = vmatpush.bf16.msra.mxu0 %v3734
    %4910 = vmatpush.bf16.msra.mxu0 %v3718
    %4911 = vmatpush.bf16.msra.mxu0 %v3702
    %4912 = vmatpush.bf16.msra.mxu0 %v3686
    %4913 = vmatpush.bf16.msra.mxu0 %v3670
    %4914 = vmatpush.bf16.msra.mxu0 %v3654
    %4915 = vmatmul.bf16.gmra.mxu0 %v1339
    %v4916 = vpop.f32.mrf.mxu0
    %v4917 = vadd.f32 %v4904, %v4916
    %v4918 = vpop.f32.mrf.mxu0
    %4919 = vdwg.mxu0
    %4920 = vmatpush.bf16.msra.mxu0 %v3894
    %4921 = vmatpush.bf16.msra.mxu0 %v3878
    %4922 = vmatpush.bf16.msra.mxu0 %v3862
    %4923 = vmatpush.bf16.msra.mxu0 %v3846
    %4924 = vmatpush.bf16.msra.mxu0 %v3830
    %4925 = vmatpush.bf16.msra.mxu0 %v3814
    %4926 = vmatpush.bf16.msra.mxu0 %v3798
    %4927 = vmatpush.bf16.msra.mxu0 %v3782
    %4928 = vmatmul.bf16.gmra.mxu0 %v1340
    %v4929 = vpop.f32.mrf.mxu0
    %v4930 = vadd.f32 %v4917, %v4929
    %v4931 = vpop.f32.mrf.mxu0
    %4932 = vdwg.mxu0
    %4933 = vmatpush.bf16.msra.mxu0 %v3511
    %4934 = vmatpush.bf16.msra.mxu0 %v3495
    %4935 = vmatpush.bf16.msra.mxu0 %v3479
    %4936 = vmatpush.bf16.msra.mxu0 %v3463
    %4937 = vmatpush.bf16.msra.mxu0 %v3447
    %4938 = vmatpush.bf16.msra.mxu0 %v3431
    %4939 = vmatpush.bf16.msra.mxu0 %v3415
    %4940 = vmatpush.bf16.msra.mxu0 %v3399
    %4941 = vmatmul.bf16.gmra.mxu0 %v1337
    %v4942 = vpop.f32.mrf.mxu0
    %v4943 = vadd.f32 0.0, %v4942
    %v4944 = vpop.f32.mrf.mxu0
    %4945 = vdwg.mxu0
    %4946 = vmatpush.bf16.msra.mxu0 %v3639
    %4947 = vmatpush.bf16.msra.mxu0 %v3623
    %4948 = vmatpush.bf16.msra.mxu0 %v3607
    %4949 = vmatpush.bf16.msra.mxu0 %v3591
    %4950 = vmatpush.bf16.msra.mxu0 %v3575
    %4951 = vmatpush.bf16.msra.mxu0 %v3559
    %4952 = vmatpush.bf16.msra.mxu0 %v3543
    %4953 = vmatpush.bf16.msra.mxu0 %v3527
    %4954 = vmatmul.bf16.gmra.mxu0 %v1338
    %v4955 = vpop.f32.mrf.mxu0
    %v4956 = vadd.f32 %v4943, %v4955
    %v4957 = vpop.f32.mrf.mxu0
    %4958 = vdwg.mxu0
    %4959 = vmatpush.bf16.msra.mxu0 %v3767
    %4960 = vmatpush.bf16.msra.mxu0 %v3751
    %4961 = vmatpush.bf16.msra.mxu0 %v3735
    %4962 = vmatpush.bf16.msra.mxu0 %v3719
    %4963 = vmatpush.bf16.msra.mxu0 %v3703
    %4964 = vmatpush.bf16.msra.mxu0 %v3687
    %4965 = vmatpush.bf16.msra.mxu0 %v3671
    %4966 = vmatpush.bf16.msra.mxu0 %v3655
    %4967 = vmatmul.bf16.gmra.mxu0 %v1339
    %v4968 = vpop.f32.mrf.mxu0
    %v4969 = vadd.f32 %v4956, %v4968
    %v4970 = vpop.f32.mrf.mxu0
    %4971 = vdwg.mxu0
    %4972 = vmatpush.bf16.msra.mxu0 %v3895
    %4973 = vmatpush.bf16.msra.mxu0 %v3879
    %4974 = vmatpush.bf16.msra.mxu0 %v3863
    %4975 = vmatpush.bf16.msra.mxu0 %v3847
    %4976 = vmatpush.bf16.msra.mxu0 %v3831
    %4977 = vmatpush.bf16.msra.mxu0 %v3815
    %4978 = vmatpush.bf16.msra.mxu0 %v3799
    %4979 = vmatpush.bf16.msra.mxu0 %v3783
    %4980 = vmatmul.bf16.gmra.mxu0 %v1340
    %v4981 = vpop.f32.mrf.mxu0
    %v4982 = vadd.f32 %v4969, %v4981
    %v4983 = vpop.f32.mrf.mxu0
    %4984 = vdwg.mxu0
    %4985 = vmatpush.bf16.msra.mxu0 %v3512
    %4986 = vmatpush.bf16.msra.mxu0 %v3496
    %4987 = vmatpush.bf16.msra.mxu0 %v3480
    %4988 = vmatpush.bf16.msra.mxu0 %v3464
    %4989 = vmatpush.bf16.msra.mxu0 %v3448
    %4990 = vmatpush.bf16.msra.mxu0 %v3432
    %4991 = vmatpush.bf16.msra.mxu0 %v3416
    %4992 = vmatpush.bf16.msra.mxu0 %v3400
    %4993 = vmatmul.bf16.gmra.mxu0 %v1337
    %v4994 = vpop.f32.mrf.mxu0
    %v4995 = vadd.f32 0.0, %v4994
    %v4996 = vpop.f32.mrf.mxu0
    %4997 = vdwg.mxu0
    %4998 = vmatpush.bf16.msra.mxu0 %v3640
    %4999 = vmatpush.bf16.msra.mxu0 %v3624
    %5000 = vmatpush.bf16.msra.mxu0 %v3608
    %5001 = vmatpush.bf16.msra.mxu0 %v3592
    %5002 = vmatpush.bf16.msra.mxu0 %v3576
    %5003 = vmatpush.bf16.msra.mxu0 %v3560
    %5004 = vmatpush.bf16.msra.mxu0 %v3544
    %5005 = vmatpush.bf16.msra.mxu0 %v3528
    %5006 = vmatmul.bf16.gmra.mxu0 %v1338
    %v5007 = vpop.f32.mrf.mxu0
    %v5008 = vadd.f32 %v4995, %v5007
    %v5009 = vpop.f32.mrf.mxu0
    %5010 = vdwg.mxu0
    %5011 = vmatpush.bf16.msra.mxu0 %v3768
    %5012 = vmatpush.bf16.msra.mxu0 %v3752
    %5013 = vmatpush.bf16.msra.mxu0 %v3736
    %5014 = vmatpush.bf16.msra.mxu0 %v3720
    %5015 = vmatpush.bf16.msra.mxu0 %v3704
    %5016 = vmatpush.bf16.msra.mxu0 %v3688
    %5017 = vmatpush.bf16.msra.mxu0 %v3672
    %5018 = vmatpush.bf16.msra.mxu0 %v3656
    %5019 = vmatmul.bf16.gmra.mxu0 %v1339
    %v5020 = vpop.f32.mrf.mxu0
    %v5021 = vadd.f32 %v5008, %v5020
    %v5022 = vpop.f32.mrf.mxu0
    %5023 = vdwg.mxu0
    %5024 = vmatpush.bf16.msra.mxu0 %v3896
    %5025 = vmatpush.bf16.msra.mxu0 %v3880
    %5026 = vmatpush.bf16.msra.mxu0 %v3864
    %5027 = vmatpush.bf16.msra.mxu0 %v3848
    %5028 = vmatpush.bf16.msra.mxu0 %v3832
    %5029 = vmatpush.bf16.msra.mxu0 %v3816
    %5030 = vmatpush.bf16.msra.mxu0 %v3800
    %5031 = vmatpush.bf16.msra.mxu0 %v3784
    %5032 = vmatmul.bf16.gmra.mxu0 %v1340
    %v5033 = vpop.f32.mrf.mxu0
    %v5034 = vadd.f32 %v5021, %v5033
    %v5035 = vpop.f32.mrf.mxu0
    %5036 = vdwg.mxu0
    %5037 = vmatpush.bf16.msra.mxu0 %v3513
    %5038 = vmatpush.bf16.msra.mxu0 %v3497
    %5039 = vmatpush.bf16.msra.mxu0 %v3481
    %5040 = vmatpush.bf16.msra.mxu0 %v3465
    %5041 = vmatpush.bf16.msra.mxu0 %v3449
    %5042 = vmatpush.bf16.msra.mxu0 %v3433
    %5043 = vmatpush.bf16.msra.mxu0 %v3417
    %5044 = vmatpush.bf16.msra.mxu0 %v3401
    %5045 = vmatmul.bf16.gmra.mxu0 %v1337
    %v5046 = vpop.f32.mrf.mxu0
    %v5047 = vadd.f32 0.0, %v5046
    %v5048 = vpop.f32.mrf.mxu0
    %5049 = vdwg.mxu0
    %5050 = vmatpush.bf16.msra.mxu0 %v3641
    %5051 = vmatpush.bf16.msra.mxu0 %v3625
    %5052 = vmatpush.bf16.msra.mxu0 %v3609
    %5053 = vmatpush.bf16.msra.mxu0 %v3593
    %5054 = vmatpush.bf16.msra.mxu0 %v3577
    %5055 = vmatpush.bf16.msra.mxu0 %v3561
    %5056 = vmatpush.bf16.msra.mxu0 %v3545
    %5057 = vmatpush.bf16.msra.mxu0 %v3529
    %5058 = vmatmul.bf16.gmra.mxu0 %v1338
    %v5059 = vpop.f32.mrf.mxu0
    %v5060 = vadd.f32 %v5047, %v5059
    %v5061 = vpop.f32.mrf.mxu0
    %5062 = vdwg.mxu0
    %5063 = vmatpush.bf16.msra.mxu0 %v3769
    %5064 = vmatpush.bf16.msra.mxu0 %v3753
    %5065 = vmatpush.bf16.msra.mxu0 %v3737
    %5066 = vmatpush.bf16.msra.mxu0 %v3721
    %5067 = vmatpush.bf16.msra.mxu0 %v3705
    %5068 = vmatpush.bf16.msra.mxu0 %v3689
    %5069 = vmatpush.bf16.msra.mxu0 %v3673
    %5070 = vmatpush.bf16.msra.mxu0 %v3657
    %5071 = vmatmul.bf16.gmra.mxu0 %v1339
    %v5072 = vpop.f32.mrf.mxu0
    %v5073 = vadd.f32 %v5060, %v5072
    %v5074 = vpop.f32.mrf.mxu0
    %5075 = vdwg.mxu0
    %5076 = vmatpush.bf16.msra.mxu0 %v3897
    %5077 = vmatpush.bf16.msra.mxu0 %v3881
    %5078 = vmatpush.bf16.msra.mxu0 %v3865
    %5079 = vmatpush.bf16.msra.mxu0 %v3849
    %5080 = vmatpush.bf16.msra.mxu0 %v3833
    %5081 = vmatpush.bf16.msra.mxu0 %v3817
    %5082 = vmatpush.bf16.msra.mxu0 %v3801
    %5083 = vmatpush.bf16.msra.mxu0 %v3785
    %5084 = vmatmul.bf16.gmra.mxu0 %v1340
    %v5085 = vpop.f32.mrf.mxu0
    %v5086 = vadd.f32 %v5073, %v5085
    %v5087 = vpop.f32.mrf.mxu0
    %5088 = vdwg.mxu0
    %5089 = vmatpush.bf16.msra.mxu0 %v3514
    %5090 = vmatpush.bf16.msra.mxu0 %v3498
    %5091 = vmatpush.bf16.msra.mxu0 %v3482
    %5092 = vmatpush.bf16.msra.mxu0 %v3466
    %5093 = vmatpush.bf16.msra.mxu0 %v3450
    %5094 = vmatpush.bf16.msra.mxu0 %v3434
    %5095 = vmatpush.bf16.msra.mxu0 %v3418
    %5096 = vmatpush.bf16.msra.mxu0 %v3402
    %5097 = vmatmul.bf16.gmra.mxu0 %v1337
    %v5098 = vpop.f32.mrf.mxu0
    %v5099 = vadd.f32 0.0, %v5098
    %v5100 = vpop.f32.mrf.mxu0
    %5101 = vdwg.mxu0
    %5102 = vmatpush.bf16.msra.mxu0 %v3642
    %5103 = vmatpush.bf16.msra.mxu0 %v3626
    %5104 = vmatpush.bf16.msra.mxu0 %v3610
    %5105 = vmatpush.bf16.msra.mxu0 %v3594
    %5106 = vmatpush.bf16.msra.mxu0 %v3578
    %5107 = vmatpush.bf16.msra.mxu0 %v3562
    %5108 = vmatpush.bf16.msra.mxu0 %v3546
    %5109 = vmatpush.bf16.msra.mxu0 %v3530
    %5110 = vmatmul.bf16.gmra.mxu0 %v1338
    %v5111 = vpop.f32.mrf.mxu0
    %v5112 = vadd.f32 %v5099, %v5111
    %v5113 = vpop.f32.mrf.mxu0
    %5114 = vdwg.mxu0
    %5115 = vmatpush.bf16.msra.mxu0 %v3770
    %5116 = vmatpush.bf16.msra.mxu0 %v3754
    %5117 = vmatpush.bf16.msra.mxu0 %v3738
    %5118 = vmatpush.bf16.msra.mxu0 %v3722
    %5119 = vmatpush.bf16.msra.mxu0 %v3706
    %5120 = vmatpush.bf16.msra.mxu0 %v3690
    %5121 = vmatpush.bf16.msra.mxu0 %v3674
    %5122 = vmatpush.bf16.msra.mxu0 %v3658
    %5123 = vmatmul.bf16.gmra.mxu0 %v1339
    %v5124 = vpop.f32.mrf.mxu0
    %v5125 = vadd.f32 %v5112, %v5124
    %v5126 = vpop.f32.mrf.mxu0
    %5127 = vdwg.mxu0
    %5128 = vmatpush.bf16.msra.mxu0 %v3898
    %5129 = vmatpush.bf16.msra.mxu0 %v3882
    %5130 = vmatpush.bf16.msra.mxu0 %v3866
    %5131 = vmatpush.bf16.msra.mxu0 %v3850
    %5132 = vmatpush.bf16.msra.mxu0 %v3834
    %5133 = vmatpush.bf16.msra.mxu0 %v3818
    %5134 = vmatpush.bf16.msra.mxu0 %v3802
    %5135 = vmatpush.bf16.msra.mxu0 %v3786
    %5136 = vmatmul.bf16.gmra.mxu0 %v1340
    %v5137 = vpop.f32.mrf.mxu0
    %v5138 = vadd.f32 %v5125, %v5137
    %v5139 = vpop.f32.mrf.mxu0
    %5140 = vdwg.mxu0
    %5141 = vmatpush.bf16.msra.mxu0 %v3515
    %5142 = vmatpush.bf16.msra.mxu0 %v3499
    %5143 = vmatpush.bf16.msra.mxu0 %v3483
    %5144 = vmatpush.bf16.msra.mxu0 %v3467
    %5145 = vmatpush.bf16.msra.mxu0 %v3451
    %5146 = vmatpush.bf16.msra.mxu0 %v3435
    %5147 = vmatpush.bf16.msra.mxu0 %v3419
    %5148 = vmatpush.bf16.msra.mxu0 %v3403
    %5149 = vmatmul.bf16.gmra.mxu0 %v1337
    %v5150 = vpop.f32.mrf.mxu0
    %v5151 = vadd.f32 0.0, %v5150
    %v5152 = vpop.f32.mrf.mxu0
    %5153 = vdwg.mxu0
    %5154 = vmatpush.bf16.msra.mxu0 %v3643
    %5155 = vmatpush.bf16.msra.mxu0 %v3627
    %5156 = vmatpush.bf16.msra.mxu0 %v3611
    %5157 = vmatpush.bf16.msra.mxu0 %v3595
    %5158 = vmatpush.bf16.msra.mxu0 %v3579
    %5159 = vmatpush.bf16.msra.mxu0 %v3563
    %5160 = vmatpush.bf16.msra.mxu0 %v3547
    %5161 = vmatpush.bf16.msra.mxu0 %v3531
    %5162 = vmatmul.bf16.gmra.mxu0 %v1338
    %v5163 = vpop.f32.mrf.mxu0
    %v5164 = vadd.f32 %v5151, %v5163
    %v5165 = vpop.f32.mrf.mxu0
    %5166 = vdwg.mxu0
    %5167 = vmatpush.bf16.msra.mxu0 %v3771
    %5168 = vmatpush.bf16.msra.mxu0 %v3755
    %5169 = vmatpush.bf16.msra.mxu0 %v3739
    %5170 = vmatpush.bf16.msra.mxu0 %v3723
    %5171 = vmatpush.bf16.msra.mxu0 %v3707
    %5172 = vmatpush.bf16.msra.mxu0 %v3691
    %5173 = vmatpush.bf16.msra.mxu0 %v3675
    %5174 = vmatpush.bf16.msra.mxu0 %v3659
    %5175 = vmatmul.bf16.gmra.mxu0 %v1339
    %v5176 = vpop.f32.mrf.mxu0
    %v5177 = vadd.f32 %v5164, %v5176
    %v5178 = vpop.f32.mrf.mxu0
    %5179 = vdwg.mxu0
    %5180 = vmatpush.bf16.msra.mxu0 %v3899
    %5181 = vmatpush.bf16.msra.mxu0 %v3883
    %5182 = vmatpush.bf16.msra.mxu0 %v3867
    %5183 = vmatpush.bf16.msra.mxu0 %v3851
    %5184 = vmatpush.bf16.msra.mxu0 %v3835
    %5185 = vmatpush.bf16.msra.mxu0 %v3819
    %5186 = vmatpush.bf16.msra.mxu0 %v3803
    %5187 = vmatpush.bf16.msra.mxu0 %v3787
    %5188 = vmatmul.bf16.gmra.mxu0 %v1340
    %v5189 = vpop.f32.mrf.mxu0
    %v5190 = vadd.f32 %v5177, %v5189
    %v5191 = vpop.f32.mrf.mxu0
    %5192 = vdwg.mxu0
    %5193 = vmatpush.bf16.msra.mxu0 %v3516
    %5194 = vmatpush.bf16.msra.mxu0 %v3500
    %5195 = vmatpush.bf16.msra.mxu0 %v3484
    %5196 = vmatpush.bf16.msra.mxu0 %v3468
    %5197 = vmatpush.bf16.msra.mxu0 %v3452
    %5198 = vmatpush.bf16.msra.mxu0 %v3436
    %5199 = vmatpush.bf16.msra.mxu0 %v3420
    %5200 = vmatpush.bf16.msra.mxu0 %v3404
    %5201 = vmatmul.bf16.gmra.mxu0 %v1337
    %v5202 = vpop.f32.mrf.mxu0
    %v5203 = vadd.f32 0.0, %v5202
    %v5204 = vpop.f32.mrf.mxu0
    %5205 = vdwg.mxu0
    %5206 = vmatpush.bf16.msra.mxu0 %v3644
    %5207 = vmatpush.bf16.msra.mxu0 %v3628
    %5208 = vmatpush.bf16.msra.mxu0 %v3612
    %5209 = vmatpush.bf16.msra.mxu0 %v3596
    %5210 = vmatpush.bf16.msra.mxu0 %v3580
    %5211 = vmatpush.bf16.msra.mxu0 %v3564
    %5212 = vmatpush.bf16.msra.mxu0 %v3548
    %5213 = vmatpush.bf16.msra.mxu0 %v3532
    %5214 = vmatmul.bf16.gmra.mxu0 %v1338
    %v5215 = vpop.f32.mrf.mxu0
    %v5216 = vadd.f32 %v5203, %v5215
    %v5217 = vpop.f32.mrf.mxu0
    %5218 = vdwg.mxu0
    %5219 = vmatpush.bf16.msra.mxu0 %v3772
    %5220 = vmatpush.bf16.msra.mxu0 %v3756
    %5221 = vmatpush.bf16.msra.mxu0 %v3740
    %5222 = vmatpush.bf16.msra.mxu0 %v3724
    %5223 = vmatpush.bf16.msra.mxu0 %v3708
    %5224 = vmatpush.bf16.msra.mxu0 %v3692
    %5225 = vmatpush.bf16.msra.mxu0 %v3676
    %5226 = vmatpush.bf16.msra.mxu0 %v3660
    %5227 = vmatmul.bf16.gmra.mxu0 %v1339
    %v5228 = vpop.f32.mrf.mxu0
    %v5229 = vadd.f32 %v5216, %v5228
    %v5230 = vpop.f32.mrf.mxu0
    %5231 = vdwg.mxu0
    %5232 = vmatpush.bf16.msra.mxu0 %v3900
    %5233 = vmatpush.bf16.msra.mxu0 %v3884
    %5234 = vmatpush.bf16.msra.mxu0 %v3868
    %5235 = vmatpush.bf16.msra.mxu0 %v3852
    %5236 = vmatpush.bf16.msra.mxu0 %v3836
    %5237 = vmatpush.bf16.msra.mxu0 %v3820
    %5238 = vmatpush.bf16.msra.mxu0 %v3804
    %5239 = vmatpush.bf16.msra.mxu0 %v3788
    %5240 = vmatmul.bf16.gmra.mxu0 %v1340
    %v5241 = vpop.f32.mrf.mxu0
    %v5242 = vadd.f32 %v5229, %v5241
    %v5243 = vpop.f32.mrf.mxu0
    %5244 = vdwg.mxu0
    %v5245 = vmul.f32 %v4462, %v4462
    %v5246 = vadd.f32 %v4462, %v4514
    %v5247 = vmul.f32 %v4514, %v4514
    %v5248 = vadd.f32 %v5245, %v5247
    %v5249 = vadd.f32 %v5246, %v4566
    %v5250 = vmul.f32 %v4566, %v4566
    %v5251 = vadd.f32 %v5248, %v5250
    %v5252 = vadd.f32 %v5249, %v4618
    %v5253 = vmul.f32 %v4618, %v4618
    %v5254 = vadd.f32 %v5251, %v5253
    %v5255 = vadd.f32 %v5252, %v4670
    %v5256 = vmul.f32 %v4670, %v4670
    %v5257 = vadd.f32 %v5254, %v5256
    %v5258 = vadd.f32 %v5255, %v4722
    %v5259 = vmul.f32 %v4722, %v4722
    %v5260 = vadd.f32 %v5257, %v5259
    %v5261 = vadd.f32 %v5258, %v4774
    %v5262 = vmul.f32 %v4774, %v4774
    %v5263 = vadd.f32 %v5260, %v5262
    %v5264 = vadd.f32 %v5261, %v4826
    %v5265 = vmul.f32 %v4826, %v4826
    %v5266 = vadd.f32 %v5263, %v5265
    %v5267 = vadd.f32 %v5264, %v4878
    %v5268 = vmul.f32 %v4878, %v4878
    %v5269 = vadd.f32 %v5266, %v5268
    %v5270 = vadd.f32 %v5267, %v4930
    %v5271 = vmul.f32 %v4930, %v4930
    %v5272 = vadd.f32 %v5269, %v5271
    %v5273 = vadd.f32 %v5270, %v4982
    %v5274 = vmul.f32 %v4982, %v4982
    %v5275 = vadd.f32 %v5272, %v5274
    %v5276 = vadd.f32 %v5273, %v5034
    %v5277 = vmul.f32 %v5034, %v5034
    %v5278 = vadd.f32 %v5275, %v5277
    %v5279 = vadd.f32 %v5276, %v5086
    %v5280 = vmul.f32 %v5086, %v5086
    %v5281 = vadd.f32 %v5278, %v5280
    %v5282 = vadd.f32 %v5279, %v5138
    %v5283 = vmul.f32 %v5138, %v5138
    %v5284 = vadd.f32 %v5281, %v5283
    %v5285 = vadd.f32 %v5282, %v5190
    %v5286 = vmul.f32 %v5190, %v5190
    %v5287 = vadd.f32 %v5284, %v5286
    %v5288 = vadd.f32 %v5285, %v5242
    %v5289 = vmul.f32 %v5242, %v5242
    %v5290 = vadd.f32 %v5287, %v5289
    %vm5291 = vcmask 1041408
    %v5292 = vsel %vm5291, %v5288, 0.0
    %v5293 = vrot.slane %v5292, 4
    %v5294 = vadd.f32 %v5292, %v5293
    %v5295 = vrot.slane %v5294, 2
    %v5296 = vadd.f32 %v5294, %v5295
    %v5297 = vrot.slane %v5296, 1
    %v5298 = vadd.f32 %v5296, %v5297
    %v5299 = vrcp.pop 32.0
    %v5300 = vmul.f32 32.0, %v5299
    %v5301 = vsub.f32 1.0, %v5300
    %v5302 = vmul.f32 %v5299, %v5301
    %v5303 = vadd.f32 %v5299, %v5302
    %vm5304 = vweird.f32 %v5299
    %v5305 = vsel %vm5304, %v5299, %v5303
    %v5306 = vmul.f32 %v5298, %v5305
    %v5307 = vsel %vm5291, %v5290, 0.0
    %v5308 = vrot.slane %v5307, 4
    %v5309 = vadd.f32 %v5307, %v5308
    %v5310 = vrot.slane %v5309, 2
    %v5311 = vadd.f32 %v5309, %v5310
    %v5312 = vrot.slane %v5311, 1
    %v5313 = vadd.f32 %v5311, %v5312
    %v5314 = vmul.f32 %v5313, %v5305
    %v5315 = vmul.f32 %v5306, %v5306
    %v5316 = vsub.f32 %v5314, %v5315
    %v5317 = vadd.f32 %v5316, 1e-05
    %v5318 = vrsqrt.pop %v5317
    %v5319 = vmul.f32 %v5318, %v5317
    %v5320 = vmul.f32 %v5319, %v5318
    %v5321 = vmul.f32 0.5, %v5320
    %v5322 = vsub.f32 1.5, %v5321
    %v5323 = vmul.f32 %v5318, %v5322
    %vm5324 = vweird.f32 %v5317
    %vm5325 = vweird.f32 %v5318
    %vm5326 = vmor %vm5324, %vm5325
    %v5327 = vsel %vm5326, %v5318, %v5323
    %v5328 = vld [vmem:[#allocation15] sm:$0x1]
    %v5329 = vmul.f32 %v5327, %v5328
    %v5330 = vld [vmem:[#allocation16] sm:$0x1]
    %v5331 = vmul.f32 %v5306, %v5329
    %v5332 = vsub.f32 %v5330, %v5331
    %v5333 = vperm.slane %v5329, 0
    %v5334 = vmul.f32 %v4462, %v5333
    %v5336 = vperm.slane %v5332, 0
    %v5338 = vadd.f32 %v5334, %v5336
    %v5339 = vmax.f32 %v5338, 0.0
    %5340 = vst [vmem:[%s13] sm:$0x3] %v5339
    %v5341 = vmul.f32 %v4514, %v5333
    %v5342 = vadd.f32 %v5341, %v5336
    %v5343 = vmax.f32 %v5342, 0.0
    %5344 = vst [vmem:[%s13 + $0x2] sm:$0x3] %v5343
    %v5345 = vmul.f32 %v4566, %v5333
    %v5346 = vadd.f32 %v5345, %v5336
    %v5347 = vmax.f32 %v5346, 0.0
    %5348 = vst [vmem:[%s13 + $0x4] sm:$0x3] %v5347
    %v5349 = vmul.f32 %v4618, %v5333
    %v5350 = vadd.f32 %v5349, %v5336
    %v5351 = vmax.f32 %v5350, 0.0
    %5352 = vst [vmem:[%s13 + $0x6] sm:$0x3] %v5351
    %v5353 = vmul.f32 %v4670, %v5333
    %v5354 = vadd.f32 %v5353, %v5336
    %v5355 = vmax.f32 %v5354, 0.0
    %5356 = vst [vmem:[%s13 + $0x8] sm:$0x3] %v5355
    %v5357 = vmul.f32 %v4722, %v5333
    %v5358 = vadd.f32 %v5357, %v5336
    %v5359 = vmax.f32 %v5358, 0.0
    %5360 = vst [vmem:[%s13 + $0xa] sm:$0x3] %v5359
    %v5361 = vmul.f32 %v4774, %v5333
    %v5362 = vadd.f32 %v5361, %v5336
    %v5363 = vmax.f32 %v5362, 0.0
    %5364 = vst [vmem:[%s13 + $0xc] sm:$0x3] %v5363
    %v5365 = vmul.f32 %v4826, %v5333
    %v5366 = vadd.f32 %v5365, %v5336
    %v5367 = vmax.f32 %v5366, 0.0
    %5368 = vst [vmem:[%s13 + $0xe] sm:$0x3] %v5367
    %v5369 = vmul.f32 %v4878, %v5333
    %v5370 = vadd.f32 %v5369, %v5336
    %v5371 = vmax.f32 %v5370, 0.0
    %5372 = vst [vmem:[%s13 + $0x10] sm:$0x3] %v5371
    %v5373 = vmul.f32 %v4930, %v5333
    %v5374 = vadd.f32 %v5373, %v5336
    %v5375 = vmax.f32 %v5374, 0.0
    %5376 = vst [vmem:[%s13 + $0x12] sm:$0x3] %v5375
    %v5377 = vmul.f32 %v4982, %v5333
    %v5378 = vadd.f32 %v5377, %v5336
    %v5379 = vmax.f32 %v5378, 0.0
    %5380 = vst [vmem:[%s13 + $0x14] sm:$0x3] %v5379
    %v5381 = vmul.f32 %v5034, %v5333
    %v5382 = vadd.f32 %v5381, %v5336
    %v5383 = vmax.f32 %v5382, 0.0
    %5384 = vst [vmem:[%s13 + $0x16] sm:$0x3] %v5383
    %v5385 = vmul.f32 %v5086, %v5333
    %v5386 = vadd.f32 %v5385, %v5336
    %v5387 = vmax.f32 %v5386, 0.0
    %5388 = vst [vmem:[%s13 + $0x18] sm:$0x3] %v5387
    %v5389 = vmul.f32 %v5138, %v5333
    %v5390 = vadd.f32 %v5389, %v5336
    %v5391 = vmax.f32 %v5390, 0.0
    %5392 = vst [vmem:[%s13 + $0x1a] sm:$0x3] %v5391
    %v5393 = vmul.f32 %v5190, %v5333
    %v5394 = vadd.f32 %v5393, %v5336
    %v5395 = vmax.f32 %v5394, 0.0
    %5396 = vst [vmem:[%s13 + $0x1c] sm:$0x3] %v5395
    %v5397 = vmul.f32 %v5242, %v5333
    %v5398 = vadd.f32 %v5397, %v5336
    %v5399 = vmax.f32 %v5398, 0.0
    %5400 = vst [vmem:[%s13 + $0x1e] sm:$0x3] %v5399
    // Predicated region
    $region90: #{vae_forward.5} parent=1 // pred_check
      _
    $region91: #{vae_forward.5} parent=1 // pred_check_branch
      %5402 = sbr.rel (0) target = $region93
    $region92: #{vae_forward.5} parent=1 // pred_region
      _
    $region93: #{vae_forward.5} parent=1 // pred_fallthru
      _
    // Predicated region
    $region94: #{vae_forward.5} parent=1 // pred_check
      _
    $region95: #{vae_forward.5} parent=1 // pred_check_branch
      %5404 = sbr.rel (0) target = $region97
    $region96: #{vae_forward.5} parent=1 // pred_region
      _
    $region97: #{vae_forward.5} parent=1 // pred_fallthru
      _
    // Predicated region
    $region98: #{vae_forward.5} parent=1 // pred_check
      _
    $region99: #{vae_forward.5} parent=1 // pred_check_branch
      %5406 = sbr.rel (0) target = $region101
    $region100: #{vae_forward.5} parent=1 // pred_region
      _
    $region101: #{vae_forward.5} parent=1 // pred_fallthru
      _
    // Predicated region
    $region102: #{vae_forward.5} parent=1 // pred_check
      _
    $region103: #{vae_forward.5} parent=1 // pred_check_branch
      %5408 = sbr.rel (0) target = $region105
    $region104: #{vae_forward.5} parent=1 // pred_region
      _
    $region105: #{vae_forward.5} parent=1 // pred_fallthru
      _
    %5409 = vsyncpa [#allocation3], 1
    %5410 = vsyncpa [#allocation5], 1
    %5411 = vsyncpa [#allocation8], 1
    %5412 = vsyncpa [#allocation11], 1
    %5413 = vsyncpa [#allocation14], 1
    %5414 = vsyncpa [#allocation17], 1

// kernel: vae_forward.6
$region0: #{vae_forward.6}
  #allocation0 [shape = 'u32[]', space=smem, size = 0x4, offset = 0x4, fixed_abs, tag = 'smem constant byte address 0x4 - core index']
  #allocation1 [shape = 'u32[72,128]{1,0:T(1,128)}', space=vmem, size = 0x9000, scoped, tag = 'internal scratch']
  %s0 = inlined_call_operand.vmem [shape: bf16[128,2048], index: 0, kind: input, shape index: {}]
  %s1 = inlined_call_operand.vmem [shape: bf16[2048,128], index: 1, kind: input, shape index: {}]
  %s2 = inlined_call_operand.vmem [shape: f32[1,128], index: 2, kind: input, shape index: {}]
  %s3 = inlined_call_operand.vmem [shape: f32[1,128], index: 3, kind: input, shape index: {}]
  %s4 = inlined_call_operand.vmem [shape: f32[128,128], index: 4, kind: output, shape index: {}]
  %s5 = sld [smem:[#allocation0]]
  $region26: #{vae_forward.6} parent=0
    _
  %s7 = ssub.s32 1, %s5
  %s8 = scalar_select 0, %s7, %s5
  // Predicated region
  $region2: #{vae_forward.6} parent=0 // pred_check
    _
  $region3: #{vae_forward.6} parent=0 // pred_check_branch
    %10 = sbr.rel (0) target = $region5
  $region4: #{vae_forward.6} parent=0 // pred_region
    _
  $region5: #{vae_forward.6} parent=0 // pred_fallthru
    _
  // Predicated region
  $region6: #{vae_forward.6} parent=0 // pred_check
    _
  $region7: #{vae_forward.6} parent=0 // pred_check_branch
    %12 = sbr.rel (0) target = $region9
  $region8: #{vae_forward.6} parent=0 // pred_region
    _
  $region9: #{vae_forward.6} parent=0 // pred_fallthru
    _
  // Predicated region
  $region10: #{vae_forward.6} parent=0 // pred_check
    _
  $region11: #{vae_forward.6} parent=0 // pred_check_branch
    %14 = sbr.rel (0) target = $region13
  $region12: #{vae_forward.6} parent=0 // pred_region
    _
  $region13: #{vae_forward.6} parent=0 // pred_fallthru
    _
  // Predicated region
  $region14: #{vae_forward.6} parent=0 // pred_check
    _
  $region15: #{vae_forward.6} parent=0 // pred_check_branch
    %16 = sbr.rel (0) target = $region17
  $region16: #{vae_forward.6} parent=0 // pred_region
    _
  $region17: #{vae_forward.6} parent=0 // pred_fallthru
    _
  %v17 = vld [vmem:[%s0] sm:$0xff]
  %v18 = vld [vmem:[%s0 + $0x8] sm:$0xff]
  %v19 = vld [vmem:[%s0 + $0x10] sm:$0xff]
  %v20 = vld [vmem:[%s0 + $0x18] sm:$0xff]
  %v21 = vld [vmem:[%s0 + $0x20] sm:$0xff]
  %v22 = vld [vmem:[%s0 + $0x28] sm:$0xff]
  %v23 = vld [vmem:[%s0 + $0x30] sm:$0xff]
  %v24 = vld [vmem:[%s0 + $0x38] sm:$0xff]
  %v25 = vld [vmem:[%s0 + $0x40] sm:$0xff]
  %v26 = vld [vmem:[%s0 + $0x48] sm:$0xff]
  %v27 = vld [vmem:[%s0 + $0x50] sm:$0xff]
  %v28 = vld [vmem:[%s0 + $0x58] sm:$0xff]
  %v29 = vld [vmem:[%s0 + $0x60] sm:$0xff]
  %v30 = vld [vmem:[%s0 + $0x68] sm:$0xff]
  %v31 = vld [vmem:[%s0 + $0x70] sm:$0xff]
  %v32 = vld [vmem:[%s0 + $0x78] sm:$0xff]
  %v33 = vld [vmem:[%s0 + $0x80] sm:$0xff]
  %v34 = vld [vmem:[%s0 + $0x88] sm:$0xff]
  %v35 = vld [vmem:[%s0 + $0x90] sm:$0xff]
  %v36 = vld [vmem:[%s0 + $0x98] sm:$0xff]
  %v37 = vld [vmem:[%s0 + $0xa0] sm:$0xff]
  %v38 = vld [vmem:[%s0 + $0xa8] sm:$0xff]
  %v39 = vld [vmem:[%s0 + $0xb0] sm:$0xff]
  %v40 = vld [vmem:[%s0 + $0xb8] sm:$0xff]
  %v41 = vld [vmem:[%s0 + $0xc0] sm:$0xff]
  %v42 = vld [vmem:[%s0 + $0xc8] sm:$0xff]
  %v43 = vld [vmem:[%s0 + $0xd0] sm:$0xff]
  %v44 = vld [vmem:[%s0 + $0xd8] sm:$0xff]
  %v45 = vld [vmem:[%s0 + $0xe0] sm:$0xff]
  %v46 = vld [vmem:[%s0 + $0xe8] sm:$0xff]
  %v47 = vld [vmem:[%s0 + $0xf0] sm:$0xff]
  %v48 = vld [vmem:[%s0 + $0xf8] sm:$0xff]
  %v49 = vld [vmem:[%s0 + $0x100] sm:$0xff]
  %v50 = vld [vmem:[%s0 + $0x108] sm:$0xff]
  %v51 = vld [vmem:[%s0 + $0x110] sm:$0xff]
  %v52 = vld [vmem:[%s0 + $0x118] sm:$0xff]
  %v53 = vld [vmem:[%s0 + $0x120] sm:$0xff]
  %v54 = vld [vmem:[%s0 + $0x128] sm:$0xff]
  %v55 = vld [vmem:[%s0 + $0x130] sm:$0xff]
  %v56 = vld [vmem:[%s0 + $0x138] sm:$0xff]
  %v57 = vld [vmem:[%s0 + $0x140] sm:$0xff]
  %v58 = vld [vmem:[%s0 + $0x148] sm:$0xff]
  %v59 = vld [vmem:[%s0 + $0x150] sm:$0xff]
  %v60 = vld [vmem:[%s0 + $0x158] sm:$0xff]
  %v61 = vld [vmem:[%s0 + $0x160] sm:$0xff]
  %v62 = vld [vmem:[%s0 + $0x168] sm:$0xff]
  %v63 = vld [vmem:[%s0 + $0x170] sm:$0xff]
  %v64 = vld [vmem:[%s0 + $0x178] sm:$0xff]
  %v65 = vld [vmem:[%s0 + $0x180] sm:$0xff]
  %v66 = vld [vmem:[%s0 + $0x188] sm:$0xff]
  %v67 = vld [vmem:[%s0 + $0x190] sm:$0xff]
  %v68 = vld [vmem:[%s0 + $0x198] sm:$0xff]
  %v69 = vld [vmem:[%s0 + $0x1a0] sm:$0xff]
  %v70 = vld [vmem:[%s0 + $0x1a8] sm:$0xff]
  %v71 = vld [vmem:[%s0 + $0x1b0] sm:$0xff]
  %v72 = vld [vmem:[%s0 + $0x1b8] sm:$0xff]
  %v73 = vld [vmem:[%s0 + $0x1c0] sm:$0xff]
  %v74 = vld [vmem:[%s0 + $0x1c8] sm:$0xff]
  %v75 = vld [vmem:[%s0 + $0x1d0] sm:$0xff]
  %v76 = vld [vmem:[%s0 + $0x1d8] sm:$0xff]
  %v77 = vld [vmem:[%s0 + $0x1e0] sm:$0xff]
  %v78 = vld [vmem:[%s0 + $0x1e8] sm:$0xff]
  %v79 = vld [vmem:[%s0 + $0x1f0] sm:$0xff]
  %v80 = vld [vmem:[%s0 + $0x1f8] sm:$0xff]
  %v81 = vld [vmem:[%s0 + $0x200] sm:$0xff]
  %v82 = vld [vmem:[%s0 + $0x208] sm:$0xff]
  %v83 = vld [vmem:[%s0 + $0x210] sm:$0xff]
  %v84 = vld [vmem:[%s0 + $0x218] sm:$0xff]
  %v85 = vld [vmem:[%s0 + $0x220] sm:$0xff]
  %v86 = vld [vmem:[%s0 + $0x228] sm:$0xff]
  %v87 = vld [vmem:[%s0 + $0x230] sm:$0xff]
  %v88 = vld [vmem:[%s0 + $0x238] sm:$0xff]
  %v89 = vld [vmem:[%s0 + $0x240] sm:$0xff]
  %v90 = vld [vmem:[%s0 + $0x248] sm:$0xff]
  %v91 = vld [vmem:[%s0 + $0x250] sm:$0xff]
  %v92 = vld [vmem:[%s0 + $0x258] sm:$0xff]
  %v93 = vld [vmem:[%s0 + $0x260] sm:$0xff]
  %v94 = vld [vmem:[%s0 + $0x268] sm:$0xff]
  %v95 = vld [vmem:[%s0 + $0x270] sm:$0xff]
  %v96 = vld [vmem:[%s0 + $0x278] sm:$0xff]
  %v97 = vld [vmem:[%s0 + $0x280] sm:$0xff]
  %v98 = vld [vmem:[%s0 + $0x288] sm:$0xff]
  %v99 = vld [vmem:[%s0 + $0x290] sm:$0xff]
  %v100 = vld [vmem:[%s0 + $0x298] sm:$0xff]
  %v101 = vld [vmem:[%s0 + $0x2a0] sm:$0xff]
  %v102 = vld [vmem:[%s0 + $0x2a8] sm:$0xff]
  %v103 = vld [vmem:[%s0 + $0x2b0] sm:$0xff]
  %v104 = vld [vmem:[%s0 + $0x2b8] sm:$0xff]
  %v105 = vld [vmem:[%s0 + $0x2c0] sm:$0xff]
  %v106 = vld [vmem:[%s0 + $0x2c8] sm:$0xff]
  %v107 = vld [vmem:[%s0 + $0x2d0] sm:$0xff]
  %v108 = vld [vmem:[%s0 + $0x2d8] sm:$0xff]
  %v109 = vld [vmem:[%s0 + $0x2e0] sm:$0xff]
  %v110 = vld [vmem:[%s0 + $0x2e8] sm:$0xff]
  %v111 = vld [vmem:[%s0 + $0x2f0] sm:$0xff]
  %v112 = vld [vmem:[%s0 + $0x2f8] sm:$0xff]
  %v113 = vld [vmem:[%s0 + $0x300] sm:$0xff]
  %v114 = vld [vmem:[%s0 + $0x308] sm:$0xff]
  %v115 = vld [vmem:[%s0 + $0x310] sm:$0xff]
  %v116 = vld [vmem:[%s0 + $0x318] sm:$0xff]
  %v117 = vld [vmem:[%s0 + $0x320] sm:$0xff]
  %v118 = vld [vmem:[%s0 + $0x328] sm:$0xff]
  %v119 = vld [vmem:[%s0 + $0x330] sm:$0xff]
  %v120 = vld [vmem:[%s0 + $0x338] sm:$0xff]
  %v121 = vld [vmem:[%s0 + $0x340] sm:$0xff]
  %v122 = vld [vmem:[%s0 + $0x348] sm:$0xff]
  %v123 = vld [vmem:[%s0 + $0x350] sm:$0xff]
  %v124 = vld [vmem:[%s0 + $0x358] sm:$0xff]
  %v125 = vld [vmem:[%s0 + $0x360] sm:$0xff]
  %v126 = vld [vmem:[%s0 + $0x368] sm:$0xff]
  %v127 = vld [vmem:[%s0 + $0x370] sm:$0xff]
  %v128 = vld [vmem:[%s0 + $0x378] sm:$0xff]
  %v129 = vld [vmem:[%s0 + $0x380] sm:$0xff]
  %v130 = vld [vmem:[%s0 + $0x388] sm:$0xff]
  %v131 = vld [vmem:[%s0 + $0x390] sm:$0xff]
  %v132 = vld [vmem:[%s0 + $0x398] sm:$0xff]
  %v133 = vld [vmem:[%s0 + $0x3a0] sm:$0xff]
  %v134 = vld [vmem:[%s0 + $0x3a8] sm:$0xff]
  %v135 = vld [vmem:[%s0 + $0x3b0] sm:$0xff]
  %v136 = vld [vmem:[%s0 + $0x3b8] sm:$0xff]
  %v137 = vld [vmem:[%s0 + $0x3c0] sm:$0xff]
  %v138 = vld [vmem:[%s0 + $0x3c8] sm:$0xff]
  %v139 = vld [vmem:[%s0 + $0x3d0] sm:$0xff]
  %v140 = vld [vmem:[%s0 + $0x3d8] sm:$0xff]
  %v141 = vld [vmem:[%s0 + $0x3e0] sm:$0xff]
  %v142 = vld [vmem:[%s0 + $0x3e8] sm:$0xff]
  %v143 = vld [vmem:[%s0 + $0x3f0] sm:$0xff]
  %v144 = vld [vmem:[%s0 + $0x3f8] sm:$0xff]
  %v145 = vld [vmem:[%s1] sm:$0xf]
  %v146 = vld [vmem:[%s1 + $0x4] sm:$0xf]
  %v147 = vld [vmem:[%s1 + $0x8] sm:$0xf]
  %v148 = vld [vmem:[%s1 + $0xc] sm:$0xf]
  %v149 = vld [vmem:[%s1 + $0x10] sm:$0xf]
  %v150 = vld [vmem:[%s1 + $0x14] sm:$0xf]
  %v151 = vld [vmem:[%s1 + $0x18] sm:$0xf]
  %v152 = vld [vmem:[%s1 + $0x1c] sm:$0xf]
  %v153 = vld [vmem:[%s1 + $0x20] sm:$0xf]
  %v154 = vld [vmem:[%s1 + $0x24] sm:$0xf]
  %v155 = vld [vmem:[%s1 + $0x28] sm:$0xf]
  %v156 = vld [vmem:[%s1 + $0x2c] sm:$0xf]
  %v157 = vld [vmem:[%s1 + $0x30] sm:$0xf]
  %v158 = vld [vmem:[%s1 + $0x34] sm:$0xf]
  %v159 = vld [vmem:[%s1 + $0x38] sm:$0xf]
  %v160 = vld [vmem:[%s1 + $0x3c] sm:$0xf]
  %v161 = vld [vmem:[%s1 + $0x40] sm:$0xf]
  %v162 = vld [vmem:[%s1 + $0x44] sm:$0xf]
  %v163 = vld [vmem:[%s1 + $0x48] sm:$0xf]
  %v164 = vld [vmem:[%s1 + $0x4c] sm:$0xf]
  %v165 = vld [vmem:[%s1 + $0x50] sm:$0xf]
  %v166 = vld [vmem:[%s1 + $0x54] sm:$0xf]
  %v167 = vld [vmem:[%s1 + $0x58] sm:$0xf]
  %v168 = vld [vmem:[%s1 + $0x5c] sm:$0xf]
  %v169 = vld [vmem:[%s1 + $0x60] sm:$0xf]
  %v170 = vld [vmem:[%s1 + $0x64] sm:$0xf]
  %v171 = vld [vmem:[%s1 + $0x68] sm:$0xf]
  %v172 = vld [vmem:[%s1 + $0x6c] sm:$0xf]
  %v173 = vld [vmem:[%s1 + $0x70] sm:$0xf]
  %v174 = vld [vmem:[%s1 + $0x74] sm:$0xf]
  %v175 = vld [vmem:[%s1 + $0x78] sm:$0xf]
  %v176 = vld [vmem:[%s1 + $0x7c] sm:$0xf]
  %v177 = vld [vmem:[%s1 + $0x80] sm:$0xf]
  %v178 = vld [vmem:[%s1 + $0x84] sm:$0xf]
  %v179 = vld [vmem:[%s1 + $0x88] sm:$0xf]
  %v180 = vld [vmem:[%s1 + $0x8c] sm:$0xf]
  %v181 = vld [vmem:[%s1 + $0x90] sm:$0xf]
  %v182 = vld [vmem:[%s1 + $0x94] sm:$0xf]
  %v183 = vld [vmem:[%s1 + $0x98] sm:$0xf]
  %v184 = vld [vmem:[%s1 + $0x9c] sm:$0xf]
  %v185 = vld [vmem:[%s1 + $0xa0] sm:$0xf]
  %v186 = vld [vmem:[%s1 + $0xa4] sm:$0xf]
  %v187 = vld [vmem:[%s1 + $0xa8] sm:$0xf]
  %v188 = vld [vmem:[%s1 + $0xac] sm:$0xf]
  %v189 = vld [vmem:[%s1 + $0xb0] sm:$0xf]
  %v190 = vld [vmem:[%s1 + $0xb4] sm:$0xf]
  %v191 = vld [vmem:[%s1 + $0xb8] sm:$0xf]
  %v192 = vld [vmem:[%s1 + $0xbc] sm:$0xf]
  %v193 = vld [vmem:[%s1 + $0xc0] sm:$0xf]
  %v194 = vld [vmem:[%s1 + $0xc4] sm:$0xf]
  %v195 = vld [vmem:[%s1 + $0xc8] sm:$0xf]
  %v196 = vld [vmem:[%s1 + $0xcc] sm:$0xf]
  %v197 = vld [vmem:[%s1 + $0xd0] sm:$0xf]
  %v198 = vld [vmem:[%s1 + $0xd4] sm:$0xf]
  %v199 = vld [vmem:[%s1 + $0xd8] sm:$0xf]
  %v200 = vld [vmem:[%s1 + $0xdc] sm:$0xf]
  %v201 = vld [vmem:[%s1 + $0xe0] sm:$0xf]
  %v202 = vld [vmem:[%s1 + $0xe4] sm:$0xf]
  %v203 = vld [vmem:[%s1 + $0xe8] sm:$0xf]
  %v204 = vld [vmem:[%s1 + $0xec] sm:$0xf]
  %v205 = vld [vmem:[%s1 + $0xf0] sm:$0xf]
  %v206 = vld [vmem:[%s1 + $0xf4] sm:$0xf]
  %v207 = vld [vmem:[%s1 + $0xf8] sm:$0xf]
  %v208 = vld [vmem:[%s1 + $0xfc] sm:$0xf]
  %v209 = vld [vmem:[%s1 + $0x100] sm:$0xf]
  %v210 = vld [vmem:[%s1 + $0x104] sm:$0xf]
  %v211 = vld [vmem:[%s1 + $0x108] sm:$0xf]
  %v212 = vld [vmem:[%s1 + $0x10c] sm:$0xf]
  %v213 = vld [vmem:[%s1 + $0x110] sm:$0xf]
  %v214 = vld [vmem:[%s1 + $0x114] sm:$0xf]
  %v215 = vld [vmem:[%s1 + $0x118] sm:$0xf]
  %v216 = vld [vmem:[%s1 + $0x11c] sm:$0xf]
  %v217 = vld [vmem:[%s1 + $0x120] sm:$0xf]
  %v218 = vld [vmem:[%s1 + $0x124] sm:$0xf]
  %v219 = vld [vmem:[%s1 + $0x128] sm:$0xf]
  %v220 = vld [vmem:[%s1 + $0x12c] sm:$0xf]
  %v221 = vld [vmem:[%s1 + $0x130] sm:$0xf]
  %v222 = vld [vmem:[%s1 + $0x134] sm:$0xf]
  %v223 = vld [vmem:[%s1 + $0x138] sm:$0xf]
  %v224 = vld [vmem:[%s1 + $0x13c] sm:$0xf]
  %v225 = vld [vmem:[%s1 + $0x140] sm:$0xf]
  %v226 = vld [vmem:[%s1 + $0x144] sm:$0xf]
  %v227 = vld [vmem:[%s1 + $0x148] sm:$0xf]
  %v228 = vld [vmem:[%s1 + $0x14c] sm:$0xf]
  %v229 = vld [vmem:[%s1 + $0x150] sm:$0xf]
  %v230 = vld [vmem:[%s1 + $0x154] sm:$0xf]
  %v231 = vld [vmem:[%s1 + $0x158] sm:$0xf]
  %v232 = vld [vmem:[%s1 + $0x15c] sm:$0xf]
  %v233 = vld [vmem:[%s1 + $0x160] sm:$0xf]
  %v234 = vld [vmem:[%s1 + $0x164] sm:$0xf]
  %v235 = vld [vmem:[%s1 + $0x168] sm:$0xf]
  %v236 = vld [vmem:[%s1 + $0x16c] sm:$0xf]
  %v237 = vld [vmem:[%s1 + $0x170] sm:$0xf]
  %v238 = vld [vmem:[%s1 + $0x174] sm:$0xf]
  %v239 = vld [vmem:[%s1 + $0x178] sm:$0xf]
  %v240 = vld [vmem:[%s1 + $0x17c] sm:$0xf]
  %v241 = vld [vmem:[%s1 + $0x180] sm:$0xf]
  %v242 = vld [vmem:[%s1 + $0x184] sm:$0xf]
  %v243 = vld [vmem:[%s1 + $0x188] sm:$0xf]
  %v244 = vld [vmem:[%s1 + $0x18c] sm:$0xf]
  %v245 = vld [vmem:[%s1 + $0x190] sm:$0xf]
  %v246 = vld [vmem:[%s1 + $0x194] sm:$0xf]
  %v247 = vld [vmem:[%s1 + $0x198] sm:$0xf]
  %v248 = vld [vmem:[%s1 + $0x19c] sm:$0xf]
  %v249 = vld [vmem:[%s1 + $0x1a0] sm:$0xf]
  %v250 = vld [vmem:[%s1 + $0x1a4] sm:$0xf]
  %v251 = vld [vmem:[%s1 + $0x1a8] sm:$0xf]
  %v252 = vld [vmem:[%s1 + $0x1ac] sm:$0xf]
  %v253 = vld [vmem:[%s1 + $0x1b0] sm:$0xf]
  %v254 = vld [vmem:[%s1 + $0x1b4] sm:$0xf]
  %v255 = vld [vmem:[%s1 + $0x1b8] sm:$0xf]
  %v256 = vld [vmem:[%s1 + $0x1bc] sm:$0xf]
  %v257 = vld [vmem:[%s1 + $0x1c0] sm:$0xf]
  %v258 = vld [vmem:[%s1 + $0x1c4] sm:$0xf]
  %v259 = vld [vmem:[%s1 + $0x1c8] sm:$0xf]
  %v260 = vld [vmem:[%s1 + $0x1cc] sm:$0xf]
  %v261 = vld [vmem:[%s1 + $0x1d0] sm:$0xf]
  %v262 = vld [vmem:[%s1 + $0x1d4] sm:$0xf]
  %v263 = vld [vmem:[%s1 + $0x1d8] sm:$0xf]
  %v264 = vld [vmem:[%s1 + $0x1dc] sm:$0xf]
  %v265 = vld [vmem:[%s1 + $0x1e0] sm:$0xf]
  %v266 = vld [vmem:[%s1 + $0x1e4] sm:$0xf]
  %v267 = vld [vmem:[%s1 + $0x1e8] sm:$0xf]
  %v268 = vld [vmem:[%s1 + $0x1ec] sm:$0xf]
  %v269 = vld [vmem:[%s1 + $0x1f0] sm:$0xf]
  %v270 = vld [vmem:[%s1 + $0x1f4] sm:$0xf]
  %v271 = vld [vmem:[%s1 + $0x1f8] sm:$0xf]
  %v272 = vld [vmem:[%s1 + $0x1fc] sm:$0xf]
  %v273 = vld [vmem:[%s1 + $0x200] sm:$0xf]
  %v274 = vld [vmem:[%s1 + $0x204] sm:$0xf]
  %v275 = vld [vmem:[%s1 + $0x208] sm:$0xf]
  %v276 = vld [vmem:[%s1 + $0x20c] sm:$0xf]
  %v277 = vld [vmem:[%s1 + $0x210] sm:$0xf]
  %v278 = vld [vmem:[%s1 + $0x214] sm:$0xf]
  %v279 = vld [vmem:[%s1 + $0x218] sm:$0xf]
  %v280 = vld [vmem:[%s1 + $0x21c] sm:$0xf]
  %v281 = vld [vmem:[%s1 + $0x220] sm:$0xf]
  %v282 = vld [vmem:[%s1 + $0x224] sm:$0xf]
  %v283 = vld [vmem:[%s1 + $0x228] sm:$0xf]
  %v284 = vld [vmem:[%s1 + $0x22c] sm:$0xf]
  %v285 = vld [vmem:[%s1 + $0x230] sm:$0xf]
  %v286 = vld [vmem:[%s1 + $0x234] sm:$0xf]
  %v287 = vld [vmem:[%s1 + $0x238] sm:$0xf]
  %v288 = vld [vmem:[%s1 + $0x23c] sm:$0xf]
  %v289 = vld [vmem:[%s1 + $0x240] sm:$0xf]
  %v290 = vld [vmem:[%s1 + $0x244] sm:$0xf]
  %v291 = vld [vmem:[%s1 + $0x248] sm:$0xf]
  %v292 = vld [vmem:[%s1 + $0x24c] sm:$0xf]
  %v293 = vld [vmem:[%s1 + $0x250] sm:$0xf]
  %v294 = vld [vmem:[%s1 + $0x254] sm:$0xf]
  %v295 = vld [vmem:[%s1 + $0x258] sm:$0xf]
  %v296 = vld [vmem:[%s1 + $0x25c] sm:$0xf]
  %v297 = vld [vmem:[%s1 + $0x260] sm:$0xf]
  %v298 = vld [vmem:[%s1 + $0x264] sm:$0xf]
  %v299 = vld [vmem:[%s1 + $0x268] sm:$0xf]
  %v300 = vld [vmem:[%s1 + $0x26c] sm:$0xf]
  %v301 = vld [vmem:[%s1 + $0x270] sm:$0xf]
  %v302 = vld [vmem:[%s1 + $0x274] sm:$0xf]
  %v303 = vld [vmem:[%s1 + $0x278] sm:$0xf]
  %v304 = vld [vmem:[%s1 + $0x27c] sm:$0xf]
  %v305 = vld [vmem:[%s1 + $0x280] sm:$0xf]
  %v306 = vld [vmem:[%s1 + $0x284] sm:$0xf]
  %v307 = vld [vmem:[%s1 + $0x288] sm:$0xf]
  %v308 = vld [vmem:[%s1 + $0x28c] sm:$0xf]
  %v309 = vld [vmem:[%s1 + $0x290] sm:$0xf]
  %v310 = vld [vmem:[%s1 + $0x294] sm:$0xf]
  %v311 = vld [vmem:[%s1 + $0x298] sm:$0xf]
  %v312 = vld [vmem:[%s1 + $0x29c] sm:$0xf]
  %v313 = vld [vmem:[%s1 + $0x2a0] sm:$0xf]
  %v314 = vld [vmem:[%s1 + $0x2a4] sm:$0xf]
  %v315 = vld [vmem:[%s1 + $0x2a8] sm:$0xf]
  %v316 = vld [vmem:[%s1 + $0x2ac] sm:$0xf]
  %v317 = vld [vmem:[%s1 + $0x2b0] sm:$0xf]
  %v318 = vld [vmem:[%s1 + $0x2b4] sm:$0xf]
  %v319 = vld [vmem:[%s1 + $0x2b8] sm:$0xf]
  %v320 = vld [vmem:[%s1 + $0x2bc] sm:$0xf]
  %v321 = vld [vmem:[%s1 + $0x2c0] sm:$0xf]
  %v322 = vld [vmem:[%s1 + $0x2c4] sm:$0xf]
  %v323 = vld [vmem:[%s1 + $0x2c8] sm:$0xf]
  %v324 = vld [vmem:[%s1 + $0x2cc] sm:$0xf]
  %v325 = vld [vmem:[%s1 + $0x2d0] sm:$0xf]
  %v326 = vld [vmem:[%s1 + $0x2d4] sm:$0xf]
  %v327 = vld [vmem:[%s1 + $0x2d8] sm:$0xf]
  %v328 = vld [vmem:[%s1 + $0x2dc] sm:$0xf]
  %v329 = vld [vmem:[%s1 + $0x2e0] sm:$0xf]
  %v330 = vld [vmem:[%s1 + $0x2e4] sm:$0xf]
  %v331 = vld [vmem:[%s1 + $0x2e8] sm:$0xf]
  %v332 = vld [vmem:[%s1 + $0x2ec] sm:$0xf]
  %v333 = vld [vmem:[%s1 + $0x2f0] sm:$0xf]
  %v334 = vld [vmem:[%s1 + $0x2f4] sm:$0xf]
  %v335 = vld [vmem:[%s1 + $0x2f8] sm:$0xf]
  %v336 = vld [vmem:[%s1 + $0x2fc] sm:$0xf]
  %v337 = vld [vmem:[%s1 + $0x300] sm:$0xf]
  %v338 = vld [vmem:[%s1 + $0x304] sm:$0xf]
  %v339 = vld [vmem:[%s1 + $0x308] sm:$0xf]
  %v340 = vld [vmem:[%s1 + $0x30c] sm:$0xf]
  %v341 = vld [vmem:[%s1 + $0x310] sm:$0xf]
  %v342 = vld [vmem:[%s1 + $0x314] sm:$0xf]
  %v343 = vld [vmem:[%s1 + $0x318] sm:$0xf]
  %v344 = vld [vmem:[%s1 + $0x31c] sm:$0xf]
  %v345 = vld [vmem:[%s1 + $0x320] sm:$0xf]
  %v346 = vld [vmem:[%s1 + $0x324] sm:$0xf]
  %v347 = vld [vmem:[%s1 + $0x328] sm:$0xf]
  %v348 = vld [vmem:[%s1 + $0x32c] sm:$0xf]
  %v349 = vld [vmem:[%s1 + $0x330] sm:$0xf]
  %v350 = vld [vmem:[%s1 + $0x334] sm:$0xf]
  %v351 = vld [vmem:[%s1 + $0x338] sm:$0xf]
  %v352 = vld [vmem:[%s1 + $0x33c] sm:$0xf]
  %v353 = vld [vmem:[%s1 + $0x340] sm:$0xf]
  %v354 = vld [vmem:[%s1 + $0x344] sm:$0xf]
  %v355 = vld [vmem:[%s1 + $0x348] sm:$0xf]
  %v356 = vld [vmem:[%s1 + $0x34c] sm:$0xf]
  %v357 = vld [vmem:[%s1 + $0x350] sm:$0xf]
  %v358 = vld [vmem:[%s1 + $0x354] sm:$0xf]
  %v359 = vld [vmem:[%s1 + $0x358] sm:$0xf]
  %v360 = vld [vmem:[%s1 + $0x35c] sm:$0xf]
  %v361 = vld [vmem:[%s1 + $0x360] sm:$0xf]
  %v362 = vld [vmem:[%s1 + $0x364] sm:$0xf]
  %v363 = vld [vmem:[%s1 + $0x368] sm:$0xf]
  %v364 = vld [vmem:[%s1 + $0x36c] sm:$0xf]
  %v365 = vld [vmem:[%s1 + $0x370] sm:$0xf]
  %v366 = vld [vmem:[%s1 + $0x374] sm:$0xf]
  %v367 = vld [vmem:[%s1 + $0x378] sm:$0xf]
  %v368 = vld [vmem:[%s1 + $0x37c] sm:$0xf]
  %v369 = vld [vmem:[%s1 + $0x380] sm:$0xf]
  %v370 = vld [vmem:[%s1 + $0x384] sm:$0xf]
  %v371 = vld [vmem:[%s1 + $0x388] sm:$0xf]
  %v372 = vld [vmem:[%s1 + $0x38c] sm:$0xf]
  %v373 = vld [vmem:[%s1 + $0x390] sm:$0xf]
  %v374 = vld [vmem:[%s1 + $0x394] sm:$0xf]
  %v375 = vld [vmem:[%s1 + $0x398] sm:$0xf]
  %v376 = vld [vmem:[%s1 + $0x39c] sm:$0xf]
  %v377 = vld [vmem:[%s1 + $0x3a0] sm:$0xf]
  %v378 = vld [vmem:[%s1 + $0x3a4] sm:$0xf]
  %v379 = vld [vmem:[%s1 + $0x3a8] sm:$0xf]
  %v380 = vld [vmem:[%s1 + $0x3ac] sm:$0xf]
  %v381 = vld [vmem:[%s1 + $0x3b0] sm:$0xf]
  %v382 = vld [vmem:[%s1 + $0x3b4] sm:$0xf]
  %v383 = vld [vmem:[%s1 + $0x3b8] sm:$0xf]
  %v384 = vld [vmem:[%s1 + $0x3bc] sm:$0xf]
  %v385 = vld [vmem:[%s1 + $0x3c0] sm:$0xf]
  %v386 = vld [vmem:[%s1 + $0x3c4] sm:$0xf]
  %v387 = vld [vmem:[%s1 + $0x3c8] sm:$0xf]
  %v388 = vld [vmem:[%s1 + $0x3cc] sm:$0xf]
  %v389 = vld [vmem:[%s1 + $0x3d0] sm:$0xf]
  %v390 = vld [vmem:[%s1 + $0x3d4] sm:$0xf]
  %v391 = vld [vmem:[%s1 + $0x3d8] sm:$0xf]
  %v392 = vld [vmem:[%s1 + $0x3dc] sm:$0xf]
  %v393 = vld [vmem:[%s1 + $0x3e0] sm:$0xf]
  %v394 = vld [vmem:[%s1 + $0x3e4] sm:$0xf]
  %v395 = vld [vmem:[%s1 + $0x3e8] sm:$0xf]
  %v396 = vld [vmem:[%s1 + $0x3ec] sm:$0xf]
  %v397 = vld [vmem:[%s1 + $0x3f0] sm:$0xf]
  %v398 = vld [vmem:[%s1 + $0x3f4] sm:$0xf]
  %v399 = vld [vmem:[%s1 + $0x3f8] sm:$0xf]
  %v400 = vld [vmem:[%s1 + $0x3fc] sm:$0xf]
  %v529 = vunpack.c.l.b16 %v17
  %v530 = vunpack.c.h.b16 %v17
  %v531 = vunpack.c.l.b16 %v18
  %v532 = vunpack.c.h.b16 %v18
  %v533 = vunpack.c.l.b16 %v19
  %v534 = vunpack.c.h.b16 %v19
  %v535 = vunpack.c.l.b16 %v20
  %v536 = vunpack.c.h.b16 %v20
  %v537 = vunpack.c.l.b16 %v21
  %v538 = vunpack.c.h.b16 %v21
  %v539 = vunpack.c.l.b16 %v22
  %v540 = vunpack.c.h.b16 %v22
  %v541 = vunpack.c.l.b16 %v23
  %v542 = vunpack.c.h.b16 %v23
  %v543 = vunpack.c.l.b16 %v24
  %v544 = vunpack.c.h.b16 %v24
  %v545 = vunpack.c.l.b16 %v25
  %v546 = vunpack.c.h.b16 %v25
  %v547 = vunpack.c.l.b16 %v26
  %v548 = vunpack.c.h.b16 %v26
  %v549 = vunpack.c.l.b16 %v27
  %v550 = vunpack.c.h.b16 %v27
  %v551 = vunpack.c.l.b16 %v28
  %v552 = vunpack.c.h.b16 %v28
  %v553 = vunpack.c.l.b16 %v29
  %v554 = vunpack.c.h.b16 %v29
  %v555 = vunpack.c.l.b16 %v30
  %v556 = vunpack.c.h.b16 %v30
  %v557 = vunpack.c.l.b16 %v31
  %v558 = vunpack.c.h.b16 %v31
  %v559 = vunpack.c.l.b16 %v32
  %v560 = vunpack.c.h.b16 %v32
  %v561 = vunpack.c.l.b16 %v33
  %v562 = vunpack.c.h.b16 %v33
  %v563 = vunpack.c.l.b16 %v34
  %v564 = vunpack.c.h.b16 %v34
  %v565 = vunpack.c.l.b16 %v35
  %v566 = vunpack.c.h.b16 %v35
  %v567 = vunpack.c.l.b16 %v36
  %v568 = vunpack.c.h.b16 %v36
  %v569 = vunpack.c.l.b16 %v37
  %v570 = vunpack.c.h.b16 %v37
  %v571 = vunpack.c.l.b16 %v38
  %v572 = vunpack.c.h.b16 %v38
  %v573 = vunpack.c.l.b16 %v39
  %v574 = vunpack.c.h.b16 %v39
  %v575 = vunpack.c.l.b16 %v40
  %v576 = vunpack.c.h.b16 %v40
  %v577 = vunpack.c.l.b16 %v41
  %v578 = vunpack.c.h.b16 %v41
  %v579 = vunpack.c.l.b16 %v42
  %v580 = vunpack.c.h.b16 %v42
  %v581 = vunpack.c.l.b16 %v43
  %v582 = vunpack.c.h.b16 %v43
  %v583 = vunpack.c.l.b16 %v44
  %v584 = vunpack.c.h.b16 %v44
  %v585 = vunpack.c.l.b16 %v45
  %v586 = vunpack.c.h.b16 %v45
  %v587 = vunpack.c.l.b16 %v46
  %v588 = vunpack.c.h.b16 %v46
  %v589 = vunpack.c.l.b16 %v47
  %v590 = vunpack.c.h.b16 %v47
  %v591 = vunpack.c.l.b16 %v48
  %v592 = vunpack.c.h.b16 %v48
  %v593 = vunpack.c.l.b16 %v49
  %v594 = vunpack.c.h.b16 %v49
  %v595 = vunpack.c.l.b16 %v50
  %v596 = vunpack.c.h.b16 %v50
  %v597 = vunpack.c.l.b16 %v51
  %v598 = vunpack.c.h.b16 %v51
  %v599 = vunpack.c.l.b16 %v52
  %v600 = vunpack.c.h.b16 %v52
  %v601 = vunpack.c.l.b16 %v53
  %v602 = vunpack.c.h.b16 %v53
  %v603 = vunpack.c.l.b16 %v54
  %v604 = vunpack.c.h.b16 %v54
  %v605 = vunpack.c.l.b16 %v55
  %v606 = vunpack.c.h.b16 %v55
  %v607 = vunpack.c.l.b16 %v56
  %v608 = vunpack.c.h.b16 %v56
  %v609 = vunpack.c.l.b16 %v57
  %v610 = vunpack.c.h.b16 %v57
  %v611 = vunpack.c.l.b16 %v58
  %v612 = vunpack.c.h.b16 %v58
  %v613 = vunpack.c.l.b16 %v59
  %v614 = vunpack.c.h.b16 %v59
  %v615 = vunpack.c.l.b16 %v60
  %v616 = vunpack.c.h.b16 %v60
  %v617 = vunpack.c.l.b16 %v61
  %v618 = vunpack.c.h.b16 %v61
  %v619 = vunpack.c.l.b16 %v62
  %v620 = vunpack.c.h.b16 %v62
  %v621 = vunpack.c.l.b16 %v63
  %v622 = vunpack.c.h.b16 %v63
  %v623 = vunpack.c.l.b16 %v64
  %v624 = vunpack.c.h.b16 %v64
  %v625 = vunpack.c.l.b16 %v65
  %v626 = vunpack.c.h.b16 %v65
  %v627 = vunpack.c.l.b16 %v66
  %v628 = vunpack.c.h.b16 %v66
  %v629 = vunpack.c.l.b16 %v67
  %v630 = vunpack.c.h.b16 %v67
  %v631 = vunpack.c.l.b16 %v68
  %v632 = vunpack.c.h.b16 %v68
  %v633 = vunpack.c.l.b16 %v69
  %v634 = vunpack.c.h.b16 %v69
  %v635 = vunpack.c.l.b16 %v70
  %v636 = vunpack.c.h.b16 %v70
  %v637 = vunpack.c.l.b16 %v71
  %v638 = vunpack.c.h.b16 %v71
  %v639 = vunpack.c.l.b16 %v72
  %v640 = vunpack.c.h.b16 %v72
  %v641 = vunpack.c.l.b16 %v73
  %v642 = vunpack.c.h.b16 %v73
  %v643 = vunpack.c.l.b16 %v74
  %v644 = vunpack.c.h.b16 %v74
  %v645 = vunpack.c.l.b16 %v75
  %v646 = vunpack.c.h.b16 %v75
  %v647 = vunpack.c.l.b16 %v76
  %v648 = vunpack.c.h.b16 %v76
  %v649 = vunpack.c.l.b16 %v77
  %v650 = vunpack.c.h.b16 %v77
  %v651 = vunpack.c.l.b16 %v78
  %v652 = vunpack.c.h.b16 %v78
  %v653 = vunpack.c.l.b16 %v79
  %v654 = vunpack.c.h.b16 %v79
  %v655 = vunpack.c.l.b16 %v80
  %v656 = vunpack.c.h.b16 %v80
  %v657 = vunpack.c.l.b16 %v81
  %v658 = vunpack.c.h.b16 %v81
  %v659 = vunpack.c.l.b16 %v82
  %v660 = vunpack.c.h.b16 %v82
  %v661 = vunpack.c.l.b16 %v83
  %v662 = vunpack.c.h.b16 %v83
  %v663 = vunpack.c.l.b16 %v84
  %v664 = vunpack.c.h.b16 %v84
  %v665 = vunpack.c.l.b16 %v85
  %v666 = vunpack.c.h.b16 %v85
  %v667 = vunpack.c.l.b16 %v86
  %v668 = vunpack.c.h.b16 %v86
  %v669 = vunpack.c.l.b16 %v87
  %v670 = vunpack.c.h.b16 %v87
  %v671 = vunpack.c.l.b16 %v88
  %v672 = vunpack.c.h.b16 %v88
  %v673 = vunpack.c.l.b16 %v89
  %v674 = vunpack.c.h.b16 %v89
  %v675 = vunpack.c.l.b16 %v90
  %v676 = vunpack.c.h.b16 %v90
  %v677 = vunpack.c.l.b16 %v91
  %v678 = vunpack.c.h.b16 %v91
  %v679 = vunpack.c.l.b16 %v92
  %v680 = vunpack.c.h.b16 %v92
  %v681 = vunpack.c.l.b16 %v93
  %v682 = vunpack.c.h.b16 %v93
  %v683 = vunpack.c.l.b16 %v94
  %v684 = vunpack.c.h.b16 %v94
  %v685 = vunpack.c.l.b16 %v95
  %v686 = vunpack.c.h.b16 %v95
  %v687 = vunpack.c.l.b16 %v96
  %v688 = vunpack.c.h.b16 %v96
  %v689 = vunpack.c.l.b16 %v97
  %v690 = vunpack.c.h.b16 %v97
  %v691 = vunpack.c.l.b16 %v98
  %v692 = vunpack.c.h.b16 %v98
  %v693 = vunpack.c.l.b16 %v99
  %v694 = vunpack.c.h.b16 %v99
  %v695 = vunpack.c.l.b16 %v100
  %v696 = vunpack.c.h.b16 %v100
  %v697 = vunpack.c.l.b16 %v101
  %v698 = vunpack.c.h.b16 %v101
  %v699 = vunpack.c.l.b16 %v102
  %v700 = vunpack.c.h.b16 %v102
  %v701 = vunpack.c.l.b16 %v103
  %v702 = vunpack.c.h.b16 %v103
  %v703 = vunpack.c.l.b16 %v104
  %v704 = vunpack.c.h.b16 %v104
  %v705 = vunpack.c.l.b16 %v105
  %v706 = vunpack.c.h.b16 %v105
  %v707 = vunpack.c.l.b16 %v106
  %v708 = vunpack.c.h.b16 %v106
  %v709 = vunpack.c.l.b16 %v107
  %v710 = vunpack.c.h.b16 %v107
  %v711 = vunpack.c.l.b16 %v108
  %v712 = vunpack.c.h.b16 %v108
  %v713 = vunpack.c.l.b16 %v109
  %v714 = vunpack.c.h.b16 %v109
  %v715 = vunpack.c.l.b16 %v110
  %v716 = vunpack.c.h.b16 %v110
  %v717 = vunpack.c.l.b16 %v111
  %v718 = vunpack.c.h.b16 %v111
  %v719 = vunpack.c.l.b16 %v112
  %v720 = vunpack.c.h.b16 %v112
  %v721 = vunpack.c.l.b16 %v113
  %v722 = vunpack.c.h.b16 %v113
  %v723 = vunpack.c.l.b16 %v114
  %v724 = vunpack.c.h.b16 %v114
  %v725 = vunpack.c.l.b16 %v115
  %v726 = vunpack.c.h.b16 %v115
  %v727 = vunpack.c.l.b16 %v116
  %v728 = vunpack.c.h.b16 %v116
  %v729 = vunpack.c.l.b16 %v117
  %v730 = vunpack.c.h.b16 %v117
  %v731 = vunpack.c.l.b16 %v118
  %v732 = vunpack.c.h.b16 %v118
  %v733 = vunpack.c.l.b16 %v119
  %v734 = vunpack.c.h.b16 %v119
  %v735 = vunpack.c.l.b16 %v120
  %v736 = vunpack.c.h.b16 %v120
  %v737 = vunpack.c.l.b16 %v121
  %v738 = vunpack.c.h.b16 %v121
  %v739 = vunpack.c.l.b16 %v122
  %v740 = vunpack.c.h.b16 %v122
  %v741 = vunpack.c.l.b16 %v123
  %v742 = vunpack.c.h.b16 %v123
  %v743 = vunpack.c.l.b16 %v124
  %v744 = vunpack.c.h.b16 %v124
  %v745 = vunpack.c.l.b16 %v125
  %v746 = vunpack.c.h.b16 %v125
  %v747 = vunpack.c.l.b16 %v126
  %v748 = vunpack.c.h.b16 %v126
  %v749 = vunpack.c.l.b16 %v127
  %v750 = vunpack.c.h.b16 %v127
  %v751 = vunpack.c.l.b16 %v128
  %v752 = vunpack.c.h.b16 %v128
  %v753 = vunpack.c.l.b16 %v129
  %v754 = vunpack.c.h.b16 %v129
  %v755 = vunpack.c.l.b16 %v130
  %v756 = vunpack.c.h.b16 %v130
  %v757 = vunpack.c.l.b16 %v131
  %v758 = vunpack.c.h.b16 %v131
  %v759 = vunpack.c.l.b16 %v132
  %v760 = vunpack.c.h.b16 %v132
  %v761 = vunpack.c.l.b16 %v133
  %v762 = vunpack.c.h.b16 %v133
  %v763 = vunpack.c.l.b16 %v134
  %v764 = vunpack.c.h.b16 %v134
  %v765 = vunpack.c.l.b16 %v135
  %v766 = vunpack.c.h.b16 %v135
  %v767 = vunpack.c.l.b16 %v136
  %v768 = vunpack.c.h.b16 %v136
  %v769 = vunpack.c.l.b16 %v137
  %v770 = vunpack.c.h.b16 %v137
  %v771 = vunpack.c.l.b16 %v138
  %v772 = vunpack.c.h.b16 %v138
  %v773 = vunpack.c.l.b16 %v139
  %v774 = vunpack.c.h.b16 %v139
  %v775 = vunpack.c.l.b16 %v140
  %v776 = vunpack.c.h.b16 %v140
  %v777 = vunpack.c.l.b16 %v141
  %v778 = vunpack.c.h.b16 %v141
  %v779 = vunpack.c.l.b16 %v142
  %v780 = vunpack.c.h.b16 %v142
  %v781 = vunpack.c.l.b16 %v143
  %v782 = vunpack.c.h.b16 %v143
  %v783 = vunpack.c.l.b16 %v144
  %v784 = vunpack.c.h.b16 %v144
  %v785 = vpack.c.b16 %v545, %v529
  %v786 = vpack.c.b16 %v546, %v530
  %v787 = vpack.c.b16 %v547, %v531
  %v788 = vpack.c.b16 %v548, %v532
  %v789 = vpack.c.b16 %v549, %v533
  %v790 = vpack.c.b16 %v550, %v534
  %v791 = vpack.c.b16 %v551, %v535
  %v792 = vpack.c.b16 %v552, %v536
  %v793 = vpack.c.b16 %v553, %v537
  %v794 = vpack.c.b16 %v554, %v538
  %v795 = vpack.c.b16 %v555, %v539
  %v796 = vpack.c.b16 %v556, %v540
  %v797 = vpack.c.b16 %v557, %v541
  %v798 = vpack.c.b16 %v558, %v542
  %v799 = vpack.c.b16 %v559, %v543
  %v800 = vpack.c.b16 %v560, %v544
  %v801 = vpack.c.b16 %v577, %v561
  %v802 = vpack.c.b16 %v578, %v562
  %v803 = vpack.c.b16 %v579, %v563
  %v804 = vpack.c.b16 %v580, %v564
  %v805 = vpack.c.b16 %v581, %v565
  %v806 = vpack.c.b16 %v582, %v566
  %v807 = vpack.c.b16 %v583, %v567
  %v808 = vpack.c.b16 %v584, %v568
  %v809 = vpack.c.b16 %v585, %v569
  %v810 = vpack.c.b16 %v586, %v570
  %v811 = vpack.c.b16 %v587, %v571
  %v812 = vpack.c.b16 %v588, %v572
  %v813 = vpack.c.b16 %v589, %v573
  %v814 = vpack.c.b16 %v590, %v574
  %v815 = vpack.c.b16 %v591, %v575
  %v816 = vpack.c.b16 %v592, %v576
  %v817 = vpack.c.b16 %v609, %v593
  %v818 = vpack.c.b16 %v610, %v594
  %v819 = vpack.c.b16 %v611, %v595
  %v820 = vpack.c.b16 %v612, %v596
  %v821 = vpack.c.b16 %v613, %v597
  %v822 = vpack.c.b16 %v614, %v598
  %v823 = vpack.c.b16 %v615, %v599
  %v824 = vpack.c.b16 %v616, %v600
  %v825 = vpack.c.b16 %v617, %v601
  %v826 = vpack.c.b16 %v618, %v602
  %v827 = vpack.c.b16 %v619, %v603
  %v828 = vpack.c.b16 %v620, %v604
  %v829 = vpack.c.b16 %v621, %v605
  %v830 = vpack.c.b16 %v622, %v606
  %v831 = vpack.c.b16 %v623, %v607
  %v832 = vpack.c.b16 %v624, %v608
  %v833 = vpack.c.b16 %v641, %v625
  %v834 = vpack.c.b16 %v642, %v626
  %v835 = vpack.c.b16 %v643, %v627
  %v836 = vpack.c.b16 %v644, %v628
  %v837 = vpack.c.b16 %v645, %v629
  %v838 = vpack.c.b16 %v646, %v630
  %v839 = vpack.c.b16 %v647, %v631
  %v840 = vpack.c.b16 %v648, %v632
  %v841 = vpack.c.b16 %v649, %v633
  %v842 = vpack.c.b16 %v650, %v634
  %v843 = vpack.c.b16 %v651, %v635
  %v844 = vpack.c.b16 %v652, %v636
  %v845 = vpack.c.b16 %v653, %v637
  %v846 = vpack.c.b16 %v654, %v638
  %v847 = vpack.c.b16 %v655, %v639
  %v848 = vpack.c.b16 %v656, %v640
  %v849 = vpack.c.b16 %v673, %v657
  %v850 = vpack.c.b16 %v674, %v658
  %v851 = vpack.c.b16 %v675, %v659
  %v852 = vpack.c.b16 %v676, %v660
  %v853 = vpack.c.b16 %v677, %v661
  %v854 = vpack.c.b16 %v678, %v662
  %v855 = vpack.c.b16 %v679, %v663
  %v856 = vpack.c.b16 %v680, %v664
  %v857 = vpack.c.b16 %v681, %v665
  %v858 = vpack.c.b16 %v682, %v666
  %v859 = vpack.c.b16 %v683, %v667
  %v860 = vpack.c.b16 %v684, %v668
  %v861 = vpack.c.b16 %v685, %v669
  %v862 = vpack.c.b16 %v686, %v670
  %v863 = vpack.c.b16 %v687, %v671
  %v864 = vpack.c.b16 %v688, %v672
  %v865 = vpack.c.b16 %v705, %v689
  %v866 = vpack.c.b16 %v706, %v690
  %v867 = vpack.c.b16 %v707, %v691
  %v868 = vpack.c.b16 %v708, %v692
  %v869 = vpack.c.b16 %v709, %v693
  %v870 = vpack.c.b16 %v710, %v694
  %v871 = vpack.c.b16 %v711, %v695
  %v872 = vpack.c.b16 %v712, %v696
  %v873 = vpack.c.b16 %v713, %v697
  %v874 = vpack.c.b16 %v714, %v698
  %v875 = vpack.c.b16 %v715, %v699
  %v876 = vpack.c.b16 %v716, %v700
  %v877 = vpack.c.b16 %v717, %v701
  %v878 = vpack.c.b16 %v718, %v702
  %v879 = vpack.c.b16 %v719, %v703
  %v880 = vpack.c.b16 %v720, %v704
  %v881 = vpack.c.b16 %v737, %v721
  %v882 = vpack.c.b16 %v738, %v722
  %v883 = vpack.c.b16 %v739, %v723
  %v884 = vpack.c.b16 %v740, %v724
  %v885 = vpack.c.b16 %v741, %v725
  %v886 = vpack.c.b16 %v742, %v726
  %v887 = vpack.c.b16 %v743, %v727
  %v888 = vpack.c.b16 %v744, %v728
  %v889 = vpack.c.b16 %v745, %v729
  %v890 = vpack.c.b16 %v746, %v730
  %v891 = vpack.c.b16 %v747, %v731
  %v892 = vpack.c.b16 %v748, %v732
  %v893 = vpack.c.b16 %v749, %v733
  %v894 = vpack.c.b16 %v750, %v734
  %v895 = vpack.c.b16 %v751, %v735
  %v896 = vpack.c.b16 %v752, %v736
  %v897 = vpack.c.b16 %v769, %v753
  %v898 = vpack.c.b16 %v770, %v754
  %v899 = vpack.c.b16 %v771, %v755
  %v900 = vpack.c.b16 %v772, %v756
  %v901 = vpack.c.b16 %v773, %v757
  %v902 = vpack.c.b16 %v774, %v758
  %v903 = vpack.c.b16 %v775, %v759
  %v904 = vpack.c.b16 %v776, %v760
  %v905 = vpack.c.b16 %v777, %v761
  %v906 = vpack.c.b16 %v778, %v762
  %v907 = vpack.c.b16 %v779, %v763
  %v908 = vpack.c.b16 %v780, %v764
  %v909 = vpack.c.b16 %v781, %v765
  %v910 = vpack.c.b16 %v782, %v766
  %v911 = vpack.c.b16 %v783, %v767
  %v912 = vpack.c.b16 %v784, %v768
  %v1297 = vunpack.c.l.b16 %v145
  %v1298 = vunpack.c.l.b16 %v146
  %v1299 = vunpack.c.l.b16 %v147
  %v1300 = vunpack.c.l.b16 %v148
  %v1301 = vunpack.c.l.b16 %v149
  %v1302 = vunpack.c.l.b16 %v150
  %v1303 = vunpack.c.l.b16 %v151
  %v1304 = vunpack.c.l.b16 %v152
  %v1305 = vunpack.c.l.b16 %v153
  %v1306 = vunpack.c.l.b16 %v154
  %v1307 = vunpack.c.l.b16 %v155
  %v1308 = vunpack.c.l.b16 %v156
  %v1309 = vunpack.c.l.b16 %v157
  %v1310 = vunpack.c.l.b16 %v158
  %v1311 = vunpack.c.l.b16 %v159
  %v1312 = vunpack.c.l.b16 %v160
  %v1313 = vunpack.c.l.b16 %v161
  %v1314 = vunpack.c.l.b16 %v162
  %v1315 = vunpack.c.l.b16 %v163
  %v1316 = vunpack.c.l.b16 %v164
  %v1317 = vunpack.c.l.b16 %v165
  %v1318 = vunpack.c.l.b16 %v166
  %v1319 = vunpack.c.l.b16 %v167
  %v1320 = vunpack.c.l.b16 %v168
  %v1321 = vunpack.c.l.b16 %v169
  %v1322 = vunpack.c.l.b16 %v170
  %v1323 = vunpack.c.l.b16 %v171
  %v1324 = vunpack.c.l.b16 %v172
  %v1325 = vunpack.c.l.b16 %v173
  %v1326 = vunpack.c.l.b16 %v174
  %v1327 = vunpack.c.l.b16 %v175
  %v1328 = vunpack.c.l.b16 %v176
  %v1329 = vunpack.c.l.b16 %v177
  %v1330 = vunpack.c.l.b16 %v178
  %v1331 = vunpack.c.l.b16 %v179
  %v1332 = vunpack.c.l.b16 %v180
  %v1333 = vunpack.c.l.b16 %v181
  %v1334 = vunpack.c.l.b16 %v182
  %v1335 = vunpack.c.l.b16 %v183
  %v1336 = vunpack.c.l.b16 %v184
  %v1337 = vunpack.c.l.b16 %v185
  %v1338 = vunpack.c.l.b16 %v186
  %v1339 = vunpack.c.l.b16 %v187
  %v1340 = vunpack.c.l.b16 %v188
  %v1341 = vunpack.c.l.b16 %v189
  %v1342 = vunpack.c.l.b16 %v190
  %v1343 = vunpack.c.l.b16 %v191
  %v1344 = vunpack.c.l.b16 %v192
  %v1345 = vunpack.c.l.b16 %v193
  %v1346 = vunpack.c.l.b16 %v194
  %v1347 = vunpack.c.l.b16 %v195
  %v1348 = vunpack.c.l.b16 %v196
  %v1349 = vunpack.c.l.b16 %v197
  %v1350 = vunpack.c.l.b16 %v198
  %v1351 = vunpack.c.l.b16 %v199
  %v1352 = vunpack.c.l.b16 %v200
  %v1353 = vunpack.c.l.b16 %v201
  %v1354 = vunpack.c.l.b16 %v202
  %v1355 = vunpack.c.l.b16 %v203
  %v1356 = vunpack.c.l.b16 %v204
  %v1357 = vunpack.c.l.b16 %v205
  %v1358 = vunpack.c.l.b16 %v206
  %v1359 = vunpack.c.l.b16 %v207
  %v1360 = vunpack.c.l.b16 %v208
  %v1361 = vunpack.c.l.b16 %v209
  %v1362 = vunpack.c.l.b16 %v210
  %v1363 = vunpack.c.l.b16 %v211
  %v1364 = vunpack.c.l.b16 %v212
  %v1365 = vunpack.c.l.b16 %v213
  %v1366 = vunpack.c.l.b16 %v214
  %v1367 = vunpack.c.l.b16 %v215
  %v1368 = vunpack.c.l.b16 %v216
  %v1369 = vunpack.c.l.b16 %v217
  %v1370 = vunpack.c.l.b16 %v218
  %v1371 = vunpack.c.l.b16 %v219
  %v1372 = vunpack.c.l.b16 %v220
  %v1373 = vunpack.c.l.b16 %v221
  %v1374 = vunpack.c.l.b16 %v222
  %v1375 = vunpack.c.l.b16 %v223
  %v1376 = vunpack.c.l.b16 %v224
  %v1377 = vunpack.c.l.b16 %v225
  %v1378 = vunpack.c.l.b16 %v226
  %v1379 = vunpack.c.l.b16 %v227
  %v1380 = vunpack.c.l.b16 %v228
  %v1381 = vunpack.c.l.b16 %v229
  %v1382 = vunpack.c.l.b16 %v230
  %v1383 = vunpack.c.l.b16 %v231
  %v1384 = vunpack.c.l.b16 %v232
  %v1385 = vunpack.c.l.b16 %v233
  %v1386 = vunpack.c.l.b16 %v234
  %v1387 = vunpack.c.l.b16 %v235
  %v1388 = vunpack.c.l.b16 %v236
  %v1389 = vunpack.c.l.b16 %v237
  %v1390 = vunpack.c.l.b16 %v238
  %v1391 = vunpack.c.l.b16 %v239
  %v1392 = vunpack.c.l.b16 %v240
  %v1393 = vunpack.c.l.b16 %v241
  %v1394 = vunpack.c.l.b16 %v242
  %v1395 = vunpack.c.l.b16 %v243
  %v1396 = vunpack.c.l.b16 %v244
  %v1397 = vunpack.c.l.b16 %v245
  %v1398 = vunpack.c.l.b16 %v246
  %v1399 = vunpack.c.l.b16 %v247
  %v1400 = vunpack.c.l.b16 %v248
  %v1401 = vunpack.c.l.b16 %v249
  %v1402 = vunpack.c.l.b16 %v250
  %v1403 = vunpack.c.l.b16 %v251
  %v1404 = vunpack.c.l.b16 %v252
  %v1405 = vunpack.c.l.b16 %v253
  %v1406 = vunpack.c.l.b16 %v254
  %v1407 = vunpack.c.l.b16 %v255
  %v1408 = vunpack.c.l.b16 %v256
  %v1409 = vunpack.c.l.b16 %v257
  %v1410 = vunpack.c.l.b16 %v258
  %v1411 = vunpack.c.l.b16 %v259
  %v1412 = vunpack.c.l.b16 %v260
  %v1413 = vunpack.c.l.b16 %v261
  %v1414 = vunpack.c.l.b16 %v262
  %v1415 = vunpack.c.l.b16 %v263
  %v1416 = vunpack.c.l.b16 %v264
  %v1417 = vunpack.c.l.b16 %v265
  %v1418 = vunpack.c.l.b16 %v266
  %v1419 = vunpack.c.l.b16 %v267
  %v1420 = vunpack.c.l.b16 %v268
  %v1421 = vunpack.c.l.b16 %v269
  %v1422 = vunpack.c.l.b16 %v270
  %v1423 = vunpack.c.l.b16 %v271
  %v1424 = vunpack.c.l.b16 %v272
  %v1425 = vunpack.c.l.b16 %v273
  %v1426 = vunpack.c.l.b16 %v274
  %v1427 = vunpack.c.l.b16 %v275
  %v1428 = vunpack.c.l.b16 %v276
  %v1429 = vunpack.c.l.b16 %v277
  %v1430 = vunpack.c.l.b16 %v278
  %v1431 = vunpack.c.l.b16 %v279
  %v1432 = vunpack.c.l.b16 %v280
  %v1433 = vunpack.c.l.b16 %v281
  %v1434 = vunpack.c.l.b16 %v282
  %v1435 = vunpack.c.l.b16 %v283
  %v1436 = vunpack.c.l.b16 %v284
  %v1437 = vunpack.c.l.b16 %v285
  %v1438 = vunpack.c.l.b16 %v286
  %v1439 = vunpack.c.l.b16 %v287
  %v1440 = vunpack.c.l.b16 %v288
  %v1441 = vunpack.c.l.b16 %v289
  %v1442 = vunpack.c.l.b16 %v290
  %v1443 = vunpack.c.l.b16 %v291
  %v1444 = vunpack.c.l.b16 %v292
  %v1445 = vunpack.c.l.b16 %v293
  %v1446 = vunpack.c.l.b16 %v294
  %v1447 = vunpack.c.l.b16 %v295
  %v1448 = vunpack.c.l.b16 %v296
  %v1449 = vunpack.c.l.b16 %v297
  %v1450 = vunpack.c.l.b16 %v298
  %v1451 = vunpack.c.l.b16 %v299
  %v1452 = vunpack.c.l.b16 %v300
  %v1453 = vunpack.c.l.b16 %v301
  %v1454 = vunpack.c.l.b16 %v302
  %v1455 = vunpack.c.l.b16 %v303
  %v1456 = vunpack.c.l.b16 %v304
  %v1457 = vunpack.c.l.b16 %v305
  %v1458 = vunpack.c.l.b16 %v306
  %v1459 = vunpack.c.l.b16 %v307
  %v1460 = vunpack.c.l.b16 %v308
  %v1461 = vunpack.c.l.b16 %v309
  %v1462 = vunpack.c.l.b16 %v310
  %v1463 = vunpack.c.l.b16 %v311
  %v1464 = vunpack.c.l.b16 %v312
  %v1465 = vunpack.c.l.b16 %v313
  %v1466 = vunpack.c.l.b16 %v314
  %v1467 = vunpack.c.l.b16 %v315
  %v1468 = vunpack.c.l.b16 %v316
  %v1469 = vunpack.c.l.b16 %v317
  %v1470 = vunpack.c.l.b16 %v318
  %v1471 = vunpack.c.l.b16 %v319
  %v1472 = vunpack.c.l.b16 %v320
  %v1473 = vunpack.c.l.b16 %v321
  %v1474 = vunpack.c.l.b16 %v322
  %v1475 = vunpack.c.l.b16 %v323
  %v1476 = vunpack.c.l.b16 %v324
  %v1477 = vunpack.c.l.b16 %v325
  %v1478 = vunpack.c.l.b16 %v326
  %v1479 = vunpack.c.l.b16 %v327
  %v1480 = vunpack.c.l.b16 %v328
  %v1481 = vunpack.c.l.b16 %v329
  %v1482 = vunpack.c.l.b16 %v330
  %v1483 = vunpack.c.l.b16 %v331
  %v1484 = vunpack.c.l.b16 %v332
  %v1485 = vunpack.c.l.b16 %v333
  %v1486 = vunpack.c.l.b16 %v334
  %v1487 = vunpack.c.l.b16 %v335
  %v1488 = vunpack.c.l.b16 %v336
  %v1489 = vunpack.c.l.b16 %v337
  %v1490 = vunpack.c.l.b16 %v338
  %v1491 = vunpack.c.l.b16 %v339
  %v1492 = vunpack.c.l.b16 %v340
  %v1493 = vunpack.c.l.b16 %v341
  %v1494 = vunpack.c.l.b16 %v342
  %v1495 = vunpack.c.l.b16 %v343
  %v1496 = vunpack.c.l.b16 %v344
  %v1497 = vunpack.c.l.b16 %v345
  %v1498 = vunpack.c.l.b16 %v346
  %v1499 = vunpack.c.l.b16 %v347
  %v1500 = vunpack.c.l.b16 %v348
  %v1501 = vunpack.c.l.b16 %v349
  %v1502 = vunpack.c.l.b16 %v350
  %v1503 = vunpack.c.l.b16 %v351
  %v1504 = vunpack.c.l.b16 %v352
  %v1505 = vunpack.c.l.b16 %v353
  %v1506 = vunpack.c.l.b16 %v354
  %v1507 = vunpack.c.l.b16 %v355
  %v1508 = vunpack.c.l.b16 %v356
  %v1509 = vunpack.c.l.b16 %v357
  %v1510 = vunpack.c.l.b16 %v358
  %v1511 = vunpack.c.l.b16 %v359
  %v1512 = vunpack.c.l.b16 %v360
  %v1513 = vunpack.c.l.b16 %v361
  %v1514 = vunpack.c.l.b16 %v362
  %v1515 = vunpack.c.l.b16 %v363
  %v1516 = vunpack.c.l.b16 %v364
  %v1517 = vunpack.c.l.b16 %v365
  %v1518 = vunpack.c.l.b16 %v366
  %v1519 = vunpack.c.l.b16 %v367
  %v1520 = vunpack.c.l.b16 %v368
  %v1521 = vunpack.c.l.b16 %v369
  %v1522 = vunpack.c.l.b16 %v370
  %v1523 = vunpack.c.l.b16 %v371
  %v1524 = vunpack.c.l.b16 %v372
  %v1525 = vunpack.c.l.b16 %v373
  %v1526 = vunpack.c.l.b16 %v374
  %v1527 = vunpack.c.l.b16 %v375
  %v1528 = vunpack.c.l.b16 %v376
  %v1529 = vunpack.c.l.b16 %v377
  %v1530 = vunpack.c.l.b16 %v378
  %v1531 = vunpack.c.l.b16 %v379
  %v1532 = vunpack.c.l.b16 %v380
  %v1533 = vunpack.c.l.b16 %v381
  %v1534 = vunpack.c.l.b16 %v382
  %v1535 = vunpack.c.l.b16 %v383
  %v1536 = vunpack.c.l.b16 %v384
  %v1537 = vunpack.c.l.b16 %v385
  %v1538 = vunpack.c.l.b16 %v386
  %v1539 = vunpack.c.l.b16 %v387
  %v1540 = vunpack.c.l.b16 %v388
  %v1541 = vunpack.c.l.b16 %v389
  %v1542 = vunpack.c.l.b16 %v390
  %v1543 = vunpack.c.l.b16 %v391
  %v1544 = vunpack.c.l.b16 %v392
  %v1545 = vunpack.c.l.b16 %v393
  %v1546 = vunpack.c.l.b16 %v394
  %v1547 = vunpack.c.l.b16 %v395
  %v1548 = vunpack.c.l.b16 %v396
  %v1549 = vunpack.c.l.b16 %v397
  %v1550 = vunpack.c.l.b16 %v398
  %v1551 = vunpack.c.l.b16 %v399
  %v1552 = vunpack.c.l.b16 %v400
  %v1553 = vpack.c.b16 %v1298, %v1297
  %v1554 = vpack.c.b16 %v1300, %v1299
  %v1555 = vpack.c.b16 %v1302, %v1301
  %v1556 = vpack.c.b16 %v1304, %v1303
  %v1557 = vpack.c.b16 %v1306, %v1305
  %v1558 = vpack.c.b16 %v1308, %v1307
  %v1559 = vpack.c.b16 %v1310, %v1309
  %v1560 = vpack.c.b16 %v1312, %v1311
  %v1561 = vpack.c.b16 %v1314, %v1313
  %v1562 = vpack.c.b16 %v1316, %v1315
  %v1563 = vpack.c.b16 %v1318, %v1317
  %v1564 = vpack.c.b16 %v1320, %v1319
  %v1565 = vpack.c.b16 %v1322, %v1321
  %v1566 = vpack.c.b16 %v1324, %v1323
  %v1567 = vpack.c.b16 %v1326, %v1325
  %v1568 = vpack.c.b16 %v1328, %v1327
  %v1569 = vpack.c.b16 %v1330, %v1329
  %v1570 = vpack.c.b16 %v1332, %v1331
  %v1571 = vpack.c.b16 %v1334, %v1333
  %v1572 = vpack.c.b16 %v1336, %v1335
  %v1573 = vpack.c.b16 %v1338, %v1337
  %v1574 = vpack.c.b16 %v1340, %v1339
  %v1575 = vpack.c.b16 %v1342, %v1341
  %v1576 = vpack.c.b16 %v1344, %v1343
  %v1577 = vpack.c.b16 %v1346, %v1345
  %v1578 = vpack.c.b16 %v1348, %v1347
  %v1579 = vpack.c.b16 %v1350, %v1349
  %v1580 = vpack.c.b16 %v1352, %v1351
  %v1581 = vpack.c.b16 %v1354, %v1353
  %v1582 = vpack.c.b16 %v1356, %v1355
  %v1583 = vpack.c.b16 %v1358, %v1357
  %v1584 = vpack.c.b16 %v1360, %v1359
  %v1585 = vpack.c.b16 %v1362, %v1361
  %v1586 = vpack.c.b16 %v1364, %v1363
  %v1587 = vpack.c.b16 %v1366, %v1365
  %v1588 = vpack.c.b16 %v1368, %v1367
  %v1589 = vpack.c.b16 %v1370, %v1369
  %v1590 = vpack.c.b16 %v1372, %v1371
  %v1591 = vpack.c.b16 %v1374, %v1373
  %v1592 = vpack.c.b16 %v1376, %v1375
  %v1593 = vpack.c.b16 %v1378, %v1377
  %v1594 = vpack.c.b16 %v1380, %v1379
  %v1595 = vpack.c.b16 %v1382, %v1381
  %v1596 = vpack.c.b16 %v1384, %v1383
  %v1597 = vpack.c.b16 %v1386, %v1385
  %v1598 = vpack.c.b16 %v1388, %v1387
  %v1599 = vpack.c.b16 %v1390, %v1389
  %v1600 = vpack.c.b16 %v1392, %v1391
  %v1601 = vpack.c.b16 %v1394, %v1393
  %v1602 = vpack.c.b16 %v1396, %v1395
  %v1603 = vpack.c.b16 %v1398, %v1397
  %v1604 = vpack.c.b16 %v1400, %v1399
  %v1605 = vpack.c.b16 %v1402, %v1401
  %v1606 = vpack.c.b16 %v1404, %v1403
  %v1607 = vpack.c.b16 %v1406, %v1405
  %v1608 = vpack.c.b16 %v1408, %v1407
  %v1609 = vpack.c.b16 %v1410, %v1409
  %v1610 = vpack.c.b16 %v1412, %v1411
  %v1611 = vpack.c.b16 %v1414, %v1413
  %v1612 = vpack.c.b16 %v1416, %v1415
  %v1613 = vpack.c.b16 %v1418, %v1417
  %v1614 = vpack.c.b16 %v1420, %v1419
  %v1615 = vpack.c.b16 %v1422, %v1421
  %v1616 = vpack.c.b16 %v1424, %v1423
  %v1617 = vpack.c.b16 %v1426, %v1425
  %v1618 = vpack.c.b16 %v1428, %v1427
  %v1619 = vpack.c.b16 %v1430, %v1429
  %v1620 = vpack.c.b16 %v1432, %v1431
  %v1621 = vpack.c.b16 %v1434, %v1433
  %v1622 = vpack.c.b16 %v1436, %v1435
  %v1623 = vpack.c.b16 %v1438, %v1437
  %v1624 = vpack.c.b16 %v1440, %v1439
  %v1625 = vpack.c.b16 %v1442, %v1441
  %v1626 = vpack.c.b16 %v1444, %v1443
  %v1627 = vpack.c.b16 %v1446, %v1445
  %v1628 = vpack.c.b16 %v1448, %v1447
  %v1629 = vpack.c.b16 %v1450, %v1449
  %v1630 = vpack.c.b16 %v1452, %v1451
  %v1631 = vpack.c.b16 %v1454, %v1453
  %v1632 = vpack.c.b16 %v1456, %v1455
  %v1633 = vpack.c.b16 %v1458, %v1457
  %v1634 = vpack.c.b16 %v1460, %v1459
  %v1635 = vpack.c.b16 %v1462, %v1461
  %v1636 = vpack.c.b16 %v1464, %v1463
  %v1637 = vpack.c.b16 %v1466, %v1465
  %v1638 = vpack.c.b16 %v1468, %v1467
  %v1639 = vpack.c.b16 %v1470, %v1469
  %v1640 = vpack.c.b16 %v1472, %v1471
  %v1641 = vpack.c.b16 %v1474, %v1473
  %v1642 = vpack.c.b16 %v1476, %v1475
  %v1643 = vpack.c.b16 %v1478, %v1477
  %v1644 = vpack.c.b16 %v1480, %v1479
  %v1645 = vpack.c.b16 %v1482, %v1481
  %v1646 = vpack.c.b16 %v1484, %v1483
  %v1647 = vpack.c.b16 %v1486, %v1485
  %v1648 = vpack.c.b16 %v1488, %v1487
  %v1649 = vpack.c.b16 %v1490, %v1489
  %v1650 = vpack.c.b16 %v1492, %v1491
  %v1651 = vpack.c.b16 %v1494, %v1493
  %v1652 = vpack.c.b16 %v1496, %v1495
  %v1653 = vpack.c.b16 %v1498, %v1497
  %v1654 = vpack.c.b16 %v1500, %v1499
  %v1655 = vpack.c.b16 %v1502, %v1501
  %v1656 = vpack.c.b16 %v1504, %v1503
  %v1657 = vpack.c.b16 %v1506, %v1505
  %v1658 = vpack.c.b16 %v1508, %v1507
  %v1659 = vpack.c.b16 %v1510, %v1509
  %v1660 = vpack.c.b16 %v1512, %v1511
  %v1661 = vpack.c.b16 %v1514, %v1513
  %v1662 = vpack.c.b16 %v1516, %v1515
  %v1663 = vpack.c.b16 %v1518, %v1517
  %v1664 = vpack.c.b16 %v1520, %v1519
  %v1665 = vpack.c.b16 %v1522, %v1521
  %v1666 = vpack.c.b16 %v1524, %v1523
  %v1667 = vpack.c.b16 %v1526, %v1525
  %v1668 = vpack.c.b16 %v1528, %v1527
  %v1669 = vpack.c.b16 %v1530, %v1529
  %v1670 = vpack.c.b16 %v1532, %v1531
  %v1671 = vpack.c.b16 %v1534, %v1533
  %v1672 = vpack.c.b16 %v1536, %v1535
  %v1673 = vpack.c.b16 %v1538, %v1537
  %v1674 = vpack.c.b16 %v1540, %v1539
  %v1675 = vpack.c.b16 %v1542, %v1541
  %v1676 = vpack.c.b16 %v1544, %v1543
  %v1677 = vpack.c.b16 %v1546, %v1545
  %v1678 = vpack.c.b16 %v1548, %v1547
  %v1679 = vpack.c.b16 %v1550, %v1549
  %v1680 = vpack.c.b16 %v1552, %v1551
  %1809 = vmatpush.bf16.msra.mxu0 %v1560
  %1810 = vmatpush.bf16.msra.mxu0 %v1559
  %1811 = vmatpush.bf16.msra.mxu0 %v1558
  %1812 = vmatpush.bf16.msra.mxu0 %v1557
  %1813 = vmatpush.bf16.msra.mxu0 %v1556
  %1814 = vmatpush.bf16.msra.mxu0 %v1555
  %1815 = vmatpush.bf16.msra.mxu0 %v1554
  %1816 = vmatpush.bf16.msra.mxu0 %v1553
  %1817 = vmatmul.bf16.gmra.mxu0 %v785
  %v1818 = vpop.f32.mrf.mxu0
  %v1819 = vadd.f32 0.0, %v1818
  %v1820 = vpop.f32.mrf.mxu0
  %v1821 = vadd.f32 0.0, %v1820
  %1822 = vmatmul.bf16.gmra.mxu0 %v801
  %v1823 = vpop.f32.mrf.mxu0
  %v1824 = vadd.f32 0.0, %v1823
  %v1825 = vpop.f32.mrf.mxu0
  %v1826 = vadd.f32 0.0, %v1825
  %1827 = vmatmul.bf16.gmra.mxu0 %v817
  %v1828 = vpop.f32.mrf.mxu0
  %v1829 = vadd.f32 0.0, %v1828
  %v1830 = vpop.f32.mrf.mxu0
  %v1831 = vadd.f32 0.0, %v1830
  %1832 = vmatmul.bf16.gmra.mxu0 %v833
  %v1833 = vpop.f32.mrf.mxu0
  %v1834 = vadd.f32 0.0, %v1833
  %v1835 = vpop.f32.mrf.mxu0
  %v1836 = vadd.f32 0.0, %v1835
  %1837 = vmatmul.bf16.gmra.mxu0 %v849
  %v1838 = vpop.f32.mrf.mxu0
  %v1839 = vadd.f32 0.0, %v1838
  %v1840 = vpop.f32.mrf.mxu0
  %v1841 = vadd.f32 0.0, %v1840
  %1842 = vmatmul.bf16.gmra.mxu0 %v865
  %v1843 = vpop.f32.mrf.mxu0
  %v1844 = vadd.f32 0.0, %v1843
  %v1845 = vpop.f32.mrf.mxu0
  %v1846 = vadd.f32 0.0, %v1845
  %1847 = vmatmul.bf16.gmra.mxu0 %v881
  %v1848 = vpop.f32.mrf.mxu0
  %v1849 = vadd.f32 0.0, %v1848
  %v1850 = vpop.f32.mrf.mxu0
  %v1851 = vadd.f32 0.0, %v1850
  %1852 = vmatmul.bf16.gmra.mxu0 %v897
  %v1853 = vpop.f32.mrf.mxu0
  %v1854 = vadd.f32 0.0, %v1853
  %v1855 = vpop.f32.mrf.mxu0
  %v1856 = vadd.f32 0.0, %v1855
  %1857 = vdwg.mxu0
  %1858 = vmatpush.bf16.msra.mxu0 %v1568
  %1859 = vmatpush.bf16.msra.mxu0 %v1567
  %1860 = vmatpush.bf16.msra.mxu0 %v1566
  %1861 = vmatpush.bf16.msra.mxu0 %v1565
  %1862 = vmatpush.bf16.msra.mxu0 %v1564
  %1863 = vmatpush.bf16.msra.mxu0 %v1563
  %1864 = vmatpush.bf16.msra.mxu0 %v1562
  %1865 = vmatpush.bf16.msra.mxu0 %v1561
  %1866 = vmatmul.bf16.gmra.mxu0 %v786
  %v1867 = vpop.f32.mrf.mxu0
  %v1868 = vadd.f32 %v1819, %v1867
  %v1869 = vpop.f32.mrf.mxu0
  %v1870 = vadd.f32 %v1821, %v1869
  %1871 = vmatmul.bf16.gmra.mxu0 %v802
  %v1872 = vpop.f32.mrf.mxu0
  %v1873 = vadd.f32 %v1824, %v1872
  %v1874 = vpop.f32.mrf.mxu0
  %v1875 = vadd.f32 %v1826, %v1874
  %1876 = vmatmul.bf16.gmra.mxu0 %v818
  %v1877 = vpop.f32.mrf.mxu0
  %v1878 = vadd.f32 %v1829, %v1877
  %v1879 = vpop.f32.mrf.mxu0
  %v1880 = vadd.f32 %v1831, %v1879
  %1881 = vmatmul.bf16.gmra.mxu0 %v834
  %v1882 = vpop.f32.mrf.mxu0
  %v1883 = vadd.f32 %v1834, %v1882
  %v1884 = vpop.f32.mrf.mxu0
  %v1885 = vadd.f32 %v1836, %v1884
  %1886 = vmatmul.bf16.gmra.mxu0 %v850
  %v1887 = vpop.f32.mrf.mxu0
  %v1888 = vadd.f32 %v1839, %v1887
  %v1889 = vpop.f32.mrf.mxu0
  %v1890 = vadd.f32 %v1841, %v1889
  %1891 = vmatmul.bf16.gmra.mxu0 %v866
  %v1892 = vpop.f32.mrf.mxu0
  %v1893 = vadd.f32 %v1844, %v1892
  %v1894 = vpop.f32.mrf.mxu0
  %v1895 = vadd.f32 %v1846, %v1894
  %1896 = vmatmul.bf16.gmra.mxu0 %v882
  %v1897 = vpop.f32.mrf.mxu0
  %v1898 = vadd.f32 %v1849, %v1897
  %v1899 = vpop.f32.mrf.mxu0
  %v1900 = vadd.f32 %v1851, %v1899
  %1901 = vmatmul.bf16.gmra.mxu0 %v898
  %v1902 = vpop.f32.mrf.mxu0
  %v1903 = vadd.f32 %v1854, %v1902
  %v1904 = vpop.f32.mrf.mxu0
  %v1905 = vadd.f32 %v1856, %v1904
  %1906 = vdwg.mxu0
  %1907 = vmatpush.bf16.msra.mxu0 %v1576
  %1908 = vmatpush.bf16.msra.mxu0 %v1575
  %1909 = vmatpush.bf16.msra.mxu0 %v1574
  %1910 = vmatpush.bf16.msra.mxu0 %v1573
  %1911 = vmatpush.bf16.msra.mxu0 %v1572
  %1912 = vmatpush.bf16.msra.mxu0 %v1571
  %1913 = vmatpush.bf16.msra.mxu0 %v1570
  %1914 = vmatpush.bf16.msra.mxu0 %v1569
  %1915 = vmatmul.bf16.gmra.mxu0 %v787
  %v1916 = vpop.f32.mrf.mxu0
  %v1917 = vadd.f32 %v1868, %v1916
  %v1918 = vpop.f32.mrf.mxu0
  %v1919 = vadd.f32 %v1870, %v1918
  %1920 = vmatmul.bf16.gmra.mxu0 %v803
  %v1921 = vpop.f32.mrf.mxu0
  %v1922 = vadd.f32 %v1873, %v1921
  %v1923 = vpop.f32.mrf.mxu0
  %v1924 = vadd.f32 %v1875, %v1923
  %1925 = vmatmul.bf16.gmra.mxu0 %v819
  %v1926 = vpop.f32.mrf.mxu0
  %v1927 = vadd.f32 %v1878, %v1926
  %v1928 = vpop.f32.mrf.mxu0
  %v1929 = vadd.f32 %v1880, %v1928
  %1930 = vmatmul.bf16.gmra.mxu0 %v835
  %v1931 = vpop.f32.mrf.mxu0
  %v1932 = vadd.f32 %v1883, %v1931
  %v1933 = vpop.f32.mrf.mxu0
  %v1934 = vadd.f32 %v1885, %v1933
  %1935 = vmatmul.bf16.gmra.mxu0 %v851
  %v1936 = vpop.f32.mrf.mxu0
  %v1937 = vadd.f32 %v1888, %v1936
  %v1938 = vpop.f32.mrf.mxu0
  %v1939 = vadd.f32 %v1890, %v1938
  %1940 = vmatmul.bf16.gmra.mxu0 %v867
  %v1941 = vpop.f32.mrf.mxu0
  %v1942 = vadd.f32 %v1893, %v1941
  %v1943 = vpop.f32.mrf.mxu0
  %v1944 = vadd.f32 %v1895, %v1943
  %1945 = vmatmul.bf16.gmra.mxu0 %v883
  %v1946 = vpop.f32.mrf.mxu0
  %v1947 = vadd.f32 %v1898, %v1946
  %v1948 = vpop.f32.mrf.mxu0
  %v1949 = vadd.f32 %v1900, %v1948
  %1950 = vmatmul.bf16.gmra.mxu0 %v899
  %v1951 = vpop.f32.mrf.mxu0
  %v1952 = vadd.f32 %v1903, %v1951
  %v1953 = vpop.f32.mrf.mxu0
  %v1954 = vadd.f32 %v1905, %v1953
  %1955 = vdwg.mxu0
  %1956 = vmatpush.bf16.msra.mxu0 %v1584
  %1957 = vmatpush.bf16.msra.mxu0 %v1583
  %1958 = vmatpush.bf16.msra.mxu0 %v1582
  %1959 = vmatpush.bf16.msra.mxu0 %v1581
  %1960 = vmatpush.bf16.msra.mxu0 %v1580
  %1961 = vmatpush.bf16.msra.mxu0 %v1579
  %1962 = vmatpush.bf16.msra.mxu0 %v1578
  %1963 = vmatpush.bf16.msra.mxu0 %v1577
  %1964 = vmatmul.bf16.gmra.mxu0 %v788
  %v1965 = vpop.f32.mrf.mxu0
  %v1966 = vadd.f32 %v1917, %v1965
  %v1967 = vpop.f32.mrf.mxu0
  %v1968 = vadd.f32 %v1919, %v1967
  %1969 = vmatmul.bf16.gmra.mxu0 %v804
  %v1970 = vpop.f32.mrf.mxu0
  %v1971 = vadd.f32 %v1922, %v1970
  %v1972 = vpop.f32.mrf.mxu0
  %v1973 = vadd.f32 %v1924, %v1972
  %1974 = vmatmul.bf16.gmra.mxu0 %v820
  %v1975 = vpop.f32.mrf.mxu0
  %v1976 = vadd.f32 %v1927, %v1975
  %v1977 = vpop.f32.mrf.mxu0
  %v1978 = vadd.f32 %v1929, %v1977
  %1979 = vmatmul.bf16.gmra.mxu0 %v836
  %v1980 = vpop.f32.mrf.mxu0
  %v1981 = vadd.f32 %v1932, %v1980
  %v1982 = vpop.f32.mrf.mxu0
  %v1983 = vadd.f32 %v1934, %v1982
  %1984 = vmatmul.bf16.gmra.mxu0 %v852
  %v1985 = vpop.f32.mrf.mxu0
  %v1986 = vadd.f32 %v1937, %v1985
  %v1987 = vpop.f32.mrf.mxu0
  %v1988 = vadd.f32 %v1939, %v1987
  %1989 = vmatmul.bf16.gmra.mxu0 %v868
  %v1990 = vpop.f32.mrf.mxu0
  %v1991 = vadd.f32 %v1942, %v1990
  %v1992 = vpop.f32.mrf.mxu0
  %v1993 = vadd.f32 %v1944, %v1992
  %1994 = vmatmul.bf16.gmra.mxu0 %v884
  %v1995 = vpop.f32.mrf.mxu0
  %v1996 = vadd.f32 %v1947, %v1995
  %v1997 = vpop.f32.mrf.mxu0
  %v1998 = vadd.f32 %v1949, %v1997
  %1999 = vmatmul.bf16.gmra.mxu0 %v900
  %v2000 = vpop.f32.mrf.mxu0
  %v2001 = vadd.f32 %v1952, %v2000
  %v2002 = vpop.f32.mrf.mxu0
  %v2003 = vadd.f32 %v1954, %v2002
  %2004 = vdwg.mxu0
  %2005 = vmatpush.bf16.msra.mxu0 %v1592
  %2006 = vmatpush.bf16.msra.mxu0 %v1591
  %2007 = vmatpush.bf16.msra.mxu0 %v1590
  %2008 = vmatpush.bf16.msra.mxu0 %v1589
  %2009 = vmatpush.bf16.msra.mxu0 %v1588
  %2010 = vmatpush.bf16.msra.mxu0 %v1587
  %2011 = vmatpush.bf16.msra.mxu0 %v1586
  %2012 = vmatpush.bf16.msra.mxu0 %v1585
  %2013 = vmatmul.bf16.gmra.mxu0 %v789
  %v2014 = vpop.f32.mrf.mxu0
  %v2015 = vadd.f32 %v1966, %v2014
  %v2016 = vpop.f32.mrf.mxu0
  %v2017 = vadd.f32 %v1968, %v2016
  %2018 = vmatmul.bf16.gmra.mxu0 %v805
  %v2019 = vpop.f32.mrf.mxu0
  %v2020 = vadd.f32 %v1971, %v2019
  %v2021 = vpop.f32.mrf.mxu0
  %v2022 = vadd.f32 %v1973, %v2021
  %2023 = vmatmul.bf16.gmra.mxu0 %v821
  %v2024 = vpop.f32.mrf.mxu0
  %v2025 = vadd.f32 %v1976, %v2024
  %v2026 = vpop.f32.mrf.mxu0
  %v2027 = vadd.f32 %v1978, %v2026
  %2028 = vmatmul.bf16.gmra.mxu0 %v837
  %v2029 = vpop.f32.mrf.mxu0
  %v2030 = vadd.f32 %v1981, %v2029
  %v2031 = vpop.f32.mrf.mxu0
  %v2032 = vadd.f32 %v1983, %v2031
  %2033 = vmatmul.bf16.gmra.mxu0 %v853
  %v2034 = vpop.f32.mrf.mxu0
  %v2035 = vadd.f32 %v1986, %v2034
  %v2036 = vpop.f32.mrf.mxu0
  %v2037 = vadd.f32 %v1988, %v2036
  %2038 = vmatmul.bf16.gmra.mxu0 %v869
  %v2039 = vpop.f32.mrf.mxu0
  %v2040 = vadd.f32 %v1991, %v2039
  %v2041 = vpop.f32.mrf.mxu0
  %v2042 = vadd.f32 %v1993, %v2041
  %2043 = vmatmul.bf16.gmra.mxu0 %v885
  %v2044 = vpop.f32.mrf.mxu0
  %v2045 = vadd.f32 %v1996, %v2044
  %v2046 = vpop.f32.mrf.mxu0
  %v2047 = vadd.f32 %v1998, %v2046
  %2048 = vmatmul.bf16.gmra.mxu0 %v901
  %v2049 = vpop.f32.mrf.mxu0
  %v2050 = vadd.f32 %v2001, %v2049
  %v2051 = vpop.f32.mrf.mxu0
  %v2052 = vadd.f32 %v2003, %v2051
  %2053 = vdwg.mxu0
  %2054 = vmatpush.bf16.msra.mxu0 %v1600
  %2055 = vmatpush.bf16.msra.mxu0 %v1599
  %2056 = vmatpush.bf16.msra.mxu0 %v1598
  %2057 = vmatpush.bf16.msra.mxu0 %v1597
  %2058 = vmatpush.bf16.msra.mxu0 %v1596
  %2059 = vmatpush.bf16.msra.mxu0 %v1595
  %2060 = vmatpush.bf16.msra.mxu0 %v1594
  %2061 = vmatpush.bf16.msra.mxu0 %v1593
  %2062 = vmatmul.bf16.gmra.mxu0 %v790
  %v2063 = vpop.f32.mrf.mxu0
  %v2064 = vadd.f32 %v2015, %v2063
  %v2065 = vpop.f32.mrf.mxu0
  %v2066 = vadd.f32 %v2017, %v2065
  %2067 = vmatmul.bf16.gmra.mxu0 %v806
  %v2068 = vpop.f32.mrf.mxu0
  %v2069 = vadd.f32 %v2020, %v2068
  %v2070 = vpop.f32.mrf.mxu0
  %v2071 = vadd.f32 %v2022, %v2070
  %2072 = vmatmul.bf16.gmra.mxu0 %v822
  %v2073 = vpop.f32.mrf.mxu0
  %v2074 = vadd.f32 %v2025, %v2073
  %v2075 = vpop.f32.mrf.mxu0
  %v2076 = vadd.f32 %v2027, %v2075
  %2077 = vmatmul.bf16.gmra.mxu0 %v838
  %v2078 = vpop.f32.mrf.mxu0
  %v2079 = vadd.f32 %v2030, %v2078
  %v2080 = vpop.f32.mrf.mxu0
  %v2081 = vadd.f32 %v2032, %v2080
  %2082 = vmatmul.bf16.gmra.mxu0 %v854
  %v2083 = vpop.f32.mrf.mxu0
  %v2084 = vadd.f32 %v2035, %v2083
  %v2085 = vpop.f32.mrf.mxu0
  %v2086 = vadd.f32 %v2037, %v2085
  %2087 = vmatmul.bf16.gmra.mxu0 %v870
  %v2088 = vpop.f32.mrf.mxu0
  %v2089 = vadd.f32 %v2040, %v2088
  %v2090 = vpop.f32.mrf.mxu0
  %v2091 = vadd.f32 %v2042, %v2090
  %2092 = vmatmul.bf16.gmra.mxu0 %v886
  %v2093 = vpop.f32.mrf.mxu0
  %v2094 = vadd.f32 %v2045, %v2093
  %v2095 = vpop.f32.mrf.mxu0
  %v2096 = vadd.f32 %v2047, %v2095
  %2097 = vmatmul.bf16.gmra.mxu0 %v902
  %v2098 = vpop.f32.mrf.mxu0
  %v2099 = vadd.f32 %v2050, %v2098
  %v2100 = vpop.f32.mrf.mxu0
  %v2101 = vadd.f32 %v2052, %v2100
  %2102 = vdwg.mxu0
  %2103 = vmatpush.bf16.msra.mxu0 %v1608
  %2104 = vmatpush.bf16.msra.mxu0 %v1607
  %2105 = vmatpush.bf16.msra.mxu0 %v1606
  %2106 = vmatpush.bf16.msra.mxu0 %v1605
  %2107 = vmatpush.bf16.msra.mxu0 %v1604
  %2108 = vmatpush.bf16.msra.mxu0 %v1603
  %2109 = vmatpush.bf16.msra.mxu0 %v1602
  %2110 = vmatpush.bf16.msra.mxu0 %v1601
  %2111 = vmatmul.bf16.gmra.mxu0 %v791
  %v2112 = vpop.f32.mrf.mxu0
  %v2113 = vadd.f32 %v2064, %v2112
  %v2114 = vpop.f32.mrf.mxu0
  %v2115 = vadd.f32 %v2066, %v2114
  %2116 = vmatmul.bf16.gmra.mxu0 %v807
  %v2117 = vpop.f32.mrf.mxu0
  %v2118 = vadd.f32 %v2069, %v2117
  %v2119 = vpop.f32.mrf.mxu0
  %v2120 = vadd.f32 %v2071, %v2119
  %2121 = vmatmul.bf16.gmra.mxu0 %v823
  %v2122 = vpop.f32.mrf.mxu0
  %v2123 = vadd.f32 %v2074, %v2122
  %v2124 = vpop.f32.mrf.mxu0
  %v2125 = vadd.f32 %v2076, %v2124
  %2126 = vmatmul.bf16.gmra.mxu0 %v839
  %v2127 = vpop.f32.mrf.mxu0
  %v2128 = vadd.f32 %v2079, %v2127
  %v2129 = vpop.f32.mrf.mxu0
  %v2130 = vadd.f32 %v2081, %v2129
  %2131 = vmatmul.bf16.gmra.mxu0 %v855
  %v2132 = vpop.f32.mrf.mxu0
  %v2133 = vadd.f32 %v2084, %v2132
  %v2134 = vpop.f32.mrf.mxu0
  %v2135 = vadd.f32 %v2086, %v2134
  %2136 = vmatmul.bf16.gmra.mxu0 %v871
  %v2137 = vpop.f32.mrf.mxu0
  %v2138 = vadd.f32 %v2089, %v2137
  %v2139 = vpop.f32.mrf.mxu0
  %v2140 = vadd.f32 %v2091, %v2139
  %2141 = vmatmul.bf16.gmra.mxu0 %v887
  %v2142 = vpop.f32.mrf.mxu0
  %v2143 = vadd.f32 %v2094, %v2142
  %v2144 = vpop.f32.mrf.mxu0
  %v2145 = vadd.f32 %v2096, %v2144
  %2146 = vmatmul.bf16.gmra.mxu0 %v903
  %v2147 = vpop.f32.mrf.mxu0
  %v2148 = vadd.f32 %v2099, %v2147
  %v2149 = vpop.f32.mrf.mxu0
  %v2150 = vadd.f32 %v2101, %v2149
  %2151 = vdwg.mxu0
  %2152 = vmatpush.bf16.msra.mxu0 %v1616
  %2153 = vmatpush.bf16.msra.mxu0 %v1615
  %2154 = vmatpush.bf16.msra.mxu0 %v1614
  %2155 = vmatpush.bf16.msra.mxu0 %v1613
  %2156 = vmatpush.bf16.msra.mxu0 %v1612
  %2157 = vmatpush.bf16.msra.mxu0 %v1611
  %2158 = vmatpush.bf16.msra.mxu0 %v1610
  %2159 = vmatpush.bf16.msra.mxu0 %v1609
  %2160 = vmatmul.bf16.gmra.mxu0 %v792
  %v2161 = vpop.f32.mrf.mxu0
  %v2162 = vadd.f32 %v2113, %v2161
  %v2163 = vpop.f32.mrf.mxu0
  %v2164 = vadd.f32 %v2115, %v2163
  %2165 = vmatmul.bf16.gmra.mxu0 %v808
  %v2166 = vpop.f32.mrf.mxu0
  %v2167 = vadd.f32 %v2118, %v2166
  %v2168 = vpop.f32.mrf.mxu0
  %v2169 = vadd.f32 %v2120, %v2168
  %2170 = vmatmul.bf16.gmra.mxu0 %v824
  %v2171 = vpop.f32.mrf.mxu0
  %v2172 = vadd.f32 %v2123, %v2171
  %v2173 = vpop.f32.mrf.mxu0
  %v2174 = vadd.f32 %v2125, %v2173
  %2175 = vmatmul.bf16.gmra.mxu0 %v840
  %v2176 = vpop.f32.mrf.mxu0
  %v2177 = vadd.f32 %v2128, %v2176
  %v2178 = vpop.f32.mrf.mxu0
  %v2179 = vadd.f32 %v2130, %v2178
  %2180 = vmatmul.bf16.gmra.mxu0 %v856
  %v2181 = vpop.f32.mrf.mxu0
  %v2182 = vadd.f32 %v2133, %v2181
  %v2183 = vpop.f32.mrf.mxu0
  %v2184 = vadd.f32 %v2135, %v2183
  %2185 = vmatmul.bf16.gmra.mxu0 %v872
  %v2186 = vpop.f32.mrf.mxu0
  %v2187 = vadd.f32 %v2138, %v2186
  %v2188 = vpop.f32.mrf.mxu0
  %v2189 = vadd.f32 %v2140, %v2188
  %2190 = vmatmul.bf16.gmra.mxu0 %v888
  %v2191 = vpop.f32.mrf.mxu0
  %v2192 = vadd.f32 %v2143, %v2191
  %v2193 = vpop.f32.mrf.mxu0
  %v2194 = vadd.f32 %v2145, %v2193
  %2195 = vmatmul.bf16.gmra.mxu0 %v904
  %v2196 = vpop.f32.mrf.mxu0
  %v2197 = vadd.f32 %v2148, %v2196
  %v2198 = vpop.f32.mrf.mxu0
  %v2199 = vadd.f32 %v2150, %v2198
  %2200 = vdwg.mxu0
  %2201 = vmatpush.bf16.msra.mxu0 %v1624
  %2202 = vmatpush.bf16.msra.mxu0 %v1623
  %2203 = vmatpush.bf16.msra.mxu0 %v1622
  %2204 = vmatpush.bf16.msra.mxu0 %v1621
  %2205 = vmatpush.bf16.msra.mxu0 %v1620
  %2206 = vmatpush.bf16.msra.mxu0 %v1619
  %2207 = vmatpush.bf16.msra.mxu0 %v1618
  %2208 = vmatpush.bf16.msra.mxu0 %v1617
  %2209 = vmatmul.bf16.gmra.mxu0 %v793
  %v2210 = vpop.f32.mrf.mxu0
  %v2211 = vadd.f32 %v2162, %v2210
  %v2212 = vpop.f32.mrf.mxu0
  %v2213 = vadd.f32 %v2164, %v2212
  %2214 = vmatmul.bf16.gmra.mxu0 %v809
  %v2215 = vpop.f32.mrf.mxu0
  %v2216 = vadd.f32 %v2167, %v2215
  %v2217 = vpop.f32.mrf.mxu0
  %v2218 = vadd.f32 %v2169, %v2217
  %2219 = vmatmul.bf16.gmra.mxu0 %v825
  %v2220 = vpop.f32.mrf.mxu0
  %v2221 = vadd.f32 %v2172, %v2220
  %v2222 = vpop.f32.mrf.mxu0
  %v2223 = vadd.f32 %v2174, %v2222
  %2224 = vmatmul.bf16.gmra.mxu0 %v841
  %v2225 = vpop.f32.mrf.mxu0
  %v2226 = vadd.f32 %v2177, %v2225
  %v2227 = vpop.f32.mrf.mxu0
  %v2228 = vadd.f32 %v2179, %v2227
  %2229 = vmatmul.bf16.gmra.mxu0 %v857
  %v2230 = vpop.f32.mrf.mxu0
  %v2231 = vadd.f32 %v2182, %v2230
  %v2232 = vpop.f32.mrf.mxu0
  %v2233 = vadd.f32 %v2184, %v2232
  %2234 = vmatmul.bf16.gmra.mxu0 %v873
  %v2235 = vpop.f32.mrf.mxu0
  %v2236 = vadd.f32 %v2187, %v2235
  %v2237 = vpop.f32.mrf.mxu0
  %v2238 = vadd.f32 %v2189, %v2237
  %2239 = vmatmul.bf16.gmra.mxu0 %v889
  %v2240 = vpop.f32.mrf.mxu0
  %v2241 = vadd.f32 %v2192, %v2240
  %v2242 = vpop.f32.mrf.mxu0
  %v2243 = vadd.f32 %v2194, %v2242
  %2244 = vmatmul.bf16.gmra.mxu0 %v905
  %v2245 = vpop.f32.mrf.mxu0
  %v2246 = vadd.f32 %v2197, %v2245
  %v2247 = vpop.f32.mrf.mxu0
  %v2248 = vadd.f32 %v2199, %v2247
  %2249 = vdwg.mxu0
  %2250 = vmatpush.bf16.msra.mxu0 %v1632
  %2251 = vmatpush.bf16.msra.mxu0 %v1631
  %2252 = vmatpush.bf16.msra.mxu0 %v1630
  %2253 = vmatpush.bf16.msra.mxu0 %v1629
  %2254 = vmatpush.bf16.msra.mxu0 %v1628
  %2255 = vmatpush.bf16.msra.mxu0 %v1627
  %2256 = vmatpush.bf16.msra.mxu0 %v1626
  %2257 = vmatpush.bf16.msra.mxu0 %v1625
  %2258 = vmatmul.bf16.gmra.mxu0 %v794
  %v2259 = vpop.f32.mrf.mxu0
  %v2260 = vadd.f32 %v2211, %v2259
  %v2261 = vpop.f32.mrf.mxu0
  %v2262 = vadd.f32 %v2213, %v2261
  %2263 = vmatmul.bf16.gmra.mxu0 %v810
  %v2264 = vpop.f32.mrf.mxu0
  %v2265 = vadd.f32 %v2216, %v2264
  %v2266 = vpop.f32.mrf.mxu0
  %v2267 = vadd.f32 %v2218, %v2266
  %2268 = vmatmul.bf16.gmra.mxu0 %v826
  %v2269 = vpop.f32.mrf.mxu0
  %v2270 = vadd.f32 %v2221, %v2269
  %v2271 = vpop.f32.mrf.mxu0
  %v2272 = vadd.f32 %v2223, %v2271
  %2273 = vmatmul.bf16.gmra.mxu0 %v842
  %v2274 = vpop.f32.mrf.mxu0
  %v2275 = vadd.f32 %v2226, %v2274
  %v2276 = vpop.f32.mrf.mxu0
  %v2277 = vadd.f32 %v2228, %v2276
  %2278 = vmatmul.bf16.gmra.mxu0 %v858
  %v2279 = vpop.f32.mrf.mxu0
  %v2280 = vadd.f32 %v2231, %v2279
  %v2281 = vpop.f32.mrf.mxu0
  %v2282 = vadd.f32 %v2233, %v2281
  %2283 = vmatmul.bf16.gmra.mxu0 %v874
  %v2284 = vpop.f32.mrf.mxu0
  %v2285 = vadd.f32 %v2236, %v2284
  %v2286 = vpop.f32.mrf.mxu0
  %v2287 = vadd.f32 %v2238, %v2286
  %2288 = vmatmul.bf16.gmra.mxu0 %v890
  %v2289 = vpop.f32.mrf.mxu0
  %v2290 = vadd.f32 %v2241, %v2289
  %v2291 = vpop.f32.mrf.mxu0
  %v2292 = vadd.f32 %v2243, %v2291
  %2293 = vmatmul.bf16.gmra.mxu0 %v906
  %v2294 = vpop.f32.mrf.mxu0
  %v2295 = vadd.f32 %v2246, %v2294
  %v2296 = vpop.f32.mrf.mxu0
  %v2297 = vadd.f32 %v2248, %v2296
  %2298 = vdwg.mxu0
  %2299 = vmatpush.bf16.msra.mxu0 %v1640
  %2300 = vmatpush.bf16.msra.mxu0 %v1639
  %2301 = vmatpush.bf16.msra.mxu0 %v1638
  %2302 = vmatpush.bf16.msra.mxu0 %v1637
  %2303 = vmatpush.bf16.msra.mxu0 %v1636
  %2304 = vmatpush.bf16.msra.mxu0 %v1635
  %2305 = vmatpush.bf16.msra.mxu0 %v1634
  %2306 = vmatpush.bf16.msra.mxu0 %v1633
  %2307 = vmatmul.bf16.gmra.mxu0 %v795
  %v2308 = vpop.f32.mrf.mxu0
  %v2309 = vadd.f32 %v2260, %v2308
  %v2310 = vpop.f32.mrf.mxu0
  %v2311 = vadd.f32 %v2262, %v2310
  %2312 = vmatmul.bf16.gmra.mxu0 %v811
  %v2313 = vpop.f32.mrf.mxu0
  %v2314 = vadd.f32 %v2265, %v2313
  %v2315 = vpop.f32.mrf.mxu0
  %v2316 = vadd.f32 %v2267, %v2315
  %2317 = vmatmul.bf16.gmra.mxu0 %v827
  %v2318 = vpop.f32.mrf.mxu0
  %v2319 = vadd.f32 %v2270, %v2318
  %v2320 = vpop.f32.mrf.mxu0
  %v2321 = vadd.f32 %v2272, %v2320
  %2322 = vmatmul.bf16.gmra.mxu0 %v843
  %v2323 = vpop.f32.mrf.mxu0
  %v2324 = vadd.f32 %v2275, %v2323
  %v2325 = vpop.f32.mrf.mxu0
  %v2326 = vadd.f32 %v2277, %v2325
  %2327 = vmatmul.bf16.gmra.mxu0 %v859
  %v2328 = vpop.f32.mrf.mxu0
  %v2329 = vadd.f32 %v2280, %v2328
  %v2330 = vpop.f32.mrf.mxu0
  %v2331 = vadd.f32 %v2282, %v2330
  %2332 = vmatmul.bf16.gmra.mxu0 %v875
  %v2333 = vpop.f32.mrf.mxu0
  %v2334 = vadd.f32 %v2285, %v2333
  %v2335 = vpop.f32.mrf.mxu0
  %v2336 = vadd.f32 %v2287, %v2335
  %2337 = vmatmul.bf16.gmra.mxu0 %v891
  %v2338 = vpop.f32.mrf.mxu0
  %v2339 = vadd.f32 %v2290, %v2338
  %v2340 = vpop.f32.mrf.mxu0
  %v2341 = vadd.f32 %v2292, %v2340
  %2342 = vmatmul.bf16.gmra.mxu0 %v907
  %v2343 = vpop.f32.mrf.mxu0
  %v2344 = vadd.f32 %v2295, %v2343
  %v2345 = vpop.f32.mrf.mxu0
  %v2346 = vadd.f32 %v2297, %v2345
  %2347 = vdwg.mxu0
  %2348 = vmatpush.bf16.msra.mxu0 %v1648
  %2349 = vmatpush.bf16.msra.mxu0 %v1647
  %2350 = vmatpush.bf16.msra.mxu0 %v1646
  %2351 = vmatpush.bf16.msra.mxu0 %v1645
  %2352 = vmatpush.bf16.msra.mxu0 %v1644
  %2353 = vmatpush.bf16.msra.mxu0 %v1643
  %2354 = vmatpush.bf16.msra.mxu0 %v1642
  %2355 = vmatpush.bf16.msra.mxu0 %v1641
  %2356 = vmatmul.bf16.gmra.mxu0 %v796
  %v2357 = vpop.f32.mrf.mxu0
  %v2358 = vadd.f32 %v2309, %v2357
  %v2359 = vpop.f32.mrf.mxu0
  %v2360 = vadd.f32 %v2311, %v2359
  %2361 = vmatmul.bf16.gmra.mxu0 %v812
  %v2362 = vpop.f32.mrf.mxu0
  %v2363 = vadd.f32 %v2314, %v2362
  %v2364 = vpop.f32.mrf.mxu0
  %v2365 = vadd.f32 %v2316, %v2364
  %2366 = vmatmul.bf16.gmra.mxu0 %v828
  %v2367 = vpop.f32.mrf.mxu0
  %v2368 = vadd.f32 %v2319, %v2367
  %v2369 = vpop.f32.mrf.mxu0
  %v2370 = vadd.f32 %v2321, %v2369
  %2371 = vmatmul.bf16.gmra.mxu0 %v844
  %v2372 = vpop.f32.mrf.mxu0
  %v2373 = vadd.f32 %v2324, %v2372
  %v2374 = vpop.f32.mrf.mxu0
  %v2375 = vadd.f32 %v2326, %v2374
  %2376 = vmatmul.bf16.gmra.mxu0 %v860
  %v2377 = vpop.f32.mrf.mxu0
  %v2378 = vadd.f32 %v2329, %v2377
  %v2379 = vpop.f32.mrf.mxu0
  %v2380 = vadd.f32 %v2331, %v2379
  %2381 = vmatmul.bf16.gmra.mxu0 %v876
  %v2382 = vpop.f32.mrf.mxu0
  %v2383 = vadd.f32 %v2334, %v2382
  %v2384 = vpop.f32.mrf.mxu0
  %v2385 = vadd.f32 %v2336, %v2384
  %2386 = vmatmul.bf16.gmra.mxu0 %v892
  %v2387 = vpop.f32.mrf.mxu0
  %v2388 = vadd.f32 %v2339, %v2387
  %v2389 = vpop.f32.mrf.mxu0
  %v2390 = vadd.f32 %v2341, %v2389
  %2391 = vmatmul.bf16.gmra.mxu0 %v908
  %v2392 = vpop.f32.mrf.mxu0
  %v2393 = vadd.f32 %v2344, %v2392
  %v2394 = vpop.f32.mrf.mxu0
  %v2395 = vadd.f32 %v2346, %v2394
  %2396 = vdwg.mxu0
  %2397 = vmatpush.bf16.msra.mxu0 %v1656
  %2398 = vmatpush.bf16.msra.mxu0 %v1655
  %2399 = vmatpush.bf16.msra.mxu0 %v1654
  %2400 = vmatpush.bf16.msra.mxu0 %v1653
  %2401 = vmatpush.bf16.msra.mxu0 %v1652
  %2402 = vmatpush.bf16.msra.mxu0 %v1651
  %2403 = vmatpush.bf16.msra.mxu0 %v1650
  %2404 = vmatpush.bf16.msra.mxu0 %v1649
  %2405 = vmatmul.bf16.gmra.mxu0 %v797
  %v2406 = vpop.f32.mrf.mxu0
  %v2407 = vadd.f32 %v2358, %v2406
  %v2408 = vpop.f32.mrf.mxu0
  %v2409 = vadd.f32 %v2360, %v2408
  %2410 = vmatmul.bf16.gmra.mxu0 %v813
  %v2411 = vpop.f32.mrf.mxu0
  %v2412 = vadd.f32 %v2363, %v2411
  %v2413 = vpop.f32.mrf.mxu0
  %v2414 = vadd.f32 %v2365, %v2413
  %2415 = vmatmul.bf16.gmra.mxu0 %v829
  %v2416 = vpop.f32.mrf.mxu0
  %v2417 = vadd.f32 %v2368, %v2416
  %v2418 = vpop.f32.mrf.mxu0
  %v2419 = vadd.f32 %v2370, %v2418
  %2420 = vmatmul.bf16.gmra.mxu0 %v845
  %v2421 = vpop.f32.mrf.mxu0
  %v2422 = vadd.f32 %v2373, %v2421
  %v2423 = vpop.f32.mrf.mxu0
  %v2424 = vadd.f32 %v2375, %v2423
  %2425 = vmatmul.bf16.gmra.mxu0 %v861
  %v2426 = vpop.f32.mrf.mxu0
  %v2427 = vadd.f32 %v2378, %v2426
  %v2428 = vpop.f32.mrf.mxu0
  %v2429 = vadd.f32 %v2380, %v2428
  %2430 = vmatmul.bf16.gmra.mxu0 %v877
  %v2431 = vpop.f32.mrf.mxu0
  %v2432 = vadd.f32 %v2383, %v2431
  %v2433 = vpop.f32.mrf.mxu0
  %v2434 = vadd.f32 %v2385, %v2433
  %2435 = vmatmul.bf16.gmra.mxu0 %v893
  %v2436 = vpop.f32.mrf.mxu0
  %v2437 = vadd.f32 %v2388, %v2436
  %v2438 = vpop.f32.mrf.mxu0
  %v2439 = vadd.f32 %v2390, %v2438
  %2440 = vmatmul.bf16.gmra.mxu0 %v909
  %v2441 = vpop.f32.mrf.mxu0
  %v2442 = vadd.f32 %v2393, %v2441
  %v2443 = vpop.f32.mrf.mxu0
  %v2444 = vadd.f32 %v2395, %v2443
  %2445 = vdwg.mxu0
  %2446 = vmatpush.bf16.msra.mxu0 %v1664
  %2447 = vmatpush.bf16.msra.mxu0 %v1663
  %2448 = vmatpush.bf16.msra.mxu0 %v1662
  %2449 = vmatpush.bf16.msra.mxu0 %v1661
  %2450 = vmatpush.bf16.msra.mxu0 %v1660
  %2451 = vmatpush.bf16.msra.mxu0 %v1659
  %2452 = vmatpush.bf16.msra.mxu0 %v1658
  %2453 = vmatpush.bf16.msra.mxu0 %v1657
  %2454 = vmatmul.bf16.gmra.mxu0 %v798
  %v2455 = vpop.f32.mrf.mxu0
  %v2456 = vadd.f32 %v2407, %v2455
  %v2457 = vpop.f32.mrf.mxu0
  %v2458 = vadd.f32 %v2409, %v2457
  %2459 = vmatmul.bf16.gmra.mxu0 %v814
  %v2460 = vpop.f32.mrf.mxu0
  %v2461 = vadd.f32 %v2412, %v2460
  %v2462 = vpop.f32.mrf.mxu0
  %v2463 = vadd.f32 %v2414, %v2462
  %2464 = vmatmul.bf16.gmra.mxu0 %v830
  %v2465 = vpop.f32.mrf.mxu0
  %v2466 = vadd.f32 %v2417, %v2465
  %v2467 = vpop.f32.mrf.mxu0
  %v2468 = vadd.f32 %v2419, %v2467
  %2469 = vmatmul.bf16.gmra.mxu0 %v846
  %v2470 = vpop.f32.mrf.mxu0
  %v2471 = vadd.f32 %v2422, %v2470
  %v2472 = vpop.f32.mrf.mxu0
  %v2473 = vadd.f32 %v2424, %v2472
  %2474 = vmatmul.bf16.gmra.mxu0 %v862
  %v2475 = vpop.f32.mrf.mxu0
  %v2476 = vadd.f32 %v2427, %v2475
  %v2477 = vpop.f32.mrf.mxu0
  %v2478 = vadd.f32 %v2429, %v2477
  %2479 = vmatmul.bf16.gmra.mxu0 %v878
  %v2480 = vpop.f32.mrf.mxu0
  %v2481 = vadd.f32 %v2432, %v2480
  %v2482 = vpop.f32.mrf.mxu0
  %v2483 = vadd.f32 %v2434, %v2482
  %2484 = vmatmul.bf16.gmra.mxu0 %v894
  %v2485 = vpop.f32.mrf.mxu0
  %v2486 = vadd.f32 %v2437, %v2485
  %v2487 = vpop.f32.mrf.mxu0
  %v2488 = vadd.f32 %v2439, %v2487
  %2489 = vmatmul.bf16.gmra.mxu0 %v910
  %v2490 = vpop.f32.mrf.mxu0
  %v2491 = vadd.f32 %v2442, %v2490
  %v2492 = vpop.f32.mrf.mxu0
  %v2493 = vadd.f32 %v2444, %v2492
  %2494 = vdwg.mxu0
  %2495 = vmatpush.bf16.msra.mxu0 %v1672
  %2496 = vmatpush.bf16.msra.mxu0 %v1671
  %2497 = vmatpush.bf16.msra.mxu0 %v1670
  %2498 = vmatpush.bf16.msra.mxu0 %v1669
  %2499 = vmatpush.bf16.msra.mxu0 %v1668
  %2500 = vmatpush.bf16.msra.mxu0 %v1667
  %2501 = vmatpush.bf16.msra.mxu0 %v1666
  %2502 = vmatpush.bf16.msra.mxu0 %v1665
  %2503 = vmatmul.bf16.gmra.mxu0 %v799
  %v2504 = vpop.f32.mrf.mxu0
  %v2505 = vadd.f32 %v2456, %v2504
  %v2506 = vpop.f32.mrf.mxu0
  %v2507 = vadd.f32 %v2458, %v2506
  %2508 = vmatmul.bf16.gmra.mxu0 %v815
  %v2509 = vpop.f32.mrf.mxu0
  %v2510 = vadd.f32 %v2461, %v2509
  %v2511 = vpop.f32.mrf.mxu0
  %v2512 = vadd.f32 %v2463, %v2511
  %2513 = vmatmul.bf16.gmra.mxu0 %v831
  %v2514 = vpop.f32.mrf.mxu0
  %v2515 = vadd.f32 %v2466, %v2514
  %v2516 = vpop.f32.mrf.mxu0
  %v2517 = vadd.f32 %v2468, %v2516
  %2518 = vmatmul.bf16.gmra.mxu0 %v847
  %v2519 = vpop.f32.mrf.mxu0
  %v2520 = vadd.f32 %v2471, %v2519
  %v2521 = vpop.f32.mrf.mxu0
  %v2522 = vadd.f32 %v2473, %v2521
  %2523 = vmatmul.bf16.gmra.mxu0 %v863
  %v2524 = vpop.f32.mrf.mxu0
  %v2525 = vadd.f32 %v2476, %v2524
  %v2526 = vpop.f32.mrf.mxu0
  %v2527 = vadd.f32 %v2478, %v2526
  %2528 = vmatmul.bf16.gmra.mxu0 %v879
  %v2529 = vpop.f32.mrf.mxu0
  %v2530 = vadd.f32 %v2481, %v2529
  %v2531 = vpop.f32.mrf.mxu0
  %v2532 = vadd.f32 %v2483, %v2531
  %2533 = vmatmul.bf16.gmra.mxu0 %v895
  %v2534 = vpop.f32.mrf.mxu0
  %v2535 = vadd.f32 %v2486, %v2534
  %v2536 = vpop.f32.mrf.mxu0
  %v2537 = vadd.f32 %v2488, %v2536
  %2538 = vmatmul.bf16.gmra.mxu0 %v911
  %v2539 = vpop.f32.mrf.mxu0
  %v2540 = vadd.f32 %v2491, %v2539
  %v2541 = vpop.f32.mrf.mxu0
  %v2542 = vadd.f32 %v2493, %v2541
  %2543 = vdwg.mxu0
  %2544 = vmatpush.bf16.msra.mxu0 %v1680
  %2545 = vmatpush.bf16.msra.mxu0 %v1679
  %2546 = vmatpush.bf16.msra.mxu0 %v1678
  %2547 = vmatpush.bf16.msra.mxu0 %v1677
  %2548 = vmatpush.bf16.msra.mxu0 %v1676
  %2549 = vmatpush.bf16.msra.mxu0 %v1675
  %2550 = vmatpush.bf16.msra.mxu0 %v1674
  %2551 = vmatpush.bf16.msra.mxu0 %v1673
  %2552 = vmatmul.bf16.gmra.mxu0 %v800
  %v2553 = vpop.f32.mrf.mxu0
  %v2554 = vadd.f32 %v2505, %v2553
  %v2555 = vpop.f32.mrf.mxu0
  %v2556 = vadd.f32 %v2507, %v2555
  %2557 = vmatmul.bf16.gmra.mxu0 %v816
  %v2558 = vpop.f32.mrf.mxu0
  %v2559 = vadd.f32 %v2510, %v2558
  %v2560 = vpop.f32.mrf.mxu0
  %v2561 = vadd.f32 %v2512, %v2560
  %2562 = vmatmul.bf16.gmra.mxu0 %v832
  %v2563 = vpop.f32.mrf.mxu0
  %v2564 = vadd.f32 %v2515, %v2563
  %v2565 = vpop.f32.mrf.mxu0
  %v2566 = vadd.f32 %v2517, %v2565
  %2567 = vmatmul.bf16.gmra.mxu0 %v848
  %v2568 = vpop.f32.mrf.mxu0
  %v2569 = vadd.f32 %v2520, %v2568
  %v2570 = vpop.f32.mrf.mxu0
  %v2571 = vadd.f32 %v2522, %v2570
  %2572 = vmatmul.bf16.gmra.mxu0 %v864
  %v2573 = vpop.f32.mrf.mxu0
  %v2574 = vadd.f32 %v2525, %v2573
  %v2575 = vpop.f32.mrf.mxu0
  %v2576 = vadd.f32 %v2527, %v2575
  %2577 = vmatmul.bf16.gmra.mxu0 %v880
  %v2578 = vpop.f32.mrf.mxu0
  %v2579 = vadd.f32 %v2530, %v2578
  %v2580 = vpop.f32.mrf.mxu0
  %v2581 = vadd.f32 %v2532, %v2580
  %2582 = vmatmul.bf16.gmra.mxu0 %v896
  %v2583 = vpop.f32.mrf.mxu0
  %v2584 = vadd.f32 %v2535, %v2583
  %v2585 = vpop.f32.mrf.mxu0
  %v2586 = vadd.f32 %v2537, %v2585
  %2587 = vmatmul.bf16.gmra.mxu0 %v912
  %v2588 = vpop.f32.mrf.mxu0
  %v2589 = vadd.f32 %v2540, %v2588
  %v2590 = vpop.f32.mrf.mxu0
  %v2591 = vadd.f32 %v2542, %v2590
  %2592 = vdwg.mxu0
  %v2593 = vadd.f32 %v2554, %v2556
  %v2594 = vadd.f32 %v2593, %v2559
  %v2595 = vadd.f32 %v2594, %v2561
  %v2596 = vadd.f32 %v2595, %v2564
  %v2597 = vadd.f32 %v2596, %v2566
  %v2598 = vadd.f32 %v2597, %v2569
  %v2599 = vadd.f32 %v2598, %v2571
  %v2600 = vadd.f32 %v2599, %v2574
  %v2601 = vadd.f32 %v2600, %v2576
  %v2602 = vadd.f32 %v2601, %v2579
  %v2603 = vadd.f32 %v2602, %v2581
  %v2604 = vadd.f32 %v2603, %v2584
  %v2605 = vadd.f32 %v2604, %v2586
  %v2606 = vadd.f32 %v2605, %v2589
  %v2607 = vadd.f32 %v2606, %v2591
  %v2608 = vrot.slane %v2607, 4
  %v2609 = vadd.f32 %v2607, %v2608
  %v2610 = vrot.slane %v2609, 2
  %v2611 = vadd.f32 %v2609, %v2610
  %v2612 = vrot.slane %v2611, 1
  %v2613 = vadd.f32 %v2611, %v2612
  %v2614 = vrcp.pop 128.0
  %v2615 = vmul.f32 128.0, %v2614
  %v2616 = vsub.f32 1.0, %v2615
  %v2617 = vmul.f32 %v2614, %v2616
  %v2618 = vadd.f32 %v2614, %v2617
  %vm2619 = vweird.f32 %v2614
  %v2620 = vsel %vm2619, %v2614, %v2618
  %v2621 = vmul.f32 %v2613, %v2620
  %v2622 = vsub.f32 %v2554, %v2621
  %v2623 = vsub.f32 %v2556, %v2621
  %v2624 = vsub.f32 %v2559, %v2621
  %v2625 = vsub.f32 %v2561, %v2621
  %v2626 = vsub.f32 %v2564, %v2621
  %v2627 = vsub.f32 %v2566, %v2621
  %v2628 = vsub.f32 %v2569, %v2621
  %v2629 = vsub.f32 %v2571, %v2621
  %v2630 = vsub.f32 %v2574, %v2621
  %v2631 = vsub.f32 %v2576, %v2621
  %v2632 = vsub.f32 %v2579, %v2621
  %v2633 = vsub.f32 %v2581, %v2621
  %v2634 = vsub.f32 %v2584, %v2621
  %v2635 = vsub.f32 %v2586, %v2621
  %v2636 = vsub.f32 %v2589, %v2621
  %v2637 = vsub.f32 %v2591, %v2621
  %v2638 = vmul.f32 %v2622, %v2622
  %v2639 = vmul.f32 %v2623, %v2623
  %v2640 = vmul.f32 %v2624, %v2624
  %v2641 = vmul.f32 %v2625, %v2625
  %v2642 = vmul.f32 %v2626, %v2626
  %v2643 = vmul.f32 %v2627, %v2627
  %v2644 = vmul.f32 %v2628, %v2628
  %v2645 = vmul.f32 %v2629, %v2629
  %v2646 = vmul.f32 %v2630, %v2630
  %v2647 = vmul.f32 %v2631, %v2631
  %v2648 = vmul.f32 %v2632, %v2632
  %v2649 = vmul.f32 %v2633, %v2633
  %v2650 = vmul.f32 %v2634, %v2634
  %v2651 = vmul.f32 %v2635, %v2635
  %v2652 = vmul.f32 %v2636, %v2636
  %v2653 = vmul.f32 %v2637, %v2637
  %v2654 = vadd.f32 %v2638, %v2639
  %v2655 = vadd.f32 %v2654, %v2640
  %v2656 = vadd.f32 %v2655, %v2641
  %v2657 = vadd.f32 %v2656, %v2642
  %v2658 = vadd.f32 %v2657, %v2643
  %v2659 = vadd.f32 %v2658, %v2644
  %v2660 = vadd.f32 %v2659, %v2645
  %v2661 = vadd.f32 %v2660, %v2646
  %v2662 = vadd.f32 %v2661, %v2647
  %v2663 = vadd.f32 %v2662, %v2648
  %v2664 = vadd.f32 %v2663, %v2649
  %v2665 = vadd.f32 %v2664, %v2650
  %v2666 = vadd.f32 %v2665, %v2651
  %v2667 = vadd.f32 %v2666, %v2652
  %v2668 = vadd.f32 %v2667, %v2653
  %v2669 = vrot.slane %v2668, 4
  %v2670 = vadd.f32 %v2668, %v2669
  %v2671 = vrot.slane %v2670, 2
  %v2672 = vadd.f32 %v2670, %v2671
  %v2673 = vrot.slane %v2672, 1
  %v2674 = vadd.f32 %v2672, %v2673
  %v2675 = vmul.f32 %v2674, %v2620
  %v2676 = vadd.f32 %v2675, 1e-05
  %v2677 = vrsqrt.pop %v2676
  %v2678 = vmul.f32 %v2677, %v2676
  %v2679 = vmul.f32 %v2678, %v2677
  %v2680 = vmul.f32 0.5, %v2679
  %v2681 = vsub.f32 1.5, %v2680
  %v2682 = vmul.f32 %v2677, %v2681
  %vm2683 = vweird.f32 %v2676
  %vm2684 = vweird.f32 %v2677
  %vm2685 = vmor %vm2683, %vm2684
  %v2686 = vsel %vm2685, %v2677, %v2682
  %v2687 = vmul.f32 %v2622, %v2686
  %v2688 = vmul.f32 %v2623, %v2686
  %v2689 = vmul.f32 %v2624, %v2686
  %v2690 = vmul.f32 %v2625, %v2686
  %v2691 = vmul.f32 %v2626, %v2686
  %v2692 = vmul.f32 %v2627, %v2686
  %v2693 = vmul.f32 %v2628, %v2686
  %v2694 = vmul.f32 %v2629, %v2686
  %v2695 = vmul.f32 %v2630, %v2686
  %v2696 = vmul.f32 %v2631, %v2686
  %v2697 = vmul.f32 %v2632, %v2686
  %v2698 = vmul.f32 %v2633, %v2686
  %v2699 = vmul.f32 %v2634, %v2686
  %v2700 = vmul.f32 %v2635, %v2686
  %v2701 = vmul.f32 %v2636, %v2686
  %v2702 = vmul.f32 %v2637, %v2686
  %v2703 = vld [vmem:[%s2] sm:$0x1]
  %v2705 = vperm.slane %v2703, 0
  %v2707 = vmul.f32 %v2687, %v2705
  %v2708 = vmul.f32 %v2688, %v2705
  %v2709 = vmul.f32 %v2689, %v2705
  %v2710 = vmul.f32 %v2690, %v2705
  %v2711 = vmul.f32 %v2691, %v2705
  %v2712 = vmul.f32 %v2692, %v2705
  %v2713 = vmul.f32 %v2693, %v2705
  %v2714 = vmul.f32 %v2694, %v2705
  %v2715 = vmul.f32 %v2695, %v2705
  %v2716 = vmul.f32 %v2696, %v2705
  %v2717 = vmul.f32 %v2697, %v2705
  %v2718 = vmul.f32 %v2698, %v2705
  %v2719 = vmul.f32 %v2699, %v2705
  %v2720 = vmul.f32 %v2700, %v2705
  %v2721 = vmul.f32 %v2701, %v2705
  %v2722 = vmul.f32 %v2702, %v2705
  %v2723 = vld [vmem:[%s3] sm:$0x1]
  %v2725 = vperm.slane %v2723, 0
  %v2727 = vadd.f32 %v2707, %v2725
  %v2728 = vadd.f32 %v2708, %v2725
  %v2729 = vadd.f32 %v2709, %v2725
  %v2730 = vadd.f32 %v2710, %v2725
  %v2731 = vadd.f32 %v2711, %v2725
  %v2732 = vadd.f32 %v2712, %v2725
  %v2733 = vadd.f32 %v2713, %v2725
  %v2734 = vadd.f32 %v2714, %v2725
  %v2735 = vadd.f32 %v2715, %v2725
  %v2736 = vadd.f32 %v2716, %v2725
  %v2737 = vadd.f32 %v2717, %v2725
  %v2738 = vadd.f32 %v2718, %v2725
  %v2739 = vadd.f32 %v2719, %v2725
  %v2740 = vadd.f32 %v2720, %v2725
  %v2741 = vadd.f32 %v2721, %v2725
  %v2742 = vadd.f32 %v2722, %v2725
  %v2743 = vmax.f32 %v2727, 0.0
  %v2744 = vmax.f32 %v2728, 0.0
  %v2745 = vmax.f32 %v2729, 0.0
  %v2746 = vmax.f32 %v2730, 0.0
  %v2747 = vmax.f32 %v2731, 0.0
  %v2748 = vmax.f32 %v2732, 0.0
  %v2749 = vmax.f32 %v2733, 0.0
  %v2750 = vmax.f32 %v2734, 0.0
  %v2751 = vmax.f32 %v2735, 0.0
  %v2752 = vmax.f32 %v2736, 0.0
  %v2753 = vmax.f32 %v2737, 0.0
  %v2754 = vmax.f32 %v2738, 0.0
  %v2755 = vmax.f32 %v2739, 0.0
  %v2756 = vmax.f32 %v2740, 0.0
  %v2757 = vmax.f32 %v2741, 0.0
  %v2758 = vmax.f32 %v2742, 0.0
  %2759 = vst [vmem:[%s4] sm:$0xff] %v2743
  %2760 = vst [vmem:[%s4 + $0x8] sm:$0xff] %v2744
  %2761 = vst [vmem:[%s4 + $0x10] sm:$0xff] %v2745
  %2762 = vst [vmem:[%s4 + $0x18] sm:$0xff] %v2746
  %2763 = vst [vmem:[%s4 + $0x20] sm:$0xff] %v2747
  %2764 = vst [vmem:[%s4 + $0x28] sm:$0xff] %v2748
  %2765 = vst [vmem:[%s4 + $0x30] sm:$0xff] %v2749
  %2766 = vst [vmem:[%s4 + $0x38] sm:$0xff] %v2750
  %2767 = vst [vmem:[%s4 + $0x40] sm:$0xff] %v2751
  %2768 = vst [vmem:[%s4 + $0x48] sm:$0xff] %v2752
  %2769 = vst [vmem:[%s4 + $0x50] sm:$0xff] %v2753
  %2770 = vst [vmem:[%s4 + $0x58] sm:$0xff] %v2754
  %2771 = vst [vmem:[%s4 + $0x60] sm:$0xff] %v2755
  %2772 = vst [vmem:[%s4 + $0x68] sm:$0xff] %v2756
  %2773 = vst [vmem:[%s4 + $0x70] sm:$0xff] %v2757
  %2774 = vst [vmem:[%s4 + $0x78] sm:$0xff] %v2758
  // Predicated region
  $region18: #{vae_forward.6} parent=0 // pred_check
    _
  $region19: #{vae_forward.6} parent=0 // pred_check_branch
    %2776 = sbr.rel (0) target = $region21
  $region20: #{vae_forward.6} parent=0 // pred_region
    _
  $region21: #{vae_forward.6} parent=0 // pred_fallthru
    _
  // Predicated region
  $region22: #{vae_forward.6} parent=0 // pred_check
    _
  $region23: #{vae_forward.6} parent=0 // pred_check_branch
    %2778 = sbr.rel (0) target = $region25
  $region24: #{vae_forward.6} parent=0 // pred_region
    _
  $region25: #{vae_forward.6} parent=0 // pred_fallthru
    _

// kernel: vae_forward.7
$region0: #{vae_forward.7}
  #allocation0 [shape = 'u32[]', space=smem, size = 0x4, offset = 0x4, fixed_abs, tag = 'smem constant byte address 0x4 - core index']
  #allocation1 [shape = 'u32[72,128]{1,0:T(1,128)}', space=vmem, size = 0x9000, scoped, tag = 'internal scratch']
  %s0 = inlined_call_operand.vmem [shape: bf16[512,1024], index: 0, kind: input, shape index: {}]
  %s1 = inlined_call_operand.vmem [shape: bf16[1024,128], index: 1, kind: input, shape index: {}]
  %s2 = inlined_call_operand.vmem [shape: f32[1,128], index: 2, kind: input, shape index: {}]
  %s3 = inlined_call_operand.vmem [shape: f32[512,128], index: 3, kind: output, shape index: {}]
  %s4 = sld [smem:[#allocation0]]
  $region22: #{vae_forward.7} parent=0
    _
  %s6 = ssub.s32 1, %s4
  %s7 = scalar_select 0, %s6, %s4
  // Predicated region
  $region2: #{vae_forward.7} parent=0 // pred_check
    _
  $region3: #{vae_forward.7} parent=0 // pred_check_branch
    %9 = sbr.rel (0) target = $region5
  $region4: #{vae_forward.7} parent=0 // pred_region
    _
  $region5: #{vae_forward.7} parent=0 // pred_fallthru
    _
  // Predicated region
  $region6: #{vae_forward.7} parent=0 // pred_check
    _
  $region7: #{vae_forward.7} parent=0 // pred_check_branch
    %11 = sbr.rel (0) target = $region9
  $region8: #{vae_forward.7} parent=0 // pred_region
    _
  $region9: #{vae_forward.7} parent=0 // pred_fallthru
    _
  // Predicated region
  $region10: #{vae_forward.7} parent=0 // pred_check
    _
  $region11: #{vae_forward.7} parent=0 // pred_check_branch
    %13 = sbr.rel (0) target = $region13
  $region12: #{vae_forward.7} parent=0 // pred_region
    _
  $region13: #{vae_forward.7} parent=0 // pred_fallthru
    _
  %v14 = vld [vmem:[%s0] sm:$0xff]
  %v15 = vld [vmem:[%s0 + $0x8] sm:$0xff]
  %v16 = vld [vmem:[%s0 + $0x10] sm:$0xff]
  %v17 = vld [vmem:[%s0 + $0x18] sm:$0xff]
  %v18 = vld [vmem:[%s0 + $0x20] sm:$0xff]
  %v19 = vld [vmem:[%s0 + $0x28] sm:$0xff]
  %v20 = vld [vmem:[%s0 + $0x30] sm:$0xff]
  %v21 = vld [vmem:[%s0 + $0x38] sm:$0xff]
  %v22 = vld [vmem:[%s0 + $0x40] sm:$0xff]
  %v23 = vld [vmem:[%s0 + $0x48] sm:$0xff]
  %v24 = vld [vmem:[%s0 + $0x50] sm:$0xff]
  %v25 = vld [vmem:[%s0 + $0x58] sm:$0xff]
  %v26 = vld [vmem:[%s0 + $0x60] sm:$0xff]
  %v27 = vld [vmem:[%s0 + $0x68] sm:$0xff]
  %v28 = vld [vmem:[%s0 + $0x70] sm:$0xff]
  %v29 = vld [vmem:[%s0 + $0x78] sm:$0xff]
  %v30 = vld [vmem:[%s0 + $0x80] sm:$0xff]
  %v31 = vld [vmem:[%s0 + $0x88] sm:$0xff]
  %v32 = vld [vmem:[%s0 + $0x90] sm:$0xff]
  %v33 = vld [vmem:[%s0 + $0x98] sm:$0xff]
  %v34 = vld [vmem:[%s0 + $0xa0] sm:$0xff]
  %v35 = vld [vmem:[%s0 + $0xa8] sm:$0xff]
  %v36 = vld [vmem:[%s0 + $0xb0] sm:$0xff]
  %v37 = vld [vmem:[%s0 + $0xb8] sm:$0xff]
  %v38 = vld [vmem:[%s0 + $0xc0] sm:$0xff]
  %v39 = vld [vmem:[%s0 + $0xc8] sm:$0xff]
  %v40 = vld [vmem:[%s0 + $0xd0] sm:$0xff]
  %v41 = vld [vmem:[%s0 + $0xd8] sm:$0xff]
  %v42 = vld [vmem:[%s0 + $0xe0] sm:$0xff]
  %v43 = vld [vmem:[%s0 + $0xe8] sm:$0xff]
  %v44 = vld [vmem:[%s0 + $0xf0] sm:$0xff]
  %v45 = vld [vmem:[%s0 + $0xf8] sm:$0xff]
  %v46 = vld [vmem:[%s0 + $0x100] sm:$0xff]
  %v47 = vld [vmem:[%s0 + $0x108] sm:$0xff]
  %v48 = vld [vmem:[%s0 + $0x110] sm:$0xff]
  %v49 = vld [vmem:[%s0 + $0x118] sm:$0xff]
  %v50 = vld [vmem:[%s0 + $0x120] sm:$0xff]
  %v51 = vld [vmem:[%s0 + $0x128] sm:$0xff]
  %v52 = vld [vmem:[%s0 + $0x130] sm:$0xff]
  %v53 = vld [vmem:[%s0 + $0x138] sm:$0xff]
  %v54 = vld [vmem:[%s0 + $0x140] sm:$0xff]
  %v55 = vld [vmem:[%s0 + $0x148] sm:$0xff]
  %v56 = vld [vmem:[%s0 + $0x150] sm:$0xff]
  %v57 = vld [vmem:[%s0 + $0x158] sm:$0xff]
  %v58 = vld [vmem:[%s0 + $0x160] sm:$0xff]
  %v59 = vld [vmem:[%s0 + $0x168] sm:$0xff]
  %v60 = vld [vmem:[%s0 + $0x170] sm:$0xff]
  %v61 = vld [vmem:[%s0 + $0x178] sm:$0xff]
  %v62 = vld [vmem:[%s0 + $0x180] sm:$0xff]
  %v63 = vld [vmem:[%s0 + $0x188] sm:$0xff]
  %v64 = vld [vmem:[%s0 + $0x190] sm:$0xff]
  %v65 = vld [vmem:[%s0 + $0x198] sm:$0xff]
  %v66 = vld [vmem:[%s0 + $0x1a0] sm:$0xff]
  %v67 = vld [vmem:[%s0 + $0x1a8] sm:$0xff]
  %v68 = vld [vmem:[%s0 + $0x1b0] sm:$0xff]
  %v69 = vld [vmem:[%s0 + $0x1b8] sm:$0xff]
  %v70 = vld [vmem:[%s0 + $0x1c0] sm:$0xff]
  %v71 = vld [vmem:[%s0 + $0x1c8] sm:$0xff]
  %v72 = vld [vmem:[%s0 + $0x1d0] sm:$0xff]
  %v73 = vld [vmem:[%s0 + $0x1d8] sm:$0xff]
  %v74 = vld [vmem:[%s0 + $0x1e0] sm:$0xff]
  %v75 = vld [vmem:[%s0 + $0x1e8] sm:$0xff]
  %v76 = vld [vmem:[%s0 + $0x1f0] sm:$0xff]
  %v77 = vld [vmem:[%s0 + $0x1f8] sm:$0xff]
  %v78 = vld [vmem:[%s0 + $0x200] sm:$0xff]
  %v79 = vld [vmem:[%s0 + $0x208] sm:$0xff]
  %v80 = vld [vmem:[%s0 + $0x210] sm:$0xff]
  %v81 = vld [vmem:[%s0 + $0x218] sm:$0xff]
  %v82 = vld [vmem:[%s0 + $0x220] sm:$0xff]
  %v83 = vld [vmem:[%s0 + $0x228] sm:$0xff]
  %v84 = vld [vmem:[%s0 + $0x230] sm:$0xff]
  %v85 = vld [vmem:[%s0 + $0x238] sm:$0xff]
  %v86 = vld [vmem:[%s0 + $0x240] sm:$0xff]
  %v87 = vld [vmem:[%s0 + $0x248] sm:$0xff]
  %v88 = vld [vmem:[%s0 + $0x250] sm:$0xff]
  %v89 = vld [vmem:[%s0 + $0x258] sm:$0xff]
  %v90 = vld [vmem:[%s0 + $0x260] sm:$0xff]
  %v91 = vld [vmem:[%s0 + $0x268] sm:$0xff]
  %v92 = vld [vmem:[%s0 + $0x270] sm:$0xff]
  %v93 = vld [vmem:[%s0 + $0x278] sm:$0xff]
  %v94 = vld [vmem:[%s0 + $0x280] sm:$0xff]
  %v95 = vld [vmem:[%s0 + $0x288] sm:$0xff]
  %v96 = vld [vmem:[%s0 + $0x290] sm:$0xff]
  %v97 = vld [vmem:[%s0 + $0x298] sm:$0xff]
  %v98 = vld [vmem:[%s0 + $0x2a0] sm:$0xff]
  %v99 = vld [vmem:[%s0 + $0x2a8] sm:$0xff]
  %v100 = vld [vmem:[%s0 + $0x2b0] sm:$0xff]
  %v101 = vld [vmem:[%s0 + $0x2b8] sm:$0xff]
  %v102 = vld [vmem:[%s0 + $0x2c0] sm:$0xff]
  %v103 = vld [vmem:[%s0 + $0x2c8] sm:$0xff]
  %v104 = vld [vmem:[%s0 + $0x2d0] sm:$0xff]
  %v105 = vld [vmem:[%s0 + $0x2d8] sm:$0xff]
  %v106 = vld [vmem:[%s0 + $0x2e0] sm:$0xff]
  %v107 = vld [vmem:[%s0 + $0x2e8] sm:$0xff]
  %v108 = vld [vmem:[%s0 + $0x2f0] sm:$0xff]
  %v109 = vld [vmem:[%s0 + $0x2f8] sm:$0xff]
  %v110 = vld [vmem:[%s0 + $0x300] sm:$0xff]
  %v111 = vld [vmem:[%s0 + $0x308] sm:$0xff]
  %v112 = vld [vmem:[%s0 + $0x310] sm:$0xff]
  %v113 = vld [vmem:[%s0 + $0x318] sm:$0xff]
  %v114 = vld [vmem:[%s0 + $0x320] sm:$0xff]
  %v115 = vld [vmem:[%s0 + $0x328] sm:$0xff]
  %v116 = vld [vmem:[%s0 + $0x330] sm:$0xff]
  %v117 = vld [vmem:[%s0 + $0x338] sm:$0xff]
  %v118 = vld [vmem:[%s0 + $0x340] sm:$0xff]
  %v119 = vld [vmem:[%s0 + $0x348] sm:$0xff]
  %v120 = vld [vmem:[%s0 + $0x350] sm:$0xff]
  %v121 = vld [vmem:[%s0 + $0x358] sm:$0xff]
  %v122 = vld [vmem:[%s0 + $0x360] sm:$0xff]
  %v123 = vld [vmem:[%s0 + $0x368] sm:$0xff]
  %v124 = vld [vmem:[%s0 + $0x370] sm:$0xff]
  %v125 = vld [vmem:[%s0 + $0x378] sm:$0xff]
  %v126 = vld [vmem:[%s0 + $0x380] sm:$0xff]
  %v127 = vld [vmem:[%s0 + $0x388] sm:$0xff]
  %v128 = vld [vmem:[%s0 + $0x390] sm:$0xff]
  %v129 = vld [vmem:[%s0 + $0x398] sm:$0xff]
  %v130 = vld [vmem:[%s0 + $0x3a0] sm:$0xff]
  %v131 = vld [vmem:[%s0 + $0x3a8] sm:$0xff]
  %v132 = vld [vmem:[%s0 + $0x3b0] sm:$0xff]
  %v133 = vld [vmem:[%s0 + $0x3b8] sm:$0xff]
  %v134 = vld [vmem:[%s0 + $0x3c0] sm:$0xff]
  %v135 = vld [vmem:[%s0 + $0x3c8] sm:$0xff]
  %v136 = vld [vmem:[%s0 + $0x3d0] sm:$0xff]
  %v137 = vld [vmem:[%s0 + $0x3d8] sm:$0xff]
  %v138 = vld [vmem:[%s0 + $0x3e0] sm:$0xff]
  %v139 = vld [vmem:[%s0 + $0x3e8] sm:$0xff]
  %v140 = vld [vmem:[%s0 + $0x3f0] sm:$0xff]
  %v141 = vld [vmem:[%s0 + $0x3f8] sm:$0xff]
  %v142 = vld [vmem:[%s0 + $0x400] sm:$0xff]
  %v143 = vld [vmem:[%s0 + $0x408] sm:$0xff]
  %v144 = vld [vmem:[%s0 + $0x410] sm:$0xff]
  %v145 = vld [vmem:[%s0 + $0x418] sm:$0xff]
  %v146 = vld [vmem:[%s0 + $0x420] sm:$0xff]
  %v147 = vld [vmem:[%s0 + $0x428] sm:$0xff]
  %v148 = vld [vmem:[%s0 + $0x430] sm:$0xff]
  %v149 = vld [vmem:[%s0 + $0x438] sm:$0xff]
  %v150 = vld [vmem:[%s0 + $0x440] sm:$0xff]
  %v151 = vld [vmem:[%s0 + $0x448] sm:$0xff]
  %v152 = vld [vmem:[%s0 + $0x450] sm:$0xff]
  %v153 = vld [vmem:[%s0 + $0x458] sm:$0xff]
  %v154 = vld [vmem:[%s0 + $0x460] sm:$0xff]
  %v155 = vld [vmem:[%s0 + $0x468] sm:$0xff]
  %v156 = vld [vmem:[%s0 + $0x470] sm:$0xff]
  %v157 = vld [vmem:[%s0 + $0x478] sm:$0xff]
  %v158 = vld [vmem:[%s0 + $0x480] sm:$0xff]
  %v159 = vld [vmem:[%s0 + $0x488] sm:$0xff]
  %v160 = vld [vmem:[%s0 + $0x490] sm:$0xff]
  %v161 = vld [vmem:[%s0 + $0x498] sm:$0xff]
  %v162 = vld [vmem:[%s0 + $0x4a0] sm:$0xff]
  %v163 = vld [vmem:[%s0 + $0x4a8] sm:$0xff]
  %v164 = vld [vmem:[%s0 + $0x4b0] sm:$0xff]
  %v165 = vld [vmem:[%s0 + $0x4b8] sm:$0xff]
  %v166 = vld [vmem:[%s0 + $0x4c0] sm:$0xff]
  %v167 = vld [vmem:[%s0 + $0x4c8] sm:$0xff]
  %v168 = vld [vmem:[%s0 + $0x4d0] sm:$0xff]
  %v169 = vld [vmem:[%s0 + $0x4d8] sm:$0xff]
  %v170 = vld [vmem:[%s0 + $0x4e0] sm:$0xff]
  %v171 = vld [vmem:[%s0 + $0x4e8] sm:$0xff]
  %v172 = vld [vmem:[%s0 + $0x4f0] sm:$0xff]
  %v173 = vld [vmem:[%s0 + $0x4f8] sm:$0xff]
  %v174 = vld [vmem:[%s0 + $0x500] sm:$0xff]
  %v175 = vld [vmem:[%s0 + $0x508] sm:$0xff]
  %v176 = vld [vmem:[%s0 + $0x510] sm:$0xff]
  %v177 = vld [vmem:[%s0 + $0x518] sm:$0xff]
  %v178 = vld [vmem:[%s0 + $0x520] sm:$0xff]
  %v179 = vld [vmem:[%s0 + $0x528] sm:$0xff]
  %v180 = vld [vmem:[%s0 + $0x530] sm:$0xff]
  %v181 = vld [vmem:[%s0 + $0x538] sm:$0xff]
  %v182 = vld [vmem:[%s0 + $0x540] sm:$0xff]
  %v183 = vld [vmem:[%s0 + $0x548] sm:$0xff]
  %v184 = vld [vmem:[%s0 + $0x550] sm:$0xff]
  %v185 = vld [vmem:[%s0 + $0x558] sm:$0xff]
  %v186 = vld [vmem:[%s0 + $0x560] sm:$0xff]
  %v187 = vld [vmem:[%s0 + $0x568] sm:$0xff]
  %v188 = vld [vmem:[%s0 + $0x570] sm:$0xff]
  %v189 = vld [vmem:[%s0 + $0x578] sm:$0xff]
  %v190 = vld [vmem:[%s0 + $0x580] sm:$0xff]
  %v191 = vld [vmem:[%s0 + $0x588] sm:$0xff]
  %v192 = vld [vmem:[%s0 + $0x590] sm:$0xff]
  %v193 = vld [vmem:[%s0 + $0x598] sm:$0xff]
  %v194 = vld [vmem:[%s0 + $0x5a0] sm:$0xff]
  %v195 = vld [vmem:[%s0 + $0x5a8] sm:$0xff]
  %v196 = vld [vmem:[%s0 + $0x5b0] sm:$0xff]
  %v197 = vld [vmem:[%s0 + $0x5b8] sm:$0xff]
  %v198 = vld [vmem:[%s0 + $0x5c0] sm:$0xff]
  %v199 = vld [vmem:[%s0 + $0x5c8] sm:$0xff]
  %v200 = vld [vmem:[%s0 + $0x5d0] sm:$0xff]
  %v201 = vld [vmem:[%s0 + $0x5d8] sm:$0xff]
  %v202 = vld [vmem:[%s0 + $0x5e0] sm:$0xff]
  %v203 = vld [vmem:[%s0 + $0x5e8] sm:$0xff]
  %v204 = vld [vmem:[%s0 + $0x5f0] sm:$0xff]
  %v205 = vld [vmem:[%s0 + $0x5f8] sm:$0xff]
  %v206 = vld [vmem:[%s0 + $0x600] sm:$0xff]
  %v207 = vld [vmem:[%s0 + $0x608] sm:$0xff]
  %v208 = vld [vmem:[%s0 + $0x610] sm:$0xff]
  %v209 = vld [vmem:[%s0 + $0x618] sm:$0xff]
  %v210 = vld [vmem:[%s0 + $0x620] sm:$0xff]
  %v211 = vld [vmem:[%s0 + $0x628] sm:$0xff]
  %v212 = vld [vmem:[%s0 + $0x630] sm:$0xff]
  %v213 = vld [vmem:[%s0 + $0x638] sm:$0xff]
  %v214 = vld [vmem:[%s0 + $0x640] sm:$0xff]
  %v215 = vld [vmem:[%s0 + $0x648] sm:$0xff]
  %v216 = vld [vmem:[%s0 + $0x650] sm:$0xff]
  %v217 = vld [vmem:[%s0 + $0x658] sm:$0xff]
  %v218 = vld [vmem:[%s0 + $0x660] sm:$0xff]
  %v219 = vld [vmem:[%s0 + $0x668] sm:$0xff]
  %v220 = vld [vmem:[%s0 + $0x670] sm:$0xff]
  %v221 = vld [vmem:[%s0 + $0x678] sm:$0xff]
  %v222 = vld [vmem:[%s0 + $0x680] sm:$0xff]
  %v223 = vld [vmem:[%s0 + $0x688] sm:$0xff]
  %v224 = vld [vmem:[%s0 + $0x690] sm:$0xff]
  %v225 = vld [vmem:[%s0 + $0x698] sm:$0xff]
  %v226 = vld [vmem:[%s0 + $0x6a0] sm:$0xff]
  %v227 = vld [vmem:[%s0 + $0x6a8] sm:$0xff]
  %v228 = vld [vmem:[%s0 + $0x6b0] sm:$0xff]
  %v229 = vld [vmem:[%s0 + $0x6b8] sm:$0xff]
  %v230 = vld [vmem:[%s0 + $0x6c0] sm:$0xff]
  %v231 = vld [vmem:[%s0 + $0x6c8] sm:$0xff]
  %v232 = vld [vmem:[%s0 + $0x6d0] sm:$0xff]
  %v233 = vld [vmem:[%s0 + $0x6d8] sm:$0xff]
  %v234 = vld [vmem:[%s0 + $0x6e0] sm:$0xff]
  %v235 = vld [vmem:[%s0 + $0x6e8] sm:$0xff]
  %v236 = vld [vmem:[%s0 + $0x6f0] sm:$0xff]
  %v237 = vld [vmem:[%s0 + $0x6f8] sm:$0xff]
  %v238 = vld [vmem:[%s0 + $0x700] sm:$0xff]
  %v239 = vld [vmem:[%s0 + $0x708] sm:$0xff]
  %v240 = vld [vmem:[%s0 + $0x710] sm:$0xff]
  %v241 = vld [vmem:[%s0 + $0x718] sm:$0xff]
  %v242 = vld [vmem:[%s0 + $0x720] sm:$0xff]
  %v243 = vld [vmem:[%s0 + $0x728] sm:$0xff]
  %v244 = vld [vmem:[%s0 + $0x730] sm:$0xff]
  %v245 = vld [vmem:[%s0 + $0x738] sm:$0xff]
  %v246 = vld [vmem:[%s0 + $0x740] sm:$0xff]
  %v247 = vld [vmem:[%s0 + $0x748] sm:$0xff]
  %v248 = vld [vmem:[%s0 + $0x750] sm:$0xff]
  %v249 = vld [vmem:[%s0 + $0x758] sm:$0xff]
  %v250 = vld [vmem:[%s0 + $0x760] sm:$0xff]
  %v251 = vld [vmem:[%s0 + $0x768] sm:$0xff]
  %v252 = vld [vmem:[%s0 + $0x770] sm:$0xff]
  %v253 = vld [vmem:[%s0 + $0x778] sm:$0xff]
  %v254 = vld [vmem:[%s0 + $0x780] sm:$0xff]
  %v255 = vld [vmem:[%s0 + $0x788] sm:$0xff]
  %v256 = vld [vmem:[%s0 + $0x790] sm:$0xff]
  %v257 = vld [vmem:[%s0 + $0x798] sm:$0xff]
  %v258 = vld [vmem:[%s0 + $0x7a0] sm:$0xff]
  %v259 = vld [vmem:[%s0 + $0x7a8] sm:$0xff]
  %v260 = vld [vmem:[%s0 + $0x7b0] sm:$0xff]
  %v261 = vld [vmem:[%s0 + $0x7b8] sm:$0xff]
  %v262 = vld [vmem:[%s0 + $0x7c0] sm:$0xff]
  %v263 = vld [vmem:[%s0 + $0x7c8] sm:$0xff]
  %v264 = vld [vmem:[%s0 + $0x7d0] sm:$0xff]
  %v265 = vld [vmem:[%s0 + $0x7d8] sm:$0xff]
  %v266 = vld [vmem:[%s0 + $0x7e0] sm:$0xff]
  %v267 = vld [vmem:[%s0 + $0x7e8] sm:$0xff]
  %v268 = vld [vmem:[%s0 + $0x7f0] sm:$0xff]
  %v269 = vld [vmem:[%s0 + $0x7f8] sm:$0xff]
  %v270 = vld [vmem:[%s1] sm:$0xf]
  %v271 = vld [vmem:[%s1 + $0x4] sm:$0xf]
  %v272 = vld [vmem:[%s1 + $0x8] sm:$0xf]
  %v273 = vld [vmem:[%s1 + $0xc] sm:$0xf]
  %v274 = vld [vmem:[%s1 + $0x10] sm:$0xf]
  %v275 = vld [vmem:[%s1 + $0x14] sm:$0xf]
  %v276 = vld [vmem:[%s1 + $0x18] sm:$0xf]
  %v277 = vld [vmem:[%s1 + $0x1c] sm:$0xf]
  %v278 = vld [vmem:[%s1 + $0x20] sm:$0xf]
  %v279 = vld [vmem:[%s1 + $0x24] sm:$0xf]
  %v280 = vld [vmem:[%s1 + $0x28] sm:$0xf]
  %v281 = vld [vmem:[%s1 + $0x2c] sm:$0xf]
  %v282 = vld [vmem:[%s1 + $0x30] sm:$0xf]
  %v283 = vld [vmem:[%s1 + $0x34] sm:$0xf]
  %v284 = vld [vmem:[%s1 + $0x38] sm:$0xf]
  %v285 = vld [vmem:[%s1 + $0x3c] sm:$0xf]
  %v286 = vld [vmem:[%s1 + $0x40] sm:$0xf]
  %v287 = vld [vmem:[%s1 + $0x44] sm:$0xf]
  %v288 = vld [vmem:[%s1 + $0x48] sm:$0xf]
  %v289 = vld [vmem:[%s1 + $0x4c] sm:$0xf]
  %v290 = vld [vmem:[%s1 + $0x50] sm:$0xf]
  %v291 = vld [vmem:[%s1 + $0x54] sm:$0xf]
  %v292 = vld [vmem:[%s1 + $0x58] sm:$0xf]
  %v293 = vld [vmem:[%s1 + $0x5c] sm:$0xf]
  %v294 = vld [vmem:[%s1 + $0x60] sm:$0xf]
  %v295 = vld [vmem:[%s1 + $0x64] sm:$0xf]
  %v296 = vld [vmem:[%s1 + $0x68] sm:$0xf]
  %v297 = vld [vmem:[%s1 + $0x6c] sm:$0xf]
  %v298 = vld [vmem:[%s1 + $0x70] sm:$0xf]
  %v299 = vld [vmem:[%s1 + $0x74] sm:$0xf]
  %v300 = vld [vmem:[%s1 + $0x78] sm:$0xf]
  %v301 = vld [vmem:[%s1 + $0x7c] sm:$0xf]
  %v302 = vld [vmem:[%s1 + $0x80] sm:$0xf]
  %v303 = vld [vmem:[%s1 + $0x84] sm:$0xf]
  %v304 = vld [vmem:[%s1 + $0x88] sm:$0xf]
  %v305 = vld [vmem:[%s1 + $0x8c] sm:$0xf]
  %v306 = vld [vmem:[%s1 + $0x90] sm:$0xf]
  %v307 = vld [vmem:[%s1 + $0x94] sm:$0xf]
  %v308 = vld [vmem:[%s1 + $0x98] sm:$0xf]
  %v309 = vld [vmem:[%s1 + $0x9c] sm:$0xf]
  %v310 = vld [vmem:[%s1 + $0xa0] sm:$0xf]
  %v311 = vld [vmem:[%s1 + $0xa4] sm:$0xf]
  %v312 = vld [vmem:[%s1 + $0xa8] sm:$0xf]
  %v313 = vld [vmem:[%s1 + $0xac] sm:$0xf]
  %v314 = vld [vmem:[%s1 + $0xb0] sm:$0xf]
  %v315 = vld [vmem:[%s1 + $0xb4] sm:$0xf]
  %v316 = vld [vmem:[%s1 + $0xb8] sm:$0xf]
  %v317 = vld [vmem:[%s1 + $0xbc] sm:$0xf]
  %v318 = vld [vmem:[%s1 + $0xc0] sm:$0xf]
  %v319 = vld [vmem:[%s1 + $0xc4] sm:$0xf]
  %v320 = vld [vmem:[%s1 + $0xc8] sm:$0xf]
  %v321 = vld [vmem:[%s1 + $0xcc] sm:$0xf]
  %v322 = vld [vmem:[%s1 + $0xd0] sm:$0xf]
  %v323 = vld [vmem:[%s1 + $0xd4] sm:$0xf]
  %v324 = vld [vmem:[%s1 + $0xd8] sm:$0xf]
  %v325 = vld [vmem:[%s1 + $0xdc] sm:$0xf]
  %v326 = vld [vmem:[%s1 + $0xe0] sm:$0xf]
  %v327 = vld [vmem:[%s1 + $0xe4] sm:$0xf]
  %v328 = vld [vmem:[%s1 + $0xe8] sm:$0xf]
  %v329 = vld [vmem:[%s1 + $0xec] sm:$0xf]
  %v330 = vld [vmem:[%s1 + $0xf0] sm:$0xf]
  %v331 = vld [vmem:[%s1 + $0xf4] sm:$0xf]
  %v332 = vld [vmem:[%s1 + $0xf8] sm:$0xf]
  %v333 = vld [vmem:[%s1 + $0xfc] sm:$0xf]
  %v334 = vld [vmem:[%s1 + $0x100] sm:$0xf]
  %v335 = vld [vmem:[%s1 + $0x104] sm:$0xf]
  %v336 = vld [vmem:[%s1 + $0x108] sm:$0xf]
  %v337 = vld [vmem:[%s1 + $0x10c] sm:$0xf]
  %v338 = vld [vmem:[%s1 + $0x110] sm:$0xf]
  %v339 = vld [vmem:[%s1 + $0x114] sm:$0xf]
  %v340 = vld [vmem:[%s1 + $0x118] sm:$0xf]
  %v341 = vld [vmem:[%s1 + $0x11c] sm:$0xf]
  %v342 = vld [vmem:[%s1 + $0x120] sm:$0xf]
  %v343 = vld [vmem:[%s1 + $0x124] sm:$0xf]
  %v344 = vld [vmem:[%s1 + $0x128] sm:$0xf]
  %v345 = vld [vmem:[%s1 + $0x12c] sm:$0xf]
  %v346 = vld [vmem:[%s1 + $0x130] sm:$0xf]
  %v347 = vld [vmem:[%s1 + $0x134] sm:$0xf]
  %v348 = vld [vmem:[%s1 + $0x138] sm:$0xf]
  %v349 = vld [vmem:[%s1 + $0x13c] sm:$0xf]
  %v350 = vld [vmem:[%s1 + $0x140] sm:$0xf]
  %v351 = vld [vmem:[%s1 + $0x144] sm:$0xf]
  %v352 = vld [vmem:[%s1 + $0x148] sm:$0xf]
  %v353 = vld [vmem:[%s1 + $0x14c] sm:$0xf]
  %v354 = vld [vmem:[%s1 + $0x150] sm:$0xf]
  %v355 = vld [vmem:[%s1 + $0x154] sm:$0xf]
  %v356 = vld [vmem:[%s1 + $0x158] sm:$0xf]
  %v357 = vld [vmem:[%s1 + $0x15c] sm:$0xf]
  %v358 = vld [vmem:[%s1 + $0x160] sm:$0xf]
  %v359 = vld [vmem:[%s1 + $0x164] sm:$0xf]
  %v360 = vld [vmem:[%s1 + $0x168] sm:$0xf]
  %v361 = vld [vmem:[%s1 + $0x16c] sm:$0xf]
  %v362 = vld [vmem:[%s1 + $0x170] sm:$0xf]
  %v363 = vld [vmem:[%s1 + $0x174] sm:$0xf]
  %v364 = vld [vmem:[%s1 + $0x178] sm:$0xf]
  %v365 = vld [vmem:[%s1 + $0x17c] sm:$0xf]
  %v366 = vld [vmem:[%s1 + $0x180] sm:$0xf]
  %v367 = vld [vmem:[%s1 + $0x184] sm:$0xf]
  %v368 = vld [vmem:[%s1 + $0x188] sm:$0xf]
  %v369 = vld [vmem:[%s1 + $0x18c] sm:$0xf]
  %v370 = vld [vmem:[%s1 + $0x190] sm:$0xf]
  %v371 = vld [vmem:[%s1 + $0x194] sm:$0xf]
  %v372 = vld [vmem:[%s1 + $0x198] sm:$0xf]
  %v373 = vld [vmem:[%s1 + $0x19c] sm:$0xf]
  %v374 = vld [vmem:[%s1 + $0x1a0] sm:$0xf]
  %v375 = vld [vmem:[%s1 + $0x1a4] sm:$0xf]
  %v376 = vld [vmem:[%s1 + $0x1a8] sm:$0xf]
  %v377 = vld [vmem:[%s1 + $0x1ac] sm:$0xf]
  %v378 = vld [vmem:[%s1 + $0x1b0] sm:$0xf]
  %v379 = vld [vmem:[%s1 + $0x1b4] sm:$0xf]
  %v380 = vld [vmem:[%s1 + $0x1b8] sm:$0xf]
  %v381 = vld [vmem:[%s1 + $0x1bc] sm:$0xf]
  %v382 = vld [vmem:[%s1 + $0x1c0] sm:$0xf]
  %v383 = vld [vmem:[%s1 + $0x1c4] sm:$0xf]
  %v384 = vld [vmem:[%s1 + $0x1c8] sm:$0xf]
  %v385 = vld [vmem:[%s1 + $0x1cc] sm:$0xf]
  %v386 = vld [vmem:[%s1 + $0x1d0] sm:$0xf]
  %v387 = vld [vmem:[%s1 + $0x1d4] sm:$0xf]
  %v388 = vld [vmem:[%s1 + $0x1d8] sm:$0xf]
  %v389 = vld [vmem:[%s1 + $0x1dc] sm:$0xf]
  %v390 = vld [vmem:[%s1 + $0x1e0] sm:$0xf]
  %v391 = vld [vmem:[%s1 + $0x1e4] sm:$0xf]
  %v392 = vld [vmem:[%s1 + $0x1e8] sm:$0xf]
  %v393 = vld [vmem:[%s1 + $0x1ec] sm:$0xf]
  %v394 = vld [vmem:[%s1 + $0x1f0] sm:$0xf]
  %v395 = vld [vmem:[%s1 + $0x1f4] sm:$0xf]
  %v396 = vld [vmem:[%s1 + $0x1f8] sm:$0xf]
  %v397 = vld [vmem:[%s1 + $0x1fc] sm:$0xf]
  %v398 = vld [vmem:[%s2] sm:$0x1]
  %v400 = vperm.slane %v398, 0
  %v658 = vunpack.c.l.b16 %v14
  %v659 = vunpack.c.h.b16 %v14
  %v660 = vunpack.c.l.b16 %v15
  %v661 = vunpack.c.h.b16 %v15
  %v662 = vunpack.c.l.b16 %v16
  %v663 = vunpack.c.h.b16 %v16
  %v664 = vunpack.c.l.b16 %v17
  %v665 = vunpack.c.h.b16 %v17
  %v666 = vunpack.c.l.b16 %v18
  %v667 = vunpack.c.h.b16 %v18
  %v668 = vunpack.c.l.b16 %v19
  %v669 = vunpack.c.h.b16 %v19
  %v670 = vunpack.c.l.b16 %v20
  %v671 = vunpack.c.h.b16 %v20
  %v672 = vunpack.c.l.b16 %v21
  %v673 = vunpack.c.h.b16 %v21
  %v674 = vunpack.c.l.b16 %v22
  %v675 = vunpack.c.h.b16 %v22
  %v676 = vunpack.c.l.b16 %v23
  %v677 = vunpack.c.h.b16 %v23
  %v678 = vunpack.c.l.b16 %v24
  %v679 = vunpack.c.h.b16 %v24
  %v680 = vunpack.c.l.b16 %v25
  %v681 = vunpack.c.h.b16 %v25
  %v682 = vunpack.c.l.b16 %v26
  %v683 = vunpack.c.h.b16 %v26
  %v684 = vunpack.c.l.b16 %v27
  %v685 = vunpack.c.h.b16 %v27
  %v686 = vunpack.c.l.b16 %v28
  %v687 = vunpack.c.h.b16 %v28
  %v688 = vunpack.c.l.b16 %v29
  %v689 = vunpack.c.h.b16 %v29
  %v690 = vunpack.c.l.b16 %v30
  %v691 = vunpack.c.h.b16 %v30
  %v692 = vunpack.c.l.b16 %v31
  %v693 = vunpack.c.h.b16 %v31
  %v694 = vunpack.c.l.b16 %v32
  %v695 = vunpack.c.h.b16 %v32
  %v696 = vunpack.c.l.b16 %v33
  %v697 = vunpack.c.h.b16 %v33
  %v698 = vunpack.c.l.b16 %v34
  %v699 = vunpack.c.h.b16 %v34
  %v700 = vunpack.c.l.b16 %v35
  %v701 = vunpack.c.h.b16 %v35
  %v702 = vunpack.c.l.b16 %v36
  %v703 = vunpack.c.h.b16 %v36
  %v704 = vunpack.c.l.b16 %v37
  %v705 = vunpack.c.h.b16 %v37
  %v706 = vunpack.c.l.b16 %v38
  %v707 = vunpack.c.h.b16 %v38
  %v708 = vunpack.c.l.b16 %v39
  %v709 = vunpack.c.h.b16 %v39
  %v710 = vunpack.c.l.b16 %v40
  %v711 = vunpack.c.h.b16 %v40
  %v712 = vunpack.c.l.b16 %v41
  %v713 = vunpack.c.h.b16 %v41
  %v714 = vunpack.c.l.b16 %v42
  %v715 = vunpack.c.h.b16 %v42
  %v716 = vunpack.c.l.b16 %v43
  %v717 = vunpack.c.h.b16 %v43
  %v718 = vunpack.c.l.b16 %v44
  %v719 = vunpack.c.h.b16 %v44
  %v720 = vunpack.c.l.b16 %v45
  %v721 = vunpack.c.h.b16 %v45
  %v722 = vunpack.c.l.b16 %v46
  %v723 = vunpack.c.h.b16 %v46
  %v724 = vunpack.c.l.b16 %v47
  %v725 = vunpack.c.h.b16 %v47
  %v726 = vunpack.c.l.b16 %v48
  %v727 = vunpack.c.h.b16 %v48
  %v728 = vunpack.c.l.b16 %v49
  %v729 = vunpack.c.h.b16 %v49
  %v730 = vunpack.c.l.b16 %v50
  %v731 = vunpack.c.h.b16 %v50
  %v732 = vunpack.c.l.b16 %v51
  %v733 = vunpack.c.h.b16 %v51
  %v734 = vunpack.c.l.b16 %v52
  %v735 = vunpack.c.h.b16 %v52
  %v736 = vunpack.c.l.b16 %v53
  %v737 = vunpack.c.h.b16 %v53
  %v738 = vunpack.c.l.b16 %v54
  %v739 = vunpack.c.h.b16 %v54
  %v740 = vunpack.c.l.b16 %v55
  %v741 = vunpack.c.h.b16 %v55
  %v742 = vunpack.c.l.b16 %v56
  %v743 = vunpack.c.h.b16 %v56
  %v744 = vunpack.c.l.b16 %v57
  %v745 = vunpack.c.h.b16 %v57
  %v746 = vunpack.c.l.b16 %v58
  %v747 = vunpack.c.h.b16 %v58
  %v748 = vunpack.c.l.b16 %v59
  %v749 = vunpack.c.h.b16 %v59
  %v750 = vunpack.c.l.b16 %v60
  %v751 = vunpack.c.h.b16 %v60
  %v752 = vunpack.c.l.b16 %v61
  %v753 = vunpack.c.h.b16 %v61
  %v754 = vunpack.c.l.b16 %v62
  %v755 = vunpack.c.h.b16 %v62
  %v756 = vunpack.c.l.b16 %v63
  %v757 = vunpack.c.h.b16 %v63
  %v758 = vunpack.c.l.b16 %v64
  %v759 = vunpack.c.h.b16 %v64
  %v760 = vunpack.c.l.b16 %v65
  %v761 = vunpack.c.h.b16 %v65
  %v762 = vunpack.c.l.b16 %v66
  %v763 = vunpack.c.h.b16 %v66
  %v764 = vunpack.c.l.b16 %v67
  %v765 = vunpack.c.h.b16 %v67
  %v766 = vunpack.c.l.b16 %v68
  %v767 = vunpack.c.h.b16 %v68
  %v768 = vunpack.c.l.b16 %v69
  %v769 = vunpack.c.h.b16 %v69
  %v770 = vunpack.c.l.b16 %v70
  %v771 = vunpack.c.h.b16 %v70
  %v772 = vunpack.c.l.b16 %v71
  %v773 = vunpack.c.h.b16 %v71
  %v774 = vunpack.c.l.b16 %v72
  %v775 = vunpack.c.h.b16 %v72
  %v776 = vunpack.c.l.b16 %v73
  %v777 = vunpack.c.h.b16 %v73
  %v778 = vunpack.c.l.b16 %v74
  %v779 = vunpack.c.h.b16 %v74
  %v780 = vunpack.c.l.b16 %v75
  %v781 = vunpack.c.h.b16 %v75
  %v782 = vunpack.c.l.b16 %v76
  %v783 = vunpack.c.h.b16 %v76
  %v784 = vunpack.c.l.b16 %v77
  %v785 = vunpack.c.h.b16 %v77
  %v786 = vunpack.c.l.b16 %v78
  %v787 = vunpack.c.h.b16 %v78
  %v788 = vunpack.c.l.b16 %v79
  %v789 = vunpack.c.h.b16 %v79
  %v790 = vunpack.c.l.b16 %v80
  %v791 = vunpack.c.h.b16 %v80
  %v792 = vunpack.c.l.b16 %v81
  %v793 = vunpack.c.h.b16 %v81
  %v794 = vunpack.c.l.b16 %v82
  %v795 = vunpack.c.h.b16 %v82
  %v796 = vunpack.c.l.b16 %v83
  %v797 = vunpack.c.h.b16 %v83
  %v798 = vunpack.c.l.b16 %v84
  %v799 = vunpack.c.h.b16 %v84
  %v800 = vunpack.c.l.b16 %v85
  %v801 = vunpack.c.h.b16 %v85
  %v802 = vunpack.c.l.b16 %v86
  %v803 = vunpack.c.h.b16 %v86
  %v804 = vunpack.c.l.b16 %v87
  %v805 = vunpack.c.h.b16 %v87
  %v806 = vunpack.c.l.b16 %v88
  %v807 = vunpack.c.h.b16 %v88
  %v808 = vunpack.c.l.b16 %v89
  %v809 = vunpack.c.h.b16 %v89
  %v810 = vunpack.c.l.b16 %v90
  %v811 = vunpack.c.h.b16 %v90
  %v812 = vunpack.c.l.b16 %v91
  %v813 = vunpack.c.h.b16 %v91
  %v814 = vunpack.c.l.b16 %v92
  %v815 = vunpack.c.h.b16 %v92
  %v816 = vunpack.c.l.b16 %v93
  %v817 = vunpack.c.h.b16 %v93
  %v818 = vunpack.c.l.b16 %v94
  %v819 = vunpack.c.h.b16 %v94
  %v820 = vunpack.c.l.b16 %v95
  %v821 = vunpack.c.h.b16 %v95
  %v822 = vunpack.c.l.b16 %v96
  %v823 = vunpack.c.h.b16 %v96
  %v824 = vunpack.c.l.b16 %v97
  %v825 = vunpack.c.h.b16 %v97
  %v826 = vunpack.c.l.b16 %v98
  %v827 = vunpack.c.h.b16 %v98
  %v828 = vunpack.c.l.b16 %v99
  %v829 = vunpack.c.h.b16 %v99
  %v830 = vunpack.c.l.b16 %v100
  %v831 = vunpack.c.h.b16 %v100
  %v832 = vunpack.c.l.b16 %v101
  %v833 = vunpack.c.h.b16 %v101
  %v834 = vunpack.c.l.b16 %v102
  %v835 = vunpack.c.h.b16 %v102
  %v836 = vunpack.c.l.b16 %v103
  %v837 = vunpack.c.h.b16 %v103
  %v838 = vunpack.c.l.b16 %v104
  %v839 = vunpack.c.h.b16 %v104
  %v840 = vunpack.c.l.b16 %v105
  %v841 = vunpack.c.h.b16 %v105
  %v842 = vunpack.c.l.b16 %v106
  %v843 = vunpack.c.h.b16 %v106
  %v844 = vunpack.c.l.b16 %v107
  %v845 = vunpack.c.h.b16 %v107
  %v846 = vunpack.c.l.b16 %v108
  %v847 = vunpack.c.h.b16 %v108
  %v848 = vunpack.c.l.b16 %v109
  %v849 = vunpack.c.h.b16 %v109
  %v850 = vunpack.c.l.b16 %v110
  %v851 = vunpack.c.h.b16 %v110
  %v852 = vunpack.c.l.b16 %v111
  %v853 = vunpack.c.h.b16 %v111
  %v854 = vunpack.c.l.b16 %v112
  %v855 = vunpack.c.h.b16 %v112
  %v856 = vunpack.c.l.b16 %v113
  %v857 = vunpack.c.h.b16 %v113
  %v858 = vunpack.c.l.b16 %v114
  %v859 = vunpack.c.h.b16 %v114
  %v860 = vunpack.c.l.b16 %v115
  %v861 = vunpack.c.h.b16 %v115
  %v862 = vunpack.c.l.b16 %v116
  %v863 = vunpack.c.h.b16 %v116
  %v864 = vunpack.c.l.b16 %v117
  %v865 = vunpack.c.h.b16 %v117
  %v866 = vunpack.c.l.b16 %v118
  %v867 = vunpack.c.h.b16 %v118
  %v868 = vunpack.c.l.b16 %v119
  %v869 = vunpack.c.h.b16 %v119
  %v870 = vunpack.c.l.b16 %v120
  %v871 = vunpack.c.h.b16 %v120
  %v872 = vunpack.c.l.b16 %v121
  %v873 = vunpack.c.h.b16 %v121
  %v874 = vunpack.c.l.b16 %v122
  %v875 = vunpack.c.h.b16 %v122
  %v876 = vunpack.c.l.b16 %v123
  %v877 = vunpack.c.h.b16 %v123
  %v878 = vunpack.c.l.b16 %v124
  %v879 = vunpack.c.h.b16 %v124
  %v880 = vunpack.c.l.b16 %v125
  %v881 = vunpack.c.h.b16 %v125
  %v882 = vunpack.c.l.b16 %v126
  %v883 = vunpack.c.h.b16 %v126
  %v884 = vunpack.c.l.b16 %v127
  %v885 = vunpack.c.h.b16 %v127
  %v886 = vunpack.c.l.b16 %v128
  %v887 = vunpack.c.h.b16 %v128
  %v888 = vunpack.c.l.b16 %v129
  %v889 = vunpack.c.h.b16 %v129
  %v890 = vunpack.c.l.b16 %v130
  %v891 = vunpack.c.h.b16 %v130
  %v892 = vunpack.c.l.b16 %v131
  %v893 = vunpack.c.h.b16 %v131
  %v894 = vunpack.c.l.b16 %v132
  %v895 = vunpack.c.h.b16 %v132
  %v896 = vunpack.c.l.b16 %v133
  %v897 = vunpack.c.h.b16 %v133
  %v898 = vunpack.c.l.b16 %v134
  %v899 = vunpack.c.h.b16 %v134
  %v900 = vunpack.c.l.b16 %v135
  %v901 = vunpack.c.h.b16 %v135
  %v902 = vunpack.c.l.b16 %v136
  %v903 = vunpack.c.h.b16 %v136
  %v904 = vunpack.c.l.b16 %v137
  %v905 = vunpack.c.h.b16 %v137
  %v906 = vunpack.c.l.b16 %v138
  %v907 = vunpack.c.h.b16 %v138
  %v908 = vunpack.c.l.b16 %v139
  %v909 = vunpack.c.h.b16 %v139
  %v910 = vunpack.c.l.b16 %v140
  %v911 = vunpack.c.h.b16 %v140
  %v912 = vunpack.c.l.b16 %v141
  %v913 = vunpack.c.h.b16 %v141
  %v914 = vunpack.c.l.b16 %v142
  %v915 = vunpack.c.h.b16 %v142
  %v916 = vunpack.c.l.b16 %v143
  %v917 = vunpack.c.h.b16 %v143
  %v918 = vunpack.c.l.b16 %v144
  %v919 = vunpack.c.h.b16 %v144
  %v920 = vunpack.c.l.b16 %v145
  %v921 = vunpack.c.h.b16 %v145
  %v922 = vunpack.c.l.b16 %v146
  %v923 = vunpack.c.h.b16 %v146
  %v924 = vunpack.c.l.b16 %v147
  %v925 = vunpack.c.h.b16 %v147
  %v926 = vunpack.c.l.b16 %v148
  %v927 = vunpack.c.h.b16 %v148
  %v928 = vunpack.c.l.b16 %v149
  %v929 = vunpack.c.h.b16 %v149
  %v930 = vunpack.c.l.b16 %v150
  %v931 = vunpack.c.h.b16 %v150
  %v932 = vunpack.c.l.b16 %v151
  %v933 = vunpack.c.h.b16 %v151
  %v934 = vunpack.c.l.b16 %v152
  %v935 = vunpack.c.h.b16 %v152
  %v936 = vunpack.c.l.b16 %v153
  %v937 = vunpack.c.h.b16 %v153
  %v938 = vunpack.c.l.b16 %v154
  %v939 = vunpack.c.h.b16 %v154
  %v940 = vunpack.c.l.b16 %v155
  %v941 = vunpack.c.h.b16 %v155
  %v942 = vunpack.c.l.b16 %v156
  %v943 = vunpack.c.h.b16 %v156
  %v944 = vunpack.c.l.b16 %v157
  %v945 = vunpack.c.h.b16 %v157
  %v946 = vunpack.c.l.b16 %v158
  %v947 = vunpack.c.h.b16 %v158
  %v948 = vunpack.c.l.b16 %v159
  %v949 = vunpack.c.h.b16 %v159
  %v950 = vunpack.c.l.b16 %v160
  %v951 = vunpack.c.h.b16 %v160
  %v952 = vunpack.c.l.b16 %v161
  %v953 = vunpack.c.h.b16 %v161
  %v954 = vunpack.c.l.b16 %v162
  %v955 = vunpack.c.h.b16 %v162
  %v956 = vunpack.c.l.b16 %v163
  %v957 = vunpack.c.h.b16 %v163
  %v958 = vunpack.c.l.b16 %v164
  %v959 = vunpack.c.h.b16 %v164
  %v960 = vunpack.c.l.b16 %v165
  %v961 = vunpack.c.h.b16 %v165
  %v962 = vunpack.c.l.b16 %v166
  %v963 = vunpack.c.h.b16 %v166
  %v964 = vunpack.c.l.b16 %v167
  %v965 = vunpack.c.h.b16 %v167
  %v966 = vunpack.c.l.b16 %v168
  %v967 = vunpack.c.h.b16 %v168
  %v968 = vunpack.c.l.b16 %v169
  %v969 = vunpack.c.h.b16 %v169
  %v970 = vunpack.c.l.b16 %v170
  %v971 = vunpack.c.h.b16 %v170
  %v972 = vunpack.c.l.b16 %v171
  %v973 = vunpack.c.h.b16 %v171
  %v974 = vunpack.c.l.b16 %v172
  %v975 = vunpack.c.h.b16 %v172
  %v976 = vunpack.c.l.b16 %v173
  %v977 = vunpack.c.h.b16 %v173
  %v978 = vunpack.c.l.b16 %v174
  %v979 = vunpack.c.h.b16 %v174
  %v980 = vunpack.c.l.b16 %v175
  %v981 = vunpack.c.h.b16 %v175
  %v982 = vunpack.c.l.b16 %v176
  %v983 = vunpack.c.h.b16 %v176
  %v984 = vunpack.c.l.b16 %v177
  %v985 = vunpack.c.h.b16 %v177
  %v986 = vunpack.c.l.b16 %v178
  %v987 = vunpack.c.h.b16 %v178
  %v988 = vunpack.c.l.b16 %v179
  %v989 = vunpack.c.h.b16 %v179
  %v990 = vunpack.c.l.b16 %v180
  %v991 = vunpack.c.h.b16 %v180
  %v992 = vunpack.c.l.b16 %v181
  %v993 = vunpack.c.h.b16 %v181
  %v994 = vunpack.c.l.b16 %v182
  %v995 = vunpack.c.h.b16 %v182
  %v996 = vunpack.c.l.b16 %v183
  %v997 = vunpack.c.h.b16 %v183
  %v998 = vunpack.c.l.b16 %v184
  %v999 = vunpack.c.h.b16 %v184
  %v1000 = vunpack.c.l.b16 %v185
  %v1001 = vunpack.c.h.b16 %v185
  %v1002 = vunpack.c.l.b16 %v186
  %v1003 = vunpack.c.h.b16 %v186
  %v1004 = vunpack.c.l.b16 %v187
  %v1005 = vunpack.c.h.b16 %v187
  %v1006 = vunpack.c.l.b16 %v188
  %v1007 = vunpack.c.h.b16 %v188
  %v1008 = vunpack.c.l.b16 %v189
  %v1009 = vunpack.c.h.b16 %v189
  %v1010 = vunpack.c.l.b16 %v190
  %v1011 = vunpack.c.h.b16 %v190
  %v1012 = vunpack.c.l.b16 %v191
  %v1013 = vunpack.c.h.b16 %v191
  %v1014 = vunpack.c.l.b16 %v192
  %v1015 = vunpack.c.h.b16 %v192
  %v1016 = vunpack.c.l.b16 %v193
  %v1017 = vunpack.c.h.b16 %v193
  %v1018 = vunpack.c.l.b16 %v194
  %v1019 = vunpack.c.h.b16 %v194
  %v1020 = vunpack.c.l.b16 %v195
  %v1021 = vunpack.c.h.b16 %v195
  %v1022 = vunpack.c.l.b16 %v196
  %v1023 = vunpack.c.h.b16 %v196
  %v1024 = vunpack.c.l.b16 %v197
  %v1025 = vunpack.c.h.b16 %v197
  %v1026 = vunpack.c.l.b16 %v198
  %v1027 = vunpack.c.h.b16 %v198
  %v1028 = vunpack.c.l.b16 %v199
  %v1029 = vunpack.c.h.b16 %v199
  %v1030 = vunpack.c.l.b16 %v200
  %v1031 = vunpack.c.h.b16 %v200
  %v1032 = vunpack.c.l.b16 %v201
  %v1033 = vunpack.c.h.b16 %v201
  %v1034 = vunpack.c.l.b16 %v202
  %v1035 = vunpack.c.h.b16 %v202
  %v1036 = vunpack.c.l.b16 %v203
  %v1037 = vunpack.c.h.b16 %v203
  %v1038 = vunpack.c.l.b16 %v204
  %v1039 = vunpack.c.h.b16 %v204
  %v1040 = vunpack.c.l.b16 %v205
  %v1041 = vunpack.c.h.b16 %v205
  %v1042 = vunpack.c.l.b16 %v206
  %v1043 = vunpack.c.h.b16 %v206
  %v1044 = vunpack.c.l.b16 %v207
  %v1045 = vunpack.c.h.b16 %v207
  %v1046 = vunpack.c.l.b16 %v208
  %v1047 = vunpack.c.h.b16 %v208
  %v1048 = vunpack.c.l.b16 %v209
  %v1049 = vunpack.c.h.b16 %v209
  %v1050 = vunpack.c.l.b16 %v210
  %v1051 = vunpack.c.h.b16 %v210
  %v1052 = vunpack.c.l.b16 %v211
  %v1053 = vunpack.c.h.b16 %v211
  %v1054 = vunpack.c.l.b16 %v212
  %v1055 = vunpack.c.h.b16 %v212
  %v1056 = vunpack.c.l.b16 %v213
  %v1057 = vunpack.c.h.b16 %v213
  %v1058 = vunpack.c.l.b16 %v214
  %v1059 = vunpack.c.h.b16 %v214
  %v1060 = vunpack.c.l.b16 %v215
  %v1061 = vunpack.c.h.b16 %v215
  %v1062 = vunpack.c.l.b16 %v216
  %v1063 = vunpack.c.h.b16 %v216
  %v1064 = vunpack.c.l.b16 %v217
  %v1065 = vunpack.c.h.b16 %v217
  %v1066 = vunpack.c.l.b16 %v218
  %v1067 = vunpack.c.h.b16 %v218
  %v1068 = vunpack.c.l.b16 %v219
  %v1069 = vunpack.c.h.b16 %v219
  %v1070 = vunpack.c.l.b16 %v220
  %v1071 = vunpack.c.h.b16 %v220
  %v1072 = vunpack.c.l.b16 %v221
  %v1073 = vunpack.c.h.b16 %v221
  %v1074 = vunpack.c.l.b16 %v222
  %v1075 = vunpack.c.h.b16 %v222
  %v1076 = vunpack.c.l.b16 %v223
  %v1077 = vunpack.c.h.b16 %v223
  %v1078 = vunpack.c.l.b16 %v224
  %v1079 = vunpack.c.h.b16 %v224
  %v1080 = vunpack.c.l.b16 %v225
  %v1081 = vunpack.c.h.b16 %v225
  %v1082 = vunpack.c.l.b16 %v226
  %v1083 = vunpack.c.h.b16 %v226
  %v1084 = vunpack.c.l.b16 %v227
  %v1085 = vunpack.c.h.b16 %v227
  %v1086 = vunpack.c.l.b16 %v228
  %v1087 = vunpack.c.h.b16 %v228
  %v1088 = vunpack.c.l.b16 %v229
  %v1089 = vunpack.c.h.b16 %v229
  %v1090 = vunpack.c.l.b16 %v230
  %v1091 = vunpack.c.h.b16 %v230
  %v1092 = vunpack.c.l.b16 %v231
  %v1093 = vunpack.c.h.b16 %v231
  %v1094 = vunpack.c.l.b16 %v232
  %v1095 = vunpack.c.h.b16 %v232
  %v1096 = vunpack.c.l.b16 %v233
  %v1097 = vunpack.c.h.b16 %v233
  %v1098 = vunpack.c.l.b16 %v234
  %v1099 = vunpack.c.h.b16 %v234
  %v1100 = vunpack.c.l.b16 %v235
  %v1101 = vunpack.c.h.b16 %v235
  %v1102 = vunpack.c.l.b16 %v236
  %v1103 = vunpack.c.h.b16 %v236
  %v1104 = vunpack.c.l.b16 %v237
  %v1105 = vunpack.c.h.b16 %v237
  %v1106 = vunpack.c.l.b16 %v238
  %v1107 = vunpack.c.h.b16 %v238
  %v1108 = vunpack.c.l.b16 %v239
  %v1109 = vunpack.c.h.b16 %v239
  %v1110 = vunpack.c.l.b16 %v240
  %v1111 = vunpack.c.h.b16 %v240
  %v1112 = vunpack.c.l.b16 %v241
  %v1113 = vunpack.c.h.b16 %v241
  %v1114 = vunpack.c.l.b16 %v242
  %v1115 = vunpack.c.h.b16 %v242
  %v1116 = vunpack.c.l.b16 %v243
  %v1117 = vunpack.c.h.b16 %v243
  %v1118 = vunpack.c.l.b16 %v244
  %v1119 = vunpack.c.h.b16 %v244
  %v1120 = vunpack.c.l.b16 %v245
  %v1121 = vunpack.c.h.b16 %v245
  %v1122 = vunpack.c.l.b16 %v246
  %v1123 = vunpack.c.h.b16 %v246
  %v1124 = vunpack.c.l.b16 %v247
  %v1125 = vunpack.c.h.b16 %v247
  %v1126 = vunpack.c.l.b16 %v248
  %v1127 = vunpack.c.h.b16 %v248
  %v1128 = vunpack.c.l.b16 %v249
  %v1129 = vunpack.c.h.b16 %v249
  %v1130 = vunpack.c.l.b16 %v250
  %v1131 = vunpack.c.h.b16 %v250
  %v1132 = vunpack.c.l.b16 %v251
  %v1133 = vunpack.c.h.b16 %v251
  %v1134 = vunpack.c.l.b16 %v252
  %v1135 = vunpack.c.h.b16 %v252
  %v1136 = vunpack.c.l.b16 %v253
  %v1137 = vunpack.c.h.b16 %v253
  %v1138 = vunpack.c.l.b16 %v254
  %v1139 = vunpack.c.h.b16 %v254
  %v1140 = vunpack.c.l.b16 %v255
  %v1141 = vunpack.c.h.b16 %v255
  %v1142 = vunpack.c.l.b16 %v256
  %v1143 = vunpack.c.h.b16 %v256
  %v1144 = vunpack.c.l.b16 %v257
  %v1145 = vunpack.c.h.b16 %v257
  %v1146 = vunpack.c.l.b16 %v258
  %v1147 = vunpack.c.h.b16 %v258
  %v1148 = vunpack.c.l.b16 %v259
  %v1149 = vunpack.c.h.b16 %v259
  %v1150 = vunpack.c.l.b16 %v260
  %v1151 = vunpack.c.h.b16 %v260
  %v1152 = vunpack.c.l.b16 %v261
  %v1153 = vunpack.c.h.b16 %v261
  %v1154 = vunpack.c.l.b16 %v262
  %v1155 = vunpack.c.h.b16 %v262
  %v1156 = vunpack.c.l.b16 %v263
  %v1157 = vunpack.c.h.b16 %v263
  %v1158 = vunpack.c.l.b16 %v264
  %v1159 = vunpack.c.h.b16 %v264
  %v1160 = vunpack.c.l.b16 %v265
  %v1161 = vunpack.c.h.b16 %v265
  %v1162 = vunpack.c.l.b16 %v266
  %v1163 = vunpack.c.h.b16 %v266
  %v1164 = vunpack.c.l.b16 %v267
  %v1165 = vunpack.c.h.b16 %v267
  %v1166 = vunpack.c.l.b16 %v268
  %v1167 = vunpack.c.h.b16 %v268
  %v1168 = vunpack.c.l.b16 %v269
  %v1169 = vunpack.c.h.b16 %v269
  %v1170 = vpack.c.b16 %v666, %v658
  %v1171 = vpack.c.b16 %v667, %v659
  %v1172 = vpack.c.b16 %v668, %v660
  %v1173 = vpack.c.b16 %v669, %v661
  %v1174 = vpack.c.b16 %v670, %v662
  %v1175 = vpack.c.b16 %v671, %v663
  %v1176 = vpack.c.b16 %v672, %v664
  %v1177 = vpack.c.b16 %v673, %v665
  %v1178 = vpack.c.b16 %v682, %v674
  %v1179 = vpack.c.b16 %v683, %v675
  %v1180 = vpack.c.b16 %v684, %v676
  %v1181 = vpack.c.b16 %v685, %v677
  %v1182 = vpack.c.b16 %v686, %v678
  %v1183 = vpack.c.b16 %v687, %v679
  %v1184 = vpack.c.b16 %v688, %v680
  %v1185 = vpack.c.b16 %v689, %v681
  %v1186 = vpack.c.b16 %v698, %v690
  %v1187 = vpack.c.b16 %v699, %v691
  %v1188 = vpack.c.b16 %v700, %v692
  %v1189 = vpack.c.b16 %v701, %v693
  %v1190 = vpack.c.b16 %v702, %v694
  %v1191 = vpack.c.b16 %v703, %v695
  %v1192 = vpack.c.b16 %v704, %v696
  %v1193 = vpack.c.b16 %v705, %v697
  %v1194 = vpack.c.b16 %v714, %v706
  %v1195 = vpack.c.b16 %v715, %v707
  %v1196 = vpack.c.b16 %v716, %v708
  %v1197 = vpack.c.b16 %v717, %v709
  %v1198 = vpack.c.b16 %v718, %v710
  %v1199 = vpack.c.b16 %v719, %v711
  %v1200 = vpack.c.b16 %v720, %v712
  %v1201 = vpack.c.b16 %v721, %v713
  %v1202 = vpack.c.b16 %v730, %v722
  %v1203 = vpack.c.b16 %v731, %v723
  %v1204 = vpack.c.b16 %v732, %v724
  %v1205 = vpack.c.b16 %v733, %v725
  %v1206 = vpack.c.b16 %v734, %v726
  %v1207 = vpack.c.b16 %v735, %v727
  %v1208 = vpack.c.b16 %v736, %v728
  %v1209 = vpack.c.b16 %v737, %v729
  %v1210 = vpack.c.b16 %v746, %v738
  %v1211 = vpack.c.b16 %v747, %v739
  %v1212 = vpack.c.b16 %v748, %v740
  %v1213 = vpack.c.b16 %v749, %v741
  %v1214 = vpack.c.b16 %v750, %v742
  %v1215 = vpack.c.b16 %v751, %v743
  %v1216 = vpack.c.b16 %v752, %v744
  %v1217 = vpack.c.b16 %v753, %v745
  %v1218 = vpack.c.b16 %v762, %v754
  %v1219 = vpack.c.b16 %v763, %v755
  %v1220 = vpack.c.b16 %v764, %v756
  %v1221 = vpack.c.b16 %v765, %v757
  %v1222 = vpack.c.b16 %v766, %v758
  %v1223 = vpack.c.b16 %v767, %v759
  %v1224 = vpack.c.b16 %v768, %v760
  %v1225 = vpack.c.b16 %v769, %v761
  %v1226 = vpack.c.b16 %v778, %v770
  %v1227 = vpack.c.b16 %v779, %v771
  %v1228 = vpack.c.b16 %v780, %v772
  %v1229 = vpack.c.b16 %v781, %v773
  %v1230 = vpack.c.b16 %v782, %v774
  %v1231 = vpack.c.b16 %v783, %v775
  %v1232 = vpack.c.b16 %v784, %v776
  %v1233 = vpack.c.b16 %v785, %v777
  %v1234 = vpack.c.b16 %v794, %v786
  %v1235 = vpack.c.b16 %v795, %v787
  %v1236 = vpack.c.b16 %v796, %v788
  %v1237 = vpack.c.b16 %v797, %v789
  %v1238 = vpack.c.b16 %v798, %v790
  %v1239 = vpack.c.b16 %v799, %v791
  %v1240 = vpack.c.b16 %v800, %v792
  %v1241 = vpack.c.b16 %v801, %v793
  %v1242 = vpack.c.b16 %v810, %v802
  %v1243 = vpack.c.b16 %v811, %v803
  %v1244 = vpack.c.b16 %v812, %v804
  %v1245 = vpack.c.b16 %v813, %v805
  %v1246 = vpack.c.b16 %v814, %v806
  %v1247 = vpack.c.b16 %v815, %v807
  %v1248 = vpack.c.b16 %v816, %v808
  %v1249 = vpack.c.b16 %v817, %v809
  %v1250 = vpack.c.b16 %v826, %v818
  %v1251 = vpack.c.b16 %v827, %v819
  %v1252 = vpack.c.b16 %v828, %v820
  %v1253 = vpack.c.b16 %v829, %v821
  %v1254 = vpack.c.b16 %v830, %v822
  %v1255 = vpack.c.b16 %v831, %v823
  %v1256 = vpack.c.b16 %v832, %v824
  %v1257 = vpack.c.b16 %v833, %v825
  %v1258 = vpack.c.b16 %v842, %v834
  %v1259 = vpack.c.b16 %v843, %v835
  %v1260 = vpack.c.b16 %v844, %v836
  %v1261 = vpack.c.b16 %v845, %v837
  %v1262 = vpack.c.b16 %v846, %v838
  %v1263 = vpack.c.b16 %v847, %v839
  %v1264 = vpack.c.b16 %v848, %v840
  %v1265 = vpack.c.b16 %v849, %v841
  %v1266 = vpack.c.b16 %v858, %v850
  %v1267 = vpack.c.b16 %v859, %v851
  %v1268 = vpack.c.b16 %v860, %v852
  %v1269 = vpack.c.b16 %v861, %v853
  %v1270 = vpack.c.b16 %v862, %v854
  %v1271 = vpack.c.b16 %v863, %v855
  %v1272 = vpack.c.b16 %v864, %v856
  %v1273 = vpack.c.b16 %v865, %v857
  %v1274 = vpack.c.b16 %v874, %v866
  %v1275 = vpack.c.b16 %v875, %v867
  %v1276 = vpack.c.b16 %v876, %v868
  %v1277 = vpack.c.b16 %v877, %v869
  %v1278 = vpack.c.b16 %v878, %v870
  %v1279 = vpack.c.b16 %v879, %v871
  %v1280 = vpack.c.b16 %v880, %v872
  %v1281 = vpack.c.b16 %v881, %v873
  %v1282 = vpack.c.b16 %v890, %v882
  %v1283 = vpack.c.b16 %v891, %v883
  %v1284 = vpack.c.b16 %v892, %v884
  %v1285 = vpack.c.b16 %v893, %v885
  %v1286 = vpack.c.b16 %v894, %v886
  %v1287 = vpack.c.b16 %v895, %v887
  %v1288 = vpack.c.b16 %v896, %v888
  %v1289 = vpack.c.b16 %v897, %v889
  %v1290 = vpack.c.b16 %v906, %v898
  %v1291 = vpack.c.b16 %v907, %v899
  %v1292 = vpack.c.b16 %v908, %v900
  %v1293 = vpack.c.b16 %v909, %v901
  %v1294 = vpack.c.b16 %v910, %v902
  %v1295 = vpack.c.b16 %v911, %v903
  %v1296 = vpack.c.b16 %v912, %v904
  %v1297 = vpack.c.b16 %v913, %v905
  %v1298 = vpack.c.b16 %v922, %v914
  %v1299 = vpack.c.b16 %v923, %v915
  %v1300 = vpack.c.b16 %v924, %v916
  %v1301 = vpack.c.b16 %v925, %v917
  %v1302 = vpack.c.b16 %v926, %v918
  %v1303 = vpack.c.b16 %v927, %v919
  %v1304 = vpack.c.b16 %v928, %v920
  %v1305 = vpack.c.b16 %v929, %v921
  %v1306 = vpack.c.b16 %v938, %v930
  %v1307 = vpack.c.b16 %v939, %v931
  %v1308 = vpack.c.b16 %v940, %v932
  %v1309 = vpack.c.b16 %v941, %v933
  %v1310 = vpack.c.b16 %v942, %v934
  %v1311 = vpack.c.b16 %v943, %v935
  %v1312 = vpack.c.b16 %v944, %v936
  %v1313 = vpack.c.b16 %v945, %v937
  %v1314 = vpack.c.b16 %v954, %v946
  %v1315 = vpack.c.b16 %v955, %v947
  %v1316 = vpack.c.b16 %v956, %v948
  %v1317 = vpack.c.b16 %v957, %v949
  %v1318 = vpack.c.b16 %v958, %v950
  %v1319 = vpack.c.b16 %v959, %v951
  %v1320 = vpack.c.b16 %v960, %v952
  %v1321 = vpack.c.b16 %v961, %v953
  %v1322 = vpack.c.b16 %v970, %v962
  %v1323 = vpack.c.b16 %v971, %v963
  %v1324 = vpack.c.b16 %v972, %v964
  %v1325 = vpack.c.b16 %v973, %v965
  %v1326 = vpack.c.b16 %v974, %v966
  %v1327 = vpack.c.b16 %v975, %v967
  %v1328 = vpack.c.b16 %v976, %v968
  %v1329 = vpack.c.b16 %v977, %v969
  %v1330 = vpack.c.b16 %v986, %v978
  %v1331 = vpack.c.b16 %v987, %v979
  %v1332 = vpack.c.b16 %v988, %v980
  %v1333 = vpack.c.b16 %v989, %v981
  %v1334 = vpack.c.b16 %v990, %v982
  %v1335 = vpack.c.b16 %v991, %v983
  %v1336 = vpack.c.b16 %v992, %v984
  %v1337 = vpack.c.b16 %v993, %v985
  %v1338 = vpack.c.b16 %v1002, %v994
  %v1339 = vpack.c.b16 %v1003, %v995
  %v1340 = vpack.c.b16 %v1004, %v996
  %v1341 = vpack.c.b16 %v1005, %v997
  %v1342 = vpack.c.b16 %v1006, %v998
  %v1343 = vpack.c.b16 %v1007, %v999
  %v1344 = vpack.c.b16 %v1008, %v1000
  %v1345 = vpack.c.b16 %v1009, %v1001
  %v1346 = vpack.c.b16 %v1018, %v1010
  %v1347 = vpack.c.b16 %v1019, %v1011
  %v1348 = vpack.c.b16 %v1020, %v1012
  %v1349 = vpack.c.b16 %v1021, %v1013
  %v1350 = vpack.c.b16 %v1022, %v1014
  %v1351 = vpack.c.b16 %v1023, %v1015
  %v1352 = vpack.c.b16 %v1024, %v1016
  %v1353 = vpack.c.b16 %v1025, %v1017
  %v1354 = vpack.c.b16 %v1034, %v1026
  %v1355 = vpack.c.b16 %v1035, %v1027
  %v1356 = vpack.c.b16 %v1036, %v1028
  %v1357 = vpack.c.b16 %v1037, %v1029
  %v1358 = vpack.c.b16 %v1038, %v1030
  %v1359 = vpack.c.b16 %v1039, %v1031
  %v1360 = vpack.c.b16 %v1040, %v1032
  %v1361 = vpack.c.b16 %v1041, %v1033
  %v1362 = vpack.c.b16 %v1050, %v1042
  %v1363 = vpack.c.b16 %v1051, %v1043
  %v1364 = vpack.c.b16 %v1052, %v1044
  %v1365 = vpack.c.b16 %v1053, %v1045
  %v1366 = vpack.c.b16 %v1054, %v1046
  %v1367 = vpack.c.b16 %v1055, %v1047
  %v1368 = vpack.c.b16 %v1056, %v1048
  %v1369 = vpack.c.b16 %v1057, %v1049
  %v1370 = vpack.c.b16 %v1066, %v1058
  %v1371 = vpack.c.b16 %v1067, %v1059
  %v1372 = vpack.c.b16 %v1068, %v1060
  %v1373 = vpack.c.b16 %v1069, %v1061
  %v1374 = vpack.c.b16 %v1070, %v1062
  %v1375 = vpack.c.b16 %v1071, %v1063
  %v1376 = vpack.c.b16 %v1072, %v1064
  %v1377 = vpack.c.b16 %v1073, %v1065
  %v1378 = vpack.c.b16 %v1082, %v1074
  %v1379 = vpack.c.b16 %v1083, %v1075
  %v1380 = vpack.c.b16 %v1084, %v1076
  %v1381 = vpack.c.b16 %v1085, %v1077
  %v1382 = vpack.c.b16 %v1086, %v1078
  %v1383 = vpack.c.b16 %v1087, %v1079
  %v1384 = vpack.c.b16 %v1088, %v1080
  %v1385 = vpack.c.b16 %v1089, %v1081
  %v1386 = vpack.c.b16 %v1098, %v1090
  %v1387 = vpack.c.b16 %v1099, %v1091
  %v1388 = vpack.c.b16 %v1100, %v1092
  %v1389 = vpack.c.b16 %v1101, %v1093
  %v1390 = vpack.c.b16 %v1102, %v1094
  %v1391 = vpack.c.b16 %v1103, %v1095
  %v1392 = vpack.c.b16 %v1104, %v1096
  %v1393 = vpack.c.b16 %v1105, %v1097
  %v1394 = vpack.c.b16 %v1114, %v1106
  %v1395 = vpack.c.b16 %v1115, %v1107
  %v1396 = vpack.c.b16 %v1116, %v1108
  %v1397 = vpack.c.b16 %v1117, %v1109
  %v1398 = vpack.c.b16 %v1118, %v1110
  %v1399 = vpack.c.b16 %v1119, %v1111
  %v1400 = vpack.c.b16 %v1120, %v1112
  %v1401 = vpack.c.b16 %v1121, %v1113
  %v1402 = vpack.c.b16 %v1130, %v1122
  %v1403 = vpack.c.b16 %v1131, %v1123
  %v1404 = vpack.c.b16 %v1132, %v1124
  %v1405 = vpack.c.b16 %v1133, %v1125
  %v1406 = vpack.c.b16 %v1134, %v1126
  %v1407 = vpack.c.b16 %v1135, %v1127
  %v1408 = vpack.c.b16 %v1136, %v1128
  %v1409 = vpack.c.b16 %v1137, %v1129
  %v1410 = vpack.c.b16 %v1146, %v1138
  %v1411 = vpack.c.b16 %v1147, %v1139
  %v1412 = vpack.c.b16 %v1148, %v1140
  %v1413 = vpack.c.b16 %v1149, %v1141
  %v1414 = vpack.c.b16 %v1150, %v1142
  %v1415 = vpack.c.b16 %v1151, %v1143
  %v1416 = vpack.c.b16 %v1152, %v1144
  %v1417 = vpack.c.b16 %v1153, %v1145
  %v1418 = vpack.c.b16 %v1162, %v1154
  %v1419 = vpack.c.b16 %v1163, %v1155
  %v1420 = vpack.c.b16 %v1164, %v1156
  %v1421 = vpack.c.b16 %v1165, %v1157
  %v1422 = vpack.c.b16 %v1166, %v1158
  %v1423 = vpack.c.b16 %v1167, %v1159
  %v1424 = vpack.c.b16 %v1168, %v1160
  %v1425 = vpack.c.b16 %v1169, %v1161
  %v1810 = vunpack.c.l.b16 %v270
  %v1811 = vunpack.c.l.b16 %v271
  %v1812 = vunpack.c.l.b16 %v272
  %v1813 = vunpack.c.l.b16 %v273
  %v1814 = vunpack.c.l.b16 %v274
  %v1815 = vunpack.c.l.b16 %v275
  %v1816 = vunpack.c.l.b16 %v276
  %v1817 = vunpack.c.l.b16 %v277
  %v1818 = vunpack.c.l.b16 %v278
  %v1819 = vunpack.c.l.b16 %v279
  %v1820 = vunpack.c.l.b16 %v280
  %v1821 = vunpack.c.l.b16 %v281
  %v1822 = vunpack.c.l.b16 %v282
  %v1823 = vunpack.c.l.b16 %v283
  %v1824 = vunpack.c.l.b16 %v284
  %v1825 = vunpack.c.l.b16 %v285
  %v1826 = vunpack.c.l.b16 %v286
  %v1827 = vunpack.c.l.b16 %v287
  %v1828 = vunpack.c.l.b16 %v288
  %v1829 = vunpack.c.l.b16 %v289
  %v1830 = vunpack.c.l.b16 %v290
  %v1831 = vunpack.c.l.b16 %v291
  %v1832 = vunpack.c.l.b16 %v292
  %v1833 = vunpack.c.l.b16 %v293
  %v1834 = vunpack.c.l.b16 %v294
  %v1835 = vunpack.c.l.b16 %v295
  %v1836 = vunpack.c.l.b16 %v296
  %v1837 = vunpack.c.l.b16 %v297
  %v1838 = vunpack.c.l.b16 %v298
  %v1839 = vunpack.c.l.b16 %v299
  %v1840 = vunpack.c.l.b16 %v300
  %v1841 = vunpack.c.l.b16 %v301
  %v1842 = vunpack.c.l.b16 %v302
  %v1843 = vunpack.c.l.b16 %v303
  %v1844 = vunpack.c.l.b16 %v304
  %v1845 = vunpack.c.l.b16 %v305
  %v1846 = vunpack.c.l.b16 %v306
  %v1847 = vunpack.c.l.b16 %v307
  %v1848 = vunpack.c.l.b16 %v308
  %v1849 = vunpack.c.l.b16 %v309
  %v1850 = vunpack.c.l.b16 %v310
  %v1851 = vunpack.c.l.b16 %v311
  %v1852 = vunpack.c.l.b16 %v312
  %v1853 = vunpack.c.l.b16 %v313
  %v1854 = vunpack.c.l.b16 %v314
  %v1855 = vunpack.c.l.b16 %v315
  %v1856 = vunpack.c.l.b16 %v316
  %v1857 = vunpack.c.l.b16 %v317
  %v1858 = vunpack.c.l.b16 %v318
  %v1859 = vunpack.c.l.b16 %v319
  %v1860 = vunpack.c.l.b16 %v320
  %v1861 = vunpack.c.l.b16 %v321
  %v1862 = vunpack.c.l.b16 %v322
  %v1863 = vunpack.c.l.b16 %v323
  %v1864 = vunpack.c.l.b16 %v324
  %v1865 = vunpack.c.l.b16 %v325
  %v1866 = vunpack.c.l.b16 %v326
  %v1867 = vunpack.c.l.b16 %v327
  %v1868 = vunpack.c.l.b16 %v328
  %v1869 = vunpack.c.l.b16 %v329
  %v1870 = vunpack.c.l.b16 %v330
  %v1871 = vunpack.c.l.b16 %v331
  %v1872 = vunpack.c.l.b16 %v332
  %v1873 = vunpack.c.l.b16 %v333
  %v1874 = vunpack.c.l.b16 %v334
  %v1875 = vunpack.c.l.b16 %v335
  %v1876 = vunpack.c.l.b16 %v336
  %v1877 = vunpack.c.l.b16 %v337
  %v1878 = vunpack.c.l.b16 %v338
  %v1879 = vunpack.c.l.b16 %v339
  %v1880 = vunpack.c.l.b16 %v340
  %v1881 = vunpack.c.l.b16 %v341
  %v1882 = vunpack.c.l.b16 %v342
  %v1883 = vunpack.c.l.b16 %v343
  %v1884 = vunpack.c.l.b16 %v344
  %v1885 = vunpack.c.l.b16 %v345
  %v1886 = vunpack.c.l.b16 %v346
  %v1887 = vunpack.c.l.b16 %v347
  %v1888 = vunpack.c.l.b16 %v348
  %v1889 = vunpack.c.l.b16 %v349
  %v1890 = vunpack.c.l.b16 %v350
  %v1891 = vunpack.c.l.b16 %v351
  %v1892 = vunpack.c.l.b16 %v352
  %v1893 = vunpack.c.l.b16 %v353
  %v1894 = vunpack.c.l.b16 %v354
  %v1895 = vunpack.c.l.b16 %v355
  %v1896 = vunpack.c.l.b16 %v356
  %v1897 = vunpack.c.l.b16 %v357
  %v1898 = vunpack.c.l.b16 %v358
  %v1899 = vunpack.c.l.b16 %v359
  %v1900 = vunpack.c.l.b16 %v360
  %v1901 = vunpack.c.l.b16 %v361
  %v1902 = vunpack.c.l.b16 %v362
  %v1903 = vunpack.c.l.b16 %v363
  %v1904 = vunpack.c.l.b16 %v364
  %v1905 = vunpack.c.l.b16 %v365
  %v1906 = vunpack.c.l.b16 %v366
  %v1907 = vunpack.c.l.b16 %v367
  %v1908 = vunpack.c.l.b16 %v368
  %v1909 = vunpack.c.l.b16 %v369
  %v1910 = vunpack.c.l.b16 %v370
  %v1911 = vunpack.c.l.b16 %v371
  %v1912 = vunpack.c.l.b16 %v372
  %v1913 = vunpack.c.l.b16 %v373
  %v1914 = vunpack.c.l.b16 %v374
  %v1915 = vunpack.c.l.b16 %v375
  %v1916 = vunpack.c.l.b16 %v376
  %v1917 = vunpack.c.l.b16 %v377
  %v1918 = vunpack.c.l.b16 %v378
  %v1919 = vunpack.c.l.b16 %v379
  %v1920 = vunpack.c.l.b16 %v380
  %v1921 = vunpack.c.l.b16 %v381
  %v1922 = vunpack.c.l.b16 %v382
  %v1923 = vunpack.c.l.b16 %v383
  %v1924 = vunpack.c.l.b16 %v384
  %v1925 = vunpack.c.l.b16 %v385
  %v1926 = vunpack.c.l.b16 %v386
  %v1927 = vunpack.c.l.b16 %v387
  %v1928 = vunpack.c.l.b16 %v388
  %v1929 = vunpack.c.l.b16 %v389
  %v1930 = vunpack.c.l.b16 %v390
  %v1931 = vunpack.c.l.b16 %v391
  %v1932 = vunpack.c.l.b16 %v392
  %v1933 = vunpack.c.l.b16 %v393
  %v1934 = vunpack.c.l.b16 %v394
  %v1935 = vunpack.c.l.b16 %v395
  %v1936 = vunpack.c.l.b16 %v396
  %v1937 = vunpack.c.l.b16 %v397
  %v1938 = vpack.c.b16 %v1811, %v1810
  %v1939 = vpack.c.b16 %v1813, %v1812
  %v1940 = vpack.c.b16 %v1815, %v1814
  %v1941 = vpack.c.b16 %v1817, %v1816
  %v1942 = vpack.c.b16 %v1819, %v1818
  %v1943 = vpack.c.b16 %v1821, %v1820
  %v1944 = vpack.c.b16 %v1823, %v1822
  %v1945 = vpack.c.b16 %v1825, %v1824
  %v1946 = vpack.c.b16 %v1827, %v1826
  %v1947 = vpack.c.b16 %v1829, %v1828
  %v1948 = vpack.c.b16 %v1831, %v1830
  %v1949 = vpack.c.b16 %v1833, %v1832
  %v1950 = vpack.c.b16 %v1835, %v1834
  %v1951 = vpack.c.b16 %v1837, %v1836
  %v1952 = vpack.c.b16 %v1839, %v1838
  %v1953 = vpack.c.b16 %v1841, %v1840
  %v1954 = vpack.c.b16 %v1843, %v1842
  %v1955 = vpack.c.b16 %v1845, %v1844
  %v1956 = vpack.c.b16 %v1847, %v1846
  %v1957 = vpack.c.b16 %v1849, %v1848
  %v1958 = vpack.c.b16 %v1851, %v1850
  %v1959 = vpack.c.b16 %v1853, %v1852
  %v1960 = vpack.c.b16 %v1855, %v1854
  %v1961 = vpack.c.b16 %v1857, %v1856
  %v1962 = vpack.c.b16 %v1859, %v1858
  %v1963 = vpack.c.b16 %v1861, %v1860
  %v1964 = vpack.c.b16 %v1863, %v1862
  %v1965 = vpack.c.b16 %v1865, %v1864
  %v1966 = vpack.c.b16 %v1867, %v1866
  %v1967 = vpack.c.b16 %v1869, %v1868
  %v1968 = vpack.c.b16 %v1871, %v1870
  %v1969 = vpack.c.b16 %v1873, %v1872
  %v1970 = vpack.c.b16 %v1875, %v1874
  %v1971 = vpack.c.b16 %v1877, %v1876
  %v1972 = vpack.c.b16 %v1879, %v1878
  %v1973 = vpack.c.b16 %v1881, %v1880
  %v1974 = vpack.c.b16 %v1883, %v1882
  %v1975 = vpack.c.b16 %v1885, %v1884
  %v1976 = vpack.c.b16 %v1887, %v1886
  %v1977 = vpack.c.b16 %v1889, %v1888
  %v1978 = vpack.c.b16 %v1891, %v1890
  %v1979 = vpack.c.b16 %v1893, %v1892
  %v1980 = vpack.c.b16 %v1895, %v1894
  %v1981 = vpack.c.b16 %v1897, %v1896
  %v1982 = vpack.c.b16 %v1899, %v1898
  %v1983 = vpack.c.b16 %v1901, %v1900
  %v1984 = vpack.c.b16 %v1903, %v1902
  %v1985 = vpack.c.b16 %v1905, %v1904
  %v1986 = vpack.c.b16 %v1907, %v1906
  %v1987 = vpack.c.b16 %v1909, %v1908
  %v1988 = vpack.c.b16 %v1911, %v1910
  %v1989 = vpack.c.b16 %v1913, %v1912
  %v1990 = vpack.c.b16 %v1915, %v1914
  %v1991 = vpack.c.b16 %v1917, %v1916
  %v1992 = vpack.c.b16 %v1919, %v1918
  %v1993 = vpack.c.b16 %v1921, %v1920
  %v1994 = vpack.c.b16 %v1923, %v1922
  %v1995 = vpack.c.b16 %v1925, %v1924
  %v1996 = vpack.c.b16 %v1927, %v1926
  %v1997 = vpack.c.b16 %v1929, %v1928
  %v1998 = vpack.c.b16 %v1931, %v1930
  %v1999 = vpack.c.b16 %v1933, %v1932
  %v2000 = vpack.c.b16 %v1935, %v1934
  %v2001 = vpack.c.b16 %v1937, %v1936
  %2066 = vmatpush.bf16.msra.mxu0 %v1945
  %2067 = vmatpush.bf16.msra.mxu0 %v1944
  %2068 = vmatpush.bf16.msra.mxu0 %v1943
  %2069 = vmatpush.bf16.msra.mxu0 %v1942
  %2070 = vmatpush.bf16.msra.mxu0 %v1941
  %2071 = vmatpush.bf16.msra.mxu0 %v1940
  %2072 = vmatpush.bf16.msra.mxu0 %v1939
  %2073 = vmatpush.bf16.msra.mxu0 %v1938
  %2074 = vmatmul.bf16.gmra.mxu0 %v1170
  %v2075 = vpop.f32.mrf.mxu0
  %v2076 = vadd.f32 %v400, %v2075
  %v2077 = vpop.f32.mrf.mxu0
  %v2078 = vadd.f32 %v400, %v2077
  %2079 = vmatmul.bf16.gmra.mxu0 %v1178
  %v2080 = vpop.f32.mrf.mxu0
  %v2081 = vadd.f32 %v400, %v2080
  %v2082 = vpop.f32.mrf.mxu0
  %v2083 = vadd.f32 %v400, %v2082
  %2084 = vmatmul.bf16.gmra.mxu0 %v1186
  %v2085 = vpop.f32.mrf.mxu0
  %v2086 = vadd.f32 %v400, %v2085
  %v2087 = vpop.f32.mrf.mxu0
  %v2088 = vadd.f32 %v400, %v2087
  %2089 = vmatmul.bf16.gmra.mxu0 %v1194
  %v2090 = vpop.f32.mrf.mxu0
  %v2091 = vadd.f32 %v400, %v2090
  %v2092 = vpop.f32.mrf.mxu0
  %v2093 = vadd.f32 %v400, %v2092
  %2094 = vmatmul.bf16.gmra.mxu0 %v1202
  %v2095 = vpop.f32.mrf.mxu0
  %v2096 = vadd.f32 %v400, %v2095
  %v2097 = vpop.f32.mrf.mxu0
  %v2098 = vadd.f32 %v400, %v2097
  %2099 = vmatmul.bf16.gmra.mxu0 %v1210
  %v2100 = vpop.f32.mrf.mxu0
  %v2101 = vadd.f32 %v400, %v2100
  %v2102 = vpop.f32.mrf.mxu0
  %v2103 = vadd.f32 %v400, %v2102
  %2104 = vmatmul.bf16.gmra.mxu0 %v1218
  %v2105 = vpop.f32.mrf.mxu0
  %v2106 = vadd.f32 %v400, %v2105
  %v2107 = vpop.f32.mrf.mxu0
  %v2108 = vadd.f32 %v400, %v2107
  %2109 = vmatmul.bf16.gmra.mxu0 %v1226
  %v2110 = vpop.f32.mrf.mxu0
  %v2111 = vadd.f32 %v400, %v2110
  %v2112 = vpop.f32.mrf.mxu0
  %v2113 = vadd.f32 %v400, %v2112
  %2114 = vmatmul.bf16.gmra.mxu0 %v1234
  %v2115 = vpop.f32.mrf.mxu0
  %v2116 = vadd.f32 %v400, %v2115
  %v2117 = vpop.f32.mrf.mxu0
  %v2118 = vadd.f32 %v400, %v2117
  %2119 = vmatmul.bf16.gmra.mxu0 %v1242
  %v2120 = vpop.f32.mrf.mxu0
  %v2121 = vadd.f32 %v400, %v2120
  %v2122 = vpop.f32.mrf.mxu0
  %v2123 = vadd.f32 %v400, %v2122
  %2124 = vmatmul.bf16.gmra.mxu0 %v1250
  %v2125 = vpop.f32.mrf.mxu0
  %v2126 = vadd.f32 %v400, %v2125
  %v2127 = vpop.f32.mrf.mxu0
  %v2128 = vadd.f32 %v400, %v2127
  %2129 = vmatmul.bf16.gmra.mxu0 %v1258
  %v2130 = vpop.f32.mrf.mxu0
  %v2131 = vadd.f32 %v400, %v2130
  %v2132 = vpop.f32.mrf.mxu0
  %v2133 = vadd.f32 %v400, %v2132
  %2134 = vmatmul.bf16.gmra.mxu0 %v1266
  %v2135 = vpop.f32.mrf.mxu0
  %v2136 = vadd.f32 %v400, %v2135
  %v2137 = vpop.f32.mrf.mxu0
  %v2138 = vadd.f32 %v400, %v2137
  %2139 = vmatmul.bf16.gmra.mxu0 %v1274
  %v2140 = vpop.f32.mrf.mxu0
  %v2141 = vadd.f32 %v400, %v2140
  %v2142 = vpop.f32.mrf.mxu0
  %v2143 = vadd.f32 %v400, %v2142
  %2144 = vmatmul.bf16.gmra.mxu0 %v1282
  %v2145 = vpop.f32.mrf.mxu0
  %v2146 = vadd.f32 %v400, %v2145
  %v2147 = vpop.f32.mrf.mxu0
  %v2148 = vadd.f32 %v400, %v2147
  %2149 = vmatmul.bf16.gmra.mxu0 %v1290
  %v2150 = vpop.f32.mrf.mxu0
  %v2151 = vadd.f32 %v400, %v2150
  %v2152 = vpop.f32.mrf.mxu0
  %v2153 = vadd.f32 %v400, %v2152
  %2154 = vmatmul.bf16.gmra.mxu0 %v1298
  %v2155 = vpop.f32.mrf.mxu0
  %v2156 = vadd.f32 %v400, %v2155
  %v2157 = vpop.f32.mrf.mxu0
  %v2158 = vadd.f32 %v400, %v2157
  %2159 = vmatmul.bf16.gmra.mxu0 %v1306
  %v2160 = vpop.f32.mrf.mxu0
  %v2161 = vadd.f32 %v400, %v2160
  %v2162 = vpop.f32.mrf.mxu0
  %v2163 = vadd.f32 %v400, %v2162
  %2164 = vmatmul.bf16.gmra.mxu0 %v1314
  %v2165 = vpop.f32.mrf.mxu0
  %v2166 = vadd.f32 %v400, %v2165
  %v2167 = vpop.f32.mrf.mxu0
  %v2168 = vadd.f32 %v400, %v2167
  %2169 = vmatmul.bf16.gmra.mxu0 %v1322
  %v2170 = vpop.f32.mrf.mxu0
  %v2171 = vadd.f32 %v400, %v2170
  %v2172 = vpop.f32.mrf.mxu0
  %v2173 = vadd.f32 %v400, %v2172
  %2174 = vmatmul.bf16.gmra.mxu0 %v1330
  %v2175 = vpop.f32.mrf.mxu0
  %v2176 = vadd.f32 %v400, %v2175
  %v2177 = vpop.f32.mrf.mxu0
  %v2178 = vadd.f32 %v400, %v2177
  %2179 = vmatmul.bf16.gmra.mxu0 %v1338
  %v2180 = vpop.f32.mrf.mxu0
  %v2181 = vadd.f32 %v400, %v2180
  %v2182 = vpop.f32.mrf.mxu0
  %v2183 = vadd.f32 %v400, %v2182
  %2184 = vmatmul.bf16.gmra.mxu0 %v1346
  %v2185 = vpop.f32.mrf.mxu0
  %v2186 = vadd.f32 %v400, %v2185
  %v2187 = vpop.f32.mrf.mxu0
  %v2188 = vadd.f32 %v400, %v2187
  %2189 = vmatmul.bf16.gmra.mxu0 %v1354
  %v2190 = vpop.f32.mrf.mxu0
  %v2191 = vadd.f32 %v400, %v2190
  %v2192 = vpop.f32.mrf.mxu0
  %v2193 = vadd.f32 %v400, %v2192
  %2194 = vmatmul.bf16.gmra.mxu0 %v1362
  %v2195 = vpop.f32.mrf.mxu0
  %v2196 = vadd.f32 %v400, %v2195
  %v2197 = vpop.f32.mrf.mxu0
  %v2198 = vadd.f32 %v400, %v2197
  %2199 = vmatmul.bf16.gmra.mxu0 %v1370
  %v2200 = vpop.f32.mrf.mxu0
  %v2201 = vadd.f32 %v400, %v2200
  %v2202 = vpop.f32.mrf.mxu0
  %v2203 = vadd.f32 %v400, %v2202
  %2204 = vmatmul.bf16.gmra.mxu0 %v1378
  %v2205 = vpop.f32.mrf.mxu0
  %v2206 = vadd.f32 %v400, %v2205
  %v2207 = vpop.f32.mrf.mxu0
  %v2208 = vadd.f32 %v400, %v2207
  %2209 = vmatmul.bf16.gmra.mxu0 %v1386
  %v2210 = vpop.f32.mrf.mxu0
  %v2211 = vadd.f32 %v400, %v2210
  %v2212 = vpop.f32.mrf.mxu0
  %v2213 = vadd.f32 %v400, %v2212
  %2214 = vmatmul.bf16.gmra.mxu0 %v1394
  %v2215 = vpop.f32.mrf.mxu0
  %v2216 = vadd.f32 %v400, %v2215
  %v2217 = vpop.f32.mrf.mxu0
  %v2218 = vadd.f32 %v400, %v2217
  %2219 = vmatmul.bf16.gmra.mxu0 %v1402
  %v2220 = vpop.f32.mrf.mxu0
  %v2221 = vadd.f32 %v400, %v2220
  %v2222 = vpop.f32.mrf.mxu0
  %v2223 = vadd.f32 %v400, %v2222
  %2224 = vmatmul.bf16.gmra.mxu0 %v1410
  %v2225 = vpop.f32.mrf.mxu0
  %v2226 = vadd.f32 %v400, %v2225
  %v2227 = vpop.f32.mrf.mxu0
  %v2228 = vadd.f32 %v400, %v2227
  %2229 = vmatmul.bf16.gmra.mxu0 %v1418
  %v2230 = vpop.f32.mrf.mxu0
  %v2231 = vadd.f32 %v400, %v2230
  %v2232 = vpop.f32.mrf.mxu0
  %v2233 = vadd.f32 %v400, %v2232
  %2234 = vdwg.mxu0
  %2235 = vmatpush.bf16.msra.mxu0 %v1953
  %2236 = vmatpush.bf16.msra.mxu0 %v1952
  %2237 = vmatpush.bf16.msra.mxu0 %v1951
  %2238 = vmatpush.bf16.msra.mxu0 %v1950
  %2239 = vmatpush.bf16.msra.mxu0 %v1949
  %2240 = vmatpush.bf16.msra.mxu0 %v1948
  %2241 = vmatpush.bf16.msra.mxu0 %v1947
  %2242 = vmatpush.bf16.msra.mxu0 %v1946
  %2243 = vmatmul.bf16.gmra.mxu0 %v1171
  %v2244 = vpop.f32.mrf.mxu0
  %v2245 = vadd.f32 %v2076, %v2244
  %v2246 = vpop.f32.mrf.mxu0
  %v2247 = vadd.f32 %v2078, %v2246
  %2248 = vmatmul.bf16.gmra.mxu0 %v1179
  %v2249 = vpop.f32.mrf.mxu0
  %v2250 = vadd.f32 %v2081, %v2249
  %v2251 = vpop.f32.mrf.mxu0
  %v2252 = vadd.f32 %v2083, %v2251
  %2253 = vmatmul.bf16.gmra.mxu0 %v1187
  %v2254 = vpop.f32.mrf.mxu0
  %v2255 = vadd.f32 %v2086, %v2254
  %v2256 = vpop.f32.mrf.mxu0
  %v2257 = vadd.f32 %v2088, %v2256
  %2258 = vmatmul.bf16.gmra.mxu0 %v1195
  %v2259 = vpop.f32.mrf.mxu0
  %v2260 = vadd.f32 %v2091, %v2259
  %v2261 = vpop.f32.mrf.mxu0
  %v2262 = vadd.f32 %v2093, %v2261
  %2263 = vmatmul.bf16.gmra.mxu0 %v1203
  %v2264 = vpop.f32.mrf.mxu0
  %v2265 = vadd.f32 %v2096, %v2264
  %v2266 = vpop.f32.mrf.mxu0
  %v2267 = vadd.f32 %v2098, %v2266
  %2268 = vmatmul.bf16.gmra.mxu0 %v1211
  %v2269 = vpop.f32.mrf.mxu0
  %v2270 = vadd.f32 %v2101, %v2269
  %v2271 = vpop.f32.mrf.mxu0
  %v2272 = vadd.f32 %v2103, %v2271
  %2273 = vmatmul.bf16.gmra.mxu0 %v1219
  %v2274 = vpop.f32.mrf.mxu0
  %v2275 = vadd.f32 %v2106, %v2274
  %v2276 = vpop.f32.mrf.mxu0
  %v2277 = vadd.f32 %v2108, %v2276
  %2278 = vmatmul.bf16.gmra.mxu0 %v1227
  %v2279 = vpop.f32.mrf.mxu0
  %v2280 = vadd.f32 %v2111, %v2279
  %v2281 = vpop.f32.mrf.mxu0
  %v2282 = vadd.f32 %v2113, %v2281
  %2283 = vmatmul.bf16.gmra.mxu0 %v1235
  %v2284 = vpop.f32.mrf.mxu0
  %v2285 = vadd.f32 %v2116, %v2284
  %v2286 = vpop.f32.mrf.mxu0
  %v2287 = vadd.f32 %v2118, %v2286
  %2288 = vmatmul.bf16.gmra.mxu0 %v1243
  %v2289 = vpop.f32.mrf.mxu0
  %v2290 = vadd.f32 %v2121, %v2289
  %v2291 = vpop.f32.mrf.mxu0
  %v2292 = vadd.f32 %v2123, %v2291
  %2293 = vmatmul.bf16.gmra.mxu0 %v1251
  %v2294 = vpop.f32.mrf.mxu0
  %v2295 = vadd.f32 %v2126, %v2294
  %v2296 = vpop.f32.mrf.mxu0
  %v2297 = vadd.f32 %v2128, %v2296
  %2298 = vmatmul.bf16.gmra.mxu0 %v1259
  %v2299 = vpop.f32.mrf.mxu0
  %v2300 = vadd.f32 %v2131, %v2299
  %v2301 = vpop.f32.mrf.mxu0
  %v2302 = vadd.f32 %v2133, %v2301
  %2303 = vmatmul.bf16.gmra.mxu0 %v1267
  %v2304 = vpop.f32.mrf.mxu0
  %v2305 = vadd.f32 %v2136, %v2304
  %v2306 = vpop.f32.mrf.mxu0
  %v2307 = vadd.f32 %v2138, %v2306
  %2308 = vmatmul.bf16.gmra.mxu0 %v1275
  %v2309 = vpop.f32.mrf.mxu0
  %v2310 = vadd.f32 %v2141, %v2309
  %v2311 = vpop.f32.mrf.mxu0
  %v2312 = vadd.f32 %v2143, %v2311
  %2313 = vmatmul.bf16.gmra.mxu0 %v1283
  %v2314 = vpop.f32.mrf.mxu0
  %v2315 = vadd.f32 %v2146, %v2314
  %v2316 = vpop.f32.mrf.mxu0
  %v2317 = vadd.f32 %v2148, %v2316
  %2318 = vmatmul.bf16.gmra.mxu0 %v1291
  %v2319 = vpop.f32.mrf.mxu0
  %v2320 = vadd.f32 %v2151, %v2319
  %v2321 = vpop.f32.mrf.mxu0
  %v2322 = vadd.f32 %v2153, %v2321
  %2323 = vmatmul.bf16.gmra.mxu0 %v1299
  %v2324 = vpop.f32.mrf.mxu0
  %v2325 = vadd.f32 %v2156, %v2324
  %v2326 = vpop.f32.mrf.mxu0
  %v2327 = vadd.f32 %v2158, %v2326
  %2328 = vmatmul.bf16.gmra.mxu0 %v1307
  %v2329 = vpop.f32.mrf.mxu0
  %v2330 = vadd.f32 %v2161, %v2329
  %v2331 = vpop.f32.mrf.mxu0
  %v2332 = vadd.f32 %v2163, %v2331
  %2333 = vmatmul.bf16.gmra.mxu0 %v1315
  %v2334 = vpop.f32.mrf.mxu0
  %v2335 = vadd.f32 %v2166, %v2334
  %v2336 = vpop.f32.mrf.mxu0
  %v2337 = vadd.f32 %v2168, %v2336
  %2338 = vmatmul.bf16.gmra.mxu0 %v1323
  %v2339 = vpop.f32.mrf.mxu0
  %v2340 = vadd.f32 %v2171, %v2339
  %v2341 = vpop.f32.mrf.mxu0
  %v2342 = vadd.f32 %v2173, %v2341
  %2343 = vmatmul.bf16.gmra.mxu0 %v1331
  %v2344 = vpop.f32.mrf.mxu0
  %v2345 = vadd.f32 %v2176, %v2344
  %v2346 = vpop.f32.mrf.mxu0
  %v2347 = vadd.f32 %v2178, %v2346
  %2348 = vmatmul.bf16.gmra.mxu0 %v1339
  %v2349 = vpop.f32.mrf.mxu0
  %v2350 = vadd.f32 %v2181, %v2349
  %v2351 = vpop.f32.mrf.mxu0
  %v2352 = vadd.f32 %v2183, %v2351
  %2353 = vmatmul.bf16.gmra.mxu0 %v1347
  %v2354 = vpop.f32.mrf.mxu0
  %v2355 = vadd.f32 %v2186, %v2354
  %v2356 = vpop.f32.mrf.mxu0
  %v2357 = vadd.f32 %v2188, %v2356
  %2358 = vmatmul.bf16.gmra.mxu0 %v1355
  %v2359 = vpop.f32.mrf.mxu0
  %v2360 = vadd.f32 %v2191, %v2359
  %v2361 = vpop.f32.mrf.mxu0
  %v2362 = vadd.f32 %v2193, %v2361
  %2363 = vmatmul.bf16.gmra.mxu0 %v1363
  %v2364 = vpop.f32.mrf.mxu0
  %v2365 = vadd.f32 %v2196, %v2364
  %v2366 = vpop.f32.mrf.mxu0
  %v2367 = vadd.f32 %v2198, %v2366
  %2368 = vmatmul.bf16.gmra.mxu0 %v1371
  %v2369 = vpop.f32.mrf.mxu0
  %v2370 = vadd.f32 %v2201, %v2369
  %v2371 = vpop.f32.mrf.mxu0
  %v2372 = vadd.f32 %v2203, %v2371
  %2373 = vmatmul.bf16.gmra.mxu0 %v1379
  %v2374 = vpop.f32.mrf.mxu0
  %v2375 = vadd.f32 %v2206, %v2374
  %v2376 = vpop.f32.mrf.mxu0
  %v2377 = vadd.f32 %v2208, %v2376
  %2378 = vmatmul.bf16.gmra.mxu0 %v1387
  %v2379 = vpop.f32.mrf.mxu0
  %v2380 = vadd.f32 %v2211, %v2379
  %v2381 = vpop.f32.mrf.mxu0
  %v2382 = vadd.f32 %v2213, %v2381
  %2383 = vmatmul.bf16.gmra.mxu0 %v1395
  %v2384 = vpop.f32.mrf.mxu0
  %v2385 = vadd.f32 %v2216, %v2384
  %v2386 = vpop.f32.mrf.mxu0
  %v2387 = vadd.f32 %v2218, %v2386
  %2388 = vmatmul.bf16.gmra.mxu0 %v1403
  %v2389 = vpop.f32.mrf.mxu0
  %v2390 = vadd.f32 %v2221, %v2389
  %v2391 = vpop.f32.mrf.mxu0
  %v2392 = vadd.f32 %v2223, %v2391
  %2393 = vmatmul.bf16.gmra.mxu0 %v1411
  %v2394 = vpop.f32.mrf.mxu0
  %v2395 = vadd.f32 %v2226, %v2394
  %v2396 = vpop.f32.mrf.mxu0
  %v2397 = vadd.f32 %v2228, %v2396
  %2398 = vmatmul.bf16.gmra.mxu0 %v1419
  %v2399 = vpop.f32.mrf.mxu0
  %v2400 = vadd.f32 %v2231, %v2399
  %v2401 = vpop.f32.mrf.mxu0
  %v2402 = vadd.f32 %v2233, %v2401
  %2403 = vdwg.mxu0
  %2404 = vmatpush.bf16.msra.mxu0 %v1961
  %2405 = vmatpush.bf16.msra.mxu0 %v1960
  %2406 = vmatpush.bf16.msra.mxu0 %v1959
  %2407 = vmatpush.bf16.msra.mxu0 %v1958
  %2408 = vmatpush.bf16.msra.mxu0 %v1957
  %2409 = vmatpush.bf16.msra.mxu0 %v1956
  %2410 = vmatpush.bf16.msra.mxu0 %v1955
  %2411 = vmatpush.bf16.msra.mxu0 %v1954
  %2412 = vmatmul.bf16.gmra.mxu0 %v1172
  %v2413 = vpop.f32.mrf.mxu0
  %v2414 = vadd.f32 %v2245, %v2413
  %v2415 = vpop.f32.mrf.mxu0
  %v2416 = vadd.f32 %v2247, %v2415
  %2417 = vmatmul.bf16.gmra.mxu0 %v1180
  %v2418 = vpop.f32.mrf.mxu0
  %v2419 = vadd.f32 %v2250, %v2418
  %v2420 = vpop.f32.mrf.mxu0
  %v2421 = vadd.f32 %v2252, %v2420
  %2422 = vmatmul.bf16.gmra.mxu0 %v1188
  %v2423 = vpop.f32.mrf.mxu0
  %v2424 = vadd.f32 %v2255, %v2423
  %v2425 = vpop.f32.mrf.mxu0
  %v2426 = vadd.f32 %v2257, %v2425
  %2427 = vmatmul.bf16.gmra.mxu0 %v1196
  %v2428 = vpop.f32.mrf.mxu0
  %v2429 = vadd.f32 %v2260, %v2428
  %v2430 = vpop.f32.mrf.mxu0
  %v2431 = vadd.f32 %v2262, %v2430
  %2432 = vmatmul.bf16.gmra.mxu0 %v1204
  %v2433 = vpop.f32.mrf.mxu0
  %v2434 = vadd.f32 %v2265, %v2433
  %v2435 = vpop.f32.mrf.mxu0
  %v2436 = vadd.f32 %v2267, %v2435
  %2437 = vmatmul.bf16.gmra.mxu0 %v1212
  %v2438 = vpop.f32.mrf.mxu0
  %v2439 = vadd.f32 %v2270, %v2438
  %v2440 = vpop.f32.mrf.mxu0
  %v2441 = vadd.f32 %v2272, %v2440
  %2442 = vmatmul.bf16.gmra.mxu0 %v1220
  %v2443 = vpop.f32.mrf.mxu0
  %v2444 = vadd.f32 %v2275, %v2443
  %v2445 = vpop.f32.mrf.mxu0
  %v2446 = vadd.f32 %v2277, %v2445
  %2447 = vmatmul.bf16.gmra.mxu0 %v1228
  %v2448 = vpop.f32.mrf.mxu0
  %v2449 = vadd.f32 %v2280, %v2448
  %v2450 = vpop.f32.mrf.mxu0
  %v2451 = vadd.f32 %v2282, %v2450
  %2452 = vmatmul.bf16.gmra.mxu0 %v1236
  %v2453 = vpop.f32.mrf.mxu0
  %v2454 = vadd.f32 %v2285, %v2453
  %v2455 = vpop.f32.mrf.mxu0
  %v2456 = vadd.f32 %v2287, %v2455
  %2457 = vmatmul.bf16.gmra.mxu0 %v1244
  %v2458 = vpop.f32.mrf.mxu0
  %v2459 = vadd.f32 %v2290, %v2458
  %v2460 = vpop.f32.mrf.mxu0
  %v2461 = vadd.f32 %v2292, %v2460
  %2462 = vmatmul.bf16.gmra.mxu0 %v1252
  %v2463 = vpop.f32.mrf.mxu0
  %v2464 = vadd.f32 %v2295, %v2463
  %v2465 = vpop.f32.mrf.mxu0
  %v2466 = vadd.f32 %v2297, %v2465
  %2467 = vmatmul.bf16.gmra.mxu0 %v1260
  %v2468 = vpop.f32.mrf.mxu0
  %v2469 = vadd.f32 %v2300, %v2468
  %v2470 = vpop.f32.mrf.mxu0
  %v2471 = vadd.f32 %v2302, %v2470
  %2472 = vmatmul.bf16.gmra.mxu0 %v1268
  %v2473 = vpop.f32.mrf.mxu0
  %v2474 = vadd.f32 %v2305, %v2473
  %v2475 = vpop.f32.mrf.mxu0
  %v2476 = vadd.f32 %v2307, %v2475
  %2477 = vmatmul.bf16.gmra.mxu0 %v1276
  %v2478 = vpop.f32.mrf.mxu0
  %v2479 = vadd.f32 %v2310, %v2478
  %v2480 = vpop.f32.mrf.mxu0
  %v2481 = vadd.f32 %v2312, %v2480
  %2482 = vmatmul.bf16.gmra.mxu0 %v1284
  %v2483 = vpop.f32.mrf.mxu0
  %v2484 = vadd.f32 %v2315, %v2483
  %v2485 = vpop.f32.mrf.mxu0
  %v2486 = vadd.f32 %v2317, %v2485
  %2487 = vmatmul.bf16.gmra.mxu0 %v1292
  %v2488 = vpop.f32.mrf.mxu0
  %v2489 = vadd.f32 %v2320, %v2488
  %v2490 = vpop.f32.mrf.mxu0
  %v2491 = vadd.f32 %v2322, %v2490
  %2492 = vmatmul.bf16.gmra.mxu0 %v1300
  %v2493 = vpop.f32.mrf.mxu0
  %v2494 = vadd.f32 %v2325, %v2493
  %v2495 = vpop.f32.mrf.mxu0
  %v2496 = vadd.f32 %v2327, %v2495
  %2497 = vmatmul.bf16.gmra.mxu0 %v1308
  %v2498 = vpop.f32.mrf.mxu0
  %v2499 = vadd.f32 %v2330, %v2498
  %v2500 = vpop.f32.mrf.mxu0
  %v2501 = vadd.f32 %v2332, %v2500
  %2502 = vmatmul.bf16.gmra.mxu0 %v1316
  %v2503 = vpop.f32.mrf.mxu0
  %v2504 = vadd.f32 %v2335, %v2503
  %v2505 = vpop.f32.mrf.mxu0
  %v2506 = vadd.f32 %v2337, %v2505
  %2507 = vmatmul.bf16.gmra.mxu0 %v1324
  %v2508 = vpop.f32.mrf.mxu0
  %v2509 = vadd.f32 %v2340, %v2508
  %v2510 = vpop.f32.mrf.mxu0
  %v2511 = vadd.f32 %v2342, %v2510
  %2512 = vmatmul.bf16.gmra.mxu0 %v1332
  %v2513 = vpop.f32.mrf.mxu0
  %v2514 = vadd.f32 %v2345, %v2513
  %v2515 = vpop.f32.mrf.mxu0
  %v2516 = vadd.f32 %v2347, %v2515
  %2517 = vmatmul.bf16.gmra.mxu0 %v1340
  %v2518 = vpop.f32.mrf.mxu0
  %v2519 = vadd.f32 %v2350, %v2518
  %v2520 = vpop.f32.mrf.mxu0
  %v2521 = vadd.f32 %v2352, %v2520
  %2522 = vmatmul.bf16.gmra.mxu0 %v1348
  %v2523 = vpop.f32.mrf.mxu0
  %v2524 = vadd.f32 %v2355, %v2523
  %v2525 = vpop.f32.mrf.mxu0
  %v2526 = vadd.f32 %v2357, %v2525
  %2527 = vmatmul.bf16.gmra.mxu0 %v1356
  %v2528 = vpop.f32.mrf.mxu0
  %v2529 = vadd.f32 %v2360, %v2528
  %v2530 = vpop.f32.mrf.mxu0
  %v2531 = vadd.f32 %v2362, %v2530
  %2532 = vmatmul.bf16.gmra.mxu0 %v1364
  %v2533 = vpop.f32.mrf.mxu0
  %v2534 = vadd.f32 %v2365, %v2533
  %v2535 = vpop.f32.mrf.mxu0
  %v2536 = vadd.f32 %v2367, %v2535
  %2537 = vmatmul.bf16.gmra.mxu0 %v1372
  %v2538 = vpop.f32.mrf.mxu0
  %v2539 = vadd.f32 %v2370, %v2538
  %v2540 = vpop.f32.mrf.mxu0
  %v2541 = vadd.f32 %v2372, %v2540
  %2542 = vmatmul.bf16.gmra.mxu0 %v1380
  %v2543 = vpop.f32.mrf.mxu0
  %v2544 = vadd.f32 %v2375, %v2543
  %v2545 = vpop.f32.mrf.mxu0
  %v2546 = vadd.f32 %v2377, %v2545
  %2547 = vmatmul.bf16.gmra.mxu0 %v1388
  %v2548 = vpop.f32.mrf.mxu0
  %v2549 = vadd.f32 %v2380, %v2548
  %v2550 = vpop.f32.mrf.mxu0
  %v2551 = vadd.f32 %v2382, %v2550
  %2552 = vmatmul.bf16.gmra.mxu0 %v1396
  %v2553 = vpop.f32.mrf.mxu0
  %v2554 = vadd.f32 %v2385, %v2553
  %v2555 = vpop.f32.mrf.mxu0
  %v2556 = vadd.f32 %v2387, %v2555
  %2557 = vmatmul.bf16.gmra.mxu0 %v1404
  %v2558 = vpop.f32.mrf.mxu0
  %v2559 = vadd.f32 %v2390, %v2558
  %v2560 = vpop.f32.mrf.mxu0
  %v2561 = vadd.f32 %v2392, %v2560
  %2562 = vmatmul.bf16.gmra.mxu0 %v1412
  %v2563 = vpop.f32.mrf.mxu0
  %v2564 = vadd.f32 %v2395, %v2563
  %v2565 = vpop.f32.mrf.mxu0
  %v2566 = vadd.f32 %v2397, %v2565
  %2567 = vmatmul.bf16.gmra.mxu0 %v1420
  %v2568 = vpop.f32.mrf.mxu0
  %v2569 = vadd.f32 %v2400, %v2568
  %v2570 = vpop.f32.mrf.mxu0
  %v2571 = vadd.f32 %v2402, %v2570
  %2572 = vdwg.mxu0
  %2573 = vmatpush.bf16.msra.mxu0 %v1969
  %2574 = vmatpush.bf16.msra.mxu0 %v1968
  %2575 = vmatpush.bf16.msra.mxu0 %v1967
  %2576 = vmatpush.bf16.msra.mxu0 %v1966
  %2577 = vmatpush.bf16.msra.mxu0 %v1965
  %2578 = vmatpush.bf16.msra.mxu0 %v1964
  %2579 = vmatpush.bf16.msra.mxu0 %v1963
  %2580 = vmatpush.bf16.msra.mxu0 %v1962
  %2581 = vmatmul.bf16.gmra.mxu0 %v1173
  %v2582 = vpop.f32.mrf.mxu0
  %v2583 = vadd.f32 %v2414, %v2582
  %v2584 = vpop.f32.mrf.mxu0
  %v2585 = vadd.f32 %v2416, %v2584
  %2586 = vmatmul.bf16.gmra.mxu0 %v1181
  %v2587 = vpop.f32.mrf.mxu0
  %v2588 = vadd.f32 %v2419, %v2587
  %v2589 = vpop.f32.mrf.mxu0
  %v2590 = vadd.f32 %v2421, %v2589
  %2591 = vmatmul.bf16.gmra.mxu0 %v1189
  %v2592 = vpop.f32.mrf.mxu0
  %v2593 = vadd.f32 %v2424, %v2592
  %v2594 = vpop.f32.mrf.mxu0
  %v2595 = vadd.f32 %v2426, %v2594
  %2596 = vmatmul.bf16.gmra.mxu0 %v1197
  %v2597 = vpop.f32.mrf.mxu0
  %v2598 = vadd.f32 %v2429, %v2597
  %v2599 = vpop.f32.mrf.mxu0
  %v2600 = vadd.f32 %v2431, %v2599
  %2601 = vmatmul.bf16.gmra.mxu0 %v1205
  %v2602 = vpop.f32.mrf.mxu0
  %v2603 = vadd.f32 %v2434, %v2602
  %v2604 = vpop.f32.mrf.mxu0
  %v2605 = vadd.f32 %v2436, %v2604
  %2606 = vmatmul.bf16.gmra.mxu0 %v1213
  %v2607 = vpop.f32.mrf.mxu0
  %v2608 = vadd.f32 %v2439, %v2607
  %v2609 = vpop.f32.mrf.mxu0
  %v2610 = vadd.f32 %v2441, %v2609
  %2611 = vmatmul.bf16.gmra.mxu0 %v1221
  %v2612 = vpop.f32.mrf.mxu0
  %v2613 = vadd.f32 %v2444, %v2612
  %v2614 = vpop.f32.mrf.mxu0
  %v2615 = vadd.f32 %v2446, %v2614
  %2616 = vmatmul.bf16.gmra.mxu0 %v1229
  %v2617 = vpop.f32.mrf.mxu0
  %v2618 = vadd.f32 %v2449, %v2617
  %v2619 = vpop.f32.mrf.mxu0
  %v2620 = vadd.f32 %v2451, %v2619
  %2621 = vmatmul.bf16.gmra.mxu0 %v1237
  %v2622 = vpop.f32.mrf.mxu0
  %v2623 = vadd.f32 %v2454, %v2622
  %v2624 = vpop.f32.mrf.mxu0
  %v2625 = vadd.f32 %v2456, %v2624
  %2626 = vmatmul.bf16.gmra.mxu0 %v1245
  %v2627 = vpop.f32.mrf.mxu0
  %v2628 = vadd.f32 %v2459, %v2627
  %v2629 = vpop.f32.mrf.mxu0
  %v2630 = vadd.f32 %v2461, %v2629
  %2631 = vmatmul.bf16.gmra.mxu0 %v1253
  %v2632 = vpop.f32.mrf.mxu0
  %v2633 = vadd.f32 %v2464, %v2632
  %v2634 = vpop.f32.mrf.mxu0
  %v2635 = vadd.f32 %v2466, %v2634
  %2636 = vmatmul.bf16.gmra.mxu0 %v1261
  %v2637 = vpop.f32.mrf.mxu0
  %v2638 = vadd.f32 %v2469, %v2637
  %v2639 = vpop.f32.mrf.mxu0
  %v2640 = vadd.f32 %v2471, %v2639
  %2641 = vmatmul.bf16.gmra.mxu0 %v1269
  %v2642 = vpop.f32.mrf.mxu0
  %v2643 = vadd.f32 %v2474, %v2642
  %v2644 = vpop.f32.mrf.mxu0
  %v2645 = vadd.f32 %v2476, %v2644
  %2646 = vmatmul.bf16.gmra.mxu0 %v1277
  %v2647 = vpop.f32.mrf.mxu0
  %v2648 = vadd.f32 %v2479, %v2647
  %v2649 = vpop.f32.mrf.mxu0
  %v2650 = vadd.f32 %v2481, %v2649
  %2651 = vmatmul.bf16.gmra.mxu0 %v1285
  %v2652 = vpop.f32.mrf.mxu0
  %v2653 = vadd.f32 %v2484, %v2652
  %v2654 = vpop.f32.mrf.mxu0
  %v2655 = vadd.f32 %v2486, %v2654
  %2656 = vmatmul.bf16.gmra.mxu0 %v1293
  %v2657 = vpop.f32.mrf.mxu0
  %v2658 = vadd.f32 %v2489, %v2657
  %v2659 = vpop.f32.mrf.mxu0
  %v2660 = vadd.f32 %v2491, %v2659
  %2661 = vmatmul.bf16.gmra.mxu0 %v1301
  %v2662 = vpop.f32.mrf.mxu0
  %v2663 = vadd.f32 %v2494, %v2662
  %v2664 = vpop.f32.mrf.mxu0
  %v2665 = vadd.f32 %v2496, %v2664
  %2666 = vmatmul.bf16.gmra.mxu0 %v1309
  %v2667 = vpop.f32.mrf.mxu0
  %v2668 = vadd.f32 %v2499, %v2667
  %v2669 = vpop.f32.mrf.mxu0
  %v2670 = vadd.f32 %v2501, %v2669
  %2671 = vmatmul.bf16.gmra.mxu0 %v1317
  %v2672 = vpop.f32.mrf.mxu0
  %v2673 = vadd.f32 %v2504, %v2672
  %v2674 = vpop.f32.mrf.mxu0
  %v2675 = vadd.f32 %v2506, %v2674
  %2676 = vmatmul.bf16.gmra.mxu0 %v1325
  %v2677 = vpop.f32.mrf.mxu0
  %v2678 = vadd.f32 %v2509, %v2677
  %v2679 = vpop.f32.mrf.mxu0
  %v2680 = vadd.f32 %v2511, %v2679
  %2681 = vmatmul.bf16.gmra.mxu0 %v1333
  %v2682 = vpop.f32.mrf.mxu0
  %v2683 = vadd.f32 %v2514, %v2682
  %v2684 = vpop.f32.mrf.mxu0
  %v2685 = vadd.f32 %v2516, %v2684
  %2686 = vmatmul.bf16.gmra.mxu0 %v1341
  %v2687 = vpop.f32.mrf.mxu0
  %v2688 = vadd.f32 %v2519, %v2687
  %v2689 = vpop.f32.mrf.mxu0
  %v2690 = vadd.f32 %v2521, %v2689
  %2691 = vmatmul.bf16.gmra.mxu0 %v1349
  %v2692 = vpop.f32.mrf.mxu0
  %v2693 = vadd.f32 %v2524, %v2692
  %v2694 = vpop.f32.mrf.mxu0
  %v2695 = vadd.f32 %v2526, %v2694
  %2696 = vmatmul.bf16.gmra.mxu0 %v1357
  %v2697 = vpop.f32.mrf.mxu0
  %v2698 = vadd.f32 %v2529, %v2697
  %v2699 = vpop.f32.mrf.mxu0
  %v2700 = vadd.f32 %v2531, %v2699
  %2701 = vmatmul.bf16.gmra.mxu0 %v1365
  %v2702 = vpop.f32.mrf.mxu0
  %v2703 = vadd.f32 %v2534, %v2702
  %v2704 = vpop.f32.mrf.mxu0
  %v2705 = vadd.f32 %v2536, %v2704
  %2706 = vmatmul.bf16.gmra.mxu0 %v1373
  %v2707 = vpop.f32.mrf.mxu0
  %v2708 = vadd.f32 %v2539, %v2707
  %v2709 = vpop.f32.mrf.mxu0
  %v2710 = vadd.f32 %v2541, %v2709
  %2711 = vmatmul.bf16.gmra.mxu0 %v1381
  %v2712 = vpop.f32.mrf.mxu0
  %v2713 = vadd.f32 %v2544, %v2712
  %v2714 = vpop.f32.mrf.mxu0
  %v2715 = vadd.f32 %v2546, %v2714
  %2716 = vmatmul.bf16.gmra.mxu0 %v1389
  %v2717 = vpop.f32.mrf.mxu0
  %v2718 = vadd.f32 %v2549, %v2717
  %v2719 = vpop.f32.mrf.mxu0
  %v2720 = vadd.f32 %v2551, %v2719
  %2721 = vmatmul.bf16.gmra.mxu0 %v1397
  %v2722 = vpop.f32.mrf.mxu0
  %v2723 = vadd.f32 %v2554, %v2722
  %v2724 = vpop.f32.mrf.mxu0
  %v2725 = vadd.f32 %v2556, %v2724
  %2726 = vmatmul.bf16.gmra.mxu0 %v1405
  %v2727 = vpop.f32.mrf.mxu0
  %v2728 = vadd.f32 %v2559, %v2727
  %v2729 = vpop.f32.mrf.mxu0
  %v2730 = vadd.f32 %v2561, %v2729
  %2731 = vmatmul.bf16.gmra.mxu0 %v1413
  %v2732 = vpop.f32.mrf.mxu0
  %v2733 = vadd.f32 %v2564, %v2732
  %v2734 = vpop.f32.mrf.mxu0
  %v2735 = vadd.f32 %v2566, %v2734
  %2736 = vmatmul.bf16.gmra.mxu0 %v1421
  %v2737 = vpop.f32.mrf.mxu0
  %v2738 = vadd.f32 %v2569, %v2737
  %v2739 = vpop.f32.mrf.mxu0
  %v2740 = vadd.f32 %v2571, %v2739
  %2741 = vdwg.mxu0
  %2742 = vmatpush.bf16.msra.mxu0 %v1977
  %2743 = vmatpush.bf16.msra.mxu0 %v1976
  %2744 = vmatpush.bf16.msra.mxu0 %v1975
  %2745 = vmatpush.bf16.msra.mxu0 %v1974
  %2746 = vmatpush.bf16.msra.mxu0 %v1973
  %2747 = vmatpush.bf16.msra.mxu0 %v1972
  %2748 = vmatpush.bf16.msra.mxu0 %v1971
  %2749 = vmatpush.bf16.msra.mxu0 %v1970
  %2750 = vmatmul.bf16.gmra.mxu0 %v1174
  %v2751 = vpop.f32.mrf.mxu0
  %v2752 = vadd.f32 %v2583, %v2751
  %v2753 = vpop.f32.mrf.mxu0
  %v2754 = vadd.f32 %v2585, %v2753
  %2755 = vmatmul.bf16.gmra.mxu0 %v1182
  %v2756 = vpop.f32.mrf.mxu0
  %v2757 = vadd.f32 %v2588, %v2756
  %v2758 = vpop.f32.mrf.mxu0
  %v2759 = vadd.f32 %v2590, %v2758
  %2760 = vmatmul.bf16.gmra.mxu0 %v1190
  %v2761 = vpop.f32.mrf.mxu0
  %v2762 = vadd.f32 %v2593, %v2761
  %v2763 = vpop.f32.mrf.mxu0
  %v2764 = vadd.f32 %v2595, %v2763
  %2765 = vmatmul.bf16.gmra.mxu0 %v1198
  %v2766 = vpop.f32.mrf.mxu0
  %v2767 = vadd.f32 %v2598, %v2766
  %v2768 = vpop.f32.mrf.mxu0
  %v2769 = vadd.f32 %v2600, %v2768
  %2770 = vmatmul.bf16.gmra.mxu0 %v1206
  %v2771 = vpop.f32.mrf.mxu0
  %v2772 = vadd.f32 %v2603, %v2771
  %v2773 = vpop.f32.mrf.mxu0
  %v2774 = vadd.f32 %v2605, %v2773
  %2775 = vmatmul.bf16.gmra.mxu0 %v1214
  %v2776 = vpop.f32.mrf.mxu0
  %v2777 = vadd.f32 %v2608, %v2776
  %v2778 = vpop.f32.mrf.mxu0
  %v2779 = vadd.f32 %v2610, %v2778
  %2780 = vmatmul.bf16.gmra.mxu0 %v1222
  %v2781 = vpop.f32.mrf.mxu0
  %v2782 = vadd.f32 %v2613, %v2781
  %v2783 = vpop.f32.mrf.mxu0
  %v2784 = vadd.f32 %v2615, %v2783
  %2785 = vmatmul.bf16.gmra.mxu0 %v1230
  %v2786 = vpop.f32.mrf.mxu0
  %v2787 = vadd.f32 %v2618, %v2786
  %v2788 = vpop.f32.mrf.mxu0
  %v2789 = vadd.f32 %v2620, %v2788
  %2790 = vmatmul.bf16.gmra.mxu0 %v1238
  %v2791 = vpop.f32.mrf.mxu0
  %v2792 = vadd.f32 %v2623, %v2791
  %v2793 = vpop.f32.mrf.mxu0
  %v2794 = vadd.f32 %v2625, %v2793
  %2795 = vmatmul.bf16.gmra.mxu0 %v1246
  %v2796 = vpop.f32.mrf.mxu0
  %v2797 = vadd.f32 %v2628, %v2796
  %v2798 = vpop.f32.mrf.mxu0
  %v2799 = vadd.f32 %v2630, %v2798
  %2800 = vmatmul.bf16.gmra.mxu0 %v1254
  %v2801 = vpop.f32.mrf.mxu0
  %v2802 = vadd.f32 %v2633, %v2801
  %v2803 = vpop.f32.mrf.mxu0
  %v2804 = vadd.f32 %v2635, %v2803
  %2805 = vmatmul.bf16.gmra.mxu0 %v1262
  %v2806 = vpop.f32.mrf.mxu0
  %v2807 = vadd.f32 %v2638, %v2806
  %v2808 = vpop.f32.mrf.mxu0
  %v2809 = vadd.f32 %v2640, %v2808
  %2810 = vmatmul.bf16.gmra.mxu0 %v1270
  %v2811 = vpop.f32.mrf.mxu0
  %v2812 = vadd.f32 %v2643, %v2811
  %v2813 = vpop.f32.mrf.mxu0
  %v2814 = vadd.f32 %v2645, %v2813
  %2815 = vmatmul.bf16.gmra.mxu0 %v1278
  %v2816 = vpop.f32.mrf.mxu0
  %v2817 = vadd.f32 %v2648, %v2816
  %v2818 = vpop.f32.mrf.mxu0
  %v2819 = vadd.f32 %v2650, %v2818
  %2820 = vmatmul.bf16.gmra.mxu0 %v1286
  %v2821 = vpop.f32.mrf.mxu0
  %v2822 = vadd.f32 %v2653, %v2821
  %v2823 = vpop.f32.mrf.mxu0
  %v2824 = vadd.f32 %v2655, %v2823
  %2825 = vmatmul.bf16.gmra.mxu0 %v1294
  %v2826 = vpop.f32.mrf.mxu0
  %v2827 = vadd.f32 %v2658, %v2826
  %v2828 = vpop.f32.mrf.mxu0
  %v2829 = vadd.f32 %v2660, %v2828
  %2830 = vmatmul.bf16.gmra.mxu0 %v1302
  %v2831 = vpop.f32.mrf.mxu0
  %v2832 = vadd.f32 %v2663, %v2831
  %v2833 = vpop.f32.mrf.mxu0
  %v2834 = vadd.f32 %v2665, %v2833
  %2835 = vmatmul.bf16.gmra.mxu0 %v1310
  %v2836 = vpop.f32.mrf.mxu0
  %v2837 = vadd.f32 %v2668, %v2836
  %v2838 = vpop.f32.mrf.mxu0
  %v2839 = vadd.f32 %v2670, %v2838
  %2840 = vmatmul.bf16.gmra.mxu0 %v1318
  %v2841 = vpop.f32.mrf.mxu0
  %v2842 = vadd.f32 %v2673, %v2841
  %v2843 = vpop.f32.mrf.mxu0
  %v2844 = vadd.f32 %v2675, %v2843
  %2845 = vmatmul.bf16.gmra.mxu0 %v1326
  %v2846 = vpop.f32.mrf.mxu0
  %v2847 = vadd.f32 %v2678, %v2846
  %v2848 = vpop.f32.mrf.mxu0
  %v2849 = vadd.f32 %v2680, %v2848
  %2850 = vmatmul.bf16.gmra.mxu0 %v1334
  %v2851 = vpop.f32.mrf.mxu0
  %v2852 = vadd.f32 %v2683, %v2851
  %v2853 = vpop.f32.mrf.mxu0
  %v2854 = vadd.f32 %v2685, %v2853
  %2855 = vmatmul.bf16.gmra.mxu0 %v1342
  %v2856 = vpop.f32.mrf.mxu0
  %v2857 = vadd.f32 %v2688, %v2856
  %v2858 = vpop.f32.mrf.mxu0
  %v2859 = vadd.f32 %v2690, %v2858
  %2860 = vmatmul.bf16.gmra.mxu0 %v1350
  %v2861 = vpop.f32.mrf.mxu0
  %v2862 = vadd.f32 %v2693, %v2861
  %v2863 = vpop.f32.mrf.mxu0
  %v2864 = vadd.f32 %v2695, %v2863
  %2865 = vmatmul.bf16.gmra.mxu0 %v1358
  %v2866 = vpop.f32.mrf.mxu0
  %v2867 = vadd.f32 %v2698, %v2866
  %v2868 = vpop.f32.mrf.mxu0
  %v2869 = vadd.f32 %v2700, %v2868
  %2870 = vmatmul.bf16.gmra.mxu0 %v1366
  %v2871 = vpop.f32.mrf.mxu0
  %v2872 = vadd.f32 %v2703, %v2871
  %v2873 = vpop.f32.mrf.mxu0
  %v2874 = vadd.f32 %v2705, %v2873
  %2875 = vmatmul.bf16.gmra.mxu0 %v1374
  %v2876 = vpop.f32.mrf.mxu0
  %v2877 = vadd.f32 %v2708, %v2876
  %v2878 = vpop.f32.mrf.mxu0
  %v2879 = vadd.f32 %v2710, %v2878
  %2880 = vmatmul.bf16.gmra.mxu0 %v1382
  %v2881 = vpop.f32.mrf.mxu0
  %v2882 = vadd.f32 %v2713, %v2881
  %v2883 = vpop.f32.mrf.mxu0
  %v2884 = vadd.f32 %v2715, %v2883
  %2885 = vmatmul.bf16.gmra.mxu0 %v1390
  %v2886 = vpop.f32.mrf.mxu0
  %v2887 = vadd.f32 %v2718, %v2886
  %v2888 = vpop.f32.mrf.mxu0
  %v2889 = vadd.f32 %v2720, %v2888
  %2890 = vmatmul.bf16.gmra.mxu0 %v1398
  %v2891 = vpop.f32.mrf.mxu0
  %v2892 = vadd.f32 %v2723, %v2891
  %v2893 = vpop.f32.mrf.mxu0
  %v2894 = vadd.f32 %v2725, %v2893
  %2895 = vmatmul.bf16.gmra.mxu0 %v1406
  %v2896 = vpop.f32.mrf.mxu0
  %v2897 = vadd.f32 %v2728, %v2896
  %v2898 = vpop.f32.mrf.mxu0
  %v2899 = vadd.f32 %v2730, %v2898
  %2900 = vmatmul.bf16.gmra.mxu0 %v1414
  %v2901 = vpop.f32.mrf.mxu0
  %v2902 = vadd.f32 %v2733, %v2901
  %v2903 = vpop.f32.mrf.mxu0
  %v2904 = vadd.f32 %v2735, %v2903
  %2905 = vmatmul.bf16.gmra.mxu0 %v1422
  %v2906 = vpop.f32.mrf.mxu0
  %v2907 = vadd.f32 %v2738, %v2906
  %v2908 = vpop.f32.mrf.mxu0
  %v2909 = vadd.f32 %v2740, %v2908
  %2910 = vdwg.mxu0
  %2911 = vmatpush.bf16.msra.mxu0 %v1985
  %2912 = vmatpush.bf16.msra.mxu0 %v1984
  %2913 = vmatpush.bf16.msra.mxu0 %v1983
  %2914 = vmatpush.bf16.msra.mxu0 %v1982
  %2915 = vmatpush.bf16.msra.mxu0 %v1981
  %2916 = vmatpush.bf16.msra.mxu0 %v1980
  %2917 = vmatpush.bf16.msra.mxu0 %v1979
  %2918 = vmatpush.bf16.msra.mxu0 %v1978
  %2919 = vmatmul.bf16.gmra.mxu0 %v1175
  %v2920 = vpop.f32.mrf.mxu0
  %v2921 = vadd.f32 %v2752, %v2920
  %v2922 = vpop.f32.mrf.mxu0
  %v2923 = vadd.f32 %v2754, %v2922
  %2924 = vmatmul.bf16.gmra.mxu0 %v1183
  %v2925 = vpop.f32.mrf.mxu0
  %v2926 = vadd.f32 %v2757, %v2925
  %v2927 = vpop.f32.mrf.mxu0
  %v2928 = vadd.f32 %v2759, %v2927
  %2929 = vmatmul.bf16.gmra.mxu0 %v1191
  %v2930 = vpop.f32.mrf.mxu0
  %v2931 = vadd.f32 %v2762, %v2930
  %v2932 = vpop.f32.mrf.mxu0
  %v2933 = vadd.f32 %v2764, %v2932
  %2934 = vmatmul.bf16.gmra.mxu0 %v1199
  %v2935 = vpop.f32.mrf.mxu0
  %v2936 = vadd.f32 %v2767, %v2935
  %v2937 = vpop.f32.mrf.mxu0
  %v2938 = vadd.f32 %v2769, %v2937
  %2939 = vmatmul.bf16.gmra.mxu0 %v1207
  %v2940 = vpop.f32.mrf.mxu0
  %v2941 = vadd.f32 %v2772, %v2940
  %v2942 = vpop.f32.mrf.mxu0
  %v2943 = vadd.f32 %v2774, %v2942
  %2944 = vmatmul.bf16.gmra.mxu0 %v1215
  %v2945 = vpop.f32.mrf.mxu0
  %v2946 = vadd.f32 %v2777, %v2945
  %v2947 = vpop.f32.mrf.mxu0
  %v2948 = vadd.f32 %v2779, %v2947
  %2949 = vmatmul.bf16.gmra.mxu0 %v1223
  %v2950 = vpop.f32.mrf.mxu0
  %v2951 = vadd.f32 %v2782, %v2950
  %v2952 = vpop.f32.mrf.mxu0
  %v2953 = vadd.f32 %v2784, %v2952
  %2954 = vmatmul.bf16.gmra.mxu0 %v1231
  %v2955 = vpop.f32.mrf.mxu0
  %v2956 = vadd.f32 %v2787, %v2955
  %v2957 = vpop.f32.mrf.mxu0
  %v2958 = vadd.f32 %v2789, %v2957
  %2959 = vmatmul.bf16.gmra.mxu0 %v1239
  %v2960 = vpop.f32.mrf.mxu0
  %v2961 = vadd.f32 %v2792, %v2960
  %v2962 = vpop.f32.mrf.mxu0
  %v2963 = vadd.f32 %v2794, %v2962
  %2964 = vmatmul.bf16.gmra.mxu0 %v1247
  %v2965 = vpop.f32.mrf.mxu0
  %v2966 = vadd.f32 %v2797, %v2965
  %v2967 = vpop.f32.mrf.mxu0
  %v2968 = vadd.f32 %v2799, %v2967
  %2969 = vmatmul.bf16.gmra.mxu0 %v1255
  %v2970 = vpop.f32.mrf.mxu0
  %v2971 = vadd.f32 %v2802, %v2970
  %v2972 = vpop.f32.mrf.mxu0
  %v2973 = vadd.f32 %v2804, %v2972
  %2974 = vmatmul.bf16.gmra.mxu0 %v1263
  %v2975 = vpop.f32.mrf.mxu0
  %v2976 = vadd.f32 %v2807, %v2975
  %v2977 = vpop.f32.mrf.mxu0
  %v2978 = vadd.f32 %v2809, %v2977
  %2979 = vmatmul.bf16.gmra.mxu0 %v1271
  %v2980 = vpop.f32.mrf.mxu0
  %v2981 = vadd.f32 %v2812, %v2980
  %v2982 = vpop.f32.mrf.mxu0
  %v2983 = vadd.f32 %v2814, %v2982
  %2984 = vmatmul.bf16.gmra.mxu0 %v1279
  %v2985 = vpop.f32.mrf.mxu0
  %v2986 = vadd.f32 %v2817, %v2985
  %v2987 = vpop.f32.mrf.mxu0
  %v2988 = vadd.f32 %v2819, %v2987
  %2989 = vmatmul.bf16.gmra.mxu0 %v1287
  %v2990 = vpop.f32.mrf.mxu0
  %v2991 = vadd.f32 %v2822, %v2990
  %v2992 = vpop.f32.mrf.mxu0
  %v2993 = vadd.f32 %v2824, %v2992
  %2994 = vmatmul.bf16.gmra.mxu0 %v1295
  %v2995 = vpop.f32.mrf.mxu0
  %v2996 = vadd.f32 %v2827, %v2995
  %v2997 = vpop.f32.mrf.mxu0
  %v2998 = vadd.f32 %v2829, %v2997
  %2999 = vmatmul.bf16.gmra.mxu0 %v1303
  %v3000 = vpop.f32.mrf.mxu0
  %v3001 = vadd.f32 %v2832, %v3000
  %v3002 = vpop.f32.mrf.mxu0
  %v3003 = vadd.f32 %v2834, %v3002
  %3004 = vmatmul.bf16.gmra.mxu0 %v1311
  %v3005 = vpop.f32.mrf.mxu0
  %v3006 = vadd.f32 %v2837, %v3005
  %v3007 = vpop.f32.mrf.mxu0
  %v3008 = vadd.f32 %v2839, %v3007
  %3009 = vmatmul.bf16.gmra.mxu0 %v1319
  %v3010 = vpop.f32.mrf.mxu0
  %v3011 = vadd.f32 %v2842, %v3010
  %v3012 = vpop.f32.mrf.mxu0
  %v3013 = vadd.f32 %v2844, %v3012
  %3014 = vmatmul.bf16.gmra.mxu0 %v1327
  %v3015 = vpop.f32.mrf.mxu0
  %v3016 = vadd.f32 %v2847, %v3015
  %v3017 = vpop.f32.mrf.mxu0
  %v3018 = vadd.f32 %v2849, %v3017
  %3019 = vmatmul.bf16.gmra.mxu0 %v1335
  %v3020 = vpop.f32.mrf.mxu0
  %v3021 = vadd.f32 %v2852, %v3020
  %v3022 = vpop.f32.mrf.mxu0
  %v3023 = vadd.f32 %v2854, %v3022
  %3024 = vmatmul.bf16.gmra.mxu0 %v1343
  %v3025 = vpop.f32.mrf.mxu0
  %v3026 = vadd.f32 %v2857, %v3025
  %v3027 = vpop.f32.mrf.mxu0
  %v3028 = vadd.f32 %v2859, %v3027
  %3029 = vmatmul.bf16.gmra.mxu0 %v1351
  %v3030 = vpop.f32.mrf.mxu0
  %v3031 = vadd.f32 %v2862, %v3030
  %v3032 = vpop.f32.mrf.mxu0
  %v3033 = vadd.f32 %v2864, %v3032
  %3034 = vmatmul.bf16.gmra.mxu0 %v1359
  %v3035 = vpop.f32.mrf.mxu0
  %v3036 = vadd.f32 %v2867, %v3035
  %v3037 = vpop.f32.mrf.mxu0
  %v3038 = vadd.f32 %v2869, %v3037
  %3039 = vmatmul.bf16.gmra.mxu0 %v1367
  %v3040 = vpop.f32.mrf.mxu0
  %v3041 = vadd.f32 %v2872, %v3040
  %v3042 = vpop.f32.mrf.mxu0
  %v3043 = vadd.f32 %v2874, %v3042
  %3044 = vmatmul.bf16.gmra.mxu0 %v1375
  %v3045 = vpop.f32.mrf.mxu0
  %v3046 = vadd.f32 %v2877, %v3045
  %v3047 = vpop.f32.mrf.mxu0
  %v3048 = vadd.f32 %v2879, %v3047
  %3049 = vmatmul.bf16.gmra.mxu0 %v1383
  %v3050 = vpop.f32.mrf.mxu0
  %v3051 = vadd.f32 %v2882, %v3050
  %v3052 = vpop.f32.mrf.mxu0
  %v3053 = vadd.f32 %v2884, %v3052
  %3054 = vmatmul.bf16.gmra.mxu0 %v1391
  %v3055 = vpop.f32.mrf.mxu0
  %v3056 = vadd.f32 %v2887, %v3055
  %v3057 = vpop.f32.mrf.mxu0
  %v3058 = vadd.f32 %v2889, %v3057
  %3059 = vmatmul.bf16.gmra.mxu0 %v1399
  %v3060 = vpop.f32.mrf.mxu0
  %v3061 = vadd.f32 %v2892, %v3060
  %v3062 = vpop.f32.mrf.mxu0
  %v3063 = vadd.f32 %v2894, %v3062
  %3064 = vmatmul.bf16.gmra.mxu0 %v1407
  %v3065 = vpop.f32.mrf.mxu0
  %v3066 = vadd.f32 %v2897, %v3065
  %v3067 = vpop.f32.mrf.mxu0
  %v3068 = vadd.f32 %v2899, %v3067
  %3069 = vmatmul.bf16.gmra.mxu0 %v1415
  %v3070 = vpop.f32.mrf.mxu0
  %v3071 = vadd.f32 %v2902, %v3070
  %v3072 = vpop.f32.mrf.mxu0
  %v3073 = vadd.f32 %v2904, %v3072
  %3074 = vmatmul.bf16.gmra.mxu0 %v1423
  %v3075 = vpop.f32.mrf.mxu0
  %v3076 = vadd.f32 %v2907, %v3075
  %v3077 = vpop.f32.mrf.mxu0
  %v3078 = vadd.f32 %v2909, %v3077
  %3079 = vdwg.mxu0
  %3080 = vmatpush.bf16.msra.mxu0 %v1993
  %3081 = vmatpush.bf16.msra.mxu0 %v1992
  %3082 = vmatpush.bf16.msra.mxu0 %v1991
  %3083 = vmatpush.bf16.msra.mxu0 %v1990
  %3084 = vmatpush.bf16.msra.mxu0 %v1989
  %3085 = vmatpush.bf16.msra.mxu0 %v1988
  %3086 = vmatpush.bf16.msra.mxu0 %v1987
  %3087 = vmatpush.bf16.msra.mxu0 %v1986
  %3088 = vmatmul.bf16.gmra.mxu0 %v1176
  %v3089 = vpop.f32.mrf.mxu0
  %v3090 = vadd.f32 %v2921, %v3089
  %v3091 = vpop.f32.mrf.mxu0
  %v3092 = vadd.f32 %v2923, %v3091
  %3093 = vmatmul.bf16.gmra.mxu0 %v1184
  %v3094 = vpop.f32.mrf.mxu0
  %v3095 = vadd.f32 %v2926, %v3094
  %v3096 = vpop.f32.mrf.mxu0
  %v3097 = vadd.f32 %v2928, %v3096
  %3098 = vmatmul.bf16.gmra.mxu0 %v1192
  %v3099 = vpop.f32.mrf.mxu0
  %v3100 = vadd.f32 %v2931, %v3099
  %v3101 = vpop.f32.mrf.mxu0
  %v3102 = vadd.f32 %v2933, %v3101
  %3103 = vmatmul.bf16.gmra.mxu0 %v1200
  %v3104 = vpop.f32.mrf.mxu0
  %v3105 = vadd.f32 %v2936, %v3104
  %v3106 = vpop.f32.mrf.mxu0
  %v3107 = vadd.f32 %v2938, %v3106
  %3108 = vmatmul.bf16.gmra.mxu0 %v1208
  %v3109 = vpop.f32.mrf.mxu0
  %v3110 = vadd.f32 %v2941, %v3109
  %v3111 = vpop.f32.mrf.mxu0
  %v3112 = vadd.f32 %v2943, %v3111
  %3113 = vmatmul.bf16.gmra.mxu0 %v1216
  %v3114 = vpop.f32.mrf.mxu0
  %v3115 = vadd.f32 %v2946, %v3114
  %v3116 = vpop.f32.mrf.mxu0
  %v3117 = vadd.f32 %v2948, %v3116
  %3118 = vmatmul.bf16.gmra.mxu0 %v1224
  %v3119 = vpop.f32.mrf.mxu0
  %v3120 = vadd.f32 %v2951, %v3119
  %v3121 = vpop.f32.mrf.mxu0
  %v3122 = vadd.f32 %v2953, %v3121
  %3123 = vmatmul.bf16.gmra.mxu0 %v1232
  %v3124 = vpop.f32.mrf.mxu0
  %v3125 = vadd.f32 %v2956, %v3124
  %v3126 = vpop.f32.mrf.mxu0
  %v3127 = vadd.f32 %v2958, %v3126
  %3128 = vmatmul.bf16.gmra.mxu0 %v1240
  %v3129 = vpop.f32.mrf.mxu0
  %v3130 = vadd.f32 %v2961, %v3129
  %v3131 = vpop.f32.mrf.mxu0
  %v3132 = vadd.f32 %v2963, %v3131
  %3133 = vmatmul.bf16.gmra.mxu0 %v1248
  %v3134 = vpop.f32.mrf.mxu0
  %v3135 = vadd.f32 %v2966, %v3134
  %v3136 = vpop.f32.mrf.mxu0
  %v3137 = vadd.f32 %v2968, %v3136
  %3138 = vmatmul.bf16.gmra.mxu0 %v1256
  %v3139 = vpop.f32.mrf.mxu0
  %v3140 = vadd.f32 %v2971, %v3139
  %v3141 = vpop.f32.mrf.mxu0
  %v3142 = vadd.f32 %v2973, %v3141
  %3143 = vmatmul.bf16.gmra.mxu0 %v1264
  %v3144 = vpop.f32.mrf.mxu0
  %v3145 = vadd.f32 %v2976, %v3144
  %v3146 = vpop.f32.mrf.mxu0
  %v3147 = vadd.f32 %v2978, %v3146
  %3148 = vmatmul.bf16.gmra.mxu0 %v1272
  %v3149 = vpop.f32.mrf.mxu0
  %v3150 = vadd.f32 %v2981, %v3149
  %v3151 = vpop.f32.mrf.mxu0
  %v3152 = vadd.f32 %v2983, %v3151
  %3153 = vmatmul.bf16.gmra.mxu0 %v1280
  %v3154 = vpop.f32.mrf.mxu0
  %v3155 = vadd.f32 %v2986, %v3154
  %v3156 = vpop.f32.mrf.mxu0
  %v3157 = vadd.f32 %v2988, %v3156
  %3158 = vmatmul.bf16.gmra.mxu0 %v1288
  %v3159 = vpop.f32.mrf.mxu0
  %v3160 = vadd.f32 %v2991, %v3159
  %v3161 = vpop.f32.mrf.mxu0
  %v3162 = vadd.f32 %v2993, %v3161
  %3163 = vmatmul.bf16.gmra.mxu0 %v1296
  %v3164 = vpop.f32.mrf.mxu0
  %v3165 = vadd.f32 %v2996, %v3164
  %v3166 = vpop.f32.mrf.mxu0
  %v3167 = vadd.f32 %v2998, %v3166
  %3168 = vmatmul.bf16.gmra.mxu0 %v1304
  %v3169 = vpop.f32.mrf.mxu0
  %v3170 = vadd.f32 %v3001, %v3169
  %v3171 = vpop.f32.mrf.mxu0
  %v3172 = vadd.f32 %v3003, %v3171
  %3173 = vmatmul.bf16.gmra.mxu0 %v1312
  %v3174 = vpop.f32.mrf.mxu0
  %v3175 = vadd.f32 %v3006, %v3174
  %v3176 = vpop.f32.mrf.mxu0
  %v3177 = vadd.f32 %v3008, %v3176
  %3178 = vmatmul.bf16.gmra.mxu0 %v1320
  %v3179 = vpop.f32.mrf.mxu0
  %v3180 = vadd.f32 %v3011, %v3179
  %v3181 = vpop.f32.mrf.mxu0
  %v3182 = vadd.f32 %v3013, %v3181
  %3183 = vmatmul.bf16.gmra.mxu0 %v1328
  %v3184 = vpop.f32.mrf.mxu0
  %v3185 = vadd.f32 %v3016, %v3184
  %v3186 = vpop.f32.mrf.mxu0
  %v3187 = vadd.f32 %v3018, %v3186
  %3188 = vmatmul.bf16.gmra.mxu0 %v1336
  %v3189 = vpop.f32.mrf.mxu0
  %v3190 = vadd.f32 %v3021, %v3189
  %v3191 = vpop.f32.mrf.mxu0
  %v3192 = vadd.f32 %v3023, %v3191
  %3193 = vmatmul.bf16.gmra.mxu0 %v1344
  %v3194 = vpop.f32.mrf.mxu0
  %v3195 = vadd.f32 %v3026, %v3194
  %v3196 = vpop.f32.mrf.mxu0
  %v3197 = vadd.f32 %v3028, %v3196
  %3198 = vmatmul.bf16.gmra.mxu0 %v1352
  %v3199 = vpop.f32.mrf.mxu0
  %v3200 = vadd.f32 %v3031, %v3199
  %v3201 = vpop.f32.mrf.mxu0
  %v3202 = vadd.f32 %v3033, %v3201
  %3203 = vmatmul.bf16.gmra.mxu0 %v1360
  %v3204 = vpop.f32.mrf.mxu0
  %v3205 = vadd.f32 %v3036, %v3204
  %v3206 = vpop.f32.mrf.mxu0
  %v3207 = vadd.f32 %v3038, %v3206
  %3208 = vmatmul.bf16.gmra.mxu0 %v1368
  %v3209 = vpop.f32.mrf.mxu0
  %v3210 = vadd.f32 %v3041, %v3209
  %v3211 = vpop.f32.mrf.mxu0
  %v3212 = vadd.f32 %v3043, %v3211
  %3213 = vmatmul.bf16.gmra.mxu0 %v1376
  %v3214 = vpop.f32.mrf.mxu0
  %v3215 = vadd.f32 %v3046, %v3214
  %v3216 = vpop.f32.mrf.mxu0
  %v3217 = vadd.f32 %v3048, %v3216
  %3218 = vmatmul.bf16.gmra.mxu0 %v1384
  %v3219 = vpop.f32.mrf.mxu0
  %v3220 = vadd.f32 %v3051, %v3219
  %v3221 = vpop.f32.mrf.mxu0
  %v3222 = vadd.f32 %v3053, %v3221
  %3223 = vmatmul.bf16.gmra.mxu0 %v1392
  %v3224 = vpop.f32.mrf.mxu0
  %v3225 = vadd.f32 %v3056, %v3224
  %v3226 = vpop.f32.mrf.mxu0
  %v3227 = vadd.f32 %v3058, %v3226
  %3228 = vmatmul.bf16.gmra.mxu0 %v1400
  %v3229 = vpop.f32.mrf.mxu0
  %v3230 = vadd.f32 %v3061, %v3229
  %v3231 = vpop.f32.mrf.mxu0
  %v3232 = vadd.f32 %v3063, %v3231
  %3233 = vmatmul.bf16.gmra.mxu0 %v1408
  %v3234 = vpop.f32.mrf.mxu0
  %v3235 = vadd.f32 %v3066, %v3234
  %v3236 = vpop.f32.mrf.mxu0
  %v3237 = vadd.f32 %v3068, %v3236
  %3238 = vmatmul.bf16.gmra.mxu0 %v1416
  %v3239 = vpop.f32.mrf.mxu0
  %v3240 = vadd.f32 %v3071, %v3239
  %v3241 = vpop.f32.mrf.mxu0
  %v3242 = vadd.f32 %v3073, %v3241
  %3243 = vmatmul.bf16.gmra.mxu0 %v1424
  %v3244 = vpop.f32.mrf.mxu0
  %v3245 = vadd.f32 %v3076, %v3244
  %v3246 = vpop.f32.mrf.mxu0
  %v3247 = vadd.f32 %v3078, %v3246
  %3248 = vdwg.mxu0
  %3249 = vmatpush.bf16.msra.mxu0 %v2001
  %3250 = vmatpush.bf16.msra.mxu0 %v2000
  %3251 = vmatpush.bf16.msra.mxu0 %v1999
  %3252 = vmatpush.bf16.msra.mxu0 %v1998
  %3253 = vmatpush.bf16.msra.mxu0 %v1997
  %3254 = vmatpush.bf16.msra.mxu0 %v1996
  %3255 = vmatpush.bf16.msra.mxu0 %v1995
  %3256 = vmatpush.bf16.msra.mxu0 %v1994
  %3257 = vmatmul.bf16.gmra.mxu0 %v1177
  %v3258 = vpop.f32.mrf.mxu0
  %v3259 = vadd.f32 %v3090, %v3258
  %v3260 = vpop.f32.mrf.mxu0
  %v3261 = vadd.f32 %v3092, %v3260
  %3262 = vmatmul.bf16.gmra.mxu0 %v1185
  %v3263 = vpop.f32.mrf.mxu0
  %v3264 = vadd.f32 %v3095, %v3263
  %v3265 = vpop.f32.mrf.mxu0
  %v3266 = vadd.f32 %v3097, %v3265
  %3267 = vmatmul.bf16.gmra.mxu0 %v1193
  %v3268 = vpop.f32.mrf.mxu0
  %v3269 = vadd.f32 %v3100, %v3268
  %v3270 = vpop.f32.mrf.mxu0
  %v3271 = vadd.f32 %v3102, %v3270
  %3272 = vmatmul.bf16.gmra.mxu0 %v1201
  %v3273 = vpop.f32.mrf.mxu0
  %v3274 = vadd.f32 %v3105, %v3273
  %v3275 = vpop.f32.mrf.mxu0
  %v3276 = vadd.f32 %v3107, %v3275
  %3277 = vmatmul.bf16.gmra.mxu0 %v1209
  %v3278 = vpop.f32.mrf.mxu0
  %v3279 = vadd.f32 %v3110, %v3278
  %v3280 = vpop.f32.mrf.mxu0
  %v3281 = vadd.f32 %v3112, %v3280
  %3282 = vmatmul.bf16.gmra.mxu0 %v1217
  %v3283 = vpop.f32.mrf.mxu0
  %v3284 = vadd.f32 %v3115, %v3283
  %v3285 = vpop.f32.mrf.mxu0
  %v3286 = vadd.f32 %v3117, %v3285
  %3287 = vmatmul.bf16.gmra.mxu0 %v1225
  %v3288 = vpop.f32.mrf.mxu0
  %v3289 = vadd.f32 %v3120, %v3288
  %v3290 = vpop.f32.mrf.mxu0
  %v3291 = vadd.f32 %v3122, %v3290
  %3292 = vmatmul.bf16.gmra.mxu0 %v1233
  %v3293 = vpop.f32.mrf.mxu0
  %v3294 = vadd.f32 %v3125, %v3293
  %v3295 = vpop.f32.mrf.mxu0
  %v3296 = vadd.f32 %v3127, %v3295
  %3297 = vmatmul.bf16.gmra.mxu0 %v1241
  %v3298 = vpop.f32.mrf.mxu0
  %v3299 = vadd.f32 %v3130, %v3298
  %v3300 = vpop.f32.mrf.mxu0
  %v3301 = vadd.f32 %v3132, %v3300
  %3302 = vmatmul.bf16.gmra.mxu0 %v1249
  %v3303 = vpop.f32.mrf.mxu0
  %v3304 = vadd.f32 %v3135, %v3303
  %v3305 = vpop.f32.mrf.mxu0
  %v3306 = vadd.f32 %v3137, %v3305
  %3307 = vmatmul.bf16.gmra.mxu0 %v1257
  %v3308 = vpop.f32.mrf.mxu0
  %v3309 = vadd.f32 %v3140, %v3308
  %v3310 = vpop.f32.mrf.mxu0
  %v3311 = vadd.f32 %v3142, %v3310
  %3312 = vmatmul.bf16.gmra.mxu0 %v1265
  %v3313 = vpop.f32.mrf.mxu0
  %v3314 = vadd.f32 %v3145, %v3313
  %v3315 = vpop.f32.mrf.mxu0
  %v3316 = vadd.f32 %v3147, %v3315
  %3317 = vmatmul.bf16.gmra.mxu0 %v1273
  %v3318 = vpop.f32.mrf.mxu0
  %v3319 = vadd.f32 %v3150, %v3318
  %v3320 = vpop.f32.mrf.mxu0
  %v3321 = vadd.f32 %v3152, %v3320
  %3322 = vmatmul.bf16.gmra.mxu0 %v1281
  %v3323 = vpop.f32.mrf.mxu0
  %v3324 = vadd.f32 %v3155, %v3323
  %v3325 = vpop.f32.mrf.mxu0
  %v3326 = vadd.f32 %v3157, %v3325
  %3327 = vmatmul.bf16.gmra.mxu0 %v1289
  %v3328 = vpop.f32.mrf.mxu0
  %v3329 = vadd.f32 %v3160, %v3328
  %v3330 = vpop.f32.mrf.mxu0
  %v3331 = vadd.f32 %v3162, %v3330
  %3332 = vmatmul.bf16.gmra.mxu0 %v1297
  %v3333 = vpop.f32.mrf.mxu0
  %v3334 = vadd.f32 %v3165, %v3333
  %v3335 = vpop.f32.mrf.mxu0
  %v3336 = vadd.f32 %v3167, %v3335
  %3337 = vmatmul.bf16.gmra.mxu0 %v1305
  %v3338 = vpop.f32.mrf.mxu0
  %v3339 = vadd.f32 %v3170, %v3338
  %v3340 = vpop.f32.mrf.mxu0
  %v3341 = vadd.f32 %v3172, %v3340
  %3342 = vmatmul.bf16.gmra.mxu0 %v1313
  %v3343 = vpop.f32.mrf.mxu0
  %v3344 = vadd.f32 %v3175, %v3343
  %v3345 = vpop.f32.mrf.mxu0
  %v3346 = vadd.f32 %v3177, %v3345
  %3347 = vmatmul.bf16.gmra.mxu0 %v1321
  %v3348 = vpop.f32.mrf.mxu0
  %v3349 = vadd.f32 %v3180, %v3348
  %v3350 = vpop.f32.mrf.mxu0
  %v3351 = vadd.f32 %v3182, %v3350
  %3352 = vmatmul.bf16.gmra.mxu0 %v1329
  %v3353 = vpop.f32.mrf.mxu0
  %v3354 = vadd.f32 %v3185, %v3353
  %v3355 = vpop.f32.mrf.mxu0
  %v3356 = vadd.f32 %v3187, %v3355
  %3357 = vmatmul.bf16.gmra.mxu0 %v1337
  %v3358 = vpop.f32.mrf.mxu0
  %v3359 = vadd.f32 %v3190, %v3358
  %v3360 = vpop.f32.mrf.mxu0
  %v3361 = vadd.f32 %v3192, %v3360
  %3362 = vmatmul.bf16.gmra.mxu0 %v1345
  %v3363 = vpop.f32.mrf.mxu0
  %v3364 = vadd.f32 %v3195, %v3363
  %v3365 = vpop.f32.mrf.mxu0
  %v3366 = vadd.f32 %v3197, %v3365
  %3367 = vmatmul.bf16.gmra.mxu0 %v1353
  %v3368 = vpop.f32.mrf.mxu0
  %v3369 = vadd.f32 %v3200, %v3368
  %v3370 = vpop.f32.mrf.mxu0
  %v3371 = vadd.f32 %v3202, %v3370
  %3372 = vmatmul.bf16.gmra.mxu0 %v1361
  %v3373 = vpop.f32.mrf.mxu0
  %v3374 = vadd.f32 %v3205, %v3373
  %v3375 = vpop.f32.mrf.mxu0
  %v3376 = vadd.f32 %v3207, %v3375
  %3377 = vmatmul.bf16.gmra.mxu0 %v1369
  %v3378 = vpop.f32.mrf.mxu0
  %v3379 = vadd.f32 %v3210, %v3378
  %v3380 = vpop.f32.mrf.mxu0
  %v3381 = vadd.f32 %v3212, %v3380
  %3382 = vmatmul.bf16.gmra.mxu0 %v1377
  %v3383 = vpop.f32.mrf.mxu0
  %v3384 = vadd.f32 %v3215, %v3383
  %v3385 = vpop.f32.mrf.mxu0
  %v3386 = vadd.f32 %v3217, %v3385
  %3387 = vmatmul.bf16.gmra.mxu0 %v1385
  %v3388 = vpop.f32.mrf.mxu0
  %v3389 = vadd.f32 %v3220, %v3388
  %v3390 = vpop.f32.mrf.mxu0
  %v3391 = vadd.f32 %v3222, %v3390
  %3392 = vmatmul.bf16.gmra.mxu0 %v1393
  %v3393 = vpop.f32.mrf.mxu0
  %v3394 = vadd.f32 %v3225, %v3393
  %v3395 = vpop.f32.mrf.mxu0
  %v3396 = vadd.f32 %v3227, %v3395
  %3397 = vmatmul.bf16.gmra.mxu0 %v1401
  %v3398 = vpop.f32.mrf.mxu0
  %v3399 = vadd.f32 %v3230, %v3398
  %v3400 = vpop.f32.mrf.mxu0
  %v3401 = vadd.f32 %v3232, %v3400
  %3402 = vmatmul.bf16.gmra.mxu0 %v1409
  %v3403 = vpop.f32.mrf.mxu0
  %v3404 = vadd.f32 %v3235, %v3403
  %v3405 = vpop.f32.mrf.mxu0
  %v3406 = vadd.f32 %v3237, %v3405
  %3407 = vmatmul.bf16.gmra.mxu0 %v1417
  %v3408 = vpop.f32.mrf.mxu0
  %v3409 = vadd.f32 %v3240, %v3408
  %v3410 = vpop.f32.mrf.mxu0
  %v3411 = vadd.f32 %v3242, %v3410
  %3412 = vmatmul.bf16.gmra.mxu0 %v1425
  %v3413 = vpop.f32.mrf.mxu0
  %v3414 = vadd.f32 %v3245, %v3413
  %v3415 = vpop.f32.mrf.mxu0
  %v3416 = vadd.f32 %v3247, %v3415
  %3417 = vdwg.mxu0
  %v3418 = vxor.u32 %v3259, 2147483648
  %v3419 = vxor.u32 %v3261, 2147483648
  %v3420 = vxor.u32 %v3264, 2147483648
  %v3421 = vxor.u32 %v3266, 2147483648
  %v3422 = vxor.u32 %v3269, 2147483648
  %v3423 = vxor.u32 %v3271, 2147483648
  %v3424 = vxor.u32 %v3274, 2147483648
  %v3425 = vxor.u32 %v3276, 2147483648
  %v3426 = vxor.u32 %v3279, 2147483648
  %v3427 = vxor.u32 %v3281, 2147483648
  %v3428 = vxor.u32 %v3284, 2147483648
  %v3429 = vxor.u32 %v3286, 2147483648
  %v3430 = vxor.u32 %v3289, 2147483648
  %v3431 = vxor.u32 %v3291, 2147483648
  %v3432 = vxor.u32 %v3294, 2147483648
  %v3433 = vxor.u32 %v3296, 2147483648
  %v3434 = vxor.u32 %v3299, 2147483648
  %v3435 = vxor.u32 %v3301, 2147483648
  %v3436 = vxor.u32 %v3304, 2147483648
  %v3437 = vxor.u32 %v3306, 2147483648
  %v3438 = vxor.u32 %v3309, 2147483648
  %v3439 = vxor.u32 %v3311, 2147483648
  %v3440 = vxor.u32 %v3314, 2147483648
  %v3441 = vxor.u32 %v3316, 2147483648
  %v3442 = vxor.u32 %v3319, 2147483648
  %v3443 = vxor.u32 %v3321, 2147483648
  %v3444 = vxor.u32 %v3324, 2147483648
  %v3445 = vxor.u32 %v3326, 2147483648
  %v3446 = vxor.u32 %v3329, 2147483648
  %v3447 = vxor.u32 %v3331, 2147483648
  %v3448 = vxor.u32 %v3334, 2147483648
  %v3449 = vxor.u32 %v3336, 2147483648
  %v3450 = vxor.u32 %v3339, 2147483648
  %v3451 = vxor.u32 %v3341, 2147483648
  %v3452 = vxor.u32 %v3344, 2147483648
  %v3453 = vxor.u32 %v3346, 2147483648
  %v3454 = vxor.u32 %v3349, 2147483648
  %v3455 = vxor.u32 %v3351, 2147483648
  %v3456 = vxor.u32 %v3354, 2147483648
  %v3457 = vxor.u32 %v3356, 2147483648
  %v3458 = vxor.u32 %v3359, 2147483648
  %v3459 = vxor.u32 %v3361, 2147483648
  %v3460 = vxor.u32 %v3364, 2147483648
  %v3461 = vxor.u32 %v3366, 2147483648
  %v3462 = vxor.u32 %v3369, 2147483648
  %v3463 = vxor.u32 %v3371, 2147483648
  %v3464 = vxor.u32 %v3374, 2147483648
  %v3465 = vxor.u32 %v3376, 2147483648
  %v3466 = vxor.u32 %v3379, 2147483648
  %v3467 = vxor.u32 %v3381, 2147483648
  %v3468 = vxor.u32 %v3384, 2147483648
  %v3469 = vxor.u32 %v3386, 2147483648
  %v3470 = vxor.u32 %v3389, 2147483648
  %v3471 = vxor.u32 %v3391, 2147483648
  %v3472 = vxor.u32 %v3394, 2147483648
  %v3473 = vxor.u32 %v3396, 2147483648
  %v3474 = vxor.u32 %v3399, 2147483648
  %v3475 = vxor.u32 %v3401, 2147483648
  %v3476 = vxor.u32 %v3404, 2147483648
  %v3477 = vxor.u32 %v3406, 2147483648
  %v3478 = vxor.u32 %v3409, 2147483648
  %v3479 = vxor.u32 %v3411, 2147483648
  %v3480 = vxor.u32 %v3414, 2147483648
  %v3481 = vxor.u32 %v3416, 2147483648
  %v3482 = vmul.f32 %v3418, 1.442695
  %v3483 = vpow.pop %v3482
  %v3484 = vmul.f32 %v3419, 1.442695
  %v3485 = vpow.pop %v3484
  %v3486 = vmul.f32 %v3420, 1.442695
  %v3487 = vpow.pop %v3486
  %v3488 = vmul.f32 %v3421, 1.442695
  %v3489 = vpow.pop %v3488
  %v3490 = vmul.f32 %v3422, 1.442695
  %v3491 = vpow.pop %v3490
  %v3492 = vmul.f32 %v3423, 1.442695
  %v3493 = vpow.pop %v3492
  %v3494 = vmul.f32 %v3424, 1.442695
  %v3495 = vpow.pop %v3494
  %v3496 = vmul.f32 %v3425, 1.442695
  %v3497 = vpow.pop %v3496
  %v3498 = vmul.f32 %v3426, 1.442695
  %v3499 = vpow.pop %v3498
  %v3500 = vmul.f32 %v3427, 1.442695
  %v3501 = vpow.pop %v3500
  %v3502 = vmul.f32 %v3428, 1.442695
  %v3503 = vpow.pop %v3502
  %v3504 = vmul.f32 %v3429, 1.442695
  %v3505 = vpow.pop %v3504
  %v3506 = vmul.f32 %v3430, 1.442695
  %v3507 = vpow.pop %v3506
  %v3508 = vmul.f32 %v3431, 1.442695
  %v3509 = vpow.pop %v3508
  %v3510 = vmul.f32 %v3432, 1.442695
  %v3511 = vpow.pop %v3510
  %v3512 = vmul.f32 %v3433, 1.442695
  %v3513 = vpow.pop %v3512
  %v3514 = vmul.f32 %v3434, 1.442695
  %v3515 = vpow.pop %v3514
  %v3516 = vmul.f32 %v3435, 1.442695
  %v3517 = vpow.pop %v3516
  %v3518 = vmul.f32 %v3436, 1.442695
  %v3519 = vpow.pop %v3518
  %v3520 = vmul.f32 %v3437, 1.442695
  %v3521 = vpow.pop %v3520
  %v3522 = vmul.f32 %v3438, 1.442695
  %v3523 = vpow.pop %v3522
  %v3524 = vmul.f32 %v3439, 1.442695
  %v3525 = vpow.pop %v3524
  %v3526 = vmul.f32 %v3440, 1.442695
  %v3527 = vpow.pop %v3526
  %v3528 = vmul.f32 %v3441, 1.442695
  %v3529 = vpow.pop %v3528
  %v3530 = vmul.f32 %v3442, 1.442695
  %v3531 = vpow.pop %v3530
  %v3532 = vmul.f32 %v3443, 1.442695
  %v3533 = vpow.pop %v3532
  %v3534 = vmul.f32 %v3444, 1.442695
  %v3535 = vpow.pop %v3534
  %v3536 = vmul.f32 %v3445, 1.442695
  %v3537 = vpow.pop %v3536
  %v3538 = vmul.f32 %v3446, 1.442695
  %v3539 = vpow.pop %v3538
  %v3540 = vmul.f32 %v3447, 1.442695
  %v3541 = vpow.pop %v3540
  %v3542 = vmul.f32 %v3448, 1.442695
  %v3543 = vpow.pop %v3542
  %v3544 = vmul.f32 %v3449, 1.442695
  %v3545 = vpow.pop %v3544
  %v3546 = vmul.f32 %v3450, 1.442695
  %v3547 = vpow.pop %v3546
  %v3548 = vmul.f32 %v3451, 1.442695
  %v3549 = vpow.pop %v3548
  %v3550 = vmul.f32 %v3452, 1.442695
  %v3551 = vpow.pop %v3550
  %v3552 = vmul.f32 %v3453, 1.442695
  %v3553 = vpow.pop %v3552
  %v3554 = vmul.f32 %v3454, 1.442695
  %v3555 = vpow.pop %v3554
  %v3556 = vmul.f32 %v3455, 1.442695
  %v3557 = vpow.pop %v3556
  %v3558 = vmul.f32 %v3456, 1.442695
  %v3559 = vpow.pop %v3558
  %v3560 = vmul.f32 %v3457, 1.442695
  %v3561 = vpow.pop %v3560
  %v3562 = vmul.f32 %v3458, 1.442695
  %v3563 = vpow.pop %v3562
  %v3564 = vmul.f32 %v3459, 1.442695
  %v3565 = vpow.pop %v3564
  %v3566 = vmul.f32 %v3460, 1.442695
  %v3567 = vpow.pop %v3566
  %v3568 = vmul.f32 %v3461, 1.442695
  %v3569 = vpow.pop %v3568
  %v3570 = vmul.f32 %v3462, 1.442695
  %v3571 = vpow.pop %v3570
  %v3572 = vmul.f32 %v3463, 1.442695
  %v3573 = vpow.pop %v3572
  %v3574 = vmul.f32 %v3464, 1.442695
  %v3575 = vpow.pop %v3574
  %v3576 = vmul.f32 %v3465, 1.442695
  %v3577 = vpow.pop %v3576
  %v3578 = vmul.f32 %v3466, 1.442695
  %v3579 = vpow.pop %v3578
  %v3580 = vmul.f32 %v3467, 1.442695
  %v3581 = vpow.pop %v3580
  %v3582 = vmul.f32 %v3468, 1.442695
  %v3583 = vpow.pop %v3582
  %v3584 = vmul.f32 %v3469, 1.442695
  %v3585 = vpow.pop %v3584
  %v3586 = vmul.f32 %v3470, 1.442695
  %v3587 = vpow.pop %v3586
  %v3588 = vmul.f32 %v3471, 1.442695
  %v3589 = vpow.pop %v3588
  %v3590 = vmul.f32 %v3472, 1.442695
  %v3591 = vpow.pop %v3590
  %v3592 = vmul.f32 %v3473, 1.442695
  %v3593 = vpow.pop %v3592
  %v3594 = vmul.f32 %v3474, 1.442695
  %v3595 = vpow.pop %v3594
  %v3596 = vmul.f32 %v3475, 1.442695
  %v3597 = vpow.pop %v3596
  %v3598 = vmul.f32 %v3476, 1.442695
  %v3599 = vpow.pop %v3598
  %v3600 = vmul.f32 %v3477, 1.442695
  %v3601 = vpow.pop %v3600
  %v3602 = vmul.f32 %v3478, 1.442695
  %v3603 = vpow.pop %v3602
  %v3604 = vmul.f32 %v3479, 1.442695
  %v3605 = vpow.pop %v3604
  %v3606 = vmul.f32 %v3480, 1.442695
  %v3607 = vpow.pop %v3606
  %v3608 = vmul.f32 %v3481, 1.442695
  %v3609 = vpow.pop %v3608
  %v3610 = vadd.f32 %v3483, 1.0
  %v3611 = vadd.f32 %v3485, 1.0
  %v3612 = vadd.f32 %v3487, 1.0
  %v3613 = vadd.f32 %v3489, 1.0
  %v3614 = vadd.f32 %v3491, 1.0
  %v3615 = vadd.f32 %v3493, 1.0
  %v3616 = vadd.f32 %v3495, 1.0
  %v3617 = vadd.f32 %v3497, 1.0
  %v3618 = vadd.f32 %v3499, 1.0
  %v3619 = vadd.f32 %v3501, 1.0
  %v3620 = vadd.f32 %v3503, 1.0
  %v3621 = vadd.f32 %v3505, 1.0
  %v3622 = vadd.f32 %v3507, 1.0
  %v3623 = vadd.f32 %v3509, 1.0
  %v3624 = vadd.f32 %v3511, 1.0
  %v3625 = vadd.f32 %v3513, 1.0
  %v3626 = vadd.f32 %v3515, 1.0
  %v3627 = vadd.f32 %v3517, 1.0
  %v3628 = vadd.f32 %v3519, 1.0
  %v3629 = vadd.f32 %v3521, 1.0
  %v3630 = vadd.f32 %v3523, 1.0
  %v3631 = vadd.f32 %v3525, 1.0
  %v3632 = vadd.f32 %v3527, 1.0
  %v3633 = vadd.f32 %v3529, 1.0
  %v3634 = vadd.f32 %v3531, 1.0
  %v3635 = vadd.f32 %v3533, 1.0
  %v3636 = vadd.f32 %v3535, 1.0
  %v3637 = vadd.f32 %v3537, 1.0
  %v3638 = vadd.f32 %v3539, 1.0
  %v3639 = vadd.f32 %v3541, 1.0
  %v3640 = vadd.f32 %v3543, 1.0
  %v3641 = vadd.f32 %v3545, 1.0
  %v3642 = vadd.f32 %v3547, 1.0
  %v3643 = vadd.f32 %v3549, 1.0
  %v3644 = vadd.f32 %v3551, 1.0
  %v3645 = vadd.f32 %v3553, 1.0
  %v3646 = vadd.f32 %v3555, 1.0
  %v3647 = vadd.f32 %v3557, 1.0
  %v3648 = vadd.f32 %v3559, 1.0
  %v3649 = vadd.f32 %v3561, 1.0
  %v3650 = vadd.f32 %v3563, 1.0
  %v3651 = vadd.f32 %v3565, 1.0
  %v3652 = vadd.f32 %v3567, 1.0
  %v3653 = vadd.f32 %v3569, 1.0
  %v3654 = vadd.f32 %v3571, 1.0
  %v3655 = vadd.f32 %v3573, 1.0
  %v3656 = vadd.f32 %v3575, 1.0
  %v3657 = vadd.f32 %v3577, 1.0
  %v3658 = vadd.f32 %v3579, 1.0
  %v3659 = vadd.f32 %v3581, 1.0
  %v3660 = vadd.f32 %v3583, 1.0
  %v3661 = vadd.f32 %v3585, 1.0
  %v3662 = vadd.f32 %v3587, 1.0
  %v3663 = vadd.f32 %v3589, 1.0
  %v3664 = vadd.f32 %v3591, 1.0
  %v3665 = vadd.f32 %v3593, 1.0
  %v3666 = vadd.f32 %v3595, 1.0
  %v3667 = vadd.f32 %v3597, 1.0
  %v3668 = vadd.f32 %v3599, 1.0
  %v3669 = vadd.f32 %v3601, 1.0
  %v3670 = vadd.f32 %v3603, 1.0
  %v3671 = vadd.f32 %v3605, 1.0
  %v3672 = vadd.f32 %v3607, 1.0
  %v3673 = vadd.f32 %v3609, 1.0
  %v3674 = vrcp.pop %v3610
  %v3675 = vmul.f32 %v3610, %v3674
  %v3676 = vsub.f32 1.0, %v3675
  %v3677 = vmul.f32 %v3674, %v3676
  %v3678 = vadd.f32 %v3674, %v3677
  %vm3679 = vweird.f32 %v3610
  %vm3680 = vweird.f32 %v3674
  %vm3681 = vmor %vm3679, %vm3680
  %v3682 = vsel %vm3681, %v3674, %v3678
  %v3683 = vand.u32 2147483647, %v3610
  %vm3684 = vcmp.eq.f32.partialorder %v3683, 8.507059e+37
  %v3685 = vand.u32 %v3610, 2147483648
  %v3686 = vor.u32 1.1754944e-38, %v3685
  %v3687 = vsel %vm3684, %v3686, %v3682
  %v3688 = vmul.f32 1.0, %v3687
  %v3689 = vrcp.pop %v3611
  %v3690 = vmul.f32 %v3611, %v3689
  %v3691 = vsub.f32 1.0, %v3690
  %v3692 = vmul.f32 %v3689, %v3691
  %v3693 = vadd.f32 %v3689, %v3692
  %vm3694 = vweird.f32 %v3611
  %vm3695 = vweird.f32 %v3689
  %vm3696 = vmor %vm3694, %vm3695
  %v3697 = vsel %vm3696, %v3689, %v3693
  %v3698 = vand.u32 2147483647, %v3611
  %vm3699 = vcmp.eq.f32.partialorder %v3698, 8.507059e+37
  %v3700 = vand.u32 %v3611, 2147483648
  %v3701 = vor.u32 1.1754944e-38, %v3700
  %v3702 = vsel %vm3699, %v3701, %v3697
  %v3703 = vmul.f32 1.0, %v3702
  %v3704 = vrcp.pop %v3612
  %v3705 = vmul.f32 %v3612, %v3704
  %v3706 = vsub.f32 1.0, %v3705
  %v3707 = vmul.f32 %v3704, %v3706
  %v3708 = vadd.f32 %v3704, %v3707
  %vm3709 = vweird.f32 %v3612
  %vm3710 = vweird.f32 %v3704
  %vm3711 = vmor %vm3709, %vm3710
  %v3712 = vsel %vm3711, %v3704, %v3708
  %v3713 = vand.u32 2147483647, %v3612
  %vm3714 = vcmp.eq.f32.partialorder %v3713, 8.507059e+37
  %v3715 = vand.u32 %v3612, 2147483648
  %v3716 = vor.u32 1.1754944e-38, %v3715
  %v3717 = vsel %vm3714, %v3716, %v3712
  %v3718 = vmul.f32 1.0, %v3717
  %v3719 = vrcp.pop %v3613
  %v3720 = vmul.f32 %v3613, %v3719
  %v3721 = vsub.f32 1.0, %v3720
  %v3722 = vmul.f32 %v3719, %v3721
  %v3723 = vadd.f32 %v3719, %v3722
  %vm3724 = vweird.f32 %v3613
  %vm3725 = vweird.f32 %v3719
  %vm3726 = vmor %vm3724, %vm3725
  %v3727 = vsel %vm3726, %v3719, %v3723
  %v3728 = vand.u32 2147483647, %v3613
  %vm3729 = vcmp.eq.f32.partialorder %v3728, 8.507059e+37
  %v3730 = vand.u32 %v3613, 2147483648
  %v3731 = vor.u32 1.1754944e-38, %v3730
  %v3732 = vsel %vm3729, %v3731, %v3727
  %v3733 = vmul.f32 1.0, %v3732
  %v3734 = vrcp.pop %v3614
  %v3735 = vmul.f32 %v3614, %v3734
  %v3736 = vsub.f32 1.0, %v3735
  %v3737 = vmul.f32 %v3734, %v3736
  %v3738 = vadd.f32 %v3734, %v3737
  %vm3739 = vweird.f32 %v3614
  %vm3740 = vweird.f32 %v3734
  %vm3741 = vmor %vm3739, %vm3740
  %v3742 = vsel %vm3741, %v3734, %v3738
  %v3743 = vand.u32 2147483647, %v3614
  %vm3744 = vcmp.eq.f32.partialorder %v3743, 8.507059e+37
  %v3745 = vand.u32 %v3614, 2147483648
  %v3746 = vor.u32 1.1754944e-38, %v3745
  %v3747 = vsel %vm3744, %v3746, %v3742
  %v3748 = vmul.f32 1.0, %v3747
  %v3749 = vrcp.pop %v3615
  %v3750 = vmul.f32 %v3615, %v3749
  %v3751 = vsub.f32 1.0, %v3750
  %v3752 = vmul.f32 %v3749, %v3751
  %v3753 = vadd.f32 %v3749, %v3752
  %vm3754 = vweird.f32 %v3615
  %vm3755 = vweird.f32 %v3749
  %vm3756 = vmor %vm3754, %vm3755
  %v3757 = vsel %vm3756, %v3749, %v3753
  %v3758 = vand.u32 2147483647, %v3615
  %vm3759 = vcmp.eq.f32.partialorder %v3758, 8.507059e+37
  %v3760 = vand.u32 %v3615, 2147483648
  %v3761 = vor.u32 1.1754944e-38, %v3760
  %v3762 = vsel %vm3759, %v3761, %v3757
  %v3763 = vmul.f32 1.0, %v3762
  %v3764 = vrcp.pop %v3616
  %v3765 = vmul.f32 %v3616, %v3764
  %v3766 = vsub.f32 1.0, %v3765
  %v3767 = vmul.f32 %v3764, %v3766
  %v3768 = vadd.f32 %v3764, %v3767
  %vm3769 = vweird.f32 %v3616
  %vm3770 = vweird.f32 %v3764
  %vm3771 = vmor %vm3769, %vm3770
  %v3772 = vsel %vm3771, %v3764, %v3768
  %v3773 = vand.u32 2147483647, %v3616
  %vm3774 = vcmp.eq.f32.partialorder %v3773, 8.507059e+37
  %v3775 = vand.u32 %v3616, 2147483648
  %v3776 = vor.u32 1.1754944e-38, %v3775
  %v3777 = vsel %vm3774, %v3776, %v3772
  %v3778 = vmul.f32 1.0, %v3777
  %v3779 = vrcp.pop %v3617
  %v3780 = vmul.f32 %v3617, %v3779
  %v3781 = vsub.f32 1.0, %v3780
  %v3782 = vmul.f32 %v3779, %v3781
  %v3783 = vadd.f32 %v3779, %v3782
  %vm3784 = vweird.f32 %v3617
  %vm3785 = vweird.f32 %v3779
  %vm3786 = vmor %vm3784, %vm3785
  %v3787 = vsel %vm3786, %v3779, %v3783
  %v3788 = vand.u32 2147483647, %v3617
  %vm3789 = vcmp.eq.f32.partialorder %v3788, 8.507059e+37
  %v3790 = vand.u32 %v3617, 2147483648
  %v3791 = vor.u32 1.1754944e-38, %v3790
  %v3792 = vsel %vm3789, %v3791, %v3787
  %v3793 = vmul.f32 1.0, %v3792
  %v3794 = vrcp.pop %v3618
  %v3795 = vmul.f32 %v3618, %v3794
  %v3796 = vsub.f32 1.0, %v3795
  %v3797 = vmul.f32 %v3794, %v3796
  %v3798 = vadd.f32 %v3794, %v3797
  %vm3799 = vweird.f32 %v3618
  %vm3800 = vweird.f32 %v3794
  %vm3801 = vmor %vm3799, %vm3800
  %v3802 = vsel %vm3801, %v3794, %v3798
  %v3803 = vand.u32 2147483647, %v3618
  %vm3804 = vcmp.eq.f32.partialorder %v3803, 8.507059e+37
  %v3805 = vand.u32 %v3618, 2147483648
  %v3806 = vor.u32 1.1754944e-38, %v3805
  %v3807 = vsel %vm3804, %v3806, %v3802
  %v3808 = vmul.f32 1.0, %v3807
  %v3809 = vrcp.pop %v3619
  %v3810 = vmul.f32 %v3619, %v3809
  %v3811 = vsub.f32 1.0, %v3810
  %v3812 = vmul.f32 %v3809, %v3811
  %v3813 = vadd.f32 %v3809, %v3812
  %vm3814 = vweird.f32 %v3619
  %vm3815 = vweird.f32 %v3809
  %vm3816 = vmor %vm3814, %vm3815
  %v3817 = vsel %vm3816, %v3809, %v3813
  %v3818 = vand.u32 2147483647, %v3619
  %vm3819 = vcmp.eq.f32.partialorder %v3818, 8.507059e+37
  %v3820 = vand.u32 %v3619, 2147483648
  %v3821 = vor.u32 1.1754944e-38, %v3820
  %v3822 = vsel %vm3819, %v3821, %v3817
  %v3823 = vmul.f32 1.0, %v3822
  %v3824 = vrcp.pop %v3620
  %v3825 = vmul.f32 %v3620, %v3824
  %v3826 = vsub.f32 1.0, %v3825
  %v3827 = vmul.f32 %v3824, %v3826
  %v3828 = vadd.f32 %v3824, %v3827
  %vm3829 = vweird.f32 %v3620
  %vm3830 = vweird.f32 %v3824
  %vm3831 = vmor %vm3829, %vm3830
  %v3832 = vsel %vm3831, %v3824, %v3828
  %v3833 = vand.u32 2147483647, %v3620
  %vm3834 = vcmp.eq.f32.partialorder %v3833, 8.507059e+37
  %v3835 = vand.u32 %v3620, 2147483648
  %v3836 = vor.u32 1.1754944e-38, %v3835
  %v3837 = vsel %vm3834, %v3836, %v3832
  %v3838 = vmul.f32 1.0, %v3837
  %v3839 = vrcp.pop %v3621
  %v3840 = vmul.f32 %v3621, %v3839
  %v3841 = vsub.f32 1.0, %v3840
  %v3842 = vmul.f32 %v3839, %v3841
  %v3843 = vadd.f32 %v3839, %v3842
  %vm3844 = vweird.f32 %v3621
  %vm3845 = vweird.f32 %v3839
  %vm3846 = vmor %vm3844, %vm3845
  %v3847 = vsel %vm3846, %v3839, %v3843
  %v3848 = vand.u32 2147483647, %v3621
  %vm3849 = vcmp.eq.f32.partialorder %v3848, 8.507059e+37
  %v3850 = vand.u32 %v3621, 2147483648
  %v3851 = vor.u32 1.1754944e-38, %v3850
  %v3852 = vsel %vm3849, %v3851, %v3847
  %v3853 = vmul.f32 1.0, %v3852
  %v3854 = vrcp.pop %v3622
  %v3855 = vmul.f32 %v3622, %v3854
  %v3856 = vsub.f32 1.0, %v3855
  %v3857 = vmul.f32 %v3854, %v3856
  %v3858 = vadd.f32 %v3854, %v3857
  %vm3859 = vweird.f32 %v3622
  %vm3860 = vweird.f32 %v3854
  %vm3861 = vmor %vm3859, %vm3860
  %v3862 = vsel %vm3861, %v3854, %v3858
  %v3863 = vand.u32 2147483647, %v3622
  %vm3864 = vcmp.eq.f32.partialorder %v3863, 8.507059e+37
  %v3865 = vand.u32 %v3622, 2147483648
  %v3866 = vor.u32 1.1754944e-38, %v3865
  %v3867 = vsel %vm3864, %v3866, %v3862
  %v3868 = vmul.f32 1.0, %v3867
  %v3869 = vrcp.pop %v3623
  %v3870 = vmul.f32 %v3623, %v3869
  %v3871 = vsub.f32 1.0, %v3870
  %v3872 = vmul.f32 %v3869, %v3871
  %v3873 = vadd.f32 %v3869, %v3872
  %vm3874 = vweird.f32 %v3623
  %vm3875 = vweird.f32 %v3869
  %vm3876 = vmor %vm3874, %vm3875
  %v3877 = vsel %vm3876, %v3869, %v3873
  %v3878 = vand.u32 2147483647, %v3623
  %vm3879 = vcmp.eq.f32.partialorder %v3878, 8.507059e+37
  %v3880 = vand.u32 %v3623, 2147483648
  %v3881 = vor.u32 1.1754944e-38, %v3880
  %v3882 = vsel %vm3879, %v3881, %v3877
  %v3883 = vmul.f32 1.0, %v3882
  %v3884 = vrcp.pop %v3624
  %v3885 = vmul.f32 %v3624, %v3884
  %v3886 = vsub.f32 1.0, %v3885
  %v3887 = vmul.f32 %v3884, %v3886
  %v3888 = vadd.f32 %v3884, %v3887
  %vm3889 = vweird.f32 %v3624
  %vm3890 = vweird.f32 %v3884
  %vm3891 = vmor %vm3889, %vm3890
  %v3892 = vsel %vm3891, %v3884, %v3888
  %v3893 = vand.u32 2147483647, %v3624
  %vm3894 = vcmp.eq.f32.partialorder %v3893, 8.507059e+37
  %v3895 = vand.u32 %v3624, 2147483648
  %v3896 = vor.u32 1.1754944e-38, %v3895
  %v3897 = vsel %vm3894, %v3896, %v3892
  %v3898 = vmul.f32 1.0, %v3897
  %v3899 = vrcp.pop %v3625
  %v3900 = vmul.f32 %v3625, %v3899
  %v3901 = vsub.f32 1.0, %v3900
  %v3902 = vmul.f32 %v3899, %v3901
  %v3903 = vadd.f32 %v3899, %v3902
  %vm3904 = vweird.f32 %v3625
  %vm3905 = vweird.f32 %v3899
  %vm3906 = vmor %vm3904, %vm3905
  %v3907 = vsel %vm3906, %v3899, %v3903
  %v3908 = vand.u32 2147483647, %v3625
  %vm3909 = vcmp.eq.f32.partialorder %v3908, 8.507059e+37
  %v3910 = vand.u32 %v3625, 2147483648
  %v3911 = vor.u32 1.1754944e-38, %v3910
  %v3912 = vsel %vm3909, %v3911, %v3907
  %v3913 = vmul.f32 1.0, %v3912
  %v3914 = vrcp.pop %v3626
  %v3915 = vmul.f32 %v3626, %v3914
  %v3916 = vsub.f32 1.0, %v3915
  %v3917 = vmul.f32 %v3914, %v3916
  %v3918 = vadd.f32 %v3914, %v3917
  %vm3919 = vweird.f32 %v3626
  %vm3920 = vweird.f32 %v3914
  %vm3921 = vmor %vm3919, %vm3920
  %v3922 = vsel %vm3921, %v3914, %v3918
  %v3923 = vand.u32 2147483647, %v3626
  %vm3924 = vcmp.eq.f32.partialorder %v3923, 8.507059e+37
  %v3925 = vand.u32 %v3626, 2147483648
  %v3926 = vor.u32 1.1754944e-38, %v3925
  %v3927 = vsel %vm3924, %v3926, %v3922
  %v3928 = vmul.f32 1.0, %v3927
  %v3929 = vrcp.pop %v3627
  %v3930 = vmul.f32 %v3627, %v3929
  %v3931 = vsub.f32 1.0, %v3930
  %v3932 = vmul.f32 %v3929, %v3931
  %v3933 = vadd.f32 %v3929, %v3932
  %vm3934 = vweird.f32 %v3627
  %vm3935 = vweird.f32 %v3929
  %vm3936 = vmor %vm3934, %vm3935
  %v3937 = vsel %vm3936, %v3929, %v3933
  %v3938 = vand.u32 2147483647, %v3627
  %vm3939 = vcmp.eq.f32.partialorder %v3938, 8.507059e+37
  %v3940 = vand.u32 %v3627, 2147483648
  %v3941 = vor.u32 1.1754944e-38, %v3940
  %v3942 = vsel %vm3939, %v3941, %v3937
  %v3943 = vmul.f32 1.0, %v3942
  %v3944 = vrcp.pop %v3628
  %v3945 = vmul.f32 %v3628, %v3944
  %v3946 = vsub.f32 1.0, %v3945
  %v3947 = vmul.f32 %v3944, %v3946
  %v3948 = vadd.f32 %v3944, %v3947
  %vm3949 = vweird.f32 %v3628
  %vm3950 = vweird.f32 %v3944
  %vm3951 = vmor %vm3949, %vm3950
  %v3952 = vsel %vm3951, %v3944, %v3948
  %v3953 = vand.u32 2147483647, %v3628
  %vm3954 = vcmp.eq.f32.partialorder %v3953, 8.507059e+37
  %v3955 = vand.u32 %v3628, 2147483648
  %v3956 = vor.u32 1.1754944e-38, %v3955
  %v3957 = vsel %vm3954, %v3956, %v3952
  %v3958 = vmul.f32 1.0, %v3957
  %v3959 = vrcp.pop %v3629
  %v3960 = vmul.f32 %v3629, %v3959
  %v3961 = vsub.f32 1.0, %v3960
  %v3962 = vmul.f32 %v3959, %v3961
  %v3963 = vadd.f32 %v3959, %v3962
  %vm3964 = vweird.f32 %v3629
  %vm3965 = vweird.f32 %v3959
  %vm3966 = vmor %vm3964, %vm3965
  %v3967 = vsel %vm3966, %v3959, %v3963
  %v3968 = vand.u32 2147483647, %v3629
  %vm3969 = vcmp.eq.f32.partialorder %v3968, 8.507059e+37
  %v3970 = vand.u32 %v3629, 2147483648
  %v3971 = vor.u32 1.1754944e-38, %v3970
  %v3972 = vsel %vm3969, %v3971, %v3967
  %v3973 = vmul.f32 1.0, %v3972
  %v3974 = vrcp.pop %v3630
  %v3975 = vmul.f32 %v3630, %v3974
  %v3976 = vsub.f32 1.0, %v3975
  %v3977 = vmul.f32 %v3974, %v3976
  %v3978 = vadd.f32 %v3974, %v3977
  %vm3979 = vweird.f32 %v3630
  %vm3980 = vweird.f32 %v3974
  %vm3981 = vmor %vm3979, %vm3980
  %v3982 = vsel %vm3981, %v3974, %v3978
  %v3983 = vand.u32 2147483647, %v3630
  %vm3984 = vcmp.eq.f32.partialorder %v3983, 8.507059e+37
  %v3985 = vand.u32 %v3630, 2147483648
  %v3986 = vor.u32 1.1754944e-38, %v3985
  %v3987 = vsel %vm3984, %v3986, %v3982
  %v3988 = vmul.f32 1.0, %v3987
  %v3989 = vrcp.pop %v3631
  %v3990 = vmul.f32 %v3631, %v3989
  %v3991 = vsub.f32 1.0, %v3990
  %v3992 = vmul.f32 %v3989, %v3991
  %v3993 = vadd.f32 %v3989, %v3992
  %vm3994 = vweird.f32 %v3631
  %vm3995 = vweird.f32 %v3989
  %vm3996 = vmor %vm3994, %vm3995
  %v3997 = vsel %vm3996, %v3989, %v3993
  %v3998 = vand.u32 2147483647, %v3631
  %vm3999 = vcmp.eq.f32.partialorder %v3998, 8.507059e+37
  %v4000 = vand.u32 %v3631, 2147483648
  %v4001 = vor.u32 1.1754944e-38, %v4000
  %v4002 = vsel %vm3999, %v4001, %v3997
  %v4003 = vmul.f32 1.0, %v4002
  %v4004 = vrcp.pop %v3632
  %v4005 = vmul.f32 %v3632, %v4004
  %v4006 = vsub.f32 1.0, %v4005
  %v4007 = vmul.f32 %v4004, %v4006
  %v4008 = vadd.f32 %v4004, %v4007
  %vm4009 = vweird.f32 %v3632
  %vm4010 = vweird.f32 %v4004
  %vm4011 = vmor %vm4009, %vm4010
  %v4012 = vsel %vm4011, %v4004, %v4008
  %v4013 = vand.u32 2147483647, %v3632
  %vm4014 = vcmp.eq.f32.partialorder %v4013, 8.507059e+37
  %v4015 = vand.u32 %v3632, 2147483648
  %v4016 = vor.u32 1.1754944e-38, %v4015
  %v4017 = vsel %vm4014, %v4016, %v4012
  %v4018 = vmul.f32 1.0, %v4017
  %v4019 = vrcp.pop %v3633
  %v4020 = vmul.f32 %v3633, %v4019
  %v4021 = vsub.f32 1.0, %v4020
  %v4022 = vmul.f32 %v4019, %v4021
  %v4023 = vadd.f32 %v4019, %v4022
  %vm4024 = vweird.f32 %v3633
  %vm4025 = vweird.f32 %v4019
  %vm4026 = vmor %vm4024, %vm4025
  %v4027 = vsel %vm4026, %v4019, %v4023
  %v4028 = vand.u32 2147483647, %v3633
  %vm4029 = vcmp.eq.f32.partialorder %v4028, 8.507059e+37
  %v4030 = vand.u32 %v3633, 2147483648
  %v4031 = vor.u32 1.1754944e-38, %v4030
  %v4032 = vsel %vm4029, %v4031, %v4027
  %v4033 = vmul.f32 1.0, %v4032
  %v4034 = vrcp.pop %v3634
  %v4035 = vmul.f32 %v3634, %v4034
  %v4036 = vsub.f32 1.0, %v4035
  %v4037 = vmul.f32 %v4034, %v4036
  %v4038 = vadd.f32 %v4034, %v4037
  %vm4039 = vweird.f32 %v3634
  %vm4040 = vweird.f32 %v4034
  %vm4041 = vmor %vm4039, %vm4040
  %v4042 = vsel %vm4041, %v4034, %v4038
  %v4043 = vand.u32 2147483647, %v3634
  %vm4044 = vcmp.eq.f32.partialorder %v4043, 8.507059e+37
  %v4045 = vand.u32 %v3634, 2147483648
  %v4046 = vor.u32 1.1754944e-38, %v4045
  %v4047 = vsel %vm4044, %v4046, %v4042
  %v4048 = vmul.f32 1.0, %v4047
  %v4049 = vrcp.pop %v3635
  %v4050 = vmul.f32 %v3635, %v4049
  %v4051 = vsub.f32 1.0, %v4050
  %v4052 = vmul.f32 %v4049, %v4051
  %v4053 = vadd.f32 %v4049, %v4052
  %vm4054 = vweird.f32 %v3635
  %vm4055 = vweird.f32 %v4049
  %vm4056 = vmor %vm4054, %vm4055
  %v4057 = vsel %vm4056, %v4049, %v4053
  %v4058 = vand.u32 2147483647, %v3635
  %vm4059 = vcmp.eq.f32.partialorder %v4058, 8.507059e+37
  %v4060 = vand.u32 %v3635, 2147483648
  %v4061 = vor.u32 1.1754944e-38, %v4060
  %v4062 = vsel %vm4059, %v4061, %v4057
  %v4063 = vmul.f32 1.0, %v4062
  %v4064 = vrcp.pop %v3636
  %v4065 = vmul.f32 %v3636, %v4064
  %v4066 = vsub.f32 1.0, %v4065
  %v4067 = vmul.f32 %v4064, %v4066
  %v4068 = vadd.f32 %v4064, %v4067
  %vm4069 = vweird.f32 %v3636
  %vm4070 = vweird.f32 %v4064
  %vm4071 = vmor %vm4069, %vm4070
  %v4072 = vsel %vm4071, %v4064, %v4068
  %v4073 = vand.u32 2147483647, %v3636
  %vm4074 = vcmp.eq.f32.partialorder %v4073, 8.507059e+37
  %v4075 = vand.u32 %v3636, 2147483648
  %v4076 = vor.u32 1.1754944e-38, %v4075
  %v4077 = vsel %vm4074, %v4076, %v4072
  %v4078 = vmul.f32 1.0, %v4077
  %v4079 = vrcp.pop %v3637
  %v4080 = vmul.f32 %v3637, %v4079
  %v4081 = vsub.f32 1.0, %v4080
  %v4082 = vmul.f32 %v4079, %v4081
  %v4083 = vadd.f32 %v4079, %v4082
  %vm4084 = vweird.f32 %v3637
  %vm4085 = vweird.f32 %v4079
  %vm4086 = vmor %vm4084, %vm4085
  %v4087 = vsel %vm4086, %v4079, %v4083
  %v4088 = vand.u32 2147483647, %v3637
  %vm4089 = vcmp.eq.f32.partialorder %v4088, 8.507059e+37
  %v4090 = vand.u32 %v3637, 2147483648
  %v4091 = vor.u32 1.1754944e-38, %v4090
  %v4092 = vsel %vm4089, %v4091, %v4087
  %v4093 = vmul.f32 1.0, %v4092
  %v4094 = vrcp.pop %v3638
  %v4095 = vmul.f32 %v3638, %v4094
  %v4096 = vsub.f32 1.0, %v4095
  %v4097 = vmul.f32 %v4094, %v4096
  %v4098 = vadd.f32 %v4094, %v4097
  %vm4099 = vweird.f32 %v3638
  %vm4100 = vweird.f32 %v4094
  %vm4101 = vmor %vm4099, %vm4100
  %v4102 = vsel %vm4101, %v4094, %v4098
  %v4103 = vand.u32 2147483647, %v3638
  %vm4104 = vcmp.eq.f32.partialorder %v4103, 8.507059e+37
  %v4105 = vand.u32 %v3638, 2147483648
  %v4106 = vor.u32 1.1754944e-38, %v4105
  %v4107 = vsel %vm4104, %v4106, %v4102
  %v4108 = vmul.f32 1.0, %v4107
  %v4109 = vrcp.pop %v3639
  %v4110 = vmul.f32 %v3639, %v4109
  %v4111 = vsub.f32 1.0, %v4110
  %v4112 = vmul.f32 %v4109, %v4111
  %v4113 = vadd.f32 %v4109, %v4112
  %vm4114 = vweird.f32 %v3639
  %vm4115 = vweird.f32 %v4109
  %vm4116 = vmor %vm4114, %vm4115
  %v4117 = vsel %vm4116, %v4109, %v4113
  %v4118 = vand.u32 2147483647, %v3639
  %vm4119 = vcmp.eq.f32.partialorder %v4118, 8.507059e+37
  %v4120 = vand.u32 %v3639, 2147483648
  %v4121 = vor.u32 1.1754944e-38, %v4120
  %v4122 = vsel %vm4119, %v4121, %v4117
  %v4123 = vmul.f32 1.0, %v4122
  %v4124 = vrcp.pop %v3640
  %v4125 = vmul.f32 %v3640, %v4124
  %v4126 = vsub.f32 1.0, %v4125
  %v4127 = vmul.f32 %v4124, %v4126
  %v4128 = vadd.f32 %v4124, %v4127
  %vm4129 = vweird.f32 %v3640
  %vm4130 = vweird.f32 %v4124
  %vm4131 = vmor %vm4129, %vm4130
  %v4132 = vsel %vm4131, %v4124, %v4128
  %v4133 = vand.u32 2147483647, %v3640
  %vm4134 = vcmp.eq.f32.partialorder %v4133, 8.507059e+37
  %v4135 = vand.u32 %v3640, 2147483648
  %v4136 = vor.u32 1.1754944e-38, %v4135
  %v4137 = vsel %vm4134, %v4136, %v4132
  %v4138 = vmul.f32 1.0, %v4137
  %v4139 = vrcp.pop %v3641
  %v4140 = vmul.f32 %v3641, %v4139
  %v4141 = vsub.f32 1.0, %v4140
  %v4142 = vmul.f32 %v4139, %v4141
  %v4143 = vadd.f32 %v4139, %v4142
  %vm4144 = vweird.f32 %v3641
  %vm4145 = vweird.f32 %v4139
  %vm4146 = vmor %vm4144, %vm4145
  %v4147 = vsel %vm4146, %v4139, %v4143
  %v4148 = vand.u32 2147483647, %v3641
  %vm4149 = vcmp.eq.f32.partialorder %v4148, 8.507059e+37
  %v4150 = vand.u32 %v3641, 2147483648
  %v4151 = vor.u32 1.1754944e-38, %v4150
  %v4152 = vsel %vm4149, %v4151, %v4147
  %v4153 = vmul.f32 1.0, %v4152
  %v4154 = vrcp.pop %v3642
  %v4155 = vmul.f32 %v3642, %v4154
  %v4156 = vsub.f32 1.0, %v4155
  %v4157 = vmul.f32 %v4154, %v4156
  %v4158 = vadd.f32 %v4154, %v4157
  %vm4159 = vweird.f32 %v3642
  %vm4160 = vweird.f32 %v4154
  %vm4161 = vmor %vm4159, %vm4160
  %v4162 = vsel %vm4161, %v4154, %v4158
  %v4163 = vand.u32 2147483647, %v3642
  %vm4164 = vcmp.eq.f32.partialorder %v4163, 8.507059e+37
  %v4165 = vand.u32 %v3642, 2147483648
  %v4166 = vor.u32 1.1754944e-38, %v4165
  %v4167 = vsel %vm4164, %v4166, %v4162
  %v4168 = vmul.f32 1.0, %v4167
  %v4169 = vrcp.pop %v3643
  %v4170 = vmul.f32 %v3643, %v4169
  %v4171 = vsub.f32 1.0, %v4170
  %v4172 = vmul.f32 %v4169, %v4171
  %v4173 = vadd.f32 %v4169, %v4172
  %vm4174 = vweird.f32 %v3643
  %vm4175 = vweird.f32 %v4169
  %vm4176 = vmor %vm4174, %vm4175
  %v4177 = vsel %vm4176, %v4169, %v4173
  %v4178 = vand.u32 2147483647, %v3643
  %vm4179 = vcmp.eq.f32.partialorder %v4178, 8.507059e+37
  %v4180 = vand.u32 %v3643, 2147483648
  %v4181 = vor.u32 1.1754944e-38, %v4180
  %v4182 = vsel %vm4179, %v4181, %v4177
  %v4183 = vmul.f32 1.0, %v4182
  %v4184 = vrcp.pop %v3644
  %v4185 = vmul.f32 %v3644, %v4184
  %v4186 = vsub.f32 1.0, %v4185
  %v4187 = vmul.f32 %v4184, %v4186
  %v4188 = vadd.f32 %v4184, %v4187
  %vm4189 = vweird.f32 %v3644
  %vm4190 = vweird.f32 %v4184
  %vm4191 = vmor %vm4189, %vm4190
  %v4192 = vsel %vm4191, %v4184, %v4188
  %v4193 = vand.u32 2147483647, %v3644
  %vm4194 = vcmp.eq.f32.partialorder %v4193, 8.507059e+37
  %v4195 = vand.u32 %v3644, 2147483648
  %v4196 = vor.u32 1.1754944e-38, %v4195
  %v4197 = vsel %vm4194, %v4196, %v4192
  %v4198 = vmul.f32 1.0, %v4197
  %v4199 = vrcp.pop %v3645
  %v4200 = vmul.f32 %v3645, %v4199
  %v4201 = vsub.f32 1.0, %v4200
  %v4202 = vmul.f32 %v4199, %v4201
  %v4203 = vadd.f32 %v4199, %v4202
  %vm4204 = vweird.f32 %v3645
  %vm4205 = vweird.f32 %v4199
  %vm4206 = vmor %vm4204, %vm4205
  %v4207 = vsel %vm4206, %v4199, %v4203
  %v4208 = vand.u32 2147483647, %v3645
  %vm4209 = vcmp.eq.f32.partialorder %v4208, 8.507059e+37
  %v4210 = vand.u32 %v3645, 2147483648
  %v4211 = vor.u32 1.1754944e-38, %v4210
  %v4212 = vsel %vm4209, %v4211, %v4207
  %v4213 = vmul.f32 1.0, %v4212
  %v4214 = vrcp.pop %v3646
  %v4215 = vmul.f32 %v3646, %v4214
  %v4216 = vsub.f32 1.0, %v4215
  %v4217 = vmul.f32 %v4214, %v4216
  %v4218 = vadd.f32 %v4214, %v4217
  %vm4219 = vweird.f32 %v3646
  %vm4220 = vweird.f32 %v4214
  %vm4221 = vmor %vm4219, %vm4220
  %v4222 = vsel %vm4221, %v4214, %v4218
  %v4223 = vand.u32 2147483647, %v3646
  %vm4224 = vcmp.eq.f32.partialorder %v4223, 8.507059e+37
  %v4225 = vand.u32 %v3646, 2147483648
  %v4226 = vor.u32 1.1754944e-38, %v4225
  %v4227 = vsel %vm4224, %v4226, %v4222
  %v4228 = vmul.f32 1.0, %v4227
  %v4229 = vrcp.pop %v3647
  %v4230 = vmul.f32 %v3647, %v4229
  %v4231 = vsub.f32 1.0, %v4230
  %v4232 = vmul.f32 %v4229, %v4231
  %v4233 = vadd.f32 %v4229, %v4232
  %vm4234 = vweird.f32 %v3647
  %vm4235 = vweird.f32 %v4229
  %vm4236 = vmor %vm4234, %vm4235
  %v4237 = vsel %vm4236, %v4229, %v4233
  %v4238 = vand.u32 2147483647, %v3647
  %vm4239 = vcmp.eq.f32.partialorder %v4238, 8.507059e+37
  %v4240 = vand.u32 %v3647, 2147483648
  %v4241 = vor.u32 1.1754944e-38, %v4240
  %v4242 = vsel %vm4239, %v4241, %v4237
  %v4243 = vmul.f32 1.0, %v4242
  %v4244 = vrcp.pop %v3648
  %v4245 = vmul.f32 %v3648, %v4244
  %v4246 = vsub.f32 1.0, %v4245
  %v4247 = vmul.f32 %v4244, %v4246
  %v4248 = vadd.f32 %v4244, %v4247
  %vm4249 = vweird.f32 %v3648
  %vm4250 = vweird.f32 %v4244
  %vm4251 = vmor %vm4249, %vm4250
  %v4252 = vsel %vm4251, %v4244, %v4248
  %v4253 = vand.u32 2147483647, %v3648
  %vm4254 = vcmp.eq.f32.partialorder %v4253, 8.507059e+37
  %v4255 = vand.u32 %v3648, 2147483648
  %v4256 = vor.u32 1.1754944e-38, %v4255
  %v4257 = vsel %vm4254, %v4256, %v4252
  %v4258 = vmul.f32 1.0, %v4257
  %v4259 = vrcp.pop %v3649
  %v4260 = vmul.f32 %v3649, %v4259
  %v4261 = vsub.f32 1.0, %v4260
  %v4262 = vmul.f32 %v4259, %v4261
  %v4263 = vadd.f32 %v4259, %v4262
  %vm4264 = vweird.f32 %v3649
  %vm4265 = vweird.f32 %v4259
  %vm4266 = vmor %vm4264, %vm4265
  %v4267 = vsel %vm4266, %v4259, %v4263
  %v4268 = vand.u32 2147483647, %v3649
  %vm4269 = vcmp.eq.f32.partialorder %v4268, 8.507059e+37
  %v4270 = vand.u32 %v3649, 2147483648
  %v4271 = vor.u32 1.1754944e-38, %v4270
  %v4272 = vsel %vm4269, %v4271, %v4267
  %v4273 = vmul.f32 1.0, %v4272
  %v4274 = vrcp.pop %v3650
  %v4275 = vmul.f32 %v3650, %v4274
  %v4276 = vsub.f32 1.0, %v4275
  %v4277 = vmul.f32 %v4274, %v4276
  %v4278 = vadd.f32 %v4274, %v4277
  %vm4279 = vweird.f32 %v3650
  %vm4280 = vweird.f32 %v4274
  %vm4281 = vmor %vm4279, %vm4280
  %v4282 = vsel %vm4281, %v4274, %v4278
  %v4283 = vand.u32 2147483647, %v3650
  %vm4284 = vcmp.eq.f32.partialorder %v4283, 8.507059e+37
  %v4285 = vand.u32 %v3650, 2147483648
  %v4286 = vor.u32 1.1754944e-38, %v4285
  %v4287 = vsel %vm4284, %v4286, %v4282
  %v4288 = vmul.f32 1.0, %v4287
  %v4289 = vrcp.pop %v3651
  %v4290 = vmul.f32 %v3651, %v4289
  %v4291 = vsub.f32 1.0, %v4290
  %v4292 = vmul.f32 %v4289, %v4291
  %v4293 = vadd.f32 %v4289, %v4292
  %vm4294 = vweird.f32 %v3651
  %vm4295 = vweird.f32 %v4289
  %vm4296 = vmor %vm4294, %vm4295
  %v4297 = vsel %vm4296, %v4289, %v4293
  %v4298 = vand.u32 2147483647, %v3651
  %vm4299 = vcmp.eq.f32.partialorder %v4298, 8.507059e+37
  %v4300 = vand.u32 %v3651, 2147483648
  %v4301 = vor.u32 1.1754944e-38, %v4300
  %v4302 = vsel %vm4299, %v4301, %v4297
  %v4303 = vmul.f32 1.0, %v4302
  %v4304 = vrcp.pop %v3652
  %v4305 = vmul.f32 %v3652, %v4304
  %v4306 = vsub.f32 1.0, %v4305
  %v4307 = vmul.f32 %v4304, %v4306
  %v4308 = vadd.f32 %v4304, %v4307
  %vm4309 = vweird.f32 %v3652
  %vm4310 = vweird.f32 %v4304
  %vm4311 = vmor %vm4309, %vm4310
  %v4312 = vsel %vm4311, %v4304, %v4308
  %v4313 = vand.u32 2147483647, %v3652
  %vm4314 = vcmp.eq.f32.partialorder %v4313, 8.507059e+37
  %v4315 = vand.u32 %v3652, 2147483648
  %v4316 = vor.u32 1.1754944e-38, %v4315
  %v4317 = vsel %vm4314, %v4316, %v4312
  %v4318 = vmul.f32 1.0, %v4317
  %v4319 = vrcp.pop %v3653
  %v4320 = vmul.f32 %v3653, %v4319
  %v4321 = vsub.f32 1.0, %v4320
  %v4322 = vmul.f32 %v4319, %v4321
  %v4323 = vadd.f32 %v4319, %v4322
  %vm4324 = vweird.f32 %v3653
  %vm4325 = vweird.f32 %v4319
  %vm4326 = vmor %vm4324, %vm4325
  %v4327 = vsel %vm4326, %v4319, %v4323
  %v4328 = vand.u32 2147483647, %v3653
  %vm4329 = vcmp.eq.f32.partialorder %v4328, 8.507059e+37
  %v4330 = vand.u32 %v3653, 2147483648
  %v4331 = vor.u32 1.1754944e-38, %v4330
  %v4332 = vsel %vm4329, %v4331, %v4327
  %v4333 = vmul.f32 1.0, %v4332
  %v4334 = vrcp.pop %v3654
  %v4335 = vmul.f32 %v3654, %v4334
  %v4336 = vsub.f32 1.0, %v4335
  %v4337 = vmul.f32 %v4334, %v4336
  %v4338 = vadd.f32 %v4334, %v4337
  %vm4339 = vweird.f32 %v3654
  %vm4340 = vweird.f32 %v4334
  %vm4341 = vmor %vm4339, %vm4340
  %v4342 = vsel %vm4341, %v4334, %v4338
  %v4343 = vand.u32 2147483647, %v3654
  %vm4344 = vcmp.eq.f32.partialorder %v4343, 8.507059e+37
  %v4345 = vand.u32 %v3654, 2147483648
  %v4346 = vor.u32 1.1754944e-38, %v4345
  %v4347 = vsel %vm4344, %v4346, %v4342
  %v4348 = vmul.f32 1.0, %v4347
  %v4349 = vrcp.pop %v3655
  %v4350 = vmul.f32 %v3655, %v4349
  %v4351 = vsub.f32 1.0, %v4350
  %v4352 = vmul.f32 %v4349, %v4351
  %v4353 = vadd.f32 %v4349, %v4352
  %vm4354 = vweird.f32 %v3655
  %vm4355 = vweird.f32 %v4349
  %vm4356 = vmor %vm4354, %vm4355
  %v4357 = vsel %vm4356, %v4349, %v4353
  %v4358 = vand.u32 2147483647, %v3655
  %vm4359 = vcmp.eq.f32.partialorder %v4358, 8.507059e+37
  %v4360 = vand.u32 %v3655, 2147483648
  %v4361 = vor.u32 1.1754944e-38, %v4360
  %v4362 = vsel %vm4359, %v4361, %v4357
  %v4363 = vmul.f32 1.0, %v4362
  %v4364 = vrcp.pop %v3656
  %v4365 = vmul.f32 %v3656, %v4364
  %v4366 = vsub.f32 1.0, %v4365
  %v4367 = vmul.f32 %v4364, %v4366
  %v4368 = vadd.f32 %v4364, %v4367
  %vm4369 = vweird.f32 %v3656
  %vm4370 = vweird.f32 %v4364
  %vm4371 = vmor %vm4369, %vm4370
  %v4372 = vsel %vm4371, %v4364, %v4368
  %v4373 = vand.u32 2147483647, %v3656
  %vm4374 = vcmp.eq.f32.partialorder %v4373, 8.507059e+37
  %v4375 = vand.u32 %v3656, 2147483648
  %v4376 = vor.u32 1.1754944e-38, %v4375
  %v4377 = vsel %vm4374, %v4376, %v4372
  %v4378 = vmul.f32 1.0, %v4377
  %v4379 = vrcp.pop %v3657
  %v4380 = vmul.f32 %v3657, %v4379
  %v4381 = vsub.f32 1.0, %v4380
  %v4382 = vmul.f32 %v4379, %v4381
  %v4383 = vadd.f32 %v4379, %v4382
  %vm4384 = vweird.f32 %v3657
  %vm4385 = vweird.f32 %v4379
  %vm4386 = vmor %vm4384, %vm4385
  %v4387 = vsel %vm4386, %v4379, %v4383
  %v4388 = vand.u32 2147483647, %v3657
  %vm4389 = vcmp.eq.f32.partialorder %v4388, 8.507059e+37
  %v4390 = vand.u32 %v3657, 2147483648
  %v4391 = vor.u32 1.1754944e-38, %v4390
  %v4392 = vsel %vm4389, %v4391, %v4387
  %v4393 = vmul.f32 1.0, %v4392
  %v4394 = vrcp.pop %v3658
  %v4395 = vmul.f32 %v3658, %v4394
  %v4396 = vsub.f32 1.0, %v4395
  %v4397 = vmul.f32 %v4394, %v4396
  %v4398 = vadd.f32 %v4394, %v4397
  %vm4399 = vweird.f32 %v3658
  %vm4400 = vweird.f32 %v4394
  %vm4401 = vmor %vm4399, %vm4400
  %v4402 = vsel %vm4401, %v4394, %v4398
  %v4403 = vand.u32 2147483647, %v3658
  %vm4404 = vcmp.eq.f32.partialorder %v4403, 8.507059e+37
  %v4405 = vand.u32 %v3658, 2147483648
  %v4406 = vor.u32 1.1754944e-38, %v4405
  %v4407 = vsel %vm4404, %v4406, %v4402
  %v4408 = vmul.f32 1.0, %v4407
  %v4409 = vrcp.pop %v3659
  %v4410 = vmul.f32 %v3659, %v4409
  %v4411 = vsub.f32 1.0, %v4410
  %v4412 = vmul.f32 %v4409, %v4411
  %v4413 = vadd.f32 %v4409, %v4412
  %vm4414 = vweird.f32 %v3659
  %vm4415 = vweird.f32 %v4409
  %vm4416 = vmor %vm4414, %vm4415
  %v4417 = vsel %vm4416, %v4409, %v4413
  %v4418 = vand.u32 2147483647, %v3659
  %vm4419 = vcmp.eq.f32.partialorder %v4418, 8.507059e+37
  %v4420 = vand.u32 %v3659, 2147483648
  %v4421 = vor.u32 1.1754944e-38, %v4420
  %v4422 = vsel %vm4419, %v4421, %v4417
  %v4423 = vmul.f32 1.0, %v4422
  %v4424 = vrcp.pop %v3660
  %v4425 = vmul.f32 %v3660, %v4424
  %v4426 = vsub.f32 1.0, %v4425
  %v4427 = vmul.f32 %v4424, %v4426
  %v4428 = vadd.f32 %v4424, %v4427
  %vm4429 = vweird.f32 %v3660
  %vm4430 = vweird.f32 %v4424
  %vm4431 = vmor %vm4429, %vm4430
  %v4432 = vsel %vm4431, %v4424, %v4428
  %v4433 = vand.u32 2147483647, %v3660
  %vm4434 = vcmp.eq.f32.partialorder %v4433, 8.507059e+37
  %v4435 = vand.u32 %v3660, 2147483648
  %v4436 = vor.u32 1.1754944e-38, %v4435
  %v4437 = vsel %vm4434, %v4436, %v4432
  %v4438 = vmul.f32 1.0, %v4437
  %v4439 = vrcp.pop %v3661
  %v4440 = vmul.f32 %v3661, %v4439
  %v4441 = vsub.f32 1.0, %v4440
  %v4442 = vmul.f32 %v4439, %v4441
  %v4443 = vadd.f32 %v4439, %v4442
  %vm4444 = vweird.f32 %v3661
  %vm4445 = vweird.f32 %v4439
  %vm4446 = vmor %vm4444, %vm4445
  %v4447 = vsel %vm4446, %v4439, %v4443
  %v4448 = vand.u32 2147483647, %v3661
  %vm4449 = vcmp.eq.f32.partialorder %v4448, 8.507059e+37
  %v4450 = vand.u32 %v3661, 2147483648
  %v4451 = vor.u32 1.1754944e-38, %v4450
  %v4452 = vsel %vm4449, %v4451, %v4447
  %v4453 = vmul.f32 1.0, %v4452
  %v4454 = vrcp.pop %v3662
  %v4455 = vmul.f32 %v3662, %v4454
  %v4456 = vsub.f32 1.0, %v4455
  %v4457 = vmul.f32 %v4454, %v4456
  %v4458 = vadd.f32 %v4454, %v4457
  %vm4459 = vweird.f32 %v3662
  %vm4460 = vweird.f32 %v4454
  %vm4461 = vmor %vm4459, %vm4460
  %v4462 = vsel %vm4461, %v4454, %v4458
  %v4463 = vand.u32 2147483647, %v3662
  %vm4464 = vcmp.eq.f32.partialorder %v4463, 8.507059e+37
  %v4465 = vand.u32 %v3662, 2147483648
  %v4466 = vor.u32 1.1754944e-38, %v4465
  %v4467 = vsel %vm4464, %v4466, %v4462
  %v4468 = vmul.f32 1.0, %v4467
  %v4469 = vrcp.pop %v3663
  %v4470 = vmul.f32 %v3663, %v4469
  %v4471 = vsub.f32 1.0, %v4470
  %v4472 = vmul.f32 %v4469, %v4471
  %v4473 = vadd.f32 %v4469, %v4472
  %vm4474 = vweird.f32 %v3663
  %vm4475 = vweird.f32 %v4469
  %vm4476 = vmor %vm4474, %vm4475
  %v4477 = vsel %vm4476, %v4469, %v4473
  %v4478 = vand.u32 2147483647, %v3663
  %vm4479 = vcmp.eq.f32.partialorder %v4478, 8.507059e+37
  %v4480 = vand.u32 %v3663, 2147483648
  %v4481 = vor.u32 1.1754944e-38, %v4480
  %v4482 = vsel %vm4479, %v4481, %v4477
  %v4483 = vmul.f32 1.0, %v4482
  %v4484 = vrcp.pop %v3664
  %v4485 = vmul.f32 %v3664, %v4484
  %v4486 = vsub.f32 1.0, %v4485
  %v4487 = vmul.f32 %v4484, %v4486
  %v4488 = vadd.f32 %v4484, %v4487
  %vm4489 = vweird.f32 %v3664
  %vm4490 = vweird.f32 %v4484
  %vm4491 = vmor %vm4489, %vm4490
  %v4492 = vsel %vm4491, %v4484, %v4488
  %v4493 = vand.u32 2147483647, %v3664
  %vm4494 = vcmp.eq.f32.partialorder %v4493, 8.507059e+37
  %v4495 = vand.u32 %v3664, 2147483648
  %v4496 = vor.u32 1.1754944e-38, %v4495
  %v4497 = vsel %vm4494, %v4496, %v4492
  %v4498 = vmul.f32 1.0, %v4497
  %v4499 = vrcp.pop %v3665
  %v4500 = vmul.f32 %v3665, %v4499
  %v4501 = vsub.f32 1.0, %v4500
  %v4502 = vmul.f32 %v4499, %v4501
  %v4503 = vadd.f32 %v4499, %v4502
  %vm4504 = vweird.f32 %v3665
  %vm4505 = vweird.f32 %v4499
  %vm4506 = vmor %vm4504, %vm4505
  %v4507 = vsel %vm4506, %v4499, %v4503
  %v4508 = vand.u32 2147483647, %v3665
  %vm4509 = vcmp.eq.f32.partialorder %v4508, 8.507059e+37
  %v4510 = vand.u32 %v3665, 2147483648
  %v4511 = vor.u32 1.1754944e-38, %v4510
  %v4512 = vsel %vm4509, %v4511, %v4507
  %v4513 = vmul.f32 1.0, %v4512
  %v4514 = vrcp.pop %v3666
  %v4515 = vmul.f32 %v3666, %v4514
  %v4516 = vsub.f32 1.0, %v4515
  %v4517 = vmul.f32 %v4514, %v4516
  %v4518 = vadd.f32 %v4514, %v4517
  %vm4519 = vweird.f32 %v3666
  %vm4520 = vweird.f32 %v4514
  %vm4521 = vmor %vm4519, %vm4520
  %v4522 = vsel %vm4521, %v4514, %v4518
  %v4523 = vand.u32 2147483647, %v3666
  %vm4524 = vcmp.eq.f32.partialorder %v4523, 8.507059e+37
  %v4525 = vand.u32 %v3666, 2147483648
  %v4526 = vor.u32 1.1754944e-38, %v4525
  %v4527 = vsel %vm4524, %v4526, %v4522
  %v4528 = vmul.f32 1.0, %v4527
  %v4529 = vrcp.pop %v3667
  %v4530 = vmul.f32 %v3667, %v4529
  %v4531 = vsub.f32 1.0, %v4530
  %v4532 = vmul.f32 %v4529, %v4531
  %v4533 = vadd.f32 %v4529, %v4532
  %vm4534 = vweird.f32 %v3667
  %vm4535 = vweird.f32 %v4529
  %vm4536 = vmor %vm4534, %vm4535
  %v4537 = vsel %vm4536, %v4529, %v4533
  %v4538 = vand.u32 2147483647, %v3667
  %vm4539 = vcmp.eq.f32.partialorder %v4538, 8.507059e+37
  %v4540 = vand.u32 %v3667, 2147483648
  %v4541 = vor.u32 1.1754944e-38, %v4540
  %v4542 = vsel %vm4539, %v4541, %v4537
  %v4543 = vmul.f32 1.0, %v4542
  %v4544 = vrcp.pop %v3668
  %v4545 = vmul.f32 %v3668, %v4544
  %v4546 = vsub.f32 1.0, %v4545
  %v4547 = vmul.f32 %v4544, %v4546
  %v4548 = vadd.f32 %v4544, %v4547
  %vm4549 = vweird.f32 %v3668
  %vm4550 = vweird.f32 %v4544
  %vm4551 = vmor %vm4549, %vm4550
  %v4552 = vsel %vm4551, %v4544, %v4548
  %v4553 = vand.u32 2147483647, %v3668
  %vm4554 = vcmp.eq.f32.partialorder %v4553, 8.507059e+37
  %v4555 = vand.u32 %v3668, 2147483648
  %v4556 = vor.u32 1.1754944e-38, %v4555
  %v4557 = vsel %vm4554, %v4556, %v4552
  %v4558 = vmul.f32 1.0, %v4557
  %v4559 = vrcp.pop %v3669
  %v4560 = vmul.f32 %v3669, %v4559
  %v4561 = vsub.f32 1.0, %v4560
  %v4562 = vmul.f32 %v4559, %v4561
  %v4563 = vadd.f32 %v4559, %v4562
  %vm4564 = vweird.f32 %v3669
  %vm4565 = vweird.f32 %v4559
  %vm4566 = vmor %vm4564, %vm4565
  %v4567 = vsel %vm4566, %v4559, %v4563
  %v4568 = vand.u32 2147483647, %v3669
  %vm4569 = vcmp.eq.f32.partialorder %v4568, 8.507059e+37
  %v4570 = vand.u32 %v3669, 2147483648
  %v4571 = vor.u32 1.1754944e-38, %v4570
  %v4572 = vsel %vm4569, %v4571, %v4567
  %v4573 = vmul.f32 1.0, %v4572
  %v4574 = vrcp.pop %v3670
  %v4575 = vmul.f32 %v3670, %v4574
  %v4576 = vsub.f32 1.0, %v4575
  %v4577 = vmul.f32 %v4574, %v4576
  %v4578 = vadd.f32 %v4574, %v4577
  %vm4579 = vweird.f32 %v3670
  %vm4580 = vweird.f32 %v4574
  %vm4581 = vmor %vm4579, %vm4580
  %v4582 = vsel %vm4581, %v4574, %v4578
  %v4583 = vand.u32 2147483647, %v3670
  %vm4584 = vcmp.eq.f32.partialorder %v4583, 8.507059e+37
  %v4585 = vand.u32 %v3670, 2147483648
  %v4586 = vor.u32 1.1754944e-38, %v4585
  %v4587 = vsel %vm4584, %v4586, %v4582
  %v4588 = vmul.f32 1.0, %v4587
  %v4589 = vrcp.pop %v3671
  %v4590 = vmul.f32 %v3671, %v4589
  %v4591 = vsub.f32 1.0, %v4590
  %v4592 = vmul.f32 %v4589, %v4591
  %v4593 = vadd.f32 %v4589, %v4592
  %vm4594 = vweird.f32 %v3671
  %vm4595 = vweird.f32 %v4589
  %vm4596 = vmor %vm4594, %vm4595
  %v4597 = vsel %vm4596, %v4589, %v4593
  %v4598 = vand.u32 2147483647, %v3671
  %vm4599 = vcmp.eq.f32.partialorder %v4598, 8.507059e+37
  %v4600 = vand.u32 %v3671, 2147483648
  %v4601 = vor.u32 1.1754944e-38, %v4600
  %v4602 = vsel %vm4599, %v4601, %v4597
  %v4603 = vmul.f32 1.0, %v4602
  %v4604 = vrcp.pop %v3672
  %v4605 = vmul.f32 %v3672, %v4604
  %v4606 = vsub.f32 1.0, %v4605
  %v4607 = vmul.f32 %v4604, %v4606
  %v4608 = vadd.f32 %v4604, %v4607
  %vm4609 = vweird.f32 %v3672
  %vm4610 = vweird.f32 %v4604
  %vm4611 = vmor %vm4609, %vm4610
  %v4612 = vsel %vm4611, %v4604, %v4608
  %v4613 = vand.u32 2147483647, %v3672
  %vm4614 = vcmp.eq.f32.partialorder %v4613, 8.507059e+37
  %v4615 = vand.u32 %v3672, 2147483648
  %v4616 = vor.u32 1.1754944e-38, %v4615
  %v4617 = vsel %vm4614, %v4616, %v4612
  %v4618 = vmul.f32 1.0, %v4617
  %v4619 = vrcp.pop %v3673
  %v4620 = vmul.f32 %v3673, %v4619
  %v4621 = vsub.f32 1.0, %v4620
  %v4622 = vmul.f32 %v4619, %v4621
  %v4623 = vadd.f32 %v4619, %v4622
  %vm4624 = vweird.f32 %v3673
  %vm4625 = vweird.f32 %v4619
  %vm4626 = vmor %vm4624, %vm4625
  %v4627 = vsel %vm4626, %v4619, %v4623
  %v4628 = vand.u32 2147483647, %v3673
  %vm4629 = vcmp.eq.f32.partialorder %v4628, 8.507059e+37
  %v4630 = vand.u32 %v3673, 2147483648
  %v4631 = vor.u32 1.1754944e-38, %v4630
  %v4632 = vsel %vm4629, %v4631, %v4627
  %v4633 = vmul.f32 1.0, %v4632
  %4634 = vst [vmem:[%s3] sm:$0xff] %v3688
  %4635 = vst [vmem:[%s3 + $0x8] sm:$0xff] %v3703
  %4636 = vst [vmem:[%s3 + $0x10] sm:$0xff] %v3718
  %4637 = vst [vmem:[%s3 + $0x18] sm:$0xff] %v3733
  %4638 = vst [vmem:[%s3 + $0x20] sm:$0xff] %v3748
  %4639 = vst [vmem:[%s3 + $0x28] sm:$0xff] %v3763
  %4640 = vst [vmem:[%s3 + $0x30] sm:$0xff] %v3778
  %4641 = vst [vmem:[%s3 + $0x38] sm:$0xff] %v3793
  %4642 = vst [vmem:[%s3 + $0x40] sm:$0xff] %v3808
  %4643 = vst [vmem:[%s3 + $0x48] sm:$0xff] %v3823
  %4644 = vst [vmem:[%s3 + $0x50] sm:$0xff] %v3838
  %4645 = vst [vmem:[%s3 + $0x58] sm:$0xff] %v3853
  %4646 = vst [vmem:[%s3 + $0x60] sm:$0xff] %v3868
  %4647 = vst [vmem:[%s3 + $0x68] sm:$0xff] %v3883
  %4648 = vst [vmem:[%s3 + $0x70] sm:$0xff] %v3898
  %4649 = vst [vmem:[%s3 + $0x78] sm:$0xff] %v3913
  %4650 = vst [vmem:[%s3 + $0x80] sm:$0xff] %v3928
  %4651 = vst [vmem:[%s3 + $0x88] sm:$0xff] %v3943
  %4652 = vst [vmem:[%s3 + $0x90] sm:$0xff] %v3958
  %4653 = vst [vmem:[%s3 + $0x98] sm:$0xff] %v3973
  %4654 = vst [vmem:[%s3 + $0xa0] sm:$0xff] %v3988
  %4655 = vst [vmem:[%s3 + $0xa8] sm:$0xff] %v4003
  %4656 = vst [vmem:[%s3 + $0xb0] sm:$0xff] %v4018
  %4657 = vst [vmem:[%s3 + $0xb8] sm:$0xff] %v4033
  %4658 = vst [vmem:[%s3 + $0xc0] sm:$0xff] %v4048
  %4659 = vst [vmem:[%s3 + $0xc8] sm:$0xff] %v4063
  %4660 = vst [vmem:[%s3 + $0xd0] sm:$0xff] %v4078
  %4661 = vst [vmem:[%s3 + $0xd8] sm:$0xff] %v4093
  %4662 = vst [vmem:[%s3 + $0xe0] sm:$0xff] %v4108
  %4663 = vst [vmem:[%s3 + $0xe8] sm:$0xff] %v4123
  %4664 = vst [vmem:[%s3 + $0xf0] sm:$0xff] %v4138
  %4665 = vst [vmem:[%s3 + $0xf8] sm:$0xff] %v4153
  %4666 = vst [vmem:[%s3 + $0x100] sm:$0xff] %v4168
  %4667 = vst [vmem:[%s3 + $0x108] sm:$0xff] %v4183
  %4668 = vst [vmem:[%s3 + $0x110] sm:$0xff] %v4198
  %4669 = vst [vmem:[%s3 + $0x118] sm:$0xff] %v4213
  %4670 = vst [vmem:[%s3 + $0x120] sm:$0xff] %v4228
  %4671 = vst [vmem:[%s3 + $0x128] sm:$0xff] %v4243
  %4672 = vst [vmem:[%s3 + $0x130] sm:$0xff] %v4258
  %4673 = vst [vmem:[%s3 + $0x138] sm:$0xff] %v4273
  %4674 = vst [vmem:[%s3 + $0x140] sm:$0xff] %v4288
  %4675 = vst [vmem:[%s3 + $0x148] sm:$0xff] %v4303
  %4676 = vst [vmem:[%s3 + $0x150] sm:$0xff] %v4318
  %4677 = vst [vmem:[%s3 + $0x158] sm:$0xff] %v4333
  %4678 = vst [vmem:[%s3 + $0x160] sm:$0xff] %v4348
  %4679 = vst [vmem:[%s3 + $0x168] sm:$0xff] %v4363
  %4680 = vst [vmem:[%s3 + $0x170] sm:$0xff] %v4378
  %4681 = vst [vmem:[%s3 + $0x178] sm:$0xff] %v4393
  %4682 = vst [vmem:[%s3 + $0x180] sm:$0xff] %v4408
  %4683 = vst [vmem:[%s3 + $0x188] sm:$0xff] %v4423
  %4684 = vst [vmem:[%s3 + $0x190] sm:$0xff] %v4438
  %4685 = vst [vmem:[%s3 + $0x198] sm:$0xff] %v4453
  %4686 = vst [vmem:[%s3 + $0x1a0] sm:$0xff] %v4468
  %4687 = vst [vmem:[%s3 + $0x1a8] sm:$0xff] %v4483
  %4688 = vst [vmem:[%s3 + $0x1b0] sm:$0xff] %v4498
  %4689 = vst [vmem:[%s3 + $0x1b8] sm:$0xff] %v4513
  %4690 = vst [vmem:[%s3 + $0x1c0] sm:$0xff] %v4528
  %4691 = vst [vmem:[%s3 + $0x1c8] sm:$0xff] %v4543
  %4692 = vst [vmem:[%s3 + $0x1d0] sm:$0xff] %v4558
  %4693 = vst [vmem:[%s3 + $0x1d8] sm:$0xff] %v4573
  %4694 = vst [vmem:[%s3 + $0x1e0] sm:$0xff] %v4588
  %4695 = vst [vmem:[%s3 + $0x1e8] sm:$0xff] %v4603
  %4696 = vst [vmem:[%s3 + $0x1f0] sm:$0xff] %v4618
  %4697 = vst [vmem:[%s3 + $0x1f8] sm:$0xff] %v4633
  // Predicated region
  $region14: #{vae_forward.7} parent=0 // pred_check
    _
  $region15: #{vae_forward.7} parent=0 // pred_check_branch
    %4699 = sbr.rel (0) target = $region17
  $region16: #{vae_forward.7} parent=0 // pred_region
    _
  $region17: #{vae_forward.7} parent=0 // pred_fallthru
    _
  // Predicated region
  $region18: #{vae_forward.7} parent=0 // pred_check
    _
  $region19: #{vae_forward.7} parent=0 // pred_check_branch
    %4701 = sbr.rel (0) target = $region21
  $region20: #{vae_forward.7} parent=0 // pred_region
    _
  $region21: #{vae_forward.7} parent=0 // pred_fallthru
    _

</llo_original>
